<compile_context>
chip_gen: v7x
topology: tpu7x:2x2x1
jax: 0.10.0
libtpu: 0.0.40
codegen_flags: <defaults>
</compile_context>

<pallas_src>
import numpy as np
import jax
import jax.numpy as jnp
from jax.experimental import pallas as pl
from jax.experimental.pallas import tpu as pltpu

BATCH = 2
CHANNELS = 3
IMG_SIZE = 16
DS_SIZE = IMG_SIZE // (2 ** 4)          # 1
EPS = 1e-5                              # TODO(synk): unknown opt.eps -> torch default
LRELU_SLOPE = 0.2

# (Cin, Cout, H_in, has_batchnorm) for the four discriminator blocks.
_LAYERS = [
    (CHANNELS, 16, IMG_SIZE,      False),
    (16,       32, IMG_SIZE // 2, True),
    (32,       64, IMG_SIZE // 4, True),
    (64,      128, IMG_SIZE // 8, True),
]


# ---------------------------------------------------------------------------
# 0/1 gather matrices: (G[t] @ x_flat) selects, for every output pixel, the
# input pixel hit by conv tap t = ky*3+kx (stride 2, pad 1). Rows whose tap
# lands in the zero padding stay all-zero. Block-diagonal over the batch so a
# single matmul handles all batch elements (rows are batch-major, row-major).
# ---------------------------------------------------------------------------
def _build_gather(batch, h_in, w_in):
    h_out, w_out = h_in // 2, w_in // 2
    n_out, n_in = batch * h_out * w_out, batch * h_in * w_in
    g = np.zeros((9, n_out, n_in), np.float32)
    for ky in range(3):
        for kx in range(3):
            t = ky * 3 + kx
            for b in range(batch):
                for ho in range(h_out):
                    hi = 2 * ho + ky - 1
                    if not (0 <= hi < h_in):
                        continue
                    for wo in range(w_out):
                        wi = 2 * wo + kx - 1
                        if 0 <= wi < w_in:
                            g[t,
                              b * h_out * w_out + ho * w_out + wo,
                              b * h_in * w_in + hi * w_in + wi] = 1.0
    return jnp.asarray(g)


def build_gathers(batch):
    return tuple(_build_gather(batch, hin, hin) for (_, _, hin, _) in _LAYERS)


# ---------------------------------------------------------------------------
# Fused kernel: 4 x (strided conv + LeakyReLU + optional train-mode BN) + Linear
# ---------------------------------------------------------------------------
def _conv_block(a, g_ref, w_ref, b_ref, bn_refs):
    """a: (B*Hi*Wi, Cin) VMEM-resident activation -> (B*Ho*Wo, Cout)."""
    n_out = g_ref.shape[1]
    c_out = w_ref.shape[2]
    acc = jnp.zeros((n_out, c_out), jnp.float32)
    for t in range(9):  # 9 taps: gather matmul (im2col) + weight matmul, f32 acc
        patch = jnp.dot(g_ref[t], a, preferred_element_type=jnp.float32)
        acc = acc + jnp.dot(patch, w_ref[t], preferred_element_type=jnp.float32)
    acc = acc + b_ref[...]
    # Module order is Conv -> LeakyReLU -> BatchNorm.
    acc = jnp.where(acc >= 0.0, acc, LRELU_SLOPE * acc)
    if bn_refs is not None:
        gamma_ref, beta_ref = bn_refs
        mean = jnp.mean(acc, axis=0, keepdims=True)        # over (B, H, W)
        cen = acc - mean
        var = jnp.mean(cen * cen, axis=0, keepdims=True)   # biased, like torch
        acc = cen * jax.lax.rsqrt(var + EPS) * gamma_ref[...] + beta_ref[...]
    return acc


def _disc_kernel(x_ref,
                 g1_ref, w1_ref, c1_ref,
                 g2_ref, w2_ref, c2_ref, gam2_ref, bet2_ref,
                 g3_ref, w3_ref, c3_ref, gam3_ref, bet3_ref,
                 g4_ref, w4_ref, c4_ref, gam4_ref, bet4_ref,
                 lw_ref, lb_ref,
                 out_ref):
    a = x_ref[...]                                                     # (B*16*16, 3)
    a = _conv_block(a, g1_ref, w1_ref, c1_ref, None)                   # (B*64, 16)
    a = _conv_block(a, g2_ref, w2_ref, c2_ref, (gam2_ref, bet2_ref))   # (B*16, 32)
    a = _conv_block(a, g3_ref, w3_ref, c3_ref, (gam3_ref, bet3_ref))   # (B*4,  64)
    a = _conv_block(a, g4_ref, w4_ref, c4_ref, (gam4_ref, bet4_ref))   # (B,   128)
    out_ref[...] = (jnp.dot(a, lw_ref[...], preferred_element_type=jnp.float32)
                    + lb_ref[...])                                     # (B, 1)


def _full_spec(shape):
    zeros = (0,) * len(shape)
    return pl.BlockSpec(shape, lambda i, _z=zeros: _z)


def discriminator_forward(img, params, gathers):
    """img: (B, C, H, W) float32 NCHW (matching the PyTorch module)."""
    batch, chan, h, w = img.shape
    # Single input layout prep (NCHW -> (B*H*W, C)); everything else is in-kernel.
    x = jnp.transpose(img, (0, 2, 3, 1)).reshape(batch * h * w, chan)

    operands = [x]
    for i, (cin, cout, _hin, bn) in enumerate(_LAYERS):
        idx = i + 1
        operands.append(gathers[i])                                    # (9, No, Ni)
        operands.append(params[f"cw{idx}"].reshape(9, cin, cout))      # HWIO -> taps
        operands.append(params[f"cb{idx}"].reshape(1, cout))
        if bn:
            operands.append(params[f"bn{idx}_g"].reshape(1, cout))
            operands.append(params[f"bn{idx}_b"].reshape(1, cout))
    operands.append(params["lw"])                                      # (128, 1)
    operands.append(params["lb"].reshape(1, 1))

    return pl.pallas_call(
        _disc_kernel,
        out_shape=jax.ShapeDtypeStruct((batch, 1), jnp.float32),
        grid=(1,),
        in_specs=[_full_spec(o.shape) for o in operands],
        out_specs=_full_spec((batch, 1)),
        compiler_params=pltpu.CompilerParams(
            dimension_semantics=("arbitrary",)),
    )(*operands)


# ---------------------------------------------------------------------------
# Pure-JAX reference (for a sanity check)
# ---------------------------------------------------------------------------
def _reference_forward(img, p):
    x = jnp.transpose(img, (0, 2, 3, 1))

    def block(x, wkey, bkey, bn=None):
        y = jax.lax.conv_general_dilated(
            x, p[wkey], (2, 2), ((1, 1), (1, 1)),
            dimension_numbers=("NHWC", "HWIO", "NHWC"),
            precision=jax.lax.Precision.HIGHEST) + p[bkey]
        y = jnp.where(y >= 0, y, LRELU_SLOPE * y)
        if bn is not None:
            g, b = p[bn + "_g"], p[bn + "_b"]
            m = y.mean(axis=(0, 1, 2), keepdims=True)
            v = ((y - m) ** 2).mean(axis=(0, 1, 2), keepdims=True)
            y = (y - m) / jnp.sqrt(v + EPS) * g + b
        return y

    x = block(x, "cw1", "cb1")
    x = block(x, "cw2", "cb2", "bn2")
    x = block(x, "cw3", "cb3", "bn3")
    x = block(x, "cw4", "cb4", "bn4")
    x = x.reshape(x.shape[0], -1)       # ds_size == 1 -> NHWC/NCHW flatten coincide
    return jnp.dot(x, p["lw"], precision=jax.lax.Precision.HIGHEST) + p["lb"]


def init_params(key):
    ks = jax.random.split(key, 10)
    s = 0.05
    return {
        "cw1": jax.random.normal(ks[0], (3, 3, CHANNELS, 16), jnp.float32) * s,
        "cb1": jax.random.normal(ks[1], (16,), jnp.float32) * s,
        "cw2": jax.random.normal(ks[2], (3, 3, 16, 32), jnp.float32) * s,
        "cb2": jax.random.normal(ks[3], (32,), jnp.float32) * s,
        "cw3": jax.random.normal(ks[4], (3, 3, 32, 64), jnp.float32) * s,
        "cb3": jax.random.normal(ks[5], (64,), jnp.float32) * s,
        "cw4": jax.random.normal(ks[6], (3, 3, 64, 128), jnp.float32) * s,
        "cb4": jax.random.normal(ks[7], (128,), jnp.float32) * s,
        "lw": jax.random.normal(ks[8], (128 * DS_SIZE ** 2, 1), jnp.float32) * s,
        "lb": jax.random.normal(ks[9], (1,), jnp.float32) * s,
        # BatchNorm affine params: PyTorch default init (gamma=1, beta=0)
        "bn2_g": jnp.ones((32,), jnp.float32), "bn2_b": jnp.zeros((32,), jnp.float32),
        "bn3_g": jnp.ones((64,), jnp.float32), "bn3_b": jnp.zeros((64,), jnp.float32),
        "bn4_g": jnp.ones((128,), jnp.float32), "bn4_b": jnp.zeros((128,), jnp.float32),
    }


if __name__ == "__main__":
    key = jax.random.PRNGKey(0)
    pkey, ikey = jax.random.split(key)
    params = init_params(pkey)
    img = jax.random.normal(ikey, (BATCH, CHANNELS, IMG_SIZE, IMG_SIZE), jnp.float32)
    gathers = build_gathers(BATCH)

    fwd = jax.jit(discriminator_forward)
    validity = jax.block_until_ready(fwd(img, params, gathers))

    assert validity.shape == (BATCH, 1), validity.shape
    assert bool(jnp.all(jnp.isfinite(validity)))

    ref = _reference_forward(img, params)
    assert bool(jnp.allclose(validity, ref, atol=2e-2, rtol=2e-2)), (
        float(jnp.max(jnp.abs(validity - ref))))

    print("KERNEL_OK")
</pallas_src>

<mosaic_0001>
module attributes {stable_mosaic.version = 11 : i64} {
  func.func @_disc_kernel(%arg0: i32, %arg1: memref<512x3xf32, #tpu.memory_space<vmem>>, %arg2: memref<9x128x512xf32, #tpu.memory_space<vmem>>, %arg3: memref<9x3x16xf32, #tpu.memory_space<vmem>>, %arg4: memref<1x16xf32, #tpu.memory_space<vmem>>, %arg5: memref<9x32x128xf32, #tpu.memory_space<vmem>>, %arg6: memref<9x16x32xf32, #tpu.memory_space<vmem>>, %arg7: memref<1x32xf32, #tpu.memory_space<vmem>>, %arg8: memref<1x32xf32, #tpu.memory_space<vmem>>, %arg9: memref<1x32xf32, #tpu.memory_space<vmem>>, %arg10: memref<9x8x32xf32, #tpu.memory_space<vmem>>, %arg11: memref<9x32x64xf32, #tpu.memory_space<vmem>>, %arg12: memref<1x64xf32, #tpu.memory_space<vmem>>, %arg13: memref<1x64xf32, #tpu.memory_space<vmem>>, %arg14: memref<1x64xf32, #tpu.memory_space<vmem>>, %arg15: memref<9x2x8xf32, #tpu.memory_space<vmem>>, %arg16: memref<9x64x128xf32, #tpu.memory_space<vmem>>, %arg17: memref<1x128xf32, #tpu.memory_space<vmem>>, %arg18: memref<1x128xf32, #tpu.memory_space<vmem>>, %arg19: memref<1x128xf32, #tpu.memory_space<vmem>>, %arg20: memref<128x1xf32, #tpu.memory_space<vmem>>, %arg21: memref<1x1xf32, #tpu.memory_space<vmem>>, %arg22: memref<2x1xf32, #tpu.memory_space<vmem>>) attributes {dimension_semantics = [#tpu.dimension_semantics<arbitrary>], iteration_bounds = array<i64: 1>, scalar_prefetch = 0 : i64, scratch_operands = 0 : i64, tpu.core_type = #tpu.core_type<tc>, window_params = [{pipeline_mode = #tpu.pipeline_mode<synchronous>, transform_indices = @transform_0, window_bounds = array<i64: 512, 3>}, {pipeline_mode = #tpu.pipeline_mode<synchronous>, transform_indices = @transform_1, window_bounds = array<i64: 9, 128, 512>}, {pipeline_mode = #tpu.pipeline_mode<synchronous>, transform_indices = @transform_2, window_bounds = array<i64: 9, 3, 16>}, {pipeline_mode = #tpu.pipeline_mode<synchronous>, transform_indices = @transform_3, window_bounds = array<i64: 1, 16>}, {pipeline_mode = #tpu.pipeline_mode<synchronous>, transform_indices = @transform_4, window_bounds = array<i64: 9, 32, 128>}, {pipeline_mode = #tpu.pipeline_mode<synchronous>, transform_indices = @transform_5, window_bounds = array<i64: 9, 16, 32>}, {pipeline_mode = #tpu.pipeline_mode<synchronous>, transform_indices = @transform_6, window_bounds = array<i64: 1, 32>}, {pipeline_mode = #tpu.pipeline_mode<synchronous>, transform_indices = @transform_7, window_bounds = array<i64: 1, 32>}, {pipeline_mode = #tpu.pipeline_mode<synchronous>, transform_indices = @transform_8, window_bounds = array<i64: 1, 32>}, {pipeline_mode = #tpu.pipeline_mode<synchronous>, transform_indices = @transform_9, window_bounds = array<i64: 9, 8, 32>}, {pipeline_mode = #tpu.pipeline_mode<synchronous>, transform_indices = @transform_10, window_bounds = array<i64: 9, 32, 64>}, {pipeline_mode = #tpu.pipeline_mode<synchronous>, transform_indices = @transform_11, window_bounds = array<i64: 1, 64>}, {pipeline_mode = #tpu.pipeline_mode<synchronous>, transform_indices = @transform_12, window_bounds = array<i64: 1, 64>}, {pipeline_mode = #tpu.pipeline_mode<synchronous>, transform_indices = @transform_13, window_bounds = array<i64: 1, 64>}, {pipeline_mode = #tpu.pipeline_mode<synchronous>, transform_indices = @transform_14, window_bounds = array<i64: 9, 2, 8>}, {pipeline_mode = #tpu.pipeline_mode<synchronous>, transform_indices = @transform_15, window_bounds = array<i64: 9, 64, 128>}, {pipeline_mode = #tpu.pipeline_mode<synchronous>, transform_indices = @transform_16, window_bounds = array<i64: 1, 128>}, {pipeline_mode = #tpu.pipeline_mode<synchronous>, transform_indices = @transform_17, window_bounds = array<i64: 1, 128>}, {pipeline_mode = #tpu.pipeline_mode<synchronous>, transform_indices = @transform_18, window_bounds = array<i64: 1, 128>}, {pipeline_mode = #tpu.pipeline_mode<synchronous>, transform_indices = @transform_19, window_bounds = array<i64: 128, 1>}, {pipeline_mode = #tpu.pipeline_mode<synchronous>, transform_indices = @transform_20, window_bounds = array<i64: 1, 1>}, {pipeline_mode = #tpu.pipeline_mode<synchronous>, transform_indices = @transform_21, window_bounds = array<i64: 2, 1>}]} {
    %c0 = arith.constant 0 : index
    %c0_0 = arith.constant 0 : index
    %0 = vector.load %arg1[%c0, %c0_0] : memref<512x3xf32, #tpu.memory_space<vmem>>, vector<512x3xf32>
    %cst = arith.constant 0.000000e+00 : f32
    %1 = vector.broadcast %cst : f32 to vector<128x16xf32>
    %c0_1 = arith.constant 0 : index
    %c0_2 = arith.constant 0 : index
    %c0_3 = arith.constant 0 : index
    %2 = vector.load %arg2[%c0_1, %c0_2, %c0_3] : memref<9x128x512xf32, #tpu.memory_space<vmem>>, vector<1x128x512xf32>
    %3 = vector.shape_cast %2 : vector<1x128x512xf32> to vector<128x512xf32>
    %cst_4 = arith.constant dense<0.000000e+00> : vector<128x3xf32>
    %4 = tpu.matmul %3, %0, %cst_4 {dimension_numbers = #tpu.dot_dimension_numbers<[1], [0], [0], [1], [0, 0, 1, 1], [], []>} : vector<128x512xf32>, vector<512x3xf32>, vector<128x3xf32> -> vector<128x3xf32>
    %c0_5 = arith.constant 0 : index
    %c0_6 = arith.constant 0 : index
    %c0_7 = arith.constant 0 : index
    %5 = vector.load %arg3[%c0_5, %c0_6, %c0_7] : memref<9x3x16xf32, #tpu.memory_space<vmem>>, vector<1x3x16xf32>
    %6 = vector.shape_cast %5 : vector<1x3x16xf32> to vector<3x16xf32>
    %cst_8 = arith.constant dense<0.000000e+00> : vector<128x16xf32>
    %7 = tpu.matmul %4, %6, %cst_8 {dimension_numbers = #tpu.dot_dimension_numbers<[1], [0], [0], [1], [0, 0, 1, 1], [], []>} : vector<128x3xf32>, vector<3x16xf32>, vector<128x16xf32> -> vector<128x16xf32>
    %8 = arith.addf %1, %7 : vector<128x16xf32>
    %c1 = arith.constant 1 : index
    %c0_9 = arith.constant 0 : index
    %c0_10 = arith.constant 0 : index
    %9 = vector.load %arg2[%c1, %c0_9, %c0_10] : memref<9x128x512xf32, #tpu.memory_space<vmem>>, vector<1x128x512xf32>
    %10 = vector.shape_cast %9 : vector<1x128x512xf32> to vector<128x512xf32>
    %cst_11 = arith.constant dense<0.000000e+00> : vector<128x3xf32>
    %11 = tpu.matmul %10, %0, %cst_11 {dimension_numbers = #tpu.dot_dimension_numbers<[1], [0], [0], [1], [0, 0, 1, 1], [], []>} : vector<128x512xf32>, vector<512x3xf32>, vector<128x3xf32> -> vector<128x3xf32>
    %c1_12 = arith.constant 1 : index
    %c0_13 = arith.constant 0 : index
    %c0_14 = arith.constant 0 : index
    %12 = vector.load %arg3[%c1_12, %c0_13, %c0_14] : memref<9x3x16xf32, #tpu.memory_space<vmem>>, vector<1x3x16xf32>
    %13 = vector.shape_cast %12 : vector<1x3x16xf32> to vector<3x16xf32>
    %cst_15 = arith.constant dense<0.000000e+00> : vector<128x16xf32>
    %14 = tpu.matmul %11, %13, %cst_15 {dimension_numbers = #tpu.dot_dimension_numbers<[1], [0], [0], [1], [0, 0, 1, 1], [], []>} : vector<128x3xf32>, vector<3x16xf32>, vector<128x16xf32> -> vector<128x16xf32>
    %15 = arith.addf %8, %14 : vector<128x16xf32>
    %c2 = arith.constant 2 : index
    %c0_16 = arith.constant 0 : index
    %c0_17 = arith.constant 0 : index
    %16 = vector.load %arg2[%c2, %c0_16, %c0_17] : memref<9x128x512xf32, #tpu.memory_space<vmem>>, vector<1x128x512xf32>
    %17 = vector.shape_cast %16 : vector<1x128x512xf32> to vector<128x512xf32>
    %cst_18 = arith.constant dense<0.000000e+00> : vector<128x3xf32>
    %18 = tpu.matmul %17, %0, %cst_18 {dimension_numbers = #tpu.dot_dimension_numbers<[1], [0], [0], [1], [0, 0, 1, 1], [], []>} : vector<128x512xf32>, vector<512x3xf32>, vector<128x3xf32> -> vector<128x3xf32>
    %c2_19 = arith.constant 2 : index
    %c0_20 = arith.constant 0 : index
    %c0_21 = arith.constant 0 : index
    %19 = vector.load %arg3[%c2_19, %c0_20, %c0_21] : memref<9x3x16xf32, #tpu.memory_space<vmem>>, vector<1x3x16xf32>
    %20 = vector.shape_cast %19 : vector<1x3x16xf32> to vector<3x16xf32>
    %cst_22 = arith.constant dense<0.000000e+00> : vector<128x16xf32>
    %21 = tpu.matmul %18, %20, %cst_22 {dimension_numbers = #tpu.dot_dimension_numbers<[1], [0], [0], [1], [0, 0, 1, 1], [], []>} : vector<128x3xf32>, vector<3x16xf32>, vector<128x16xf32> -> vector<128x16xf32>
    %22 = arith.addf %15, %21 : vector<128x16xf32>
    %c3 = arith.constant 3 : index
    %c0_23 = arith.constant 0 : index
    %c0_24 = arith.constant 0 : index
    %23 = vector.load %arg2[%c3, %c0_23, %c0_24] : memref<9x128x512xf32, #tpu.memory_space<vmem>>, vector<1x128x512xf32>
    %24 = vector.shape_cast %23 : vector<1x128x512xf32> to vector<128x512xf32>
    %cst_25 = arith.constant dense<0.000000e+00> : vector<128x3xf32>
    %25 = tpu.matmul %24, %0, %cst_25 {dimension_numbers = #tpu.dot_dimension_numbers<[1], [0], [0], [1], [0, 0, 1, 1], [], []>} : vector<128x512xf32>, vector<512x3xf32>, vector<128x3xf32> -> vector<128x3xf32>
    %c3_26 = arith.constant 3 : index
    %c0_27 = arith.constant 0 : index
    %c0_28 = arith.constant 0 : index
    %26 = vector.load %arg3[%c3_26, %c0_27, %c0_28] : memref<9x3x16xf32, #tpu.memory_space<vmem>>, vector<1x3x16xf32>
    %27 = vector.shape_cast %26 : vector<1x3x16xf32> to vector<3x16xf32>
    %cst_29 = arith.constant dense<0.000000e+00> : vector<128x16xf32>
    %28 = tpu.matmul %25, %27, %cst_29 {dimension_numbers = #tpu.dot_dimension_numbers<[1], [0], [0], [1], [0, 0, 1, 1], [], []>} : vector<128x3xf32>, vector<3x16xf32>, vector<128x16xf32> -> vector<128x16xf32>
    %29 = arith.addf %22, %28 : vector<128x16xf32>
    %c4 = arith.constant 4 : index
    %c0_30 = arith.constant 0 : index
    %c0_31 = arith.constant 0 : index
    %30 = vector.load %arg2[%c4, %c0_30, %c0_31] : memref<9x128x512xf32, #tpu.memory_space<vmem>>, vector<1x128x512xf32>
    %31 = vector.shape_cast %30 : vector<1x128x512xf32> to vector<128x512xf32>
    %cst_32 = arith.constant dense<0.000000e+00> : vector<128x3xf32>
    %32 = tpu.matmul %31, %0, %cst_32 {dimension_numbers = #tpu.dot_dimension_numbers<[1], [0], [0], [1], [0, 0, 1, 1], [], []>} : vector<128x512xf32>, vector<512x3xf32>, vector<128x3xf32> -> vector<128x3xf32>
    %c4_33 = arith.constant 4 : index
    %c0_34 = arith.constant 0 : index
    %c0_35 = arith.constant 0 : index
    %33 = vector.load %arg3[%c4_33, %c0_34, %c0_35] : memref<9x3x16xf32, #tpu.memory_space<vmem>>, vector<1x3x16xf32>
    %34 = vector.shape_cast %33 : vector<1x3x16xf32> to vector<3x16xf32>
    %cst_36 = arith.constant dense<0.000000e+00> : vector<128x16xf32>
    %35 = tpu.matmul %32, %34, %cst_36 {dimension_numbers = #tpu.dot_dimension_numbers<[1], [0], [0], [1], [0, 0, 1, 1], [], []>} : vector<128x3xf32>, vector<3x16xf32>, vector<128x16xf32> -> vector<128x16xf32>
    %36 = arith.addf %29, %35 : vector<128x16xf32>
    %c5 = arith.constant 5 : index
    %c0_37 = arith.constant 0 : index
    %c0_38 = arith.constant 0 : index
    %37 = vector.load %arg2[%c5, %c0_37, %c0_38] : memref<9x128x512xf32, #tpu.memory_space<vmem>>, vector<1x128x512xf32>
    %38 = vector.shape_cast %37 : vector<1x128x512xf32> to vector<128x512xf32>
    %cst_39 = arith.constant dense<0.000000e+00> : vector<128x3xf32>
    %39 = tpu.matmul %38, %0, %cst_39 {dimension_numbers = #tpu.dot_dimension_numbers<[1], [0], [0], [1], [0, 0, 1, 1], [], []>} : vector<128x512xf32>, vector<512x3xf32>, vector<128x3xf32> -> vector<128x3xf32>
    %c5_40 = arith.constant 5 : index
    %c0_41 = arith.constant 0 : index
    %c0_42 = arith.constant 0 : index
    %40 = vector.load %arg3[%c5_40, %c0_41, %c0_42] : memref<9x3x16xf32, #tpu.memory_space<vmem>>, vector<1x3x16xf32>
    %41 = vector.shape_cast %40 : vector<1x3x16xf32> to vector<3x16xf32>
    %cst_43 = arith.constant dense<0.000000e+00> : vector<128x16xf32>
    %42 = tpu.matmul %39, %41, %cst_43 {dimension_numbers = #tpu.dot_dimension_numbers<[1], [0], [0], [1], [0, 0, 1, 1], [], []>} : vector<128x3xf32>, vector<3x16xf32>, vector<128x16xf32> -> vector<128x16xf32>
    %43 = arith.addf %36, %42 : vector<128x16xf32>
    %c6 = arith.constant 6 : index
    %c0_44 = arith.constant 0 : index
    %c0_45 = arith.constant 0 : index
    %44 = vector.load %arg2[%c6, %c0_44, %c0_45] : memref<9x128x512xf32, #tpu.memory_space<vmem>>, vector<1x128x512xf32>
    %45 = vector.shape_cast %44 : vector<1x128x512xf32> to vector<128x512xf32>
    %cst_46 = arith.constant dense<0.000000e+00> : vector<128x3xf32>
    %46 = tpu.matmul %45, %0, %cst_46 {dimension_numbers = #tpu.dot_dimension_numbers<[1], [0], [0], [1], [0, 0, 1, 1], [], []>} : vector<128x512xf32>, vector<512x3xf32>, vector<128x3xf32> -> vector<128x3xf32>
    %c6_47 = arith.constant 6 : index
    %c0_48 = arith.constant 0 : index
    %c0_49 = arith.constant 0 : index
    %47 = vector.load %arg3[%c6_47, %c0_48, %c0_49] : memref<9x3x16xf32, #tpu.memory_space<vmem>>, vector<1x3x16xf32>
    %48 = vector.shape_cast %47 : vector<1x3x16xf32> to vector<3x16xf32>
    %cst_50 = arith.constant dense<0.000000e+00> : vector<128x16xf32>
    %49 = tpu.matmul %46, %48, %cst_50 {dimension_numbers = #tpu.dot_dimension_numbers<[1], [0], [0], [1], [0, 0, 1, 1], [], []>} : vector<128x3xf32>, vector<3x16xf32>, vector<128x16xf32> -> vector<128x16xf32>
    %50 = arith.addf %43, %49 : vector<128x16xf32>
    %c7 = arith.constant 7 : index
    %c0_51 = arith.constant 0 : index
    %c0_52 = arith.constant 0 : index
    %51 = vector.load %arg2[%c7, %c0_51, %c0_52] : memref<9x128x512xf32, #tpu.memory_space<vmem>>, vector<1x128x512xf32>
    %52 = vector.shape_cast %51 : vector<1x128x512xf32> to vector<128x512xf32>
    %cst_53 = arith.constant dense<0.000000e+00> : vector<128x3xf32>
    %53 = tpu.matmul %52, %0, %cst_53 {dimension_numbers = #tpu.dot_dimension_numbers<[1], [0], [0], [1], [0, 0, 1, 1], [], []>} : vector<128x512xf32>, vector<512x3xf32>, vector<128x3xf32> -> vector<128x3xf32>
    %c7_54 = arith.constant 7 : index
    %c0_55 = arith.constant 0 : index
    %c0_56 = arith.constant 0 : index
    %54 = vector.load %arg3[%c7_54, %c0_55, %c0_56] : memref<9x3x16xf32, #tpu.memory_space<vmem>>, vector<1x3x16xf32>
    %55 = vector.shape_cast %54 : vector<1x3x16xf32> to vector<3x16xf32>
    %cst_57 = arith.constant dense<0.000000e+00> : vector<128x16xf32>
    %56 = tpu.matmul %53, %55, %cst_57 {dimension_numbers = #tpu.dot_dimension_numbers<[1], [0], [0], [1], [0, 0, 1, 1], [], []>} : vector<128x3xf32>, vector<3x16xf32>, vector<128x16xf32> -> vector<128x16xf32>
    %57 = arith.addf %50, %56 : vector<128x16xf32>
    %c8 = arith.constant 8 : index
    %c0_58 = arith.constant 0 : index
    %c0_59 = arith.constant 0 : index
    %58 = vector.load %arg2[%c8, %c0_58, %c0_59] : memref<9x128x512xf32, #tpu.memory_space<vmem>>, vector<1x128x512xf32>
    %59 = vector.shape_cast %58 : vector<1x128x512xf32> to vector<128x512xf32>
    %cst_60 = arith.constant dense<0.000000e+00> : vector<128x3xf32>
    %60 = tpu.matmul %59, %0, %cst_60 {dimension_numbers = #tpu.dot_dimension_numbers<[1], [0], [0], [1], [0, 0, 1, 1], [], []>} : vector<128x512xf32>, vector<512x3xf32>, vector<128x3xf32> -> vector<128x3xf32>
    %c8_61 = arith.constant 8 : index
    %c0_62 = arith.constant 0 : index
    %c0_63 = arith.constant 0 : index
    %61 = vector.load %arg3[%c8_61, %c0_62, %c0_63] : memref<9x3x16xf32, #tpu.memory_space<vmem>>, vector<1x3x16xf32>
    %62 = vector.shape_cast %61 : vector<1x3x16xf32> to vector<3x16xf32>
    %cst_64 = arith.constant dense<0.000000e+00> : vector<128x16xf32>
    %63 = tpu.matmul %60, %62, %cst_64 {dimension_numbers = #tpu.dot_dimension_numbers<[1], [0], [0], [1], [0, 0, 1, 1], [], []>} : vector<128x3xf32>, vector<3x16xf32>, vector<128x16xf32> -> vector<128x16xf32>
    %64 = arith.addf %57, %63 : vector<128x16xf32>
    %c0_65 = arith.constant 0 : index
    %c0_66 = arith.constant 0 : index
    %65 = vector.load %arg4[%c0_65, %c0_66] : memref<1x16xf32, #tpu.memory_space<vmem>>, vector<1x16xf32>
    %66 = vector.broadcast %65 : vector<1x16xf32> to vector<128x16xf32>
    %67 = arith.addf %64, %66 : vector<128x16xf32>
    %cst_67 = arith.constant 0.000000e+00 : f32
    %68 = vector.broadcast %cst_67 : f32 to vector<128x16xf32>
    %69 = arith.cmpf oge, %67, %68 : vector<128x16xf32>
    %cst_68 = arith.constant 2.000000e-01 : f32
    %70 = vector.broadcast %cst_68 : f32 to vector<128x16xf32>
    %71 = arith.mulf %70, %67 : vector<128x16xf32>
    %72 = arith.select %69, %67, %71 : vector<128x16xi1>, vector<128x16xf32>
    %cst_69 = arith.constant 0.000000e+00 : f32
    %73 = vector.broadcast %cst_69 : f32 to vector<32x32xf32>
    %c0_70 = arith.constant 0 : index
    %c0_71 = arith.constant 0 : index
    %c0_72 = arith.constant 0 : index
    %74 = vector.load %arg5[%c0_70, %c0_71, %c0_72] : memref<9x32x128xf32, #tpu.memory_space<vmem>>, vector<1x32x128xf32>
    %75 = vector.shape_cast %74 : vector<1x32x128xf32> to vector<32x128xf32>
    %cst_73 = arith.constant dense<0.000000e+00> : vector<32x16xf32>
    %76 = tpu.matmul %75, %72, %cst_73 {dimension_numbers = #tpu.dot_dimension_numbers<[1], [0], [0], [1], [0, 0, 1, 1], [], []>} : vector<32x128xf32>, vector<128x16xf32>, vector<32x16xf32> -> vector<32x16xf32>
    %c0_74 = arith.constant 0 : index
    %c0_75 = arith.constant 0 : index
    %c0_76 = arith.constant 0 : index
    %77 = vector.load %arg6[%c0_74, %c0_75, %c0_76] : memref<9x16x32xf32, #tpu.memory_space<vmem>>, vector<1x16x32xf32>
    %78 = vector.shape_cast %77 : vector<1x16x32xf32> to vector<16x32xf32>
    %cst_77 = arith.constant dense<0.000000e+00> : vector<32x32xf32>
    %79 = tpu.matmul %76, %78, %cst_77 {dimension_numbers = #tpu.dot_dimension_numbers<[1], [0], [0], [1], [0, 0, 1, 1], [], []>} : vector<32x16xf32>, vector<16x32xf32>, vector<32x32xf32> -> vector<32x32xf32>
    %80 = arith.addf %73, %79 : vector<32x32xf32>
    %c1_78 = arith.constant 1 : index
    %c0_79 = arith.constant 0 : index
    %c0_80 = arith.constant 0 : index
    %81 = vector.load %arg5[%c1_78, %c0_79, %c0_80] : memref<9x32x128xf32, #tpu.memory_space<vmem>>, vector<1x32x128xf32>
    %82 = vector.shape_cast %81 : vector<1x32x128xf32> to vector<32x128xf32>
    %cst_81 = arith.constant dense<0.000000e+00> : vector<32x16xf32>
    %83 = tpu.matmul %82, %72, %cst_81 {dimension_numbers = #tpu.dot_dimension_numbers<[1], [0], [0], [1], [0, 0, 1, 1], [], []>} : vector<32x128xf32>, vector<128x16xf32>, vector<32x16xf32> -> vector<32x16xf32>
    %c1_82 = arith.constant 1 : index
    %c0_83 = arith.constant 0 : index
    %c0_84 = arith.constant 0 : index
    %84 = vector.load %arg6[%c1_82, %c0_83, %c0_84] : memref<9x16x32xf32, #tpu.memory_space<vmem>>, vector<1x16x32xf32>
    %85 = vector.shape_cast %84 : vector<1x16x32xf32> to vector<16x32xf32>
    %cst_85 = arith.constant dense<0.000000e+00> : vector<32x32xf32>
    %86 = tpu.matmul %83, %85, %cst_85 {dimension_numbers = #tpu.dot_dimension_numbers<[1], [0], [0], [1], [0, 0, 1, 1], [], []>} : vector<32x16xf32>, vector<16x32xf32>, vector<32x32xf32> -> vector<32x32xf32>
    %87 = arith.addf %80, %86 : vector<32x32xf32>
    %c2_86 = arith.constant 2 : index
    %c0_87 = arith.constant 0 : index
    %c0_88 = arith.constant 0 : index
    %88 = vector.load %arg5[%c2_86, %c0_87, %c0_88] : memref<9x32x128xf32, #tpu.memory_space<vmem>>, vector<1x32x128xf32>
    %89 = vector.shape_cast %88 : vector<1x32x128xf32> to vector<32x128xf32>
    %cst_89 = arith.constant dense<0.000000e+00> : vector<32x16xf32>
    %90 = tpu.matmul %89, %72, %cst_89 {dimension_numbers = #tpu.dot_dimension_numbers<[1], [0], [0], [1], [0, 0, 1, 1], [], []>} : vector<32x128xf32>, vector<128x16xf32>, vector<32x16xf32> -> vector<32x16xf32>
    %c2_90 = arith.constant 2 : index
    %c0_91 = arith.constant 0 : index
    %c0_92 = arith.constant 0 : index
    %91 = vector.load %arg6[%c2_90, %c0_91, %c0_92] : memref<9x16x32xf32, #tpu.memory_space<vmem>>, vector<1x16x32xf32>
    %92 = vector.shape_cast %91 : vector<1x16x32xf32> to vector<16x32xf32>
    %cst_93 = arith.constant dense<0.000000e+00> : vector<32x32xf32>
    %93 = tpu.matmul %90, %92, %cst_93 {dimension_numbers = #tpu.dot_dimension_numbers<[1], [0], [0], [1], [0, 0, 1, 1], [], []>} : vector<32x16xf32>, vector<16x32xf32>, vector<32x32xf32> -> vector<32x32xf32>
    %94 = arith.addf %87, %93 : vector<32x32xf32>
    %c3_94 = arith.constant 3 : index
    %c0_95 = arith.constant 0 : index
    %c0_96 = arith.constant 0 : index
    %95 = vector.load %arg5[%c3_94, %c0_95, %c0_96] : memref<9x32x128xf32, #tpu.memory_space<vmem>>, vector<1x32x128xf32>
    %96 = vector.shape_cast %95 : vector<1x32x128xf32> to vector<32x128xf32>
    %cst_97 = arith.constant dense<0.000000e+00> : vector<32x16xf32>
    %97 = tpu.matmul %96, %72, %cst_97 {dimension_numbers = #tpu.dot_dimension_numbers<[1], [0], [0], [1], [0, 0, 1, 1], [], []>} : vector<32x128xf32>, vector<128x16xf32>, vector<32x16xf32> -> vector<32x16xf32>
    %c3_98 = arith.constant 3 : index
    %c0_99 = arith.constant 0 : index
    %c0_100 = arith.constant 0 : index
    %98 = vector.load %arg6[%c3_98, %c0_99, %c0_100] : memref<9x16x32xf32, #tpu.memory_space<vmem>>, vector<1x16x32xf32>
    %99 = vector.shape_cast %98 : vector<1x16x32xf32> to vector<16x32xf32>
    %cst_101 = arith.constant dense<0.000000e+00> : vector<32x32xf32>
    %100 = tpu.matmul %97, %99, %cst_101 {dimension_numbers = #tpu.dot_dimension_numbers<[1], [0], [0], [1], [0, 0, 1, 1], [], []>} : vector<32x16xf32>, vector<16x32xf32>, vector<32x32xf32> -> vector<32x32xf32>
    %101 = arith.addf %94, %100 : vector<32x32xf32>
    %c4_102 = arith.constant 4 : index
    %c0_103 = arith.constant 0 : index
    %c0_104 = arith.constant 0 : index
    %102 = vector.load %arg5[%c4_102, %c0_103, %c0_104] : memref<9x32x128xf32, #tpu.memory_space<vmem>>, vector<1x32x128xf32>
    %103 = vector.shape_cast %102 : vector<1x32x128xf32> to vector<32x128xf32>
    %cst_105 = arith.constant dense<0.000000e+00> : vector<32x16xf32>
    %104 = tpu.matmul %103, %72, %cst_105 {dimension_numbers = #tpu.dot_dimension_numbers<[1], [0], [0], [1], [0, 0, 1, 1], [], []>} : vector<32x128xf32>, vector<128x16xf32>, vector<32x16xf32> -> vector<32x16xf32>
    %c4_106 = arith.constant 4 : index
    %c0_107 = arith.constant 0 : index
    %c0_108 = arith.constant 0 : index
    %105 = vector.load %arg6[%c4_106, %c0_107, %c0_108] : memref<9x16x32xf32, #tpu.memory_space<vmem>>, vector<1x16x32xf32>
    %106 = vector.shape_cast %105 : vector<1x16x32xf32> to vector<16x32xf32>
    %cst_109 = arith.constant dense<0.000000e+00> : vector<32x32xf32>
    %107 = tpu.matmul %104, %106, %cst_109 {dimension_numbers = #tpu.dot_dimension_numbers<[1], [0], [0], [1], [0, 0, 1, 1], [], []>} : vector<32x16xf32>, vector<16x32xf32>, vector<32x32xf32> -> vector<32x32xf32>
    %108 = arith.addf %101, %107 : vector<32x32xf32>
    %c5_110 = arith.constant 5 : index
    %c0_111 = arith.constant 0 : index
    %c0_112 = arith.constant 0 : index
    %109 = vector.load %arg5[%c5_110, %c0_111, %c0_112] : memref<9x32x128xf32, #tpu.memory_space<vmem>>, vector<1x32x128xf32>
    %110 = vector.shape_cast %109 : vector<1x32x128xf32> to vector<32x128xf32>
    %cst_113 = arith.constant dense<0.000000e+00> : vector<32x16xf32>
    %111 = tpu.matmul %110, %72, %cst_113 {dimension_numbers = #tpu.dot_dimension_numbers<[1], [0], [0], [1], [0, 0, 1, 1], [], []>} : vector<32x128xf32>, vector<128x16xf32>, vector<32x16xf32> -> vector<32x16xf32>
    %c5_114 = arith.constant 5 : index
    %c0_115 = arith.constant 0 : index
    %c0_116 = arith.constant 0 : index
    %112 = vector.load %arg6[%c5_114, %c0_115, %c0_116] : memref<9x16x32xf32, #tpu.memory_space<vmem>>, vector<1x16x32xf32>
    %113 = vector.shape_cast %112 : vector<1x16x32xf32> to vector<16x32xf32>
    %cst_117 = arith.constant dense<0.000000e+00> : vector<32x32xf32>
    %114 = tpu.matmul %111, %113, %cst_117 {dimension_numbers = #tpu.dot_dimension_numbers<[1], [0], [0], [1], [0, 0, 1, 1], [], []>} : vector<32x16xf32>, vector<16x32xf32>, vector<32x32xf32> -> vector<32x32xf32>
    %115 = arith.addf %108, %114 : vector<32x32xf32>
    %c6_118 = arith.constant 6 : index
    %c0_119 = arith.constant 0 : index
    %c0_120 = arith.constant 0 : index
    %116 = vector.load %arg5[%c6_118, %c0_119, %c0_120] : memref<9x32x128xf32, #tpu.memory_space<vmem>>, vector<1x32x128xf32>
    %117 = vector.shape_cast %116 : vector<1x32x128xf32> to vector<32x128xf32>
    %cst_121 = arith.constant dense<0.000000e+00> : vector<32x16xf32>
    %118 = tpu.matmul %117, %72, %cst_121 {dimension_numbers = #tpu.dot_dimension_numbers<[1], [0], [0], [1], [0, 0, 1, 1], [], []>} : vector<32x128xf32>, vector<128x16xf32>, vector<32x16xf32> -> vector<32x16xf32>
    %c6_122 = arith.constant 6 : index
    %c0_123 = arith.constant 0 : index
    %c0_124 = arith.constant 0 : index
    %119 = vector.load %arg6[%c6_122, %c0_123, %c0_124] : memref<9x16x32xf32, #tpu.memory_space<vmem>>, vector<1x16x32xf32>
    %120 = vector.shape_cast %119 : vector<1x16x32xf32> to vector<16x32xf32>
    %cst_125 = arith.constant dense<0.000000e+00> : vector<32x32xf32>
    %121 = tpu.matmul %118, %120, %cst_125 {dimension_numbers = #tpu.dot_dimension_numbers<[1], [0], [0], [1], [0, 0, 1, 1], [], []>} : vector<32x16xf32>, vector<16x32xf32>, vector<32x32xf32> -> vector<32x32xf32>
    %122 = arith.addf %115, %121 : vector<32x32xf32>
    %c7_126 = arith.constant 7 : index
    %c0_127 = arith.constant 0 : index
    %c0_128 = arith.constant 0 : index
    %123 = vector.load %arg5[%c7_126, %c0_127, %c0_128] : memref<9x32x128xf32, #tpu.memory_space<vmem>>, vector<1x32x128xf32>
    %124 = vector.shape_cast %123 : vector<1x32x128xf32> to vector<32x128xf32>
    %cst_129 = arith.constant dense<0.000000e+00> : vector<32x16xf32>
    %125 = tpu.matmul %124, %72, %cst_129 {dimension_numbers = #tpu.dot_dimension_numbers<[1], [0], [0], [1], [0, 0, 1, 1], [], []>} : vector<32x128xf32>, vector<128x16xf32>, vector<32x16xf32> -> vector<32x16xf32>
    %c7_130 = arith.constant 7 : index
    %c0_131 = arith.constant 0 : index
    %c0_132 = arith.constant 0 : index
    %126 = vector.load %arg6[%c7_130, %c0_131, %c0_132] : memref<9x16x32xf32, #tpu.memory_space<vmem>>, vector<1x16x32xf32>
    %127 = vector.shape_cast %126 : vector<1x16x32xf32> to vector<16x32xf32>
    %cst_133 = arith.constant dense<0.000000e+00> : vector<32x32xf32>
    %128 = tpu.matmul %125, %127, %cst_133 {dimension_numbers = #tpu.dot_dimension_numbers<[1], [0], [0], [1], [0, 0, 1, 1], [], []>} : vector<32x16xf32>, vector<16x32xf32>, vector<32x32xf32> -> vector<32x32xf32>
    %129 = arith.addf %122, %128 : vector<32x32xf32>
    %c8_134 = arith.constant 8 : index
    %c0_135 = arith.constant 0 : index
    %c0_136 = arith.constant 0 : index
    %130 = vector.load %arg5[%c8_134, %c0_135, %c0_136] : memref<9x32x128xf32, #tpu.memory_space<vmem>>, vector<1x32x128xf32>
    %131 = vector.shape_cast %130 : vector<1x32x128xf32> to vector<32x128xf32>
    %cst_137 = arith.constant dense<0.000000e+00> : vector<32x16xf32>
    %132 = tpu.matmul %131, %72, %cst_137 {dimension_numbers = #tpu.dot_dimension_numbers<[1], [0], [0], [1], [0, 0, 1, 1], [], []>} : vector<32x128xf32>, vector<128x16xf32>, vector<32x16xf32> -> vector<32x16xf32>
    %c8_138 = arith.constant 8 : index
    %c0_139 = arith.constant 0 : index
    %c0_140 = arith.constant 0 : index
    %133 = vector.load %arg6[%c8_138, %c0_139, %c0_140] : memref<9x16x32xf32, #tpu.memory_space<vmem>>, vector<1x16x32xf32>
    %134 = vector.shape_cast %133 : vector<1x16x32xf32> to vector<16x32xf32>
    %cst_141 = arith.constant dense<0.000000e+00> : vector<32x32xf32>
    %135 = tpu.matmul %132, %134, %cst_141 {dimension_numbers = #tpu.dot_dimension_numbers<[1], [0], [0], [1], [0, 0, 1, 1], [], []>} : vector<32x16xf32>, vector<16x32xf32>, vector<32x32xf32> -> vector<32x32xf32>
    %136 = arith.addf %129, %135 : vector<32x32xf32>
    %c0_142 = arith.constant 0 : index
    %c0_143 = arith.constant 0 : index
    %137 = vector.load %arg7[%c0_142, %c0_143] : memref<1x32xf32, #tpu.memory_space<vmem>>, vector<1x32xf32>
    %138 = vector.broadcast %137 : vector<1x32xf32> to vector<32x32xf32>
    %139 = arith.addf %136, %138 : vector<32x32xf32>
    %cst_144 = arith.constant 0.000000e+00 : f32
    %140 = vector.broadcast %cst_144 : f32 to vector<32x32xf32>
    %141 = arith.cmpf oge, %139, %140 : vector<32x32xf32>
    %cst_145 = arith.constant 2.000000e-01 : f32
    %142 = vector.broadcast %cst_145 : f32 to vector<32x32xf32>
    %143 = arith.mulf %142, %139 : vector<32x32xf32>
    %144 = arith.select %141, %139, %143 : vector<32x32xi1>, vector<32x32xf32>
    %cst_146 = arith.constant dense<0.000000e+00> : vector<32xf32>
    %145 = vector.multi_reduction <add>, %144, %cst_146 [0] : vector<32x32xf32> to vector<32xf32>
    %146 = vector.shape_cast %145 : vector<32xf32> to vector<1x32xf32>
    %cst_147 = arith.constant 3.200000e+01 : f32
    %147 = vector.broadcast %cst_147 : f32 to vector<1x32xf32>
    %148 = arith.divf %146, %147 : vector<1x32xf32>
    %149 = vector.broadcast %148 : vector<1x32xf32> to vector<32x32xf32>
    %150 = arith.subf %144, %149 : vector<32x32xf32>
    %151 = arith.mulf %150, %150 : vector<32x32xf32>
    %cst_148 = arith.constant dense<0.000000e+00> : vector<32xf32>
    %152 = vector.multi_reduction <add>, %151, %cst_148 [0] : vector<32x32xf32> to vector<32xf32>
    %153 = vector.shape_cast %152 : vector<32xf32> to vector<1x32xf32>
    %cst_149 = arith.constant 3.200000e+01 : f32
    %154 = vector.broadcast %cst_149 : f32 to vector<1x32xf32>
    %155 = arith.divf %153, %154 : vector<1x32xf32>
    %cst_150 = arith.constant 9.99999974E-6 : f32
    %156 = vector.broadcast %cst_150 : f32 to vector<1x32xf32>
    %157 = arith.addf %155, %156 : vector<1x32xf32>
    %158 = math.rsqrt %157 : vector<1x32xf32>
    %159 = vector.broadcast %158 : vector<1x32xf32> to vector<32x32xf32>
    %160 = arith.mulf %150, %159 : vector<32x32xf32>
    %c0_151 = arith.constant 0 : index
    %c0_152 = arith.constant 0 : index
    %161 = vector.load %arg8[%c0_151, %c0_152] : memref<1x32xf32, #tpu.memory_space<vmem>>, vector<1x32xf32>
    %162 = vector.broadcast %161 : vector<1x32xf32> to vector<32x32xf32>
    %163 = arith.mulf %160, %162 : vector<32x32xf32>
    %c0_153 = arith.constant 0 : index
    %c0_154 = arith.constant 0 : index
    %164 = vector.load %arg9[%c0_153, %c0_154] : memref<1x32xf32, #tpu.memory_space<vmem>>, vector<1x32xf32>
    %165 = vector.broadcast %164 : vector<1x32xf32> to vector<32x32xf32>
    %166 = arith.addf %163, %165 : vector<32x32xf32>
    %cst_155 = arith.constant 0.000000e+00 : f32
    %167 = vector.broadcast %cst_155 : f32 to vector<8x64xf32>
    %c0_156 = arith.constant 0 : index
    %c0_157 = arith.constant 0 : index
    %c0_158 = arith.constant 0 : index
    %168 = vector.load %arg10[%c0_156, %c0_157, %c0_158] : memref<9x8x32xf32, #tpu.memory_space<vmem>>, vector<1x8x32xf32>
    %169 = vector.shape_cast %168 : vector<1x8x32xf32> to vector<8x32xf32>
    %cst_159 = arith.constant dense<0.000000e+00> : vector<8x32xf32>
    %170 = tpu.matmul %169, %166, %cst_159 {dimension_numbers = #tpu.dot_dimension_numbers<[1], [0], [0], [1], [0, 0, 1, 1], [], []>} : vector<8x32xf32>, vector<32x32xf32>, vector<8x32xf32> -> vector<8x32xf32>
    %c0_160 = arith.constant 0 : index
    %c0_161 = arith.constant 0 : index
    %c0_162 = arith.constant 0 : index
    %171 = vector.load %arg11[%c0_160, %c0_161, %c0_162] : memref<9x32x64xf32, #tpu.memory_space<vmem>>, vector<1x32x64xf32>
    %172 = vector.shape_cast %171 : vector<1x32x64xf32> to vector<32x64xf32>
    %cst_163 = arith.constant dense<0.000000e+00> : vector<8x64xf32>
    %173 = tpu.matmul %170, %172, %cst_163 {dimension_numbers = #tpu.dot_dimension_numbers<[1], [0], [0], [1], [0, 0, 1, 1], [], []>} : vector<8x32xf32>, vector<32x64xf32>, vector<8x64xf32> -> vector<8x64xf32>
    %174 = arith.addf %167, %173 : vector<8x64xf32>
    %c1_164 = arith.constant 1 : index
    %c0_165 = arith.constant 0 : index
    %c0_166 = arith.constant 0 : index
    %175 = vector.load %arg10[%c1_164, %c0_165, %c0_166] : memref<9x8x32xf32, #tpu.memory_space<vmem>>, vector<1x8x32xf32>
    %176 = vector.shape_cast %175 : vector<1x8x32xf32> to vector<8x32xf32>
    %cst_167 = arith.constant dense<0.000000e+00> : vector<8x32xf32>
    %177 = tpu.matmul %176, %166, %cst_167 {dimension_numbers = #tpu.dot_dimension_numbers<[1], [0], [0], [1], [0, 0, 1, 1], [], []>} : vector<8x32xf32>, vector<32x32xf32>, vector<8x32xf32> -> vector<8x32xf32>
    %c1_168 = arith.constant 1 : index
    %c0_169 = arith.constant 0 : index
    %c0_170 = arith.constant 0 : index
    %178 = vector.load %arg11[%c1_168, %c0_169, %c0_170] : memref<9x32x64xf32, #tpu.memory_space<vmem>>, vector<1x32x64xf32>
    %179 = vector.shape_cast %178 : vector<1x32x64xf32> to vector<32x64xf32>
    %cst_171 = arith.constant dense<0.000000e+00> : vector<8x64xf32>
    %180 = tpu.matmul %177, %179, %cst_171 {dimension_numbers = #tpu.dot_dimension_numbers<[1], [0], [0], [1], [0, 0, 1, 1], [], []>} : vector<8x32xf32>, vector<32x64xf32>, vector<8x64xf32> -> vector<8x64xf32>
    %181 = arith.addf %174, %180 : vector<8x64xf32>
    %c2_172 = arith.constant 2 : index
    %c0_173 = arith.constant 0 : index
    %c0_174 = arith.constant 0 : index
    %182 = vector.load %arg10[%c2_172, %c0_173, %c0_174] : memref<9x8x32xf32, #tpu.memory_space<vmem>>, vector<1x8x32xf32>
    %183 = vector.shape_cast %182 : vector<1x8x32xf32> to vector<8x32xf32>
    %cst_175 = arith.constant dense<0.000000e+00> : vector<8x32xf32>
    %184 = tpu.matmul %183, %166, %cst_175 {dimension_numbers = #tpu.dot_dimension_numbers<[1], [0], [0], [1], [0, 0, 1, 1], [], []>} : vector<8x32xf32>, vector<32x32xf32>, vector<8x32xf32> -> vector<8x32xf32>
    %c2_176 = arith.constant 2 : index
    %c0_177 = arith.constant 0 : index
    %c0_178 = arith.constant 0 : index
    %185 = vector.load %arg11[%c2_176, %c0_177, %c0_178] : memref<9x32x64xf32, #tpu.memory_space<vmem>>, vector<1x32x64xf32>
    %186 = vector.shape_cast %185 : vector<1x32x64xf32> to vector<32x64xf32>
    %cst_179 = arith.constant dense<0.000000e+00> : vector<8x64xf32>
    %187 = tpu.matmul %184, %186, %cst_179 {dimension_numbers = #tpu.dot_dimension_numbers<[1], [0], [0], [1], [0, 0, 1, 1], [], []>} : vector<8x32xf32>, vector<32x64xf32>, vector<8x64xf32> -> vector<8x64xf32>
    %188 = arith.addf %181, %187 : vector<8x64xf32>
    %c3_180 = arith.constant 3 : index
    %c0_181 = arith.constant 0 : index
    %c0_182 = arith.constant 0 : index
    %189 = vector.load %arg10[%c3_180, %c0_181, %c0_182] : memref<9x8x32xf32, #tpu.memory_space<vmem>>, vector<1x8x32xf32>
    %190 = vector.shape_cast %189 : vector<1x8x32xf32> to vector<8x32xf32>
    %cst_183 = arith.constant dense<0.000000e+00> : vector<8x32xf32>
    %191 = tpu.matmul %190, %166, %cst_183 {dimension_numbers = #tpu.dot_dimension_numbers<[1], [0], [0], [1], [0, 0, 1, 1], [], []>} : vector<8x32xf32>, vector<32x32xf32>, vector<8x32xf32> -> vector<8x32xf32>
    %c3_184 = arith.constant 3 : index
    %c0_185 = arith.constant 0 : index
    %c0_186 = arith.constant 0 : index
    %192 = vector.load %arg11[%c3_184, %c0_185, %c0_186] : memref<9x32x64xf32, #tpu.memory_space<vmem>>, vector<1x32x64xf32>
    %193 = vector.shape_cast %192 : vector<1x32x64xf32> to vector<32x64xf32>
    %cst_187 = arith.constant dense<0.000000e+00> : vector<8x64xf32>
    %194 = tpu.matmul %191, %193, %cst_187 {dimension_numbers = #tpu.dot_dimension_numbers<[1], [0], [0], [1], [0, 0, 1, 1], [], []>} : vector<8x32xf32>, vector<32x64xf32>, vector<8x64xf32> -> vector<8x64xf32>
    %195 = arith.addf %188, %194 : vector<8x64xf32>
    %c4_188 = arith.constant 4 : index
    %c0_189 = arith.constant 0 : index
    %c0_190 = arith.constant 0 : index
    %196 = vector.load %arg10[%c4_188, %c0_189, %c0_190] : memref<9x8x32xf32, #tpu.memory_space<vmem>>, vector<1x8x32xf32>
    %197 = vector.shape_cast %196 : vector<1x8x32xf32> to vector<8x32xf32>
    %cst_191 = arith.constant dense<0.000000e+00> : vector<8x32xf32>
    %198 = tpu.matmul %197, %166, %cst_191 {dimension_numbers = #tpu.dot_dimension_numbers<[1], [0], [0], [1], [0, 0, 1, 1], [], []>} : vector<8x32xf32>, vector<32x32xf32>, vector<8x32xf32> -> vector<8x32xf32>
    %c4_192 = arith.constant 4 : index
    %c0_193 = arith.constant 0 : index
    %c0_194 = arith.constant 0 : index
    %199 = vector.load %arg11[%c4_192, %c0_193, %c0_194] : memref<9x32x64xf32, #tpu.memory_space<vmem>>, vector<1x32x64xf32>
    %200 = vector.shape_cast %199 : vector<1x32x64xf32> to vector<32x64xf32>
    %cst_195 = arith.constant dense<0.000000e+00> : vector<8x64xf32>
    %201 = tpu.matmul %198, %200, %cst_195 {dimension_numbers = #tpu.dot_dimension_numbers<[1], [0], [0], [1], [0, 0, 1, 1], [], []>} : vector<8x32xf32>, vector<32x64xf32>, vector<8x64xf32> -> vector<8x64xf32>
    %202 = arith.addf %195, %201 : vector<8x64xf32>
    %c5_196 = arith.constant 5 : index
    %c0_197 = arith.constant 0 : index
    %c0_198 = arith.constant 0 : index
    %203 = vector.load %arg10[%c5_196, %c0_197, %c0_198] : memref<9x8x32xf32, #tpu.memory_space<vmem>>, vector<1x8x32xf32>
    %204 = vector.shape_cast %203 : vector<1x8x32xf32> to vector<8x32xf32>
    %cst_199 = arith.constant dense<0.000000e+00> : vector<8x32xf32>
    %205 = tpu.matmul %204, %166, %cst_199 {dimension_numbers = #tpu.dot_dimension_numbers<[1], [0], [0], [1], [0, 0, 1, 1], [], []>} : vector<8x32xf32>, vector<32x32xf32>, vector<8x32xf32> -> vector<8x32xf32>
    %c5_200 = arith.constant 5 : index
    %c0_201 = arith.constant 0 : index
    %c0_202 = arith.constant 0 : index
    %206 = vector.load %arg11[%c5_200, %c0_201, %c0_202] : memref<9x32x64xf32, #tpu.memory_space<vmem>>, vector<1x32x64xf32>
    %207 = vector.shape_cast %206 : vector<1x32x64xf32> to vector<32x64xf32>
    %cst_203 = arith.constant dense<0.000000e+00> : vector<8x64xf32>
    %208 = tpu.matmul %205, %207, %cst_203 {dimension_numbers = #tpu.dot_dimension_numbers<[1], [0], [0], [1], [0, 0, 1, 1], [], []>} : vector<8x32xf32>, vector<32x64xf32>, vector<8x64xf32> -> vector<8x64xf32>
    %209 = arith.addf %202, %208 : vector<8x64xf32>
    %c6_204 = arith.constant 6 : index
    %c0_205 = arith.constant 0 : index
    %c0_206 = arith.constant 0 : index
    %210 = vector.load %arg10[%c6_204, %c0_205, %c0_206] : memref<9x8x32xf32, #tpu.memory_space<vmem>>, vector<1x8x32xf32>
    %211 = vector.shape_cast %210 : vector<1x8x32xf32> to vector<8x32xf32>
    %cst_207 = arith.constant dense<0.000000e+00> : vector<8x32xf32>
    %212 = tpu.matmul %211, %166, %cst_207 {dimension_numbers = #tpu.dot_dimension_numbers<[1], [0], [0], [1], [0, 0, 1, 1], [], []>} : vector<8x32xf32>, vector<32x32xf32>, vector<8x32xf32> -> vector<8x32xf32>
    %c6_208 = arith.constant 6 : index
    %c0_209 = arith.constant 0 : index
    %c0_210 = arith.constant 0 : index
    %213 = vector.load %arg11[%c6_208, %c0_209, %c0_210] : memref<9x32x64xf32, #tpu.memory_space<vmem>>, vector<1x32x64xf32>
    %214 = vector.shape_cast %213 : vector<1x32x64xf32> to vector<32x64xf32>
    %cst_211 = arith.constant dense<0.000000e+00> : vector<8x64xf32>
    %215 = tpu.matmul %212, %214, %cst_211 {dimension_numbers = #tpu.dot_dimension_numbers<[1], [0], [0], [1], [0, 0, 1, 1], [], []>} : vector<8x32xf32>, vector<32x64xf32>, vector<8x64xf32> -> vector<8x64xf32>
    %216 = arith.addf %209, %215 : vector<8x64xf32>
    %c7_212 = arith.constant 7 : index
    %c0_213 = arith.constant 0 : index
    %c0_214 = arith.constant 0 : index
    %217 = vector.load %arg10[%c7_212, %c0_213, %c0_214] : memref<9x8x32xf32, #tpu.memory_space<vmem>>, vector<1x8x32xf32>
    %218 = vector.shape_cast %217 : vector<1x8x32xf32> to vector<8x32xf32>
    %cst_215 = arith.constant dense<0.000000e+00> : vector<8x32xf32>
    %219 = tpu.matmul %218, %166, %cst_215 {dimension_numbers = #tpu.dot_dimension_numbers<[1], [0], [0], [1], [0, 0, 1, 1], [], []>} : vector<8x32xf32>, vector<32x32xf32>, vector<8x32xf32> -> vector<8x32xf32>
    %c7_216 = arith.constant 7 : index
    %c0_217 = arith.constant 0 : index
    %c0_218 = arith.constant 0 : index
    %220 = vector.load %arg11[%c7_216, %c0_217, %c0_218] : memref<9x32x64xf32, #tpu.memory_space<vmem>>, vector<1x32x64xf32>
    %221 = vector.shape_cast %220 : vector<1x32x64xf32> to vector<32x64xf32>
    %cst_219 = arith.constant dense<0.000000e+00> : vector<8x64xf32>
    %222 = tpu.matmul %219, %221, %cst_219 {dimension_numbers = #tpu.dot_dimension_numbers<[1], [0], [0], [1], [0, 0, 1, 1], [], []>} : vector<8x32xf32>, vector<32x64xf32>, vector<8x64xf32> -> vector<8x64xf32>
    %223 = arith.addf %216, %222 : vector<8x64xf32>
    %c8_220 = arith.constant 8 : index
    %c0_221 = arith.constant 0 : index
    %c0_222 = arith.constant 0 : index
    %224 = vector.load %arg10[%c8_220, %c0_221, %c0_222] : memref<9x8x32xf32, #tpu.memory_space<vmem>>, vector<1x8x32xf32>
    %225 = vector.shape_cast %224 : vector<1x8x32xf32> to vector<8x32xf32>
    %cst_223 = arith.constant dense<0.000000e+00> : vector<8x32xf32>
    %226 = tpu.matmul %225, %166, %cst_223 {dimension_numbers = #tpu.dot_dimension_numbers<[1], [0], [0], [1], [0, 0, 1, 1], [], []>} : vector<8x32xf32>, vector<32x32xf32>, vector<8x32xf32> -> vector<8x32xf32>
    %c8_224 = arith.constant 8 : index
    %c0_225 = arith.constant 0 : index
    %c0_226 = arith.constant 0 : index
    %227 = vector.load %arg11[%c8_224, %c0_225, %c0_226] : memref<9x32x64xf32, #tpu.memory_space<vmem>>, vector<1x32x64xf32>
    %228 = vector.shape_cast %227 : vector<1x32x64xf32> to vector<32x64xf32>
    %cst_227 = arith.constant dense<0.000000e+00> : vector<8x64xf32>
    %229 = tpu.matmul %226, %228, %cst_227 {dimension_numbers = #tpu.dot_dimension_numbers<[1], [0], [0], [1], [0, 0, 1, 1], [], []>} : vector<8x32xf32>, vector<32x64xf32>, vector<8x64xf32> -> vector<8x64xf32>
    %230 = arith.addf %223, %229 : vector<8x64xf32>
    %c0_228 = arith.constant 0 : index
    %c0_229 = arith.constant 0 : index
    %231 = vector.load %arg12[%c0_228, %c0_229] : memref<1x64xf32, #tpu.memory_space<vmem>>, vector<1x64xf32>
    %232 = vector.broadcast %231 : vector<1x64xf32> to vector<8x64xf32>
    %233 = arith.addf %230, %232 : vector<8x64xf32>
    %cst_230 = arith.constant 0.000000e+00 : f32
    %234 = vector.broadcast %cst_230 : f32 to vector<8x64xf32>
    %235 = arith.cmpf oge, %233, %234 : vector<8x64xf32>
    %cst_231 = arith.constant 2.000000e-01 : f32
    %236 = vector.broadcast %cst_231 : f32 to vector<8x64xf32>
    %237 = arith.mulf %236, %233 : vector<8x64xf32>
    %238 = arith.select %235, %233, %237 : vector<8x64xi1>, vector<8x64xf32>
    %cst_232 = arith.constant dense<0.000000e+00> : vector<64xf32>
    %239 = vector.multi_reduction <add>, %238, %cst_232 [0] : vector<8x64xf32> to vector<64xf32>
    %240 = vector.shape_cast %239 : vector<64xf32> to vector<1x64xf32>
    %cst_233 = arith.constant 8.000000e+00 : f32
    %241 = vector.broadcast %cst_233 : f32 to vector<1x64xf32>
    %242 = arith.divf %240, %241 : vector<1x64xf32>
    %243 = vector.broadcast %242 : vector<1x64xf32> to vector<8x64xf32>
    %244 = arith.subf %238, %243 : vector<8x64xf32>
    %245 = arith.mulf %244, %244 : vector<8x64xf32>
    %cst_234 = arith.constant dense<0.000000e+00> : vector<64xf32>
    %246 = vector.multi_reduction <add>, %245, %cst_234 [0] : vector<8x64xf32> to vector<64xf32>
    %247 = vector.shape_cast %246 : vector<64xf32> to vector<1x64xf32>
    %cst_235 = arith.constant 8.000000e+00 : f32
    %248 = vector.broadcast %cst_235 : f32 to vector<1x64xf32>
    %249 = arith.divf %247, %248 : vector<1x64xf32>
    %cst_236 = arith.constant 9.99999974E-6 : f32
    %250 = vector.broadcast %cst_236 : f32 to vector<1x64xf32>
    %251 = arith.addf %249, %250 : vector<1x64xf32>
    %252 = math.rsqrt %251 : vector<1x64xf32>
    %253 = vector.broadcast %252 : vector<1x64xf32> to vector<8x64xf32>
    %254 = arith.mulf %244, %253 : vector<8x64xf32>
    %c0_237 = arith.constant 0 : index
    %c0_238 = arith.constant 0 : index
    %255 = vector.load %arg13[%c0_237, %c0_238] : memref<1x64xf32, #tpu.memory_space<vmem>>, vector<1x64xf32>
    %256 = vector.broadcast %255 : vector<1x64xf32> to vector<8x64xf32>
    %257 = arith.mulf %254, %256 : vector<8x64xf32>
    %c0_239 = arith.constant 0 : index
    %c0_240 = arith.constant 0 : index
    %258 = vector.load %arg14[%c0_239, %c0_240] : memref<1x64xf32, #tpu.memory_space<vmem>>, vector<1x64xf32>
    %259 = vector.broadcast %258 : vector<1x64xf32> to vector<8x64xf32>
    %260 = arith.addf %257, %259 : vector<8x64xf32>
    %cst_241 = arith.constant 0.000000e+00 : f32
    %261 = vector.broadcast %cst_241 : f32 to vector<2x128xf32>
    %c0_242 = arith.constant 0 : index
    %c0_243 = arith.constant 0 : index
    %c0_244 = arith.constant 0 : index
    %262 = vector.load %arg15[%c0_242, %c0_243, %c0_244] : memref<9x2x8xf32, #tpu.memory_space<vmem>>, vector<1x2x8xf32>
    %263 = vector.shape_cast %262 : vector<1x2x8xf32> to vector<2x8xf32>
    %cst_245 = arith.constant dense<0.000000e+00> : vector<2x64xf32>
    %264 = tpu.matmul %263, %260, %cst_245 {dimension_numbers = #tpu.dot_dimension_numbers<[1], [0], [0], [1], [0, 0, 1, 1], [], []>} : vector<2x8xf32>, vector<8x64xf32>, vector<2x64xf32> -> vector<2x64xf32>
    %c0_246 = arith.constant 0 : index
    %c0_247 = arith.constant 0 : index
    %c0_248 = arith.constant 0 : index
    %265 = vector.load %arg16[%c0_246, %c0_247, %c0_248] : memref<9x64x128xf32, #tpu.memory_space<vmem>>, vector<1x64x128xf32>
    %266 = vector.shape_cast %265 : vector<1x64x128xf32> to vector<64x128xf32>
    %cst_249 = arith.constant dense<0.000000e+00> : vector<2x128xf32>
    %267 = tpu.matmul %264, %266, %cst_249 {dimension_numbers = #tpu.dot_dimension_numbers<[1], [0], [0], [1], [0, 0, 1, 1], [], []>} : vector<2x64xf32>, vector<64x128xf32>, vector<2x128xf32> -> vector<2x128xf32>
    %268 = arith.addf %261, %267 : vector<2x128xf32>
    %c1_250 = arith.constant 1 : index
    %c0_251 = arith.constant 0 : index
    %c0_252 = arith.constant 0 : index
    %269 = vector.load %arg15[%c1_250, %c0_251, %c0_252] : memref<9x2x8xf32, #tpu.memory_space<vmem>>, vector<1x2x8xf32>
    %270 = vector.shape_cast %269 : vector<1x2x8xf32> to vector<2x8xf32>
    %cst_253 = arith.constant dense<0.000000e+00> : vector<2x64xf32>
    %271 = tpu.matmul %270, %260, %cst_253 {dimension_numbers = #tpu.dot_dimension_numbers<[1], [0], [0], [1], [0, 0, 1, 1], [], []>} : vector<2x8xf32>, vector<8x64xf32>, vector<2x64xf32> -> vector<2x64xf32>
    %c1_254 = arith.constant 1 : index
    %c0_255 = arith.constant 0 : index
    %c0_256 = arith.constant 0 : index
    %272 = vector.load %arg16[%c1_254, %c0_255, %c0_256] : memref<9x64x128xf32, #tpu.memory_space<vmem>>, vector<1x64x128xf32>
    %273 = vector.shape_cast %272 : vector<1x64x128xf32> to vector<64x128xf32>
    %cst_257 = arith.constant dense<0.000000e+00> : vector<2x128xf32>
    %274 = tpu.matmul %271, %273, %cst_257 {dimension_numbers = #tpu.dot_dimension_numbers<[1], [0], [0], [1], [0, 0, 1, 1], [], []>} : vector<2x64xf32>, vector<64x128xf32>, vector<2x128xf32> -> vector<2x128xf32>
    %275 = arith.addf %268, %274 : vector<2x128xf32>
    %c2_258 = arith.constant 2 : index
    %c0_259 = arith.constant 0 : index
    %c0_260 = arith.constant 0 : index
    %276 = vector.load %arg15[%c2_258, %c0_259, %c0_260] : memref<9x2x8xf32, #tpu.memory_space<vmem>>, vector<1x2x8xf32>
    %277 = vector.shape_cast %276 : vector<1x2x8xf32> to vector<2x8xf32>
    %cst_261 = arith.constant dense<0.000000e+00> : vector<2x64xf32>
    %278 = tpu.matmul %277, %260, %cst_261 {dimension_numbers = #tpu.dot_dimension_numbers<[1], [0], [0], [1], [0, 0, 1, 1], [], []>} : vector<2x8xf32>, vector<8x64xf32>, vector<2x64xf32> -> vector<2x64xf32>
    %c2_262 = arith.constant 2 : index
    %c0_263 = arith.constant 0 : index
    %c0_264 = arith.constant 0 : index
    %279 = vector.load %arg16[%c2_262, %c0_263, %c0_264] : memref<9x64x128xf32, #tpu.memory_space<vmem>>, vector<1x64x128xf32>
    %280 = vector.shape_cast %279 : vector<1x64x128xf32> to vector<64x128xf32>
    %cst_265 = arith.constant dense<0.000000e+00> : vector<2x128xf32>
    %281 = tpu.matmul %278, %280, %cst_265 {dimension_numbers = #tpu.dot_dimension_numbers<[1], [0], [0], [1], [0, 0, 1, 1], [], []>} : vector<2x64xf32>, vector<64x128xf32>, vector<2x128xf32> -> vector<2x128xf32>
    %282 = arith.addf %275, %281 : vector<2x128xf32>
    %c3_266 = arith.constant 3 : index
    %c0_267 = arith.constant 0 : index
    %c0_268 = arith.constant 0 : index
    %283 = vector.load %arg15[%c3_266, %c0_267, %c0_268] : memref<9x2x8xf32, #tpu.memory_space<vmem>>, vector<1x2x8xf32>
    %284 = vector.shape_cast %283 : vector<1x2x8xf32> to vector<2x8xf32>
    %cst_269 = arith.constant dense<0.000000e+00> : vector<2x64xf32>
    %285 = tpu.matmul %284, %260, %cst_269 {dimension_numbers = #tpu.dot_dimension_numbers<[1], [0], [0], [1], [0, 0, 1, 1], [], []>} : vector<2x8xf32>, vector<8x64xf32>, vector<2x64xf32> -> vector<2x64xf32>
    %c3_270 = arith.constant 3 : index
    %c0_271 = arith.constant 0 : index
    %c0_272 = arith.constant 0 : index
    %286 = vector.load %arg16[%c3_270, %c0_271, %c0_272] : memref<9x64x128xf32, #tpu.memory_space<vmem>>, vector<1x64x128xf32>
    %287 = vector.shape_cast %286 : vector<1x64x128xf32> to vector<64x128xf32>
    %cst_273 = arith.constant dense<0.000000e+00> : vector<2x128xf32>
    %288 = tpu.matmul %285, %287, %cst_273 {dimension_numbers = #tpu.dot_dimension_numbers<[1], [0], [0], [1], [0, 0, 1, 1], [], []>} : vector<2x64xf32>, vector<64x128xf32>, vector<2x128xf32> -> vector<2x128xf32>
    %289 = arith.addf %282, %288 : vector<2x128xf32>
    %c4_274 = arith.constant 4 : index
    %c0_275 = arith.constant 0 : index
    %c0_276 = arith.constant 0 : index
    %290 = vector.load %arg15[%c4_274, %c0_275, %c0_276] : memref<9x2x8xf32, #tpu.memory_space<vmem>>, vector<1x2x8xf32>
    %291 = vector.shape_cast %290 : vector<1x2x8xf32> to vector<2x8xf32>
    %cst_277 = arith.constant dense<0.000000e+00> : vector<2x64xf32>
    %292 = tpu.matmul %291, %260, %cst_277 {dimension_numbers = #tpu.dot_dimension_numbers<[1], [0], [0], [1], [0, 0, 1, 1], [], []>} : vector<2x8xf32>, vector<8x64xf32>, vector<2x64xf32> -> vector<2x64xf32>
    %c4_278 = arith.constant 4 : index
    %c0_279 = arith.constant 0 : index
    %c0_280 = arith.constant 0 : index
    %293 = vector.load %arg16[%c4_278, %c0_279, %c0_280] : memref<9x64x128xf32, #tpu.memory_space<vmem>>, vector<1x64x128xf32>
    %294 = vector.shape_cast %293 : vector<1x64x128xf32> to vector<64x128xf32>
    %cst_281 = arith.constant dense<0.000000e+00> : vector<2x128xf32>
    %295 = tpu.matmul %292, %294, %cst_281 {dimension_numbers = #tpu.dot_dimension_numbers<[1], [0], [0], [1], [0, 0, 1, 1], [], []>} : vector<2x64xf32>, vector<64x128xf32>, vector<2x128xf32> -> vector<2x128xf32>
    %296 = arith.addf %289, %295 : vector<2x128xf32>
    %c5_282 = arith.constant 5 : index
    %c0_283 = arith.constant 0 : index
    %c0_284 = arith.constant 0 : index
    %297 = vector.load %arg15[%c5_282, %c0_283, %c0_284] : memref<9x2x8xf32, #tpu.memory_space<vmem>>, vector<1x2x8xf32>
    %298 = vector.shape_cast %297 : vector<1x2x8xf32> to vector<2x8xf32>
    %cst_285 = arith.constant dense<0.000000e+00> : vector<2x64xf32>
    %299 = tpu.matmul %298, %260, %cst_285 {dimension_numbers = #tpu.dot_dimension_numbers<[1], [0], [0], [1], [0, 0, 1, 1], [], []>} : vector<2x8xf32>, vector<8x64xf32>, vector<2x64xf32> -> vector<2x64xf32>
    %c5_286 = arith.constant 5 : index
    %c0_287 = arith.constant 0 : index
    %c0_288 = arith.constant 0 : index
    %300 = vector.load %arg16[%c5_286, %c0_287, %c0_288] : memref<9x64x128xf32, #tpu.memory_space<vmem>>, vector<1x64x128xf32>
    %301 = vector.shape_cast %300 : vector<1x64x128xf32> to vector<64x128xf32>
    %cst_289 = arith.constant dense<0.000000e+00> : vector<2x128xf32>
    %302 = tpu.matmul %299, %301, %cst_289 {dimension_numbers = #tpu.dot_dimension_numbers<[1], [0], [0], [1], [0, 0, 1, 1], [], []>} : vector<2x64xf32>, vector<64x128xf32>, vector<2x128xf32> -> vector<2x128xf32>
    %303 = arith.addf %296, %302 : vector<2x128xf32>
    %c6_290 = arith.constant 6 : index
    %c0_291 = arith.constant 0 : index
    %c0_292 = arith.constant 0 : index
    %304 = vector.load %arg15[%c6_290, %c0_291, %c0_292] : memref<9x2x8xf32, #tpu.memory_space<vmem>>, vector<1x2x8xf32>
    %305 = vector.shape_cast %304 : vector<1x2x8xf32> to vector<2x8xf32>
    %cst_293 = arith.constant dense<0.000000e+00> : vector<2x64xf32>
    %306 = tpu.matmul %305, %260, %cst_293 {dimension_numbers = #tpu.dot_dimension_numbers<[1], [0], [0], [1], [0, 0, 1, 1], [], []>} : vector<2x8xf32>, vector<8x64xf32>, vector<2x64xf32> -> vector<2x64xf32>
    %c6_294 = arith.constant 6 : index
    %c0_295 = arith.constant 0 : index
    %c0_296 = arith.constant 0 : index
    %307 = vector.load %arg16[%c6_294, %c0_295, %c0_296] : memref<9x64x128xf32, #tpu.memory_space<vmem>>, vector<1x64x128xf32>
    %308 = vector.shape_cast %307 : vector<1x64x128xf32> to vector<64x128xf32>
    %cst_297 = arith.constant dense<0.000000e+00> : vector<2x128xf32>
    %309 = tpu.matmul %306, %308, %cst_297 {dimension_numbers = #tpu.dot_dimension_numbers<[1], [0], [0], [1], [0, 0, 1, 1], [], []>} : vector<2x64xf32>, vector<64x128xf32>, vector<2x128xf32> -> vector<2x128xf32>
    %310 = arith.addf %303, %309 : vector<2x128xf32>
    %c7_298 = arith.constant 7 : index
    %c0_299 = arith.constant 0 : index
    %c0_300 = arith.constant 0 : index
    %311 = vector.load %arg15[%c7_298, %c0_299, %c0_300] : memref<9x2x8xf32, #tpu.memory_space<vmem>>, vector<1x2x8xf32>
    %312 = vector.shape_cast %311 : vector<1x2x8xf32> to vector<2x8xf32>
    %cst_301 = arith.constant dense<0.000000e+00> : vector<2x64xf32>
    %313 = tpu.matmul %312, %260, %cst_301 {dimension_numbers = #tpu.dot_dimension_numbers<[1], [0], [0], [1], [0, 0, 1, 1], [], []>} : vector<2x8xf32>, vector<8x64xf32>, vector<2x64xf32> -> vector<2x64xf32>
    %c7_302 = arith.constant 7 : index
    %c0_303 = arith.constant 0 : index
    %c0_304 = arith.constant 0 : index
    %314 = vector.load %arg16[%c7_302, %c0_303, %c0_304] : memref<9x64x128xf32, #tpu.memory_space<vmem>>, vector<1x64x128xf32>
    %315 = vector.shape_cast %314 : vector<1x64x128xf32> to vector<64x128xf32>
    %cst_305 = arith.constant dense<0.000000e+00> : vector<2x128xf32>
    %316 = tpu.matmul %313, %315, %cst_305 {dimension_numbers = #tpu.dot_dimension_numbers<[1], [0], [0], [1], [0, 0, 1, 1], [], []>} : vector<2x64xf32>, vector<64x128xf32>, vector<2x128xf32> -> vector<2x128xf32>
    %317 = arith.addf %310, %316 : vector<2x128xf32>
    %c8_306 = arith.constant 8 : index
    %c0_307 = arith.constant 0 : index
    %c0_308 = arith.constant 0 : index
    %318 = vector.load %arg15[%c8_306, %c0_307, %c0_308] : memref<9x2x8xf32, #tpu.memory_space<vmem>>, vector<1x2x8xf32>
    %319 = vector.shape_cast %318 : vector<1x2x8xf32> to vector<2x8xf32>
    %cst_309 = arith.constant dense<0.000000e+00> : vector<2x64xf32>
    %320 = tpu.matmul %319, %260, %cst_309 {dimension_numbers = #tpu.dot_dimension_numbers<[1], [0], [0], [1], [0, 0, 1, 1], [], []>} : vector<2x8xf32>, vector<8x64xf32>, vector<2x64xf32> -> vector<2x64xf32>
    %c8_310 = arith.constant 8 : index
    %c0_311 = arith.constant 0 : index
    %c0_312 = arith.constant 0 : index
    %321 = vector.load %arg16[%c8_310, %c0_311, %c0_312] : memref<9x64x128xf32, #tpu.memory_space<vmem>>, vector<1x64x128xf32>
    %322 = vector.shape_cast %321 : vector<1x64x128xf32> to vector<64x128xf32>
    %cst_313 = arith.constant dense<0.000000e+00> : vector<2x128xf32>
    %323 = tpu.matmul %320, %322, %cst_313 {dimension_numbers = #tpu.dot_dimension_numbers<[1], [0], [0], [1], [0, 0, 1, 1], [], []>} : vector<2x64xf32>, vector<64x128xf32>, vector<2x128xf32> -> vector<2x128xf32>
    %324 = arith.addf %317, %323 : vector<2x128xf32>
    %c0_314 = arith.constant 0 : index
    %c0_315 = arith.constant 0 : index
    %325 = vector.load %arg17[%c0_314, %c0_315] : memref<1x128xf32, #tpu.memory_space<vmem>>, vector<1x128xf32>
    %326 = vector.broadcast %325 : vector<1x128xf32> to vector<2x128xf32>
    %327 = arith.addf %324, %326 : vector<2x128xf32>
    %cst_316 = arith.constant 0.000000e+00 : f32
    %328 = vector.broadcast %cst_316 : f32 to vector<2x128xf32>
    %329 = arith.cmpf oge, %327, %328 : vector<2x128xf32>
    %cst_317 = arith.constant 2.000000e-01 : f32
    %330 = vector.broadcast %cst_317 : f32 to vector<2x128xf32>
    %331 = arith.mulf %330, %327 : vector<2x128xf32>
    %332 = arith.select %329, %327, %331 : vector<2x128xi1>, vector<2x128xf32>
    %cst_318 = arith.constant dense<0.000000e+00> : vector<128xf32>
    %333 = vector.multi_reduction <add>, %332, %cst_318 [0] : vector<2x128xf32> to vector<128xf32>
    %334 = vector.shape_cast %333 : vector<128xf32> to vector<1x128xf32>
    %cst_319 = arith.constant 2.000000e+00 : f32
    %335 = vector.broadcast %cst_319 : f32 to vector<1x128xf32>
    %336 = arith.divf %334, %335 : vector<1x128xf32>
    %337 = vector.broadcast %336 : vector<1x128xf32> to vector<2x128xf32>
    %338 = arith.subf %332, %337 : vector<2x128xf32>
    %339 = arith.mulf %338, %338 : vector<2x128xf32>
    %cst_320 = arith.constant dense<0.000000e+00> : vector<128xf32>
    %340 = vector.multi_reduction <add>, %339, %cst_320 [0] : vector<2x128xf32> to vector<128xf32>
    %341 = vector.shape_cast %340 : vector<128xf32> to vector<1x128xf32>
    %cst_321 = arith.constant 2.000000e+00 : f32
    %342 = vector.broadcast %cst_321 : f32 to vector<1x128xf32>
    %343 = arith.divf %341, %342 : vector<1x128xf32>
    %cst_322 = arith.constant 9.99999974E-6 : f32
    %344 = vector.broadcast %cst_322 : f32 to vector<1x128xf32>
    %345 = arith.addf %343, %344 : vector<1x128xf32>
    %346 = math.rsqrt %345 : vector<1x128xf32>
    %347 = vector.broadcast %346 : vector<1x128xf32> to vector<2x128xf32>
    %348 = arith.mulf %338, %347 : vector<2x128xf32>
    %c0_323 = arith.constant 0 : index
    %c0_324 = arith.constant 0 : index
    %349 = vector.load %arg18[%c0_323, %c0_324] : memref<1x128xf32, #tpu.memory_space<vmem>>, vector<1x128xf32>
    %350 = vector.broadcast %349 : vector<1x128xf32> to vector<2x128xf32>
    %351 = arith.mulf %348, %350 : vector<2x128xf32>
    %c0_325 = arith.constant 0 : index
    %c0_326 = arith.constant 0 : index
    %352 = vector.load %arg19[%c0_325, %c0_326] : memref<1x128xf32, #tpu.memory_space<vmem>>, vector<1x128xf32>
    %353 = vector.broadcast %352 : vector<1x128xf32> to vector<2x128xf32>
    %354 = arith.addf %351, %353 : vector<2x128xf32>
    %c0_327 = arith.constant 0 : index
    %c0_328 = arith.constant 0 : index
    %355 = vector.load %arg20[%c0_327, %c0_328] : memref<128x1xf32, #tpu.memory_space<vmem>>, vector<128x1xf32>
    %cst_329 = arith.constant dense<0.000000e+00> : vector<2x1xf32>
    %356 = tpu.matmul %354, %355, %cst_329 {dimension_numbers = #tpu.dot_dimension_numbers<[1], [0], [0], [1], [0, 0, 1, 1], [], []>} : vector<2x128xf32>, vector<128x1xf32>, vector<2x1xf32> -> vector<2x1xf32>
    %c0_330 = arith.constant 0 : index
    %c0_331 = arith.constant 0 : index
    %357 = vector.load %arg21[%c0_330, %c0_331] : memref<1x1xf32, #tpu.memory_space<vmem>>, vector<1x1xf32>
    %358 = vector.broadcast %357 : vector<1x1xf32> to vector<2x1xf32>
    %359 = arith.addf %356, %358 : vector<2x1xf32>
    %c0_332 = arith.constant 0 : index
    %c0_333 = arith.constant 0 : index
    %360 = vector.load %arg22[%c0_332, %c0_333] : memref<2x1xf32, #tpu.memory_space<vmem>>, vector<2x1xf32>
    tpu.vector_store %arg22[%c0_332, %c0_333], %359 {strides = array<i32>} : memref<2x1xf32, #tpu.memory_space<vmem>>, vector<2x1xf32>,
    return
  }
  func.func @transform_0(%arg0: i32) -> (i32, i32) {
    %c0_i32 = arith.constant 0 : i32
    %c0_i32_0 = arith.constant 0 : i32
    %c0_i32_1 = arith.constant 0 : i32
    return %c0_i32, %c0_i32_0 : i32, i32
  }
  func.func @transform_1(%arg0: i32) -> (i32, i32, i32) {
    %c0_i32 = arith.constant 0 : i32
    %c0_i32_0 = arith.constant 0 : i32
    %c0_i32_1 = arith.constant 0 : i32
    %c0_i32_2 = arith.constant 0 : i32
    return %c0_i32, %c0_i32_0, %c0_i32_1 : i32, i32, i32
  }
  func.func @transform_2(%arg0: i32) -> (i32, i32, i32) {
    %c0_i32 = arith.constant 0 : i32
    %c0_i32_0 = arith.constant 0 : i32
    %c0_i32_1 = arith.constant 0 : i32
    %c0_i32_2 = arith.constant 0 : i32
    return %c0_i32, %c0_i32_0, %c0_i32_1 : i32, i32, i32
  }
  func.func @transform_3(%arg0: i32) -> (i32, i32) {
    %c0_i32 = arith.constant 0 : i32
    %c0_i32_0 = arith.constant 0 : i32
    %c0_i32_1 = arith.constant 0 : i32
    return %c0_i32, %c0_i32_0 : i32, i32
  }
  func.func @transform_4(%arg0: i32) -> (i32, i32, i32) {
    %c0_i32 = arith.constant 0 : i32
    %c0_i32_0 = arith.constant 0 : i32
    %c0_i32_1 = arith.constant 0 : i32
    %c0_i32_2 = arith.constant 0 : i32
    return %c0_i32, %c0_i32_0, %c0_i32_1 : i32, i32, i32
  }
  func.func @transform_5(%arg0: i32) -> (i32, i32, i32) {
    %c0_i32 = arith.constant 0 : i32
    %c0_i32_0 = arith.constant 0 : i32
    %c0_i32_1 = arith.constant 0 : i32
    %c0_i32_2 = arith.constant 0 : i32
    return %c0_i32, %c0_i32_0, %c0_i32_1 : i32, i32, i32
  }
  func.func @transform_6(%arg0: i32) -> (i32, i32) {
    %c0_i32 = arith.constant 0 : i32
    %c0_i32_0 = arith.constant 0 : i32
    %c0_i32_1 = arith.constant 0 : i32
    return %c0_i32, %c0_i32_0 : i32, i32
  }
  func.func @transform_7(%arg0: i32) -> (i32, i32) {
    %c0_i32 = arith.constant 0 : i32
    %c0_i32_0 = arith.constant 0 : i32
    %c0_i32_1 = arith.constant 0 : i32
    return %c0_i32, %c0_i32_0 : i32, i32
  }
  func.func @transform_8(%arg0: i32) -> (i32, i32) {
    %c0_i32 = arith.constant 0 : i32
    %c0_i32_0 = arith.constant 0 : i32
    %c0_i32_1 = arith.constant 0 : i32
    return %c0_i32, %c0_i32_0 : i32, i32
  }
  func.func @transform_9(%arg0: i32) -> (i32, i32, i32) {
    %c0_i32 = arith.constant 0 : i32
    %c0_i32_0 = arith.constant 0 : i32
    %c0_i32_1 = arith.constant 0 : i32
    %c0_i32_2 = arith.constant 0 : i32
    return %c0_i32, %c0_i32_0, %c0_i32_1 : i32, i32, i32
  }
  func.func @transform_10(%arg0: i32) -> (i32, i32, i32) {
    %c0_i32 = arith.constant 0 : i32
    %c0_i32_0 = arith.constant 0 : i32
    %c0_i32_1 = arith.constant 0 : i32
    %c0_i32_2 = arith.constant 0 : i32
    return %c0_i32, %c0_i32_0, %c0_i32_1 : i32, i32, i32
  }
  func.func @transform_11(%arg0: i32) -> (i32, i32) {
    %c0_i32 = arith.constant 0 : i32
    %c0_i32_0 = arith.constant 0 : i32
    %c0_i32_1 = arith.constant 0 : i32
    return %c0_i32, %c0_i32_0 : i32, i32
  }
  func.func @transform_12(%arg0: i32) -> (i32, i32) {
    %c0_i32 = arith.constant 0 : i32
    %c0_i32_0 = arith.constant 0 : i32
    %c0_i32_1 = arith.constant 0 : i32
    return %c0_i32, %c0_i32_0 : i32, i32
  }
  func.func @transform_13(%arg0: i32) -> (i32, i32) {
    %c0_i32 = arith.constant 0 : i32
    %c0_i32_0 = arith.constant 0 : i32
    %c0_i32_1 = arith.constant 0 : i32
    return %c0_i32, %c0_i32_0 : i32, i32
  }
  func.func @transform_14(%arg0: i32) -> (i32, i32, i32) {
    %c0_i32 = arith.constant 0 : i32
    %c0_i32_0 = arith.constant 0 : i32
    %c0_i32_1 = arith.constant 0 : i32
    %c0_i32_2 = arith.constant 0 : i32
    return %c0_i32, %c0_i32_0, %c0_i32_1 : i32, i32, i32
  }
  func.func @transform_15(%arg0: i32) -> (i32, i32, i32) {
    %c0_i32 = arith.constant 0 : i32
    %c0_i32_0 = arith.constant 0 : i32
    %c0_i32_1 = arith.constant 0 : i32
    %c0_i32_2 = arith.constant 0 : i32
    return %c0_i32, %c0_i32_0, %c0_i32_1 : i32, i32, i32
  }
  func.func @transform_16(%arg0: i32) -> (i32, i32) {
    %c0_i32 = arith.constant 0 : i32
    %c0_i32_0 = arith.constant 0 : i32
    %c0_i32_1 = arith.constant 0 : i32
    return %c0_i32, %c0_i32_0 : i32, i32
  }
  func.func @transform_17(%arg0: i32) -> (i32, i32) {
    %c0_i32 = arith.constant 0 : i32
    %c0_i32_0 = arith.constant 0 : i32
    %c0_i32_1 = arith.constant 0 : i32
    return %c0_i32, %c0_i32_0 : i32, i32
  }
  func.func @transform_18(%arg0: i32) -> (i32, i32) {
    %c0_i32 = arith.constant 0 : i32
    %c0_i32_0 = arith.constant 0 : i32
    %c0_i32_1 = arith.constant 0 : i32
    return %c0_i32, %c0_i32_0 : i32, i32
  }
  func.func @transform_19(%arg0: i32) -> (i32, i32) {
    %c0_i32 = arith.constant 0 : i32
    %c0_i32_0 = arith.constant 0 : i32
    %c0_i32_1 = arith.constant 0 : i32
    return %c0_i32, %c0_i32_0 : i32, i32
  }
  func.func @transform_20(%arg0: i32) -> (i32, i32) {
    %c0_i32 = arith.constant 0 : i32
    %c0_i32_0 = arith.constant 0 : i32
    %c0_i32_1 = arith.constant 0 : i32
    return %c0_i32, %c0_i32_0 : i32, i32
  }
  func.func @transform_21(%arg0: i32) -> (i32, i32) {
    %c0_i32 = arith.constant 0 : i32
    %c0_i32_0 = arith.constant 0 : i32
    %c0_i32_1 = arith.constant 0 : i32
    return %c0_i32, %c0_i32_0 : i32, i32
  }
}

</mosaic_0001>

<llo_original>
// kernel: discriminator_forward.1
$region0: #{discriminator_forward.1}
  #allocation0 [shape = 'u32[]', space=smem, size = 0x4, offset = 0x4, fixed_abs, tag = 'smem constant byte address 0x4 - core index']
  #allocation1 [shape = 'u32[144,128]{1,0:T(1,128)}', space=vmem, size = 0x12000, scoped, tag = 'internal scratch']
  #allocation2 [shape = 'f32[1,1]{1,0:T(1,128)S(1)}', space=vmem, size = 0x200, scoped, tag = 'scoped memory for discriminator_forward.1']
  %s0 = inlined_call_operand.vmem [shape: f32[512,3], index: 0, kind: input, shape index: {}]
  %s1 = inlined_call_operand.hbm [shape: f32[9,128,512], index: 1, kind: input, shape index: {}]
  %s2 = inlined_call_operand.hbm [shape: f32[9,3,16], index: 2, kind: input, shape index: {}]
  %s3 = inlined_call_operand.hbm [shape: f32[1,16], index: 3, kind: input, shape index: {}]
  %s4 = inlined_call_operand.hbm [shape: f32[9,32,128], index: 4, kind: input, shape index: {}]
  %s5 = inlined_call_operand.hbm [shape: f32[9,16,32], index: 5, kind: input, shape index: {}]
  %s6 = inlined_call_operand.hbm [shape: f32[1,32], index: 6, kind: input, shape index: {}]
  %s7 = inlined_call_operand.hbm [shape: f32[1,32], index: 7, kind: input, shape index: {}]
  %s8 = inlined_call_operand.hbm [shape: f32[1,32], index: 8, kind: input, shape index: {}]
  %s9 = inlined_call_operand.hbm [shape: f32[9,8,32], index: 9, kind: input, shape index: {}]
  %s10 = inlined_call_operand.hbm [shape: f32[9,32,64], index: 10, kind: input, shape index: {}]
  %s11 = inlined_call_operand.hbm [shape: f32[1,64], index: 11, kind: input, shape index: {}]
  %s12 = inlined_call_operand.hbm [shape: f32[1,64], index: 12, kind: input, shape index: {}]
  %s13 = inlined_call_operand.hbm [shape: f32[1,64], index: 13, kind: input, shape index: {}]
  %s14 = inlined_call_operand.vmem [shape: f32[9,2,8], index: 14, kind: input, shape index: {}]
  %s15 = inlined_call_operand.hbm [shape: f32[9,64,128], index: 15, kind: input, shape index: {}]
  %s16 = inlined_call_operand.hbm [shape: f32[1,128], index: 16, kind: input, shape index: {}]
  %s17 = inlined_call_operand.hbm [shape: f32[1,128], index: 17, kind: input, shape index: {}]
  %s18 = inlined_call_operand.hbm [shape: f32[1,128], index: 18, kind: input, shape index: {}]
  %s19 = inlined_call_operand.vmem [shape: f32[128,1], index: 19, kind: input, shape index: {}]
  %s20 = inlined_call_operand.<no memory space> [shape: f32[1,1], index: 20, kind: input, shape index: {}]
  %s21 = inlined_call_operand.vmem [shape: f32[2,1], index: 21, kind: output, shape index: {}]
  %s22 = sld [smem:[#allocation0]]
  $region162: #{discriminator_forward.1} parent=0
    _
  %s24 = ssub.s32 1, %s22
  %s25 = scalar_select 0, %s24, %s22
  %v26 = vstv %s20
  %27 = vst [vmem:[#allocation2] sm:$0x1] %v26
  $region1: #{discriminator_forward.1} parent=0
    #allocation3 [shape = 'u8[2359296]{0}', space=vmem, size = 0x240000, scoped, tag = 'input window, operand 1, single buffered']
    #allocation4 [shape = 's32[1]{0}', space=sflag, size = 0x4, scoped, tag = 'scoped memory for discriminator_forward.1']
    #allocation5 [shape = 'u8[18432]{0}', space=vmem, size = 0x4800, scoped, tag = 'input window, operand 2, single buffered']
    #allocation6 [shape = 's32[1]{0}', space=sflag, size = 0x4, scoped, tag = 'scoped memory for discriminator_forward.1']
    #allocation7 [shape = 'u8[512]{0}', space=vmem, size = 0x400, scoped, tag = 'input window, operand 3, single buffered']
    #allocation8 [shape = 'u8[147456]{0}', space=vmem, size = 0x24000, scoped, tag = 'input window, operand 4, single buffered']
    #allocation9 [shape = 's32[1]{0}', space=sflag, size = 0x4, scoped, tag = 'scoped memory for discriminator_forward.1']
    #allocation10 [shape = 'u8[73728]{0}', space=vmem, size = 0x12000, scoped, tag = 'input window, operand 5, single buffered']
    #allocation11 [shape = 'u8[512]{0}', space=vmem, size = 0x400, scoped, tag = 'input window, operand 6, single buffered']
    #allocation12 [shape = 's32[1]{0}', space=sflag, size = 0x4, scoped, tag = 'scoped memory for discriminator_forward.1']
    #allocation13 [shape = 'u8[512]{0}', space=vmem, size = 0x400, scoped, tag = 'input window, operand 7, single buffered']
    #allocation14 [shape = 'u8[512]{0}', space=vmem, size = 0x400, scoped, tag = 'input window, operand 8, single buffered']
    #allocation15 [shape = 's32[1]{0}', space=sflag, size = 0x4, scoped, tag = 'scoped memory for discriminator_forward.1']
    #allocation16 [shape = 'u8[36864]{0}', space=vmem, size = 0x9000, scoped, tag = 'input window, operand 9, single buffered']
    #allocation17 [shape = 'u8[147456]{0}', space=vmem, size = 0x24000, scoped, tag = 'input window, operand 10, single buffered']
    #allocation18 [shape = 's32[1]{0}', space=sflag, size = 0x4, scoped, tag = 'scoped memory for discriminator_forward.1']
    #allocation19 [shape = 'u8[512]{0}', space=vmem, size = 0x400, scoped, tag = 'input window, operand 11, single buffered']
    #allocation20 [shape = 'u8[512]{0}', space=vmem, size = 0x400, scoped, tag = 'input window, operand 12, single buffered']
    #allocation21 [shape = 's32[1]{0}', space=sflag, size = 0x4, scoped, tag = 'scoped memory for discriminator_forward.1']
    #allocation22 [shape = 'u8[512]{0}', space=vmem, size = 0x400, scoped, tag = 'input window, operand 13, single buffered']
    #allocation23 [shape = 'u8[294912]{0}', space=vmem, size = 0x48000, scoped, tag = 'input window, operand 15, single buffered']
    #allocation24 [shape = 's32[1]{0}', space=sflag, size = 0x4, scoped, tag = 'scoped memory for discriminator_forward.1']
    #allocation25 [shape = 'u8[512]{0}', space=vmem, size = 0x400, scoped, tag = 'input window, operand 16, single buffered']
    #allocation26 [shape = 'u8[512]{0}', space=vmem, size = 0x400, scoped, tag = 'input window, operand 17, single buffered']
    #allocation27 [shape = 's32[1]{0}', space=sflag, size = 0x4, scoped, tag = 'scoped memory for discriminator_forward.1']
    #allocation28 [shape = 'u8[512]{0}', space=vmem, size = 0x400, scoped, tag = 'input window, operand 18, single buffered']
    %28 = vsyncpa [#allocation4], 0
    %29 = vsyncpa [#allocation6], 0
    %30 = vsyncpa [#allocation9], 0
    %31 = vsyncpa [#allocation12], 0
    %32 = vsyncpa [#allocation15], 0
    %33 = vsyncpa [#allocation18], 0
    %34 = vsyncpa [#allocation21], 0
    %35 = vsyncpa [#allocation24], 0
    %36 = vsyncpa [#allocation27], 0
    // Predicated region
    $region2: #{discriminator_forward.1} parent=1 // pred_check
      _
    $region3: #{discriminator_forward.1} parent=1 // pred_check_branch
      %38 = sbr.rel (0) target = $region5
    $region4: #{discriminator_forward.1} parent=1 // pred_region
      _
    $region5: #{discriminator_forward.1} parent=1 // pred_fallthru
      _
    // Predicated region
    $region6: #{discriminator_forward.1} parent=1 // pred_check
      _
    $region7: #{discriminator_forward.1} parent=1 // pred_check_branch
      %40 = sbr.rel (0) target = $region9
    $region8: #{discriminator_forward.1} parent=1 // pred_region
      %s42 = ssub.s32 73728, 73728
      %43 = vsyncadd [#allocation4], %s42
      %s44 = sshll.u32 [#allocation3], 4
      %s45 = int_to_ptr.vmem [resolvable:$true] %s44
      %50 = dma.hbm_to_vmem [thread:$0]  %s1, 73728, %s45, [#allocation4], 512, 512, 32
    $region9: #{discriminator_forward.1} parent=1 // pred_fallthru
      _
    // Predicated region
    $region10: #{discriminator_forward.1} parent=1 // pred_check
      _
    $region11: #{discriminator_forward.1} parent=1 // pred_check_branch
      %52 = sbr.rel (0) target = $region13
    $region12: #{discriminator_forward.1} parent=1 // pred_region
      %s54 = ssub.s32 576, 576
      %55 = vsyncadd [#allocation6], %s54
      %s56 = sshll.u32 [#allocation5], 4
      %s57 = int_to_ptr.vmem [resolvable:$true] %s56
      %62 = dma.hbm_to_vmem [thread:$0]  %s2, 576, %s57, [#allocation6], 64, 64, 4
    $region13: #{discriminator_forward.1} parent=1 // pred_fallthru
      _
    // Predicated region
    $region14: #{discriminator_forward.1} parent=1 // pred_check
      _
    $region15: #{discriminator_forward.1} parent=1 // pred_check_branch
      %64 = sbr.rel (0) target = $region17
    $region16: #{discriminator_forward.1} parent=1 // pred_region
      %s66 = ssub.s32 16, 16
      %67 = vsyncadd [#allocation6], %s66
      %s69 = sshll.u32 [#allocation7], 4
      %s70 = int_to_ptr.vmem [resolvable:$true] %s69
      %72 = dma.hbm_to_vmem [thread:$0]  %s3, 16, %s70, [#allocation6]
    $region17: #{discriminator_forward.1} parent=1 // pred_fallthru
      _
    // Predicated region
    $region18: #{discriminator_forward.1} parent=1 // pred_check
      _
    $region19: #{discriminator_forward.1} parent=1 // pred_check_branch
      %74 = sbr.rel (0) target = $region21
    $region20: #{discriminator_forward.1} parent=1 // pred_region
      %s76 = ssub.s32 4608, 4608
      %77 = vsyncadd [#allocation9], %s76
      %s78 = sshll.u32 [#allocation8], 4
      %s79 = int_to_ptr.vmem [resolvable:$true] %s78
      %84 = dma.hbm_to_vmem [thread:$0]  %s4, 4608, %s79, [#allocation9], 128, 128, 8
    $region21: #{discriminator_forward.1} parent=1 // pred_fallthru
      _
    // Predicated region
    $region22: #{discriminator_forward.1} parent=1 // pred_check
      _
    $region23: #{discriminator_forward.1} parent=1 // pred_check_branch
      %86 = sbr.rel (0) target = $region25
    $region24: #{discriminator_forward.1} parent=1 // pred_region
      %s88 = ssub.s32 2304, 2304
      %89 = vsyncadd [#allocation9], %s88
      %s90 = sshll.u32 [#allocation10], 4
      %s91 = int_to_ptr.vmem [resolvable:$true] %s90
      %96 = dma.hbm_to_vmem [thread:$0]  %s5, 2304, %s91, [#allocation9], 128, 128, 8
    $region25: #{discriminator_forward.1} parent=1 // pred_fallthru
      _
    // Predicated region
    $region26: #{discriminator_forward.1} parent=1 // pred_check
      _
    $region27: #{discriminator_forward.1} parent=1 // pred_check_branch
      %98 = sbr.rel (0) target = $region29
    $region28: #{discriminator_forward.1} parent=1 // pred_region
      %s100 = ssub.s32 16, 16
      %101 = vsyncadd [#allocation12], %s100
      %s103 = sshll.u32 [#allocation11], 4
      %s104 = int_to_ptr.vmem [resolvable:$true] %s103
      %106 = dma.hbm_to_vmem [thread:$0]  %s6, 16, %s104, [#allocation12]
    $region29: #{discriminator_forward.1} parent=1 // pred_fallthru
      _
    // Predicated region
    $region30: #{discriminator_forward.1} parent=1 // pred_check
      _
    $region31: #{discriminator_forward.1} parent=1 // pred_check_branch
      %108 = sbr.rel (0) target = $region33
    $region32: #{discriminator_forward.1} parent=1 // pred_region
      %s110 = ssub.s32 16, 16
      %111 = vsyncadd [#allocation12], %s110
      %s113 = sshll.u32 [#allocation13], 4
      %s114 = int_to_ptr.vmem [resolvable:$true] %s113
      %116 = dma.hbm_to_vmem [thread:$0]  %s7, 16, %s114, [#allocation12]
    $region33: #{discriminator_forward.1} parent=1 // pred_fallthru
      _
    // Predicated region
    $region34: #{discriminator_forward.1} parent=1 // pred_check
      _
    $region35: #{discriminator_forward.1} parent=1 // pred_check_branch
      %118 = sbr.rel (0) target = $region37
    $region36: #{discriminator_forward.1} parent=1 // pred_region
      %s120 = ssub.s32 16, 16
      %121 = vsyncadd [#allocation15], %s120
      %s123 = sshll.u32 [#allocation14], 4
      %s124 = int_to_ptr.vmem [resolvable:$true] %s123
      %126 = dma.hbm_to_vmem [thread:$0]  %s8, 16, %s124, [#allocation15]
    $region37: #{discriminator_forward.1} parent=1 // pred_fallthru
      _
    // Predicated region
    $region38: #{discriminator_forward.1} parent=1 // pred_check
      _
    $region39: #{discriminator_forward.1} parent=1 // pred_check_branch
      %128 = sbr.rel (0) target = $region41
    $region40: #{discriminator_forward.1} parent=1 // pred_region
      %s130 = ssub.s32 1152, 1152
      %131 = vsyncadd [#allocation15], %s130
      %s132 = sshll.u32 [#allocation16], 4
      %s133 = int_to_ptr.vmem [resolvable:$true] %s132
      %138 = dma.hbm_to_vmem [thread:$0]  %s9, 1152, %s133, [#allocation15], 128, 128, 8
    $region41: #{discriminator_forward.1} parent=1 // pred_fallthru
      _
    // Predicated region
    $region42: #{discriminator_forward.1} parent=1 // pred_check
      _
    $region43: #{discriminator_forward.1} parent=1 // pred_check_branch
      %140 = sbr.rel (0) target = $region45
    $region44: #{discriminator_forward.1} parent=1 // pred_region
      %s142 = ssub.s32 4608, 4608
      %143 = vsyncadd [#allocation18], %s142
      %s144 = sshll.u32 [#allocation17], 4
      %s145 = int_to_ptr.vmem [resolvable:$true] %s144
      %150 = dma.hbm_to_vmem [thread:$0]  %s10, 4608, %s145, [#allocation18], 128, 128, 8
    $region45: #{discriminator_forward.1} parent=1 // pred_fallthru
      _
    // Predicated region
    $region46: #{discriminator_forward.1} parent=1 // pred_check
      _
    $region47: #{discriminator_forward.1} parent=1 // pred_check_branch
      %152 = sbr.rel (0) target = $region49
    $region48: #{discriminator_forward.1} parent=1 // pred_region
      %s154 = ssub.s32 16, 16
      %155 = vsyncadd [#allocation18], %s154
      %s157 = sshll.u32 [#allocation19], 4
      %s158 = int_to_ptr.vmem [resolvable:$true] %s157
      %160 = dma.hbm_to_vmem [thread:$0]  %s11, 16, %s158, [#allocation18]
    $region49: #{discriminator_forward.1} parent=1 // pred_fallthru
      _
    // Predicated region
    $region50: #{discriminator_forward.1} parent=1 // pred_check
      _
    $region51: #{discriminator_forward.1} parent=1 // pred_check_branch
      %162 = sbr.rel (0) target = $region53
    $region52: #{discriminator_forward.1} parent=1 // pred_region
      %s164 = ssub.s32 16, 16
      %165 = vsyncadd [#allocation21], %s164
      %s167 = sshll.u32 [#allocation20], 4
      %s168 = int_to_ptr.vmem [resolvable:$true] %s167
      %170 = dma.hbm_to_vmem [thread:$0]  %s12, 16, %s168, [#allocation21]
    $region53: #{discriminator_forward.1} parent=1 // pred_fallthru
      _
    // Predicated region
    $region54: #{discriminator_forward.1} parent=1 // pred_check
      _
    $region55: #{discriminator_forward.1} parent=1 // pred_check_branch
      %172 = sbr.rel (0) target = $region57
    $region56: #{discriminator_forward.1} parent=1 // pred_region
      %s174 = ssub.s32 16, 16
      %175 = vsyncadd [#allocation21], %s174
      %s177 = sshll.u32 [#allocation22], 4
      %s178 = int_to_ptr.vmem [resolvable:$true] %s177
      %180 = dma.hbm_to_vmem [thread:$0]  %s13, 16, %s178, [#allocation21]
    $region57: #{discriminator_forward.1} parent=1 // pred_fallthru
      _
    // Predicated region
    $region58: #{discriminator_forward.1} parent=1 // pred_check
      _
    $region59: #{discriminator_forward.1} parent=1 // pred_check_branch
      %182 = sbr.rel (0) target = $region61
    $region60: #{discriminator_forward.1} parent=1 // pred_region
      _
    $region61: #{discriminator_forward.1} parent=1 // pred_fallthru
      _
    // Predicated region
    $region62: #{discriminator_forward.1} parent=1 // pred_check
      _
    $region63: #{discriminator_forward.1} parent=1 // pred_check_branch
      %184 = sbr.rel (0) target = $region65
    $region64: #{discriminator_forward.1} parent=1 // pred_region
      %s186 = ssub.s32 9216, 9216
      %187 = vsyncadd [#allocation24], %s186
      %s188 = sshll.u32 [#allocation23], 4
      %s189 = int_to_ptr.vmem [resolvable:$true] %s188
      %194 = dma.hbm_to_vmem [thread:$0]  %s15, 9216, %s189, [#allocation24], 128, 128, 8
    $region65: #{discriminator_forward.1} parent=1 // pred_fallthru
      _
    // Predicated region
    $region66: #{discriminator_forward.1} parent=1 // pred_check
      _
    $region67: #{discriminator_forward.1} parent=1 // pred_check_branch
      %196 = sbr.rel (0) target = $region69
    $region68: #{discriminator_forward.1} parent=1 // pred_region
      %s198 = ssub.s32 16, 16
      %199 = vsyncadd [#allocation24], %s198
      %s201 = sshll.u32 [#allocation25], 4
      %s202 = int_to_ptr.vmem [resolvable:$true] %s201
      %204 = dma.hbm_to_vmem [thread:$0]  %s16, 16, %s202, [#allocation24]
    $region69: #{discriminator_forward.1} parent=1 // pred_fallthru
      _
    // Predicated region
    $region70: #{discriminator_forward.1} parent=1 // pred_check
      _
    $region71: #{discriminator_forward.1} parent=1 // pred_check_branch
      %206 = sbr.rel (0) target = $region73
    $region72: #{discriminator_forward.1} parent=1 // pred_region
      %s208 = ssub.s32 16, 16
      %209 = vsyncadd [#allocation27], %s208
      %s211 = sshll.u32 [#allocation26], 4
      %s212 = int_to_ptr.vmem [resolvable:$true] %s211
      %214 = dma.hbm_to_vmem [thread:$0]  %s17, 16, %s212, [#allocation27]
    $region73: #{discriminator_forward.1} parent=1 // pred_fallthru
      _
    // Predicated region
    $region74: #{discriminator_forward.1} parent=1 // pred_check
      _
    $region75: #{discriminator_forward.1} parent=1 // pred_check_branch
      %216 = sbr.rel (0) target = $region77
    $region76: #{discriminator_forward.1} parent=1 // pred_region
      %s218 = ssub.s32 16, 16
      %219 = vsyncadd [#allocation27], %s218
      %s221 = sshll.u32 [#allocation28], 4
      %s222 = int_to_ptr.vmem [resolvable:$true] %s221
      %224 = dma.hbm_to_vmem [thread:$0]  %s18, 16, %s222, [#allocation27]
    $region77: #{discriminator_forward.1} parent=1 // pred_fallthru
      _
    // Predicated region
    $region78: #{discriminator_forward.1} parent=1 // pred_check
      _
    $region79: #{discriminator_forward.1} parent=1 // pred_check_branch
      %226 = sbr.rel (0) target = $region81
    $region80: #{discriminator_forward.1} parent=1 // pred_region
      _
    $region81: #{discriminator_forward.1} parent=1 // pred_fallthru
      _
    // Predicated region
    $region82: #{discriminator_forward.1} parent=1 // pred_check
      _
    $region83: #{discriminator_forward.1} parent=1 // pred_check_branch
      %228 = sbr.rel (0) target = $region85
    $region84: #{discriminator_forward.1} parent=1 // pred_region
      _
    $region85: #{discriminator_forward.1} parent=1 // pred_fallthru
      _
    // Predicated region
    $region86: #{discriminator_forward.1} parent=1 // pred_check
      _
    $region87: #{discriminator_forward.1} parent=1 // pred_check_branch
      %230 = sbr.rel (0) target = $region89
    $region88: #{discriminator_forward.1} parent=1 // pred_region
      %231 = dma.done [#allocation4], 73728
    $region89: #{discriminator_forward.1} parent=1 // pred_fallthru
      _
    // Predicated region
    $region90: #{discriminator_forward.1} parent=1 // pred_check
      _
    $region91: #{discriminator_forward.1} parent=1 // pred_check_branch
      %233 = sbr.rel (0) target = $region93
    $region92: #{discriminator_forward.1} parent=1 // pred_region
      %234 = dma.done [#allocation6], 576
    $region93: #{discriminator_forward.1} parent=1 // pred_fallthru
      _
    // Predicated region
    $region94: #{discriminator_forward.1} parent=1 // pred_check
      _
    $region95: #{discriminator_forward.1} parent=1 // pred_check_branch
      %236 = sbr.rel (0) target = $region97
    $region96: #{discriminator_forward.1} parent=1 // pred_region
      %237 = dma.done [#allocation6], 16
    $region97: #{discriminator_forward.1} parent=1 // pred_fallthru
      _
    // Predicated region
    $region98: #{discriminator_forward.1} parent=1 // pred_check
      _
    $region99: #{discriminator_forward.1} parent=1 // pred_check_branch
      %239 = sbr.rel (0) target = $region101
    $region100: #{discriminator_forward.1} parent=1 // pred_region
      %240 = dma.done [#allocation9], 4608
    $region101: #{discriminator_forward.1} parent=1 // pred_fallthru
      _
    // Predicated region
    $region102: #{discriminator_forward.1} parent=1 // pred_check
      _
    $region103: #{discriminator_forward.1} parent=1 // pred_check_branch
      %242 = sbr.rel (0) target = $region105
    $region104: #{discriminator_forward.1} parent=1 // pred_region
      %243 = dma.done [#allocation9], 2304
    $region105: #{discriminator_forward.1} parent=1 // pred_fallthru
      _
    // Predicated region
    $region106: #{discriminator_forward.1} parent=1 // pred_check
      _
    $region107: #{discriminator_forward.1} parent=1 // pred_check_branch
      %245 = sbr.rel (0) target = $region109
    $region108: #{discriminator_forward.1} parent=1 // pred_region
      %246 = dma.done [#allocation12], 16
    $region109: #{discriminator_forward.1} parent=1 // pred_fallthru
      _
    // Predicated region
    $region110: #{discriminator_forward.1} parent=1 // pred_check
      _
    $region111: #{discriminator_forward.1} parent=1 // pred_check_branch
      %248 = sbr.rel (0) target = $region113
    $region112: #{discriminator_forward.1} parent=1 // pred_region
      %249 = dma.done [#allocation12], 16
    $region113: #{discriminator_forward.1} parent=1 // pred_fallthru
      _
    // Predicated region
    $region114: #{discriminator_forward.1} parent=1 // pred_check
      _
    $region115: #{discriminator_forward.1} parent=1 // pred_check_branch
      %251 = sbr.rel (0) target = $region117
    $region116: #{discriminator_forward.1} parent=1 // pred_region
      %252 = dma.done [#allocation15], 16
    $region117: #{discriminator_forward.1} parent=1 // pred_fallthru
      _
    // Predicated region
    $region118: #{discriminator_forward.1} parent=1 // pred_check
      _
    $region119: #{discriminator_forward.1} parent=1 // pred_check_branch
      %254 = sbr.rel (0) target = $region121
    $region120: #{discriminator_forward.1} parent=1 // pred_region
      %255 = dma.done [#allocation15], 1152
    $region121: #{discriminator_forward.1} parent=1 // pred_fallthru
      _
    // Predicated region
    $region122: #{discriminator_forward.1} parent=1 // pred_check
      _
    $region123: #{discriminator_forward.1} parent=1 // pred_check_branch
      %257 = sbr.rel (0) target = $region125
    $region124: #{discriminator_forward.1} parent=1 // pred_region
      %258 = dma.done [#allocation18], 4608
    $region125: #{discriminator_forward.1} parent=1 // pred_fallthru
      _
    // Predicated region
    $region126: #{discriminator_forward.1} parent=1 // pred_check
      _
    $region127: #{discriminator_forward.1} parent=1 // pred_check_branch
      %260 = sbr.rel (0) target = $region129
    $region128: #{discriminator_forward.1} parent=1 // pred_region
      %261 = dma.done [#allocation18], 16
    $region129: #{discriminator_forward.1} parent=1 // pred_fallthru
      _
    // Predicated region
    $region130: #{discriminator_forward.1} parent=1 // pred_check
      _
    $region131: #{discriminator_forward.1} parent=1 // pred_check_branch
      %263 = sbr.rel (0) target = $region133
    $region132: #{discriminator_forward.1} parent=1 // pred_region
      %264 = dma.done [#allocation21], 16
    $region133: #{discriminator_forward.1} parent=1 // pred_fallthru
      _
    // Predicated region
    $region134: #{discriminator_forward.1} parent=1 // pred_check
      _
    $region135: #{discriminator_forward.1} parent=1 // pred_check_branch
      %266 = sbr.rel (0) target = $region137
    $region136: #{discriminator_forward.1} parent=1 // pred_region
      %267 = dma.done [#allocation21], 16
    $region137: #{discriminator_forward.1} parent=1 // pred_fallthru
      _
    // Predicated region
    $region138: #{discriminator_forward.1} parent=1 // pred_check
      _
    $region139: #{discriminator_forward.1} parent=1 // pred_check_branch
      %269 = sbr.rel (0) target = $region141
    $region140: #{discriminator_forward.1} parent=1 // pred_region
      %270 = dma.done [#allocation24], 9216
    $region141: #{discriminator_forward.1} parent=1 // pred_fallthru
      _
    // Predicated region
    $region142: #{discriminator_forward.1} parent=1 // pred_check
      _
    $region143: #{discriminator_forward.1} parent=1 // pred_check_branch
      %272 = sbr.rel (0) target = $region145
    $region144: #{discriminator_forward.1} parent=1 // pred_region
      %273 = dma.done [#allocation24], 16
    $region145: #{discriminator_forward.1} parent=1 // pred_fallthru
      _
    // Predicated region
    $region146: #{discriminator_forward.1} parent=1 // pred_check
      _
    $region147: #{discriminator_forward.1} parent=1 // pred_check_branch
      %275 = sbr.rel (0) target = $region149
    $region148: #{discriminator_forward.1} parent=1 // pred_region
      %276 = dma.done [#allocation27], 16
    $region149: #{discriminator_forward.1} parent=1 // pred_fallthru
      _
    // Predicated region
    $region150: #{discriminator_forward.1} parent=1 // pred_check
      _
    $region151: #{discriminator_forward.1} parent=1 // pred_check_branch
      %278 = sbr.rel (0) target = $region153
    $region152: #{discriminator_forward.1} parent=1 // pred_region
      %279 = dma.done [#allocation27], 16
    $region153: #{discriminator_forward.1} parent=1 // pred_fallthru
      _
    %v280 = vld [vmem:[%s0] sm:$0xff]
    %v281 = vld [vmem:[%s0 + $0x8] sm:$0xff]
    %v282 = vld [vmem:[%s0 + $0x10] sm:$0xff]
    %v283 = vld [vmem:[%s0 + $0x18] sm:$0xff]
    %v284 = vld [vmem:[%s0 + $0x20] sm:$0xff]
    %v285 = vld [vmem:[%s0 + $0x28] sm:$0xff]
    %v286 = vld [vmem:[%s0 + $0x30] sm:$0xff]
    %v287 = vld [vmem:[%s0 + $0x38] sm:$0xff]
    %v288 = vld [vmem:[%s0 + $0x40] sm:$0xff]
    %v289 = vld [vmem:[%s0 + $0x48] sm:$0xff]
    %v290 = vld [vmem:[%s0 + $0x50] sm:$0xff]
    %v291 = vld [vmem:[%s0 + $0x58] sm:$0xff]
    %v292 = vld [vmem:[%s0 + $0x60] sm:$0xff]
    %v293 = vld [vmem:[%s0 + $0x68] sm:$0xff]
    %v294 = vld [vmem:[%s0 + $0x70] sm:$0xff]
    %v295 = vld [vmem:[%s0 + $0x78] sm:$0xff]
    %v296 = vld [vmem:[%s0 + $0x80] sm:$0xff]
    %v297 = vld [vmem:[%s0 + $0x88] sm:$0xff]
    %v298 = vld [vmem:[%s0 + $0x90] sm:$0xff]
    %v299 = vld [vmem:[%s0 + $0x98] sm:$0xff]
    %v300 = vld [vmem:[%s0 + $0xa0] sm:$0xff]
    %v301 = vld [vmem:[%s0 + $0xa8] sm:$0xff]
    %v302 = vld [vmem:[%s0 + $0xb0] sm:$0xff]
    %v303 = vld [vmem:[%s0 + $0xb8] sm:$0xff]
    %v304 = vld [vmem:[%s0 + $0xc0] sm:$0xff]
    %v305 = vld [vmem:[%s0 + $0xc8] sm:$0xff]
    %v306 = vld [vmem:[%s0 + $0xd0] sm:$0xff]
    %v307 = vld [vmem:[%s0 + $0xd8] sm:$0xff]
    %v308 = vld [vmem:[%s0 + $0xe0] sm:$0xff]
    %v309 = vld [vmem:[%s0 + $0xe8] sm:$0xff]
    %v310 = vld [vmem:[%s0 + $0xf0] sm:$0xff]
    %v311 = vld [vmem:[%s0 + $0xf8] sm:$0xff]
    %v312 = vld [vmem:[%s0 + $0x100] sm:$0xff]
    %v313 = vld [vmem:[%s0 + $0x108] sm:$0xff]
    %v314 = vld [vmem:[%s0 + $0x110] sm:$0xff]
    %v315 = vld [vmem:[%s0 + $0x118] sm:$0xff]
    %v316 = vld [vmem:[%s0 + $0x120] sm:$0xff]
    %v317 = vld [vmem:[%s0 + $0x128] sm:$0xff]
    %v318 = vld [vmem:[%s0 + $0x130] sm:$0xff]
    %v319 = vld [vmem:[%s0 + $0x138] sm:$0xff]
    %v320 = vld [vmem:[%s0 + $0x140] sm:$0xff]
    %v321 = vld [vmem:[%s0 + $0x148] sm:$0xff]
    %v322 = vld [vmem:[%s0 + $0x150] sm:$0xff]
    %v323 = vld [vmem:[%s0 + $0x158] sm:$0xff]
    %v324 = vld [vmem:[%s0 + $0x160] sm:$0xff]
    %v325 = vld [vmem:[%s0 + $0x168] sm:$0xff]
    %v326 = vld [vmem:[%s0 + $0x170] sm:$0xff]
    %v327 = vld [vmem:[%s0 + $0x178] sm:$0xff]
    %v328 = vld [vmem:[%s0 + $0x180] sm:$0xff]
    %v329 = vld [vmem:[%s0 + $0x188] sm:$0xff]
    %v330 = vld [vmem:[%s0 + $0x190] sm:$0xff]
    %v331 = vld [vmem:[%s0 + $0x198] sm:$0xff]
    %v332 = vld [vmem:[%s0 + $0x1a0] sm:$0xff]
    %v333 = vld [vmem:[%s0 + $0x1a8] sm:$0xff]
    %v334 = vld [vmem:[%s0 + $0x1b0] sm:$0xff]
    %v335 = vld [vmem:[%s0 + $0x1b8] sm:$0xff]
    %v336 = vld [vmem:[%s0 + $0x1c0] sm:$0xff]
    %v337 = vld [vmem:[%s0 + $0x1c8] sm:$0xff]
    %v338 = vld [vmem:[%s0 + $0x1d0] sm:$0xff]
    %v339 = vld [vmem:[%s0 + $0x1d8] sm:$0xff]
    %v340 = vld [vmem:[%s0 + $0x1e0] sm:$0xff]
    %v341 = vld [vmem:[%s0 + $0x1e8] sm:$0xff]
    %v342 = vld [vmem:[%s0 + $0x1f0] sm:$0xff]
    %v343 = vld [vmem:[%s0 + $0x1f8] sm:$0xff]
    %v344 = vld [vmem:[#allocation3] sm:$0xff]
    %v345 = vld [vmem:[#allocation3 + $0x8] sm:$0xff]
    %v346 = vld [vmem:[#allocation3 + $0x10] sm:$0xff]
    %v347 = vld [vmem:[#allocation3 + $0x18] sm:$0xff]
    %v348 = vld [vmem:[#allocation3 + $0x20] sm:$0xff]
    %v349 = vld [vmem:[#allocation3 + $0x28] sm:$0xff]
    %v350 = vld [vmem:[#allocation3 + $0x30] sm:$0xff]
    %v351 = vld [vmem:[#allocation3 + $0x38] sm:$0xff]
    %v352 = vld [vmem:[#allocation3 + $0x40] sm:$0xff]
    %v353 = vld [vmem:[#allocation3 + $0x48] sm:$0xff]
    %v354 = vld [vmem:[#allocation3 + $0x50] sm:$0xff]
    %v355 = vld [vmem:[#allocation3 + $0x58] sm:$0xff]
    %v356 = vld [vmem:[#allocation3 + $0x60] sm:$0xff]
    %v357 = vld [vmem:[#allocation3 + $0x68] sm:$0xff]
    %v358 = vld [vmem:[#allocation3 + $0x70] sm:$0xff]
    %v359 = vld [vmem:[#allocation3 + $0x78] sm:$0xff]
    %v360 = vld [vmem:[#allocation3 + $0x80] sm:$0xff]
    %v361 = vld [vmem:[#allocation3 + $0x88] sm:$0xff]
    %v362 = vld [vmem:[#allocation3 + $0x90] sm:$0xff]
    %v363 = vld [vmem:[#allocation3 + $0x98] sm:$0xff]
    %v364 = vld [vmem:[#allocation3 + $0xa0] sm:$0xff]
    %v365 = vld [vmem:[#allocation3 + $0xa8] sm:$0xff]
    %v366 = vld [vmem:[#allocation3 + $0xb0] sm:$0xff]
    %v367 = vld [vmem:[#allocation3 + $0xb8] sm:$0xff]
    %v368 = vld [vmem:[#allocation3 + $0xc0] sm:$0xff]
    %v369 = vld [vmem:[#allocation3 + $0xc8] sm:$0xff]
    %v370 = vld [vmem:[#allocation3 + $0xd0] sm:$0xff]
    %v371 = vld [vmem:[#allocation3 + $0xd8] sm:$0xff]
    %v372 = vld [vmem:[#allocation3 + $0xe0] sm:$0xff]
    %v373 = vld [vmem:[#allocation3 + $0xe8] sm:$0xff]
    %v374 = vld [vmem:[#allocation3 + $0xf0] sm:$0xff]
    %v375 = vld [vmem:[#allocation3 + $0xf8] sm:$0xff]
    %v376 = vld [vmem:[#allocation3 + $0x100] sm:$0xff]
    %v377 = vld [vmem:[#allocation3 + $0x108] sm:$0xff]
    %v378 = vld [vmem:[#allocation3 + $0x110] sm:$0xff]
    %v379 = vld [vmem:[#allocation3 + $0x118] sm:$0xff]
    %v380 = vld [vmem:[#allocation3 + $0x120] sm:$0xff]
    %v381 = vld [vmem:[#allocation3 + $0x128] sm:$0xff]
    %v382 = vld [vmem:[#allocation3 + $0x130] sm:$0xff]
    %v383 = vld [vmem:[#allocation3 + $0x138] sm:$0xff]
    %v384 = vld [vmem:[#allocation3 + $0x140] sm:$0xff]
    %v385 = vld [vmem:[#allocation3 + $0x148] sm:$0xff]
    %v386 = vld [vmem:[#allocation3 + $0x150] sm:$0xff]
    %v387 = vld [vmem:[#allocation3 + $0x158] sm:$0xff]
    %v388 = vld [vmem:[#allocation3 + $0x160] sm:$0xff]
    %v389 = vld [vmem:[#allocation3 + $0x168] sm:$0xff]
    %v390 = vld [vmem:[#allocation3 + $0x170] sm:$0xff]
    %v391 = vld [vmem:[#allocation3 + $0x178] sm:$0xff]
    %v392 = vld [vmem:[#allocation3 + $0x180] sm:$0xff]
    %v393 = vld [vmem:[#allocation3 + $0x188] sm:$0xff]
    %v394 = vld [vmem:[#allocation3 + $0x190] sm:$0xff]
    %v395 = vld [vmem:[#allocation3 + $0x198] sm:$0xff]
    %v396 = vld [vmem:[#allocation3 + $0x1a0] sm:$0xff]
    %v397 = vld [vmem:[#allocation3 + $0x1a8] sm:$0xff]
    %v398 = vld [vmem:[#allocation3 + $0x1b0] sm:$0xff]
    %v399 = vld [vmem:[#allocation3 + $0x1b8] sm:$0xff]
    %v400 = vld [vmem:[#allocation3 + $0x1c0] sm:$0xff]
    %v401 = vld [vmem:[#allocation3 + $0x1c8] sm:$0xff]
    %v402 = vld [vmem:[#allocation3 + $0x1d0] sm:$0xff]
    %v403 = vld [vmem:[#allocation3 + $0x1d8] sm:$0xff]
    %v404 = vld [vmem:[#allocation3 + $0x1e0] sm:$0xff]
    %v405 = vld [vmem:[#allocation3 + $0x1e8] sm:$0xff]
    %v406 = vld [vmem:[#allocation3 + $0x1f0] sm:$0xff]
    %v407 = vld [vmem:[#allocation3 + $0x1f8] sm:$0xff]
    %408 = vmatprep.subr.mxu0 0.0
    %409 = vmatpush1.msra.mxu0 %v280
    %410 = vmatprep.subr.mxu0 0.0
    %411 = vmatpush1.msra.mxu0 %v281
    %412 = vmatprep.subr.mxu0 0.0
    %413 = vmatpush1.msra.mxu0 %v282
    %414 = vmatprep.subr.mxu0 0.0
    %415 = vmatpush1.msra.mxu0 %v283
    %416 = vmatprep.subr.mxu0 0.0
    %417 = vmatpush1.msra.mxu0 %v284
    %418 = vmatprep.subr.mxu0 0.0
    %419 = vmatpush1.msra.mxu0 %v285
    %420 = vmatprep.subr.mxu0 0.0
    %421 = vmatpush1.msra.mxu0 %v286
    %422 = vmatprep.subr.mxu0 0.0
    %423 = vmatpush1.msra.mxu0 %v287
    %424 = vmatprep.subr.mxu0 0.0
    %425 = vmatpush1.msra.mxu0 %v288
    %426 = vmatprep.subr.mxu0 0.0
    %427 = vmatpush1.msra.mxu0 %v289
    %428 = vmatprep.subr.mxu0 0.0
    %429 = vmatpush1.msra.mxu0 %v290
    %430 = vmatprep.subr.mxu0 0.0
    %431 = vmatpush1.msra.mxu0 %v291
    %432 = vmatprep.subr.mxu0 0.0
    %433 = vmatpush1.msra.mxu0 %v292
    %434 = vmatprep.subr.mxu0 0.0
    %435 = vmatpush1.msra.mxu0 %v293
    %436 = vmatprep.subr.mxu0 0.0
    %437 = vmatpush1.msra.mxu0 %v294
    %438 = vmatprep.subr.mxu0 0.0
    %439 = vmatpush1.msra.mxu0 %v295
    %440 = vmatprep.subr.mxu0 0.0
    %441 = vmatpush1.msra.mxu0 %v296
    %442 = vmatprep.subr.mxu0 0.0
    %443 = vmatpush1.msra.mxu0 %v297
    %444 = vmatprep.subr.mxu0 0.0
    %445 = vmatpush1.msra.mxu0 %v298
    %446 = vmatprep.subr.mxu0 0.0
    %447 = vmatpush1.msra.mxu0 %v299
    %448 = vmatprep.subr.mxu0 0.0
    %449 = vmatpush1.msra.mxu0 %v300
    %450 = vmatprep.subr.mxu0 0.0
    %451 = vmatpush1.msra.mxu0 %v301
    %452 = vmatprep.subr.mxu0 0.0
    %453 = vmatpush1.msra.mxu0 %v302
    %454 = vmatprep.subr.mxu0 0.0
    %455 = vmatpush1.msra.mxu0 %v303
    %456 = vmatprep.subr.mxu0 0.0
    %457 = vmatpush1.msra.mxu0 %v304
    %458 = vmatprep.subr.mxu0 0.0
    %459 = vmatpush1.msra.mxu0 %v305
    %460 = vmatprep.subr.mxu0 0.0
    %461 = vmatpush1.msra.mxu0 %v306
    %462 = vmatprep.subr.mxu0 0.0
    %463 = vmatpush1.msra.mxu0 %v307
    %464 = vmatprep.subr.mxu0 0.0
    %465 = vmatpush1.msra.mxu0 %v308
    %466 = vmatprep.subr.mxu0 0.0
    %467 = vmatpush1.msra.mxu0 %v309
    %468 = vmatprep.subr.mxu0 0.0
    %469 = vmatpush1.msra.mxu0 %v310
    %470 = vmatprep.subr.mxu0 0.0
    %471 = vmatpush1.msra.mxu0 %v311
    %472 = vmatprep.mubr.f32.mxu0 %v345
    %473 = vmatmul.mubr.f32.gmra.mrb[0].mxu0 %v344
    %v474 = vpop.f32.mrb[0].mxu0
    %v475 = vadd.f32 0.0, %v474
    %v476 = vpop.f32.mrb[0].mxu0
    %477 = vmatprep.mubr.f32.mxu0 %v349
    %478 = vmatmul.mubr.f32.gmra.mrb[0].mxu0 %v348
    %v479 = vpop.f32.mrb[0].mxu0
    %v480 = vadd.f32 0.0, %v479
    %v481 = vpop.f32.mrb[0].mxu0
    %482 = vmatprep.mubr.f32.mxu0 %v353
    %483 = vmatmul.mubr.f32.gmra.mrb[0].mxu0 %v352
    %v484 = vpop.f32.mrb[0].mxu0
    %v485 = vadd.f32 0.0, %v484
    %v486 = vpop.f32.mrb[0].mxu0
    %487 = vmatprep.mubr.f32.mxu0 %v357
    %488 = vmatmul.mubr.f32.gmra.mrb[0].mxu0 %v356
    %v489 = vpop.f32.mrb[0].mxu0
    %v490 = vadd.f32 0.0, %v489
    %v491 = vpop.f32.mrb[0].mxu0
    %492 = vmatprep.mubr.f32.mxu0 %v361
    %493 = vmatmul.mubr.f32.gmra.mrb[0].mxu0 %v360
    %v494 = vpop.f32.mrb[0].mxu0
    %v495 = vadd.f32 0.0, %v494
    %v496 = vpop.f32.mrb[0].mxu0
    %497 = vmatprep.mubr.f32.mxu0 %v365
    %498 = vmatmul.mubr.f32.gmra.mrb[0].mxu0 %v364
    %v499 = vpop.f32.mrb[0].mxu0
    %v500 = vadd.f32 0.0, %v499
    %v501 = vpop.f32.mrb[0].mxu0
    %502 = vmatprep.mubr.f32.mxu0 %v369
    %503 = vmatmul.mubr.f32.gmra.mrb[0].mxu0 %v368
    %v504 = vpop.f32.mrb[0].mxu0
    %v505 = vadd.f32 0.0, %v504
    %v506 = vpop.f32.mrb[0].mxu0
    %507 = vmatprep.mubr.f32.mxu0 %v373
    %508 = vmatmul.mubr.f32.gmra.mrb[0].mxu0 %v372
    %v509 = vpop.f32.mrb[0].mxu0
    %v510 = vadd.f32 0.0, %v509
    %v511 = vpop.f32.mrb[0].mxu0
    %512 = vmatprep.mubr.f32.mxu0 %v377
    %513 = vmatmul.mubr.f32.gmra.mrb[0].mxu0 %v376
    %v514 = vpop.f32.mrb[0].mxu0
    %v515 = vadd.f32 0.0, %v514
    %v516 = vpop.f32.mrb[0].mxu0
    %517 = vmatprep.mubr.f32.mxu0 %v381
    %518 = vmatmul.mubr.f32.gmra.mrb[0].mxu0 %v380
    %v519 = vpop.f32.mrb[0].mxu0
    %v520 = vadd.f32 0.0, %v519
    %v521 = vpop.f32.mrb[0].mxu0
    %522 = vmatprep.mubr.f32.mxu0 %v385
    %523 = vmatmul.mubr.f32.gmra.mrb[0].mxu0 %v384
    %v524 = vpop.f32.mrb[0].mxu0
    %v525 = vadd.f32 0.0, %v524
    %v526 = vpop.f32.mrb[0].mxu0
    %527 = vmatprep.mubr.f32.mxu0 %v389
    %528 = vmatmul.mubr.f32.gmra.mrb[0].mxu0 %v388
    %v529 = vpop.f32.mrb[0].mxu0
    %v530 = vadd.f32 0.0, %v529
    %v531 = vpop.f32.mrb[0].mxu0
    %532 = vmatprep.mubr.f32.mxu0 %v393
    %533 = vmatmul.mubr.f32.gmra.mrb[0].mxu0 %v392
    %v534 = vpop.f32.mrb[0].mxu0
    %v535 = vadd.f32 0.0, %v534
    %v536 = vpop.f32.mrb[0].mxu0
    %537 = vmatprep.mubr.f32.mxu0 %v397
    %538 = vmatmul.mubr.f32.gmra.mrb[0].mxu0 %v396
    %v539 = vpop.f32.mrb[0].mxu0
    %v540 = vadd.f32 0.0, %v539
    %v541 = vpop.f32.mrb[0].mxu0
    %542 = vmatprep.mubr.f32.mxu0 %v401
    %543 = vmatmul.mubr.f32.gmra.mrb[0].mxu0 %v400
    %v544 = vpop.f32.mrb[0].mxu0
    %v545 = vadd.f32 0.0, %v544
    %v546 = vpop.f32.mrb[0].mxu0
    %547 = vmatprep.mubr.f32.mxu0 %v405
    %548 = vmatmul.mubr.f32.gmra.mrb[0].mxu0 %v404
    %v549 = vpop.f32.mrb[0].mxu0
    %v550 = vadd.f32 0.0, %v549
    %v551 = vpop.f32.mrb[0].mxu0
    %552 = vdwg.mxu0
    %553 = vmatprep.subr.mxu0 0.0
    %554 = vmatpush1.msra.mxu0 %v312
    %555 = vmatprep.subr.mxu0 0.0
    %556 = vmatpush1.msra.mxu0 %v313
    %557 = vmatprep.subr.mxu0 0.0
    %558 = vmatpush1.msra.mxu0 %v314
    %559 = vmatprep.subr.mxu0 0.0
    %560 = vmatpush1.msra.mxu0 %v315
    %561 = vmatprep.subr.mxu0 0.0
    %562 = vmatpush1.msra.mxu0 %v316
    %563 = vmatprep.subr.mxu0 0.0
    %564 = vmatpush1.msra.mxu0 %v317
    %565 = vmatprep.subr.mxu0 0.0
    %566 = vmatpush1.msra.mxu0 %v318
    %567 = vmatprep.subr.mxu0 0.0
    %568 = vmatpush1.msra.mxu0 %v319
    %569 = vmatprep.subr.mxu0 0.0
    %570 = vmatpush1.msra.mxu0 %v320
    %571 = vmatprep.subr.mxu0 0.0
    %572 = vmatpush1.msra.mxu0 %v321
    %573 = vmatprep.subr.mxu0 0.0
    %574 = vmatpush1.msra.mxu0 %v322
    %575 = vmatprep.subr.mxu0 0.0
    %576 = vmatpush1.msra.mxu0 %v323
    %577 = vmatprep.subr.mxu0 0.0
    %578 = vmatpush1.msra.mxu0 %v324
    %579 = vmatprep.subr.mxu0 0.0
    %580 = vmatpush1.msra.mxu0 %v325
    %581 = vmatprep.subr.mxu0 0.0
    %582 = vmatpush1.msra.mxu0 %v326
    %583 = vmatprep.subr.mxu0 0.0
    %584 = vmatpush1.msra.mxu0 %v327
    %585 = vmatprep.subr.mxu0 0.0
    %586 = vmatpush1.msra.mxu0 %v328
    %587 = vmatprep.subr.mxu0 0.0
    %588 = vmatpush1.msra.mxu0 %v329
    %589 = vmatprep.subr.mxu0 0.0
    %590 = vmatpush1.msra.mxu0 %v330
    %591 = vmatprep.subr.mxu0 0.0
    %592 = vmatpush1.msra.mxu0 %v331
    %593 = vmatprep.subr.mxu0 0.0
    %594 = vmatpush1.msra.mxu0 %v332
    %595 = vmatprep.subr.mxu0 0.0
    %596 = vmatpush1.msra.mxu0 %v333
    %597 = vmatprep.subr.mxu0 0.0
    %598 = vmatpush1.msra.mxu0 %v334
    %599 = vmatprep.subr.mxu0 0.0
    %600 = vmatpush1.msra.mxu0 %v335
    %601 = vmatprep.subr.mxu0 0.0
    %602 = vmatpush1.msra.mxu0 %v336
    %603 = vmatprep.subr.mxu0 0.0
    %604 = vmatpush1.msra.mxu0 %v337
    %605 = vmatprep.subr.mxu0 0.0
    %606 = vmatpush1.msra.mxu0 %v338
    %607 = vmatprep.subr.mxu0 0.0
    %608 = vmatpush1.msra.mxu0 %v339
    %609 = vmatprep.subr.mxu0 0.0
    %610 = vmatpush1.msra.mxu0 %v340
    %611 = vmatprep.subr.mxu0 0.0
    %612 = vmatpush1.msra.mxu0 %v341
    %613 = vmatprep.subr.mxu0 0.0
    %614 = vmatpush1.msra.mxu0 %v342
    %615 = vmatprep.subr.mxu0 0.0
    %616 = vmatpush1.msra.mxu0 %v343
    %617 = vmatprep.mubr.f32.mxu0 %v347
    %618 = vmatmul.mubr.f32.gmra.mrb[0].mxu0 %v346
    %v619 = vpop.f32.mrb[0].mxu0
    %v620 = vadd.f32 %v475, %v619
    %v621 = vpop.f32.mrb[0].mxu0
    %622 = vmatprep.mubr.f32.mxu0 %v351
    %623 = vmatmul.mubr.f32.gmra.mrb[0].mxu0 %v350
    %v624 = vpop.f32.mrb[0].mxu0
    %v625 = vadd.f32 %v480, %v624
    %v626 = vpop.f32.mrb[0].mxu0
    %627 = vmatprep.mubr.f32.mxu0 %v355
    %628 = vmatmul.mubr.f32.gmra.mrb[0].mxu0 %v354
    %v629 = vpop.f32.mrb[0].mxu0
    %v630 = vadd.f32 %v485, %v629
    %v631 = vpop.f32.mrb[0].mxu0
    %632 = vmatprep.mubr.f32.mxu0 %v359
    %633 = vmatmul.mubr.f32.gmra.mrb[0].mxu0 %v358
    %v634 = vpop.f32.mrb[0].mxu0
    %v635 = vadd.f32 %v490, %v634
    %v636 = vpop.f32.mrb[0].mxu0
    %637 = vmatprep.mubr.f32.mxu0 %v363
    %638 = vmatmul.mubr.f32.gmra.mrb[0].mxu0 %v362
    %v639 = vpop.f32.mrb[0].mxu0
    %v640 = vadd.f32 %v495, %v639
    %v641 = vpop.f32.mrb[0].mxu0
    %642 = vmatprep.mubr.f32.mxu0 %v367
    %643 = vmatmul.mubr.f32.gmra.mrb[0].mxu0 %v366
    %v644 = vpop.f32.mrb[0].mxu0
    %v645 = vadd.f32 %v500, %v644
    %v646 = vpop.f32.mrb[0].mxu0
    %647 = vmatprep.mubr.f32.mxu0 %v371
    %648 = vmatmul.mubr.f32.gmra.mrb[0].mxu0 %v370
    %v649 = vpop.f32.mrb[0].mxu0
    %v650 = vadd.f32 %v505, %v649
    %v651 = vpop.f32.mrb[0].mxu0
    %652 = vmatprep.mubr.f32.mxu0 %v375
    %653 = vmatmul.mubr.f32.gmra.mrb[0].mxu0 %v374
    %v654 = vpop.f32.mrb[0].mxu0
    %v655 = vadd.f32 %v510, %v654
    %v656 = vpop.f32.mrb[0].mxu0
    %657 = vmatprep.mubr.f32.mxu0 %v379
    %658 = vmatmul.mubr.f32.gmra.mrb[0].mxu0 %v378
    %v659 = vpop.f32.mrb[0].mxu0
    %v660 = vadd.f32 %v515, %v659
    %v661 = vpop.f32.mrb[0].mxu0
    %662 = vmatprep.mubr.f32.mxu0 %v383
    %663 = vmatmul.mubr.f32.gmra.mrb[0].mxu0 %v382
    %v664 = vpop.f32.mrb[0].mxu0
    %v665 = vadd.f32 %v520, %v664
    %v666 = vpop.f32.mrb[0].mxu0
    %667 = vmatprep.mubr.f32.mxu0 %v387
    %668 = vmatmul.mubr.f32.gmra.mrb[0].mxu0 %v386
    %v669 = vpop.f32.mrb[0].mxu0
    %v670 = vadd.f32 %v525, %v669
    %v671 = vpop.f32.mrb[0].mxu0
    %672 = vmatprep.mubr.f32.mxu0 %v391
    %673 = vmatmul.mubr.f32.gmra.mrb[0].mxu0 %v390
    %v674 = vpop.f32.mrb[0].mxu0
    %v675 = vadd.f32 %v530, %v674
    %v676 = vpop.f32.mrb[0].mxu0
    %677 = vmatprep.mubr.f32.mxu0 %v395
    %678 = vmatmul.mubr.f32.gmra.mrb[0].mxu0 %v394
    %v679 = vpop.f32.mrb[0].mxu0
    %v680 = vadd.f32 %v535, %v679
    %v681 = vpop.f32.mrb[0].mxu0
    %682 = vmatprep.mubr.f32.mxu0 %v399
    %683 = vmatmul.mubr.f32.gmra.mrb[0].mxu0 %v398
    %v684 = vpop.f32.mrb[0].mxu0
    %v685 = vadd.f32 %v540, %v684
    %v686 = vpop.f32.mrb[0].mxu0
    %687 = vmatprep.mubr.f32.mxu0 %v403
    %688 = vmatmul.mubr.f32.gmra.mrb[0].mxu0 %v402
    %v689 = vpop.f32.mrb[0].mxu0
    %v690 = vadd.f32 %v545, %v689
    %v691 = vpop.f32.mrb[0].mxu0
    %692 = vmatprep.mubr.f32.mxu0 %v407
    %693 = vmatmul.mubr.f32.gmra.mrb[0].mxu0 %v406
    %v694 = vpop.f32.mrb[0].mxu0
    %v695 = vadd.f32 %v550, %v694
    %v696 = vpop.f32.mrb[0].mxu0
    %697 = vdwg.mxu0
    %v698 = vld [vmem:[#allocation5] sm:$0x7]
    %s699 = scalar_lea.vmem [#allocation3], 512
    %v700 = vld [vmem:[%s699] sm:$0xff]
    %v701 = vld [vmem:[%s699 + $0x8] sm:$0xff]
    %v702 = vld [vmem:[%s699 + $0x10] sm:$0xff]
    %v703 = vld [vmem:[%s699 + $0x18] sm:$0xff]
    %v704 = vld [vmem:[%s699 + $0x20] sm:$0xff]
    %v705 = vld [vmem:[%s699 + $0x28] sm:$0xff]
    %v706 = vld [vmem:[%s699 + $0x30] sm:$0xff]
    %v707 = vld [vmem:[%s699 + $0x38] sm:$0xff]
    %v708 = vld [vmem:[%s699 + $0x40] sm:$0xff]
    %v709 = vld [vmem:[%s699 + $0x48] sm:$0xff]
    %v710 = vld [vmem:[%s699 + $0x50] sm:$0xff]
    %v711 = vld [vmem:[%s699 + $0x58] sm:$0xff]
    %v712 = vld [vmem:[%s699 + $0x60] sm:$0xff]
    %v713 = vld [vmem:[%s699 + $0x68] sm:$0xff]
    %v714 = vld [vmem:[%s699 + $0x70] sm:$0xff]
    %v715 = vld [vmem:[%s699 + $0x78] sm:$0xff]
    %v716 = vld [vmem:[%s699 + $0x80] sm:$0xff]
    %v717 = vld [vmem:[%s699 + $0x88] sm:$0xff]
    %v718 = vld [vmem:[%s699 + $0x90] sm:$0xff]
    %v719 = vld [vmem:[%s699 + $0x98] sm:$0xff]
    %v720 = vld [vmem:[%s699 + $0xa0] sm:$0xff]
    %v721 = vld [vmem:[%s699 + $0xa8] sm:$0xff]
    %v722 = vld [vmem:[%s699 + $0xb0] sm:$0xff]
    %v723 = vld [vmem:[%s699 + $0xb8] sm:$0xff]
    %v724 = vld [vmem:[%s699 + $0xc0] sm:$0xff]
    %v725 = vld [vmem:[%s699 + $0xc8] sm:$0xff]
    %v726 = vld [vmem:[%s699 + $0xd0] sm:$0xff]
    %v727 = vld [vmem:[%s699 + $0xd8] sm:$0xff]
    %v728 = vld [vmem:[%s699 + $0xe0] sm:$0xff]
    %v729 = vld [vmem:[%s699 + $0xe8] sm:$0xff]
    %v730 = vld [vmem:[%s699 + $0xf0] sm:$0xff]
    %v731 = vld [vmem:[%s699 + $0xf8] sm:$0xff]
    %v732 = vld [vmem:[%s699 + $0x100] sm:$0xff]
    %v733 = vld [vmem:[%s699 + $0x108] sm:$0xff]
    %v734 = vld [vmem:[%s699 + $0x110] sm:$0xff]
    %v735 = vld [vmem:[%s699 + $0x118] sm:$0xff]
    %v736 = vld [vmem:[%s699 + $0x120] sm:$0xff]
    %v737 = vld [vmem:[%s699 + $0x128] sm:$0xff]
    %v738 = vld [vmem:[%s699 + $0x130] sm:$0xff]
    %v739 = vld [vmem:[%s699 + $0x138] sm:$0xff]
    %v740 = vld [vmem:[%s699 + $0x140] sm:$0xff]
    %v741 = vld [vmem:[%s699 + $0x148] sm:$0xff]
    %v742 = vld [vmem:[%s699 + $0x150] sm:$0xff]
    %v743 = vld [vmem:[%s699 + $0x158] sm:$0xff]
    %v744 = vld [vmem:[%s699 + $0x160] sm:$0xff]
    %v745 = vld [vmem:[%s699 + $0x168] sm:$0xff]
    %v746 = vld [vmem:[%s699 + $0x170] sm:$0xff]
    %v747 = vld [vmem:[%s699 + $0x178] sm:$0xff]
    %v748 = vld [vmem:[%s699 + $0x180] sm:$0xff]
    %v749 = vld [vmem:[%s699 + $0x188] sm:$0xff]
    %v750 = vld [vmem:[%s699 + $0x190] sm:$0xff]
    %v751 = vld [vmem:[%s699 + $0x198] sm:$0xff]
    %v752 = vld [vmem:[%s699 + $0x1a0] sm:$0xff]
    %v753 = vld [vmem:[%s699 + $0x1a8] sm:$0xff]
    %v754 = vld [vmem:[%s699 + $0x1b0] sm:$0xff]
    %v755 = vld [vmem:[%s699 + $0x1b8] sm:$0xff]
    %v756 = vld [vmem:[%s699 + $0x1c0] sm:$0xff]
    %v757 = vld [vmem:[%s699 + $0x1c8] sm:$0xff]
    %v758 = vld [vmem:[%s699 + $0x1d0] sm:$0xff]
    %v759 = vld [vmem:[%s699 + $0x1d8] sm:$0xff]
    %v760 = vld [vmem:[%s699 + $0x1e0] sm:$0xff]
    %v761 = vld [vmem:[%s699 + $0x1e8] sm:$0xff]
    %v762 = vld [vmem:[%s699 + $0x1f0] sm:$0xff]
    %v763 = vld [vmem:[%s699 + $0x1f8] sm:$0xff]
    %764 = vmatprep.subr.mxu0 0.0
    %765 = vmatpush1.msra.mxu0 %v280
    %766 = vmatprep.subr.mxu0 0.0
    %767 = vmatpush1.msra.mxu0 %v281
    %768 = vmatprep.subr.mxu0 0.0
    %769 = vmatpush1.msra.mxu0 %v282
    %770 = vmatprep.subr.mxu0 0.0
    %771 = vmatpush1.msra.mxu0 %v283
    %772 = vmatprep.subr.mxu0 0.0
    %773 = vmatpush1.msra.mxu0 %v284
    %774 = vmatprep.subr.mxu0 0.0
    %775 = vmatpush1.msra.mxu0 %v285
    %776 = vmatprep.subr.mxu0 0.0
    %777 = vmatpush1.msra.mxu0 %v286
    %778 = vmatprep.subr.mxu0 0.0
    %779 = vmatpush1.msra.mxu0 %v287
    %780 = vmatprep.subr.mxu0 0.0
    %781 = vmatpush1.msra.mxu0 %v288
    %782 = vmatprep.subr.mxu0 0.0
    %783 = vmatpush1.msra.mxu0 %v289
    %784 = vmatprep.subr.mxu0 0.0
    %785 = vmatpush1.msra.mxu0 %v290
    %786 = vmatprep.subr.mxu0 0.0
    %787 = vmatpush1.msra.mxu0 %v291
    %788 = vmatprep.subr.mxu0 0.0
    %789 = vmatpush1.msra.mxu0 %v292
    %790 = vmatprep.subr.mxu0 0.0
    %791 = vmatpush1.msra.mxu0 %v293
    %792 = vmatprep.subr.mxu0 0.0
    %793 = vmatpush1.msra.mxu0 %v294
    %794 = vmatprep.subr.mxu0 0.0
    %795 = vmatpush1.msra.mxu0 %v295
    %796 = vmatprep.subr.mxu0 0.0
    %797 = vmatpush1.msra.mxu0 %v296
    %798 = vmatprep.subr.mxu0 0.0
    %799 = vmatpush1.msra.mxu0 %v297
    %800 = vmatprep.subr.mxu0 0.0
    %801 = vmatpush1.msra.mxu0 %v298
    %802 = vmatprep.subr.mxu0 0.0
    %803 = vmatpush1.msra.mxu0 %v299
    %804 = vmatprep.subr.mxu0 0.0
    %805 = vmatpush1.msra.mxu0 %v300
    %806 = vmatprep.subr.mxu0 0.0
    %807 = vmatpush1.msra.mxu0 %v301
    %808 = vmatprep.subr.mxu0 0.0
    %809 = vmatpush1.msra.mxu0 %v302
    %810 = vmatprep.subr.mxu0 0.0
    %811 = vmatpush1.msra.mxu0 %v303
    %812 = vmatprep.subr.mxu0 0.0
    %813 = vmatpush1.msra.mxu0 %v304
    %814 = vmatprep.subr.mxu0 0.0
    %815 = vmatpush1.msra.mxu0 %v305
    %816 = vmatprep.subr.mxu0 0.0
    %817 = vmatpush1.msra.mxu0 %v306
    %818 = vmatprep.subr.mxu0 0.0
    %819 = vmatpush1.msra.mxu0 %v307
    %820 = vmatprep.subr.mxu0 0.0
    %821 = vmatpush1.msra.mxu0 %v308
    %822 = vmatprep.subr.mxu0 0.0
    %823 = vmatpush1.msra.mxu0 %v309
    %824 = vmatprep.subr.mxu0 0.0
    %825 = vmatpush1.msra.mxu0 %v310
    %826 = vmatprep.subr.mxu0 0.0
    %827 = vmatpush1.msra.mxu0 %v311
    %828 = vmatprep.mubr.f32.mxu0 %v701
    %829 = vmatmul.mubr.f32.gmra.mrb[0].mxu0 %v700
    %v830 = vpop.f32.mrb[0].mxu0
    %v831 = vadd.f32 0.0, %v830
    %v832 = vpop.f32.mrb[0].mxu0
    %833 = vmatprep.mubr.f32.mxu0 %v705
    %834 = vmatmul.mubr.f32.gmra.mrb[0].mxu0 %v704
    %v835 = vpop.f32.mrb[0].mxu0
    %v836 = vadd.f32 0.0, %v835
    %v837 = vpop.f32.mrb[0].mxu0
    %838 = vmatprep.mubr.f32.mxu0 %v709
    %839 = vmatmul.mubr.f32.gmra.mrb[0].mxu0 %v708
    %v840 = vpop.f32.mrb[0].mxu0
    %v841 = vadd.f32 0.0, %v840
    %v842 = vpop.f32.mrb[0].mxu0
    %843 = vmatprep.mubr.f32.mxu0 %v713
    %844 = vmatmul.mubr.f32.gmra.mrb[0].mxu0 %v712
    %v845 = vpop.f32.mrb[0].mxu0
    %v846 = vadd.f32 0.0, %v845
    %v847 = vpop.f32.mrb[0].mxu0
    %848 = vmatprep.mubr.f32.mxu0 %v717
    %849 = vmatmul.mubr.f32.gmra.mrb[0].mxu0 %v716
    %v850 = vpop.f32.mrb[0].mxu0
    %v851 = vadd.f32 0.0, %v850
    %v852 = vpop.f32.mrb[0].mxu0
    %853 = vmatprep.mubr.f32.mxu0 %v721
    %854 = vmatmul.mubr.f32.gmra.mrb[0].mxu0 %v720
    %v855 = vpop.f32.mrb[0].mxu0
    %v856 = vadd.f32 0.0, %v855
    %v857 = vpop.f32.mrb[0].mxu0
    %858 = vmatprep.mubr.f32.mxu0 %v725
    %859 = vmatmul.mubr.f32.gmra.mrb[0].mxu0 %v724
    %v860 = vpop.f32.mrb[0].mxu0
    %v861 = vadd.f32 0.0, %v860
    %v862 = vpop.f32.mrb[0].mxu0
    %863 = vmatprep.mubr.f32.mxu0 %v729
    %864 = vmatmul.mubr.f32.gmra.mrb[0].mxu0 %v728
    %v865 = vpop.f32.mrb[0].mxu0
    %v866 = vadd.f32 0.0, %v865
    %v867 = vpop.f32.mrb[0].mxu0
    %868 = vmatprep.mubr.f32.mxu0 %v733
    %869 = vmatmul.mubr.f32.gmra.mrb[0].mxu0 %v732
    %v870 = vpop.f32.mrb[0].mxu0
    %v871 = vadd.f32 0.0, %v870
    %v872 = vpop.f32.mrb[0].mxu0
    %873 = vmatprep.mubr.f32.mxu0 %v737
    %874 = vmatmul.mubr.f32.gmra.mrb[0].mxu0 %v736
    %v875 = vpop.f32.mrb[0].mxu0
    %v876 = vadd.f32 0.0, %v875
    %v877 = vpop.f32.mrb[0].mxu0
    %878 = vmatprep.mubr.f32.mxu0 %v741
    %879 = vmatmul.mubr.f32.gmra.mrb[0].mxu0 %v740
    %v880 = vpop.f32.mrb[0].mxu0
    %v881 = vadd.f32 0.0, %v880
    %v882 = vpop.f32.mrb[0].mxu0
    %883 = vmatprep.mubr.f32.mxu0 %v745
    %884 = vmatmul.mubr.f32.gmra.mrb[0].mxu0 %v744
    %v885 = vpop.f32.mrb[0].mxu0
    %v886 = vadd.f32 0.0, %v885
    %v887 = vpop.f32.mrb[0].mxu0
    %888 = vmatprep.mubr.f32.mxu0 %v749
    %889 = vmatmul.mubr.f32.gmra.mrb[0].mxu0 %v748
    %v890 = vpop.f32.mrb[0].mxu0
    %v891 = vadd.f32 0.0, %v890
    %v892 = vpop.f32.mrb[0].mxu0
    %893 = vmatprep.mubr.f32.mxu0 %v753
    %894 = vmatmul.mubr.f32.gmra.mrb[0].mxu0 %v752
    %v895 = vpop.f32.mrb[0].mxu0
    %v896 = vadd.f32 0.0, %v895
    %v897 = vpop.f32.mrb[0].mxu0
    %898 = vmatprep.mubr.f32.mxu0 %v757
    %899 = vmatmul.mubr.f32.gmra.mrb[0].mxu0 %v756
    %v900 = vpop.f32.mrb[0].mxu0
    %v901 = vadd.f32 0.0, %v900
    %v902 = vpop.f32.mrb[0].mxu0
    %903 = vmatprep.mubr.f32.mxu0 %v761
    %904 = vmatmul.mubr.f32.gmra.mrb[0].mxu0 %v760
    %v905 = vpop.f32.mrb[0].mxu0
    %v906 = vadd.f32 0.0, %v905
    %v907 = vpop.f32.mrb[0].mxu0
    %908 = vdwg.mxu0
    %909 = vmatprep.subr.mxu0 0.0
    %910 = vmatpush1.msra.mxu0 %v312
    %911 = vmatprep.subr.mxu0 0.0
    %912 = vmatpush1.msra.mxu0 %v313
    %913 = vmatprep.subr.mxu0 0.0
    %914 = vmatpush1.msra.mxu0 %v314
    %915 = vmatprep.subr.mxu0 0.0
    %916 = vmatpush1.msra.mxu0 %v315
    %917 = vmatprep.subr.mxu0 0.0
    %918 = vmatpush1.msra.mxu0 %v316
    %919 = vmatprep.subr.mxu0 0.0
    %920 = vmatpush1.msra.mxu0 %v317
    %921 = vmatprep.subr.mxu0 0.0
    %922 = vmatpush1.msra.mxu0 %v318
    %923 = vmatprep.subr.mxu0 0.0
    %924 = vmatpush1.msra.mxu0 %v319
    %925 = vmatprep.subr.mxu0 0.0
    %926 = vmatpush1.msra.mxu0 %v320
    %927 = vmatprep.subr.mxu0 0.0
    %928 = vmatpush1.msra.mxu0 %v321
    %929 = vmatprep.subr.mxu0 0.0
    %930 = vmatpush1.msra.mxu0 %v322
    %931 = vmatprep.subr.mxu0 0.0
    %932 = vmatpush1.msra.mxu0 %v323
    %933 = vmatprep.subr.mxu0 0.0
    %934 = vmatpush1.msra.mxu0 %v324
    %935 = vmatprep.subr.mxu0 0.0
    %936 = vmatpush1.msra.mxu0 %v325
    %937 = vmatprep.subr.mxu0 0.0
    %938 = vmatpush1.msra.mxu0 %v326
    %939 = vmatprep.subr.mxu0 0.0
    %940 = vmatpush1.msra.mxu0 %v327
    %941 = vmatprep.subr.mxu0 0.0
    %942 = vmatpush1.msra.mxu0 %v328
    %943 = vmatprep.subr.mxu0 0.0
    %944 = vmatpush1.msra.mxu0 %v329
    %945 = vmatprep.subr.mxu0 0.0
    %946 = vmatpush1.msra.mxu0 %v330
    %947 = vmatprep.subr.mxu0 0.0
    %948 = vmatpush1.msra.mxu0 %v331
    %949 = vmatprep.subr.mxu0 0.0
    %950 = vmatpush1.msra.mxu0 %v332
    %951 = vmatprep.subr.mxu0 0.0
    %952 = vmatpush1.msra.mxu0 %v333
    %953 = vmatprep.subr.mxu0 0.0
    %954 = vmatpush1.msra.mxu0 %v334
    %955 = vmatprep.subr.mxu0 0.0
    %956 = vmatpush1.msra.mxu0 %v335
    %957 = vmatprep.subr.mxu0 0.0
    %958 = vmatpush1.msra.mxu0 %v336
    %959 = vmatprep.subr.mxu0 0.0
    %960 = vmatpush1.msra.mxu0 %v337
    %961 = vmatprep.subr.mxu0 0.0
    %962 = vmatpush1.msra.mxu0 %v338
    %963 = vmatprep.subr.mxu0 0.0
    %964 = vmatpush1.msra.mxu0 %v339
    %965 = vmatprep.subr.mxu0 0.0
    %966 = vmatpush1.msra.mxu0 %v340
    %967 = vmatprep.subr.mxu0 0.0
    %968 = vmatpush1.msra.mxu0 %v341
    %969 = vmatprep.subr.mxu0 0.0
    %970 = vmatpush1.msra.mxu0 %v342
    %971 = vmatprep.subr.mxu0 0.0
    %972 = vmatpush1.msra.mxu0 %v343
    %973 = vmatprep.mubr.f32.mxu0 %v703
    %974 = vmatmul.mubr.f32.gmra.mrb[0].mxu0 %v702
    %v975 = vpop.f32.mrb[0].mxu0
    %v976 = vadd.f32 %v831, %v975
    %v977 = vpop.f32.mrb[0].mxu0
    %978 = vmatprep.mubr.f32.mxu0 %v707
    %979 = vmatmul.mubr.f32.gmra.mrb[0].mxu0 %v706
    %v980 = vpop.f32.mrb[0].mxu0
    %v981 = vadd.f32 %v836, %v980
    %v982 = vpop.f32.mrb[0].mxu0
    %983 = vmatprep.mubr.f32.mxu0 %v711
    %984 = vmatmul.mubr.f32.gmra.mrb[0].mxu0 %v710
    %v985 = vpop.f32.mrb[0].mxu0
    %v986 = vadd.f32 %v841, %v985
    %v987 = vpop.f32.mrb[0].mxu0
    %988 = vmatprep.mubr.f32.mxu0 %v715
    %989 = vmatmul.mubr.f32.gmra.mrb[0].mxu0 %v714
    %v990 = vpop.f32.mrb[0].mxu0
    %v991 = vadd.f32 %v846, %v990
    %v992 = vpop.f32.mrb[0].mxu0
    %993 = vmatprep.mubr.f32.mxu0 %v719
    %994 = vmatmul.mubr.f32.gmra.mrb[0].mxu0 %v718
    %v995 = vpop.f32.mrb[0].mxu0
    %v996 = vadd.f32 %v851, %v995
    %v997 = vpop.f32.mrb[0].mxu0
    %998 = vmatprep.mubr.f32.mxu0 %v723
    %999 = vmatmul.mubr.f32.gmra.mrb[0].mxu0 %v722
    %v1000 = vpop.f32.mrb[0].mxu0
    %v1001 = vadd.f32 %v856, %v1000
    %v1002 = vpop.f32.mrb[0].mxu0
    %1003 = vmatprep.mubr.f32.mxu0 %v727
    %1004 = vmatmul.mubr.f32.gmra.mrb[0].mxu0 %v726
    %v1005 = vpop.f32.mrb[0].mxu0
    %v1006 = vadd.f32 %v861, %v1005
    %v1007 = vpop.f32.mrb[0].mxu0
    %1008 = vmatprep.mubr.f32.mxu0 %v731
    %1009 = vmatmul.mubr.f32.gmra.mrb[0].mxu0 %v730
    %v1010 = vpop.f32.mrb[0].mxu0
    %v1011 = vadd.f32 %v866, %v1010
    %v1012 = vpop.f32.mrb[0].mxu0
    %1013 = vmatprep.mubr.f32.mxu0 %v735
    %1014 = vmatmul.mubr.f32.gmra.mrb[0].mxu0 %v734
    %v1015 = vpop.f32.mrb[0].mxu0
    %v1016 = vadd.f32 %v871, %v1015
    %v1017 = vpop.f32.mrb[0].mxu0
    %1018 = vmatprep.mubr.f32.mxu0 %v739
    %1019 = vmatmul.mubr.f32.gmra.mrb[0].mxu0 %v738
    %v1020 = vpop.f32.mrb[0].mxu0
    %v1021 = vadd.f32 %v876, %v1020
    %v1022 = vpop.f32.mrb[0].mxu0
    %1023 = vmatprep.mubr.f32.mxu0 %v743
    %1024 = vmatmul.mubr.f32.gmra.mrb[0].mxu0 %v742
    %v1025 = vpop.f32.mrb[0].mxu0
    %v1026 = vadd.f32 %v881, %v1025
    %v1027 = vpop.f32.mrb[0].mxu0
    %1028 = vmatprep.mubr.f32.mxu0 %v747
    %1029 = vmatmul.mubr.f32.gmra.mrb[0].mxu0 %v746
    %v1030 = vpop.f32.mrb[0].mxu0
    %v1031 = vadd.f32 %v886, %v1030
    %v1032 = vpop.f32.mrb[0].mxu0
    %1033 = vmatprep.mubr.f32.mxu0 %v751
    %1034 = vmatmul.mubr.f32.gmra.mrb[0].mxu0 %v750
    %v1035 = vpop.f32.mrb[0].mxu0
    %v1036 = vadd.f32 %v891, %v1035
    %v1037 = vpop.f32.mrb[0].mxu0
    %1038 = vmatprep.mubr.f32.mxu0 %v755
    %1039 = vmatmul.mubr.f32.gmra.mrb[0].mxu0 %v754
    %v1040 = vpop.f32.mrb[0].mxu0
    %v1041 = vadd.f32 %v896, %v1040
    %v1042 = vpop.f32.mrb[0].mxu0
    %1043 = vmatprep.mubr.f32.mxu0 %v759
    %1044 = vmatmul.mubr.f32.gmra.mrb[0].mxu0 %v758
    %v1045 = vpop.f32.mrb[0].mxu0
    %v1046 = vadd.f32 %v901, %v1045
    %v1047 = vpop.f32.mrb[0].mxu0
    %1048 = vmatprep.mubr.f32.mxu0 %v763
    %1049 = vmatmul.mubr.f32.gmra.mrb[0].mxu0 %v762
    %v1050 = vpop.f32.mrb[0].mxu0
    %v1051 = vadd.f32 %v906, %v1050
    %v1052 = vpop.f32.mrb[0].mxu0
    %1053 = vdwg.mxu0
    %s1054 = scalar_lea.vmem [#allocation5], 4
    %v1055 = vld [vmem:[%s1054] sm:$0x7]
    %vm1056 = vcmask 23552
    %v1058 = vsel %vm1056, %v976, 0
    %v1061 = vsel %vm1056, %v981, 0
    %v1064 = vsel %vm1056, %v986, 0
    %v1067 = vsel %vm1056, %v991, 0
    %v1070 = vsel %vm1056, %v996, 0
    %v1073 = vsel %vm1056, %v1001, 0
    %v1076 = vsel %vm1056, %v1006, 0
    %v1079 = vsel %vm1056, %v1011, 0
    %v1082 = vsel %vm1056, %v1016, 0
    %v1085 = vsel %vm1056, %v1021, 0
    %v1088 = vsel %vm1056, %v1026, 0
    %v1091 = vsel %vm1056, %v1031, 0
    %v1094 = vsel %vm1056, %v1036, 0
    %v1097 = vsel %vm1056, %v1041, 0
    %v1100 = vsel %vm1056, %v1046, 0
    %v1103 = vsel %vm1056, %v1051, 0
    %vm1105 = vcmask 1042432
    %v1107 = vsel %vm1105, %v1055, 0
    %1109 = vmatprep.subr.mxu0 0.0
    %1110 = vmatpush1.msra.mxu0 %v1107
    %1111 = vmatprep.subr.mxu0 0.0
    %1112 = vmatpush1.msra.mxu0 0.0
    %1113 = vmatprep.subr.mxu0 0.0
    %1114 = vmatpush1.msra.mxu0 0.0
    %1115 = vmatprep.subr.mxu0 0.0
    %1116 = vmatpush1.msra.mxu0 0.0
    %1117 = vmatprep.subr.mxu0 0.0
    %1118 = vmatpush1.msra.mxu0 0.0
    %1119 = vmatprep.subr.mxu0 0.0
    %1120 = vmatpush1.msra.mxu0 0.0
    %1121 = vmatprep.subr.mxu0 0.0
    %1122 = vmatpush1.msra.mxu0 0.0
    %1123 = vmatprep.subr.mxu0 0.0
    %1124 = vmatpush1.msra.mxu0 0.0
    %1125 = vmatprep.subr.mxu0 0.0
    %1126 = vmatpush1.msra.mxu0 0.0
    %1127 = vmatprep.subr.mxu0 0.0
    %1128 = vmatpush1.msra.mxu0 0.0
    %1129 = vmatprep.subr.mxu0 0.0
    %1130 = vmatpush1.msra.mxu0 0.0
    %1131 = vmatprep.subr.mxu0 0.0
    %1132 = vmatpush1.msra.mxu0 0.0
    %1133 = vmatprep.subr.mxu0 0.0
    %1134 = vmatpush1.msra.mxu0 0.0
    %1135 = vmatprep.subr.mxu0 0.0
    %1136 = vmatpush1.msra.mxu0 0.0
    %1137 = vmatprep.subr.mxu0 0.0
    %1138 = vmatpush1.msra.mxu0 0.0
    %1139 = vmatprep.subr.mxu0 0.0
    %1140 = vmatpush1.msra.mxu0 0.0
    %1141 = vmatprep.subr.mxu0 0.0
    %1142 = vmatpush1.msra.mxu0 0.0
    %1143 = vmatprep.subr.mxu0 0.0
    %1144 = vmatpush1.msra.mxu0 0.0
    %1145 = vmatprep.subr.mxu0 0.0
    %1146 = vmatpush1.msra.mxu0 0.0
    %1147 = vmatprep.subr.mxu0 0.0
    %1148 = vmatpush1.msra.mxu0 0.0
    %1149 = vmatprep.subr.mxu0 0.0
    %1150 = vmatpush1.msra.mxu0 0.0
    %1151 = vmatprep.subr.mxu0 0.0
    %1152 = vmatpush1.msra.mxu0 0.0
    %1153 = vmatprep.subr.mxu0 0.0
    %1154 = vmatpush1.msra.mxu0 0.0
    %1155 = vmatprep.subr.mxu0 0.0
    %1156 = vmatpush1.msra.mxu0 0.0
    %1157 = vmatprep.subr.mxu0 0.0
    %1158 = vmatpush1.msra.mxu0 0.0
    %1159 = vmatprep.subr.mxu0 0.0
    %1160 = vmatpush1.msra.mxu0 0.0
    %1161 = vmatprep.subr.mxu0 0.0
    %1162 = vmatpush1.msra.mxu0 0.0
    %1163 = vmatprep.subr.mxu0 0.0
    %1164 = vmatpush1.msra.mxu0 0.0
    %1165 = vmatprep.subr.mxu0 0.0
    %1166 = vmatpush1.msra.mxu0 0.0
    %1167 = vmatprep.subr.mxu0 0.0
    %1168 = vmatpush1.msra.mxu0 0.0
    %1169 = vmatprep.subr.mxu0 0.0
    %1170 = vmatpush1.msra.mxu0 0.0
    %1171 = vmatprep.subr.mxu0 0.0
    %1172 = vmatpush1.msra.mxu0 0.0
    %1173 = vmatprep.mubr.f32.mxu0 0.0
    %1174 = vmatmul.mubr.f32.gmra.mrb[0].mxu0 %v1058
    %v1175 = vpop.f32.mrb[0].mxu0
    %v1176 = vadd.f32 0.0, %v1175
    %v1177 = vpop.f32.mrb[0].mxu0
    %1178 = vmatprep.mubr.f32.mxu0 0.0
    %1179 = vmatmul.mubr.f32.gmra.mrb[0].mxu0 %v1061
    %v1180 = vpop.f32.mrb[0].mxu0
    %v1181 = vadd.f32 0.0, %v1180
    %v1182 = vpop.f32.mrb[0].mxu0
    %1183 = vmatprep.mubr.f32.mxu0 0.0
    %1184 = vmatmul.mubr.f32.gmra.mrb[0].mxu0 %v1064
    %v1185 = vpop.f32.mrb[0].mxu0
    %v1186 = vadd.f32 0.0, %v1185
    %v1187 = vpop.f32.mrb[0].mxu0
    %1188 = vmatprep.mubr.f32.mxu0 0.0
    %1189 = vmatmul.mubr.f32.gmra.mrb[0].mxu0 %v1067
    %v1190 = vpop.f32.mrb[0].mxu0
    %v1191 = vadd.f32 0.0, %v1190
    %v1192 = vpop.f32.mrb[0].mxu0
    %1193 = vmatprep.mubr.f32.mxu0 0.0
    %1194 = vmatmul.mubr.f32.gmra.mrb[0].mxu0 %v1070
    %v1195 = vpop.f32.mrb[0].mxu0
    %v1196 = vadd.f32 0.0, %v1195
    %v1197 = vpop.f32.mrb[0].mxu0
    %1198 = vmatprep.mubr.f32.mxu0 0.0
    %1199 = vmatmul.mubr.f32.gmra.mrb[0].mxu0 %v1073
    %v1200 = vpop.f32.mrb[0].mxu0
    %v1201 = vadd.f32 0.0, %v1200
    %v1202 = vpop.f32.mrb[0].mxu0
    %1203 = vmatprep.mubr.f32.mxu0 0.0
    %1204 = vmatmul.mubr.f32.gmra.mrb[0].mxu0 %v1076
    %v1205 = vpop.f32.mrb[0].mxu0
    %v1206 = vadd.f32 0.0, %v1205
    %v1207 = vpop.f32.mrb[0].mxu0
    %1208 = vmatprep.mubr.f32.mxu0 0.0
    %1209 = vmatmul.mubr.f32.gmra.mrb[0].mxu0 %v1079
    %v1210 = vpop.f32.mrb[0].mxu0
    %v1211 = vadd.f32 0.0, %v1210
    %v1212 = vpop.f32.mrb[0].mxu0
    %1213 = vmatprep.mubr.f32.mxu0 0.0
    %1214 = vmatmul.mubr.f32.gmra.mrb[0].mxu0 %v1082
    %v1215 = vpop.f32.mrb[0].mxu0
    %v1216 = vadd.f32 0.0, %v1215
    %v1217 = vpop.f32.mrb[0].mxu0
    %1218 = vmatprep.mubr.f32.mxu0 0.0
    %1219 = vmatmul.mubr.f32.gmra.mrb[0].mxu0 %v1085
    %v1220 = vpop.f32.mrb[0].mxu0
    %v1221 = vadd.f32 0.0, %v1220
    %v1222 = vpop.f32.mrb[0].mxu0
    %1223 = vmatprep.mubr.f32.mxu0 0.0
    %1224 = vmatmul.mubr.f32.gmra.mrb[0].mxu0 %v1088
    %v1225 = vpop.f32.mrb[0].mxu0
    %v1226 = vadd.f32 0.0, %v1225
    %v1227 = vpop.f32.mrb[0].mxu0
    %1228 = vmatprep.mubr.f32.mxu0 0.0
    %1229 = vmatmul.mubr.f32.gmra.mrb[0].mxu0 %v1091
    %v1230 = vpop.f32.mrb[0].mxu0
    %v1231 = vadd.f32 0.0, %v1230
    %v1232 = vpop.f32.mrb[0].mxu0
    %1233 = vmatprep.mubr.f32.mxu0 0.0
    %1234 = vmatmul.mubr.f32.gmra.mrb[0].mxu0 %v1094
    %v1235 = vpop.f32.mrb[0].mxu0
    %v1236 = vadd.f32 0.0, %v1235
    %v1237 = vpop.f32.mrb[0].mxu0
    %1238 = vmatprep.mubr.f32.mxu0 0.0
    %1239 = vmatmul.mubr.f32.gmra.mrb[0].mxu0 %v1097
    %v1240 = vpop.f32.mrb[0].mxu0
    %v1241 = vadd.f32 0.0, %v1240
    %v1242 = vpop.f32.mrb[0].mxu0
    %1243 = vmatprep.mubr.f32.mxu0 0.0
    %1244 = vmatmul.mubr.f32.gmra.mrb[0].mxu0 %v1100
    %v1245 = vpop.f32.mrb[0].mxu0
    %v1246 = vadd.f32 0.0, %v1245
    %v1247 = vpop.f32.mrb[0].mxu0
    %1248 = vmatprep.mubr.f32.mxu0 0.0
    %1249 = vmatmul.mubr.f32.gmra.mrb[0].mxu0 %v1103
    %v1250 = vpop.f32.mrb[0].mxu0
    %v1251 = vadd.f32 0.0, %v1250
    %v1252 = vpop.f32.mrb[0].mxu0
    %1253 = vdwg.mxu0
    %v1255 = vsel %vm1056, %v620, 0
    %v1258 = vsel %vm1056, %v625, 0
    %v1261 = vsel %vm1056, %v630, 0
    %v1264 = vsel %vm1056, %v635, 0
    %v1267 = vsel %vm1056, %v640, 0
    %v1270 = vsel %vm1056, %v645, 0
    %v1273 = vsel %vm1056, %v650, 0
    %v1276 = vsel %vm1056, %v655, 0
    %v1279 = vsel %vm1056, %v660, 0
    %v1282 = vsel %vm1056, %v665, 0
    %v1285 = vsel %vm1056, %v670, 0
    %v1288 = vsel %vm1056, %v675, 0
    %v1291 = vsel %vm1056, %v680, 0
    %v1294 = vsel %vm1056, %v685, 0
    %v1297 = vsel %vm1056, %v690, 0
    %v1300 = vsel %vm1056, %v695, 0
    %v1303 = vsel %vm1105, %v698, 0
    %1305 = vmatprep.subr.mxu0 0.0
    %1306 = vmatpush1.msra.mxu0 %v1303
    %1307 = vmatprep.subr.mxu0 0.0
    %1308 = vmatpush1.msra.mxu0 0.0
    %1309 = vmatprep.subr.mxu0 0.0
    %1310 = vmatpush1.msra.mxu0 0.0
    %1311 = vmatprep.subr.mxu0 0.0
    %1312 = vmatpush1.msra.mxu0 0.0
    %1313 = vmatprep.subr.mxu0 0.0
    %1314 = vmatpush1.msra.mxu0 0.0
    %1315 = vmatprep.subr.mxu0 0.0
    %1316 = vmatpush1.msra.mxu0 0.0
    %1317 = vmatprep.subr.mxu0 0.0
    %1318 = vmatpush1.msra.mxu0 0.0
    %1319 = vmatprep.subr.mxu0 0.0
    %1320 = vmatpush1.msra.mxu0 0.0
    %1321 = vmatprep.subr.mxu0 0.0
    %1322 = vmatpush1.msra.mxu0 0.0
    %1323 = vmatprep.subr.mxu0 0.0
    %1324 = vmatpush1.msra.mxu0 0.0
    %1325 = vmatprep.subr.mxu0 0.0
    %1326 = vmatpush1.msra.mxu0 0.0
    %1327 = vmatprep.subr.mxu0 0.0
    %1328 = vmatpush1.msra.mxu0 0.0
    %1329 = vmatprep.subr.mxu0 0.0
    %1330 = vmatpush1.msra.mxu0 0.0
    %1331 = vmatprep.subr.mxu0 0.0
    %1332 = vmatpush1.msra.mxu0 0.0
    %1333 = vmatprep.subr.mxu0 0.0
    %1334 = vmatpush1.msra.mxu0 0.0
    %1335 = vmatprep.subr.mxu0 0.0
    %1336 = vmatpush1.msra.mxu0 0.0
    %1337 = vmatprep.subr.mxu0 0.0
    %1338 = vmatpush1.msra.mxu0 0.0
    %1339 = vmatprep.subr.mxu0 0.0
    %1340 = vmatpush1.msra.mxu0 0.0
    %1341 = vmatprep.subr.mxu0 0.0
    %1342 = vmatpush1.msra.mxu0 0.0
    %1343 = vmatprep.subr.mxu0 0.0
    %1344 = vmatpush1.msra.mxu0 0.0
    %1345 = vmatprep.subr.mxu0 0.0
    %1346 = vmatpush1.msra.mxu0 0.0
    %1347 = vmatprep.subr.mxu0 0.0
    %1348 = vmatpush1.msra.mxu0 0.0
    %1349 = vmatprep.subr.mxu0 0.0
    %1350 = vmatpush1.msra.mxu0 0.0
    %1351 = vmatprep.subr.mxu0 0.0
    %1352 = vmatpush1.msra.mxu0 0.0
    %1353 = vmatprep.subr.mxu0 0.0
    %1354 = vmatpush1.msra.mxu0 0.0
    %1355 = vmatprep.subr.mxu0 0.0
    %1356 = vmatpush1.msra.mxu0 0.0
    %1357 = vmatprep.subr.mxu0 0.0
    %1358 = vmatpush1.msra.mxu0 0.0
    %1359 = vmatprep.subr.mxu0 0.0
    %1360 = vmatpush1.msra.mxu0 0.0
    %1361 = vmatprep.subr.mxu0 0.0
    %1362 = vmatpush1.msra.mxu0 0.0
    %1363 = vmatprep.subr.mxu0 0.0
    %1364 = vmatpush1.msra.mxu0 0.0
    %1365 = vmatprep.subr.mxu0 0.0
    %1366 = vmatpush1.msra.mxu0 0.0
    %1367 = vmatprep.subr.mxu0 0.0
    %1368 = vmatpush1.msra.mxu0 0.0
    %1369 = vmatprep.mubr.f32.mxu0 0.0
    %1370 = vmatmul.mubr.f32.gmra.mrb[0].mxu0 %v1255
    %v1371 = vpop.f32.mrb[0].mxu0
    %v1372 = vadd.f32 %v1176, %v1371
    %v1373 = vpop.f32.mrb[0].mxu0
    %1374 = vmatprep.mubr.f32.mxu0 0.0
    %1375 = vmatmul.mubr.f32.gmra.mrb[0].mxu0 %v1258
    %v1376 = vpop.f32.mrb[0].mxu0
    %v1377 = vadd.f32 %v1181, %v1376
    %v1378 = vpop.f32.mrb[0].mxu0
    %1379 = vmatprep.mubr.f32.mxu0 0.0
    %1380 = vmatmul.mubr.f32.gmra.mrb[0].mxu0 %v1261
    %v1381 = vpop.f32.mrb[0].mxu0
    %v1382 = vadd.f32 %v1186, %v1381
    %v1383 = vpop.f32.mrb[0].mxu0
    %1384 = vmatprep.mubr.f32.mxu0 0.0
    %1385 = vmatmul.mubr.f32.gmra.mrb[0].mxu0 %v1264
    %v1386 = vpop.f32.mrb[0].mxu0
    %v1387 = vadd.f32 %v1191, %v1386
    %v1388 = vpop.f32.mrb[0].mxu0
    %1389 = vmatprep.mubr.f32.mxu0 0.0
    %1390 = vmatmul.mubr.f32.gmra.mrb[0].mxu0 %v1267
    %v1391 = vpop.f32.mrb[0].mxu0
    %v1392 = vadd.f32 %v1196, %v1391
    %v1393 = vpop.f32.mrb[0].mxu0
    %1394 = vmatprep.mubr.f32.mxu0 0.0
    %1395 = vmatmul.mubr.f32.gmra.mrb[0].mxu0 %v1270
    %v1396 = vpop.f32.mrb[0].mxu0
    %v1397 = vadd.f32 %v1201, %v1396
    %v1398 = vpop.f32.mrb[0].mxu0
    %1399 = vmatprep.mubr.f32.mxu0 0.0
    %1400 = vmatmul.mubr.f32.gmra.mrb[0].mxu0 %v1273
    %v1401 = vpop.f32.mrb[0].mxu0
    %v1402 = vadd.f32 %v1206, %v1401
    %v1403 = vpop.f32.mrb[0].mxu0
    %1404 = vmatprep.mubr.f32.mxu0 0.0
    %1405 = vmatmul.mubr.f32.gmra.mrb[0].mxu0 %v1276
    %v1406 = vpop.f32.mrb[0].mxu0
    %v1407 = vadd.f32 %v1211, %v1406
    %v1408 = vpop.f32.mrb[0].mxu0
    %1409 = vmatprep.mubr.f32.mxu0 0.0
    %1410 = vmatmul.mubr.f32.gmra.mrb[0].mxu0 %v1279
    %v1411 = vpop.f32.mrb[0].mxu0
    %v1412 = vadd.f32 %v1216, %v1411
    %v1413 = vpop.f32.mrb[0].mxu0
    %1414 = vmatprep.mubr.f32.mxu0 0.0
    %1415 = vmatmul.mubr.f32.gmra.mrb[0].mxu0 %v1282
    %v1416 = vpop.f32.mrb[0].mxu0
    %v1417 = vadd.f32 %v1221, %v1416
    %v1418 = vpop.f32.mrb[0].mxu0
    %1419 = vmatprep.mubr.f32.mxu0 0.0
    %1420 = vmatmul.mubr.f32.gmra.mrb[0].mxu0 %v1285
    %v1421 = vpop.f32.mrb[0].mxu0
    %v1422 = vadd.f32 %v1226, %v1421
    %v1423 = vpop.f32.mrb[0].mxu0
    %1424 = vmatprep.mubr.f32.mxu0 0.0
    %1425 = vmatmul.mubr.f32.gmra.mrb[0].mxu0 %v1288
    %v1426 = vpop.f32.mrb[0].mxu0
    %v1427 = vadd.f32 %v1231, %v1426
    %v1428 = vpop.f32.mrb[0].mxu0
    %1429 = vmatprep.mubr.f32.mxu0 0.0
    %1430 = vmatmul.mubr.f32.gmra.mrb[0].mxu0 %v1291
    %v1431 = vpop.f32.mrb[0].mxu0
    %v1432 = vadd.f32 %v1236, %v1431
    %v1433 = vpop.f32.mrb[0].mxu0
    %1434 = vmatprep.mubr.f32.mxu0 0.0
    %1435 = vmatmul.mubr.f32.gmra.mrb[0].mxu0 %v1294
    %v1436 = vpop.f32.mrb[0].mxu0
    %v1437 = vadd.f32 %v1241, %v1436
    %v1438 = vpop.f32.mrb[0].mxu0
    %1439 = vmatprep.mubr.f32.mxu0 0.0
    %1440 = vmatmul.mubr.f32.gmra.mrb[0].mxu0 %v1297
    %v1441 = vpop.f32.mrb[0].mxu0
    %v1442 = vadd.f32 %v1246, %v1441
    %v1443 = vpop.f32.mrb[0].mxu0
    %1444 = vmatprep.mubr.f32.mxu0 0.0
    %1445 = vmatmul.mubr.f32.gmra.mrb[0].mxu0 %v1300
    %v1446 = vpop.f32.mrb[0].mxu0
    %v1447 = vadd.f32 %v1251, %v1446
    %v1448 = vpop.f32.mrb[0].mxu0
    %1449 = vdwg.mxu0
    %s1450 = scalar_lea.vmem [#allocation3], 1024
    %v1451 = vld [vmem:[%s1450] sm:$0xff]
    %v1452 = vld [vmem:[%s1450 + $0x8] sm:$0xff]
    %v1453 = vld [vmem:[%s1450 + $0x10] sm:$0xff]
    %v1454 = vld [vmem:[%s1450 + $0x18] sm:$0xff]
    %v1455 = vld [vmem:[%s1450 + $0x20] sm:$0xff]
    %v1456 = vld [vmem:[%s1450 + $0x28] sm:$0xff]
    %v1457 = vld [vmem:[%s1450 + $0x30] sm:$0xff]
    %v1458 = vld [vmem:[%s1450 + $0x38] sm:$0xff]
    %v1459 = vld [vmem:[%s1450 + $0x40] sm:$0xff]
    %v1460 = vld [vmem:[%s1450 + $0x48] sm:$0xff]
    %v1461 = vld [vmem:[%s1450 + $0x50] sm:$0xff]
    %v1462 = vld [vmem:[%s1450 + $0x58] sm:$0xff]
    %v1463 = vld [vmem:[%s1450 + $0x60] sm:$0xff]
    %v1464 = vld [vmem:[%s1450 + $0x68] sm:$0xff]
    %v1465 = vld [vmem:[%s1450 + $0x70] sm:$0xff]
    %v1466 = vld [vmem:[%s1450 + $0x78] sm:$0xff]
    %v1467 = vld [vmem:[%s1450 + $0x80] sm:$0xff]
    %v1468 = vld [vmem:[%s1450 + $0x88] sm:$0xff]
    %v1469 = vld [vmem:[%s1450 + $0x90] sm:$0xff]
    %v1470 = vld [vmem:[%s1450 + $0x98] sm:$0xff]
    %v1471 = vld [vmem:[%s1450 + $0xa0] sm:$0xff]
    %v1472 = vld [vmem:[%s1450 + $0xa8] sm:$0xff]
    %v1473 = vld [vmem:[%s1450 + $0xb0] sm:$0xff]
    %v1474 = vld [vmem:[%s1450 + $0xb8] sm:$0xff]
    %v1475 = vld [vmem:[%s1450 + $0xc0] sm:$0xff]
    %v1476 = vld [vmem:[%s1450 + $0xc8] sm:$0xff]
    %v1477 = vld [vmem:[%s1450 + $0xd0] sm:$0xff]
    %v1478 = vld [vmem:[%s1450 + $0xd8] sm:$0xff]
    %v1479 = vld [vmem:[%s1450 + $0xe0] sm:$0xff]
    %v1480 = vld [vmem:[%s1450 + $0xe8] sm:$0xff]
    %v1481 = vld [vmem:[%s1450 + $0xf0] sm:$0xff]
    %v1482 = vld [vmem:[%s1450 + $0xf8] sm:$0xff]
    %v1483 = vld [vmem:[%s1450 + $0x100] sm:$0xff]
    %v1484 = vld [vmem:[%s1450 + $0x108] sm:$0xff]
    %v1485 = vld [vmem:[%s1450 + $0x110] sm:$0xff]
    %v1486 = vld [vmem:[%s1450 + $0x118] sm:$0xff]
    %v1487 = vld [vmem:[%s1450 + $0x120] sm:$0xff]
    %v1488 = vld [vmem:[%s1450 + $0x128] sm:$0xff]
    %v1489 = vld [vmem:[%s1450 + $0x130] sm:$0xff]
    %v1490 = vld [vmem:[%s1450 + $0x138] sm:$0xff]
    %v1491 = vld [vmem:[%s1450 + $0x140] sm:$0xff]
    %v1492 = vld [vmem:[%s1450 + $0x148] sm:$0xff]
    %v1493 = vld [vmem:[%s1450 + $0x150] sm:$0xff]
    %v1494 = vld [vmem:[%s1450 + $0x158] sm:$0xff]
    %v1495 = vld [vmem:[%s1450 + $0x160] sm:$0xff]
    %v1496 = vld [vmem:[%s1450 + $0x168] sm:$0xff]
    %v1497 = vld [vmem:[%s1450 + $0x170] sm:$0xff]
    %v1498 = vld [vmem:[%s1450 + $0x178] sm:$0xff]
    %v1499 = vld [vmem:[%s1450 + $0x180] sm:$0xff]
    %v1500 = vld [vmem:[%s1450 + $0x188] sm:$0xff]
    %v1501 = vld [vmem:[%s1450 + $0x190] sm:$0xff]
    %v1502 = vld [vmem:[%s1450 + $0x198] sm:$0xff]
    %v1503 = vld [vmem:[%s1450 + $0x1a0] sm:$0xff]
    %v1504 = vld [vmem:[%s1450 + $0x1a8] sm:$0xff]
    %v1505 = vld [vmem:[%s1450 + $0x1b0] sm:$0xff]
    %v1506 = vld [vmem:[%s1450 + $0x1b8] sm:$0xff]
    %v1507 = vld [vmem:[%s1450 + $0x1c0] sm:$0xff]
    %v1508 = vld [vmem:[%s1450 + $0x1c8] sm:$0xff]
    %v1509 = vld [vmem:[%s1450 + $0x1d0] sm:$0xff]
    %v1510 = vld [vmem:[%s1450 + $0x1d8] sm:$0xff]
    %v1511 = vld [vmem:[%s1450 + $0x1e0] sm:$0xff]
    %v1512 = vld [vmem:[%s1450 + $0x1e8] sm:$0xff]
    %v1513 = vld [vmem:[%s1450 + $0x1f0] sm:$0xff]
    %v1514 = vld [vmem:[%s1450 + $0x1f8] sm:$0xff]
    %1515 = vmatprep.subr.mxu0 0.0
    %1516 = vmatpush1.msra.mxu0 %v280
    %1517 = vmatprep.subr.mxu0 0.0
    %1518 = vmatpush1.msra.mxu0 %v281
    %1519 = vmatprep.subr.mxu0 0.0
    %1520 = vmatpush1.msra.mxu0 %v282
    %1521 = vmatprep.subr.mxu0 0.0
    %1522 = vmatpush1.msra.mxu0 %v283
    %1523 = vmatprep.subr.mxu0 0.0
    %1524 = vmatpush1.msra.mxu0 %v284
    %1525 = vmatprep.subr.mxu0 0.0
    %1526 = vmatpush1.msra.mxu0 %v285
    %1527 = vmatprep.subr.mxu0 0.0
    %1528 = vmatpush1.msra.mxu0 %v286
    %1529 = vmatprep.subr.mxu0 0.0
    %1530 = vmatpush1.msra.mxu0 %v287
    %1531 = vmatprep.subr.mxu0 0.0
    %1532 = vmatpush1.msra.mxu0 %v288
    %1533 = vmatprep.subr.mxu0 0.0
    %1534 = vmatpush1.msra.mxu0 %v289
    %1535 = vmatprep.subr.mxu0 0.0
    %1536 = vmatpush1.msra.mxu0 %v290
    %1537 = vmatprep.subr.mxu0 0.0
    %1538 = vmatpush1.msra.mxu0 %v291
    %1539 = vmatprep.subr.mxu0 0.0
    %1540 = vmatpush1.msra.mxu0 %v292
    %1541 = vmatprep.subr.mxu0 0.0
    %1542 = vmatpush1.msra.mxu0 %v293
    %1543 = vmatprep.subr.mxu0 0.0
    %1544 = vmatpush1.msra.mxu0 %v294
    %1545 = vmatprep.subr.mxu0 0.0
    %1546 = vmatpush1.msra.mxu0 %v295
    %1547 = vmatprep.subr.mxu0 0.0
    %1548 = vmatpush1.msra.mxu0 %v296
    %1549 = vmatprep.subr.mxu0 0.0
    %1550 = vmatpush1.msra.mxu0 %v297
    %1551 = vmatprep.subr.mxu0 0.0
    %1552 = vmatpush1.msra.mxu0 %v298
    %1553 = vmatprep.subr.mxu0 0.0
    %1554 = vmatpush1.msra.mxu0 %v299
    %1555 = vmatprep.subr.mxu0 0.0
    %1556 = vmatpush1.msra.mxu0 %v300
    %1557 = vmatprep.subr.mxu0 0.0
    %1558 = vmatpush1.msra.mxu0 %v301
    %1559 = vmatprep.subr.mxu0 0.0
    %1560 = vmatpush1.msra.mxu0 %v302
    %1561 = vmatprep.subr.mxu0 0.0
    %1562 = vmatpush1.msra.mxu0 %v303
    %1563 = vmatprep.subr.mxu0 0.0
    %1564 = vmatpush1.msra.mxu0 %v304
    %1565 = vmatprep.subr.mxu0 0.0
    %1566 = vmatpush1.msra.mxu0 %v305
    %1567 = vmatprep.subr.mxu0 0.0
    %1568 = vmatpush1.msra.mxu0 %v306
    %1569 = vmatprep.subr.mxu0 0.0
    %1570 = vmatpush1.msra.mxu0 %v307
    %1571 = vmatprep.subr.mxu0 0.0
    %1572 = vmatpush1.msra.mxu0 %v308
    %1573 = vmatprep.subr.mxu0 0.0
    %1574 = vmatpush1.msra.mxu0 %v309
    %1575 = vmatprep.subr.mxu0 0.0
    %1576 = vmatpush1.msra.mxu0 %v310
    %1577 = vmatprep.subr.mxu0 0.0
    %1578 = vmatpush1.msra.mxu0 %v311
    %1579 = vmatprep.mubr.f32.mxu0 %v1452
    %1580 = vmatmul.mubr.f32.gmra.mrb[0].mxu0 %v1451
    %v1581 = vpop.f32.mrb[0].mxu0
    %v1582 = vadd.f32 0.0, %v1581
    %v1583 = vpop.f32.mrb[0].mxu0
    %1584 = vmatprep.mubr.f32.mxu0 %v1456
    %1585 = vmatmul.mubr.f32.gmra.mrb[0].mxu0 %v1455
    %v1586 = vpop.f32.mrb[0].mxu0
    %v1587 = vadd.f32 0.0, %v1586
    %v1588 = vpop.f32.mrb[0].mxu0
    %1589 = vmatprep.mubr.f32.mxu0 %v1460
    %1590 = vmatmul.mubr.f32.gmra.mrb[0].mxu0 %v1459
    %v1591 = vpop.f32.mrb[0].mxu0
    %v1592 = vadd.f32 0.0, %v1591
    %v1593 = vpop.f32.mrb[0].mxu0
    %1594 = vmatprep.mubr.f32.mxu0 %v1464
    %1595 = vmatmul.mubr.f32.gmra.mrb[0].mxu0 %v1463
    %v1596 = vpop.f32.mrb[0].mxu0
    %v1597 = vadd.f32 0.0, %v1596
    %v1598 = vpop.f32.mrb[0].mxu0
    %1599 = vmatprep.mubr.f32.mxu0 %v1468
    %1600 = vmatmul.mubr.f32.gmra.mrb[0].mxu0 %v1467
    %v1601 = vpop.f32.mrb[0].mxu0
    %v1602 = vadd.f32 0.0, %v1601
    %v1603 = vpop.f32.mrb[0].mxu0
    %1604 = vmatprep.mubr.f32.mxu0 %v1472
    %1605 = vmatmul.mubr.f32.gmra.mrb[0].mxu0 %v1471
    %v1606 = vpop.f32.mrb[0].mxu0
    %v1607 = vadd.f32 0.0, %v1606
    %v1608 = vpop.f32.mrb[0].mxu0
    %1609 = vmatprep.mubr.f32.mxu0 %v1476
    %1610 = vmatmul.mubr.f32.gmra.mrb[0].mxu0 %v1475
    %v1611 = vpop.f32.mrb[0].mxu0
    %v1612 = vadd.f32 0.0, %v1611
    %v1613 = vpop.f32.mrb[0].mxu0
    %1614 = vmatprep.mubr.f32.mxu0 %v1480
    %1615 = vmatmul.mubr.f32.gmra.mrb[0].mxu0 %v1479
    %v1616 = vpop.f32.mrb[0].mxu0
    %v1617 = vadd.f32 0.0, %v1616
    %v1618 = vpop.f32.mrb[0].mxu0
    %1619 = vmatprep.mubr.f32.mxu0 %v1484
    %1620 = vmatmul.mubr.f32.gmra.mrb[0].mxu0 %v1483
    %v1621 = vpop.f32.mrb[0].mxu0
    %v1622 = vadd.f32 0.0, %v1621
    %v1623 = vpop.f32.mrb[0].mxu0
    %1624 = vmatprep.mubr.f32.mxu0 %v1488
    %1625 = vmatmul.mubr.f32.gmra.mrb[0].mxu0 %v1487
    %v1626 = vpop.f32.mrb[0].mxu0
    %v1627 = vadd.f32 0.0, %v1626
    %v1628 = vpop.f32.mrb[0].mxu0
    %1629 = vmatprep.mubr.f32.mxu0 %v1492
    %1630 = vmatmul.mubr.f32.gmra.mrb[0].mxu0 %v1491
    %v1631 = vpop.f32.mrb[0].mxu0
    %v1632 = vadd.f32 0.0, %v1631
    %v1633 = vpop.f32.mrb[0].mxu0
    %1634 = vmatprep.mubr.f32.mxu0 %v1496
    %1635 = vmatmul.mubr.f32.gmra.mrb[0].mxu0 %v1495
    %v1636 = vpop.f32.mrb[0].mxu0
    %v1637 = vadd.f32 0.0, %v1636
    %v1638 = vpop.f32.mrb[0].mxu0
    %1639 = vmatprep.mubr.f32.mxu0 %v1500
    %1640 = vmatmul.mubr.f32.gmra.mrb[0].mxu0 %v1499
    %v1641 = vpop.f32.mrb[0].mxu0
    %v1642 = vadd.f32 0.0, %v1641
    %v1643 = vpop.f32.mrb[0].mxu0
    %1644 = vmatprep.mubr.f32.mxu0 %v1504
    %1645 = vmatmul.mubr.f32.gmra.mrb[0].mxu0 %v1503
    %v1646 = vpop.f32.mrb[0].mxu0
    %v1647 = vadd.f32 0.0, %v1646
    %v1648 = vpop.f32.mrb[0].mxu0
    %1649 = vmatprep.mubr.f32.mxu0 %v1508
    %1650 = vmatmul.mubr.f32.gmra.mrb[0].mxu0 %v1507
    %v1651 = vpop.f32.mrb[0].mxu0
    %v1652 = vadd.f32 0.0, %v1651
    %v1653 = vpop.f32.mrb[0].mxu0
    %1654 = vmatprep.mubr.f32.mxu0 %v1512
    %1655 = vmatmul.mubr.f32.gmra.mrb[0].mxu0 %v1511
    %v1656 = vpop.f32.mrb[0].mxu0
    %v1657 = vadd.f32 0.0, %v1656
    %v1658 = vpop.f32.mrb[0].mxu0
    %1659 = vdwg.mxu0
    %1660 = vmatprep.subr.mxu0 0.0
    %1661 = vmatpush1.msra.mxu0 %v312
    %1662 = vmatprep.subr.mxu0 0.0
    %1663 = vmatpush1.msra.mxu0 %v313
    %1664 = vmatprep.subr.mxu0 0.0
    %1665 = vmatpush1.msra.mxu0 %v314
    %1666 = vmatprep.subr.mxu0 0.0
    %1667 = vmatpush1.msra.mxu0 %v315
    %1668 = vmatprep.subr.mxu0 0.0
    %1669 = vmatpush1.msra.mxu0 %v316
    %1670 = vmatprep.subr.mxu0 0.0
    %1671 = vmatpush1.msra.mxu0 %v317
    %1672 = vmatprep.subr.mxu0 0.0
    %1673 = vmatpush1.msra.mxu0 %v318
    %1674 = vmatprep.subr.mxu0 0.0
    %1675 = vmatpush1.msra.mxu0 %v319
    %1676 = vmatprep.subr.mxu0 0.0
    %1677 = vmatpush1.msra.mxu0 %v320
    %1678 = vmatprep.subr.mxu0 0.0
    %1679 = vmatpush1.msra.mxu0 %v321
    %1680 = vmatprep.subr.mxu0 0.0
    %1681 = vmatpush1.msra.mxu0 %v322
    %1682 = vmatprep.subr.mxu0 0.0
    %1683 = vmatpush1.msra.mxu0 %v323
    %1684 = vmatprep.subr.mxu0 0.0
    %1685 = vmatpush1.msra.mxu0 %v324
    %1686 = vmatprep.subr.mxu0 0.0
    %1687 = vmatpush1.msra.mxu0 %v325
    %1688 = vmatprep.subr.mxu0 0.0
    %1689 = vmatpush1.msra.mxu0 %v326
    %1690 = vmatprep.subr.mxu0 0.0
    %1691 = vmatpush1.msra.mxu0 %v327
    %1692 = vmatprep.subr.mxu0 0.0
    %1693 = vmatpush1.msra.mxu0 %v328
    %1694 = vmatprep.subr.mxu0 0.0
    %1695 = vmatpush1.msra.mxu0 %v329
    %1696 = vmatprep.subr.mxu0 0.0
    %1697 = vmatpush1.msra.mxu0 %v330
    %1698 = vmatprep.subr.mxu0 0.0
    %1699 = vmatpush1.msra.mxu0 %v331
    %1700 = vmatprep.subr.mxu0 0.0
    %1701 = vmatpush1.msra.mxu0 %v332
    %1702 = vmatprep.subr.mxu0 0.0
    %1703 = vmatpush1.msra.mxu0 %v333
    %1704 = vmatprep.subr.mxu0 0.0
    %1705 = vmatpush1.msra.mxu0 %v334
    %1706 = vmatprep.subr.mxu0 0.0
    %1707 = vmatpush1.msra.mxu0 %v335
    %1708 = vmatprep.subr.mxu0 0.0
    %1709 = vmatpush1.msra.mxu0 %v336
    %1710 = vmatprep.subr.mxu0 0.0
    %1711 = vmatpush1.msra.mxu0 %v337
    %1712 = vmatprep.subr.mxu0 0.0
    %1713 = vmatpush1.msra.mxu0 %v338
    %1714 = vmatprep.subr.mxu0 0.0
    %1715 = vmatpush1.msra.mxu0 %v339
    %1716 = vmatprep.subr.mxu0 0.0
    %1717 = vmatpush1.msra.mxu0 %v340
    %1718 = vmatprep.subr.mxu0 0.0
    %1719 = vmatpush1.msra.mxu0 %v341
    %1720 = vmatprep.subr.mxu0 0.0
    %1721 = vmatpush1.msra.mxu0 %v342
    %1722 = vmatprep.subr.mxu0 0.0
    %1723 = vmatpush1.msra.mxu0 %v343
    %1724 = vmatprep.mubr.f32.mxu0 %v1454
    %1725 = vmatmul.mubr.f32.gmra.mrb[0].mxu0 %v1453
    %v1726 = vpop.f32.mrb[0].mxu0
    %v1727 = vadd.f32 %v1582, %v1726
    %v1728 = vpop.f32.mrb[0].mxu0
    %1729 = vmatprep.mubr.f32.mxu0 %v1458
    %1730 = vmatmul.mubr.f32.gmra.mrb[0].mxu0 %v1457
    %v1731 = vpop.f32.mrb[0].mxu0
    %v1732 = vadd.f32 %v1587, %v1731
    %v1733 = vpop.f32.mrb[0].mxu0
    %1734 = vmatprep.mubr.f32.mxu0 %v1462
    %1735 = vmatmul.mubr.f32.gmra.mrb[0].mxu0 %v1461
    %v1736 = vpop.f32.mrb[0].mxu0
    %v1737 = vadd.f32 %v1592, %v1736
    %v1738 = vpop.f32.mrb[0].mxu0
    %1739 = vmatprep.mubr.f32.mxu0 %v1466
    %1740 = vmatmul.mubr.f32.gmra.mrb[0].mxu0 %v1465
    %v1741 = vpop.f32.mrb[0].mxu0
    %v1742 = vadd.f32 %v1597, %v1741
    %v1743 = vpop.f32.mrb[0].mxu0
    %1744 = vmatprep.mubr.f32.mxu0 %v1470
    %1745 = vmatmul.mubr.f32.gmra.mrb[0].mxu0 %v1469
    %v1746 = vpop.f32.mrb[0].mxu0
    %v1747 = vadd.f32 %v1602, %v1746
    %v1748 = vpop.f32.mrb[0].mxu0
    %1749 = vmatprep.mubr.f32.mxu0 %v1474
    %1750 = vmatmul.mubr.f32.gmra.mrb[0].mxu0 %v1473
    %v1751 = vpop.f32.mrb[0].mxu0
    %v1752 = vadd.f32 %v1607, %v1751
    %v1753 = vpop.f32.mrb[0].mxu0
    %1754 = vmatprep.mubr.f32.mxu0 %v1478
    %1755 = vmatmul.mubr.f32.gmra.mrb[0].mxu0 %v1477
    %v1756 = vpop.f32.mrb[0].mxu0
    %v1757 = vadd.f32 %v1612, %v1756
    %v1758 = vpop.f32.mrb[0].mxu0
    %1759 = vmatprep.mubr.f32.mxu0 %v1482
    %1760 = vmatmul.mubr.f32.gmra.mrb[0].mxu0 %v1481
    %v1761 = vpop.f32.mrb[0].mxu0
    %v1762 = vadd.f32 %v1617, %v1761
    %v1763 = vpop.f32.mrb[0].mxu0
    %1764 = vmatprep.mubr.f32.mxu0 %v1486
    %1765 = vmatmul.mubr.f32.gmra.mrb[0].mxu0 %v1485
    %v1766 = vpop.f32.mrb[0].mxu0
    %v1767 = vadd.f32 %v1622, %v1766
    %v1768 = vpop.f32.mrb[0].mxu0
    %1769 = vmatprep.mubr.f32.mxu0 %v1490
    %1770 = vmatmul.mubr.f32.gmra.mrb[0].mxu0 %v1489
    %v1771 = vpop.f32.mrb[0].mxu0
    %v1772 = vadd.f32 %v1627, %v1771
    %v1773 = vpop.f32.mrb[0].mxu0
    %1774 = vmatprep.mubr.f32.mxu0 %v1494
    %1775 = vmatmul.mubr.f32.gmra.mrb[0].mxu0 %v1493
    %v1776 = vpop.f32.mrb[0].mxu0
    %v1777 = vadd.f32 %v1632, %v1776
    %v1778 = vpop.f32.mrb[0].mxu0
    %1779 = vmatprep.mubr.f32.mxu0 %v1498
    %1780 = vmatmul.mubr.f32.gmra.mrb[0].mxu0 %v1497
    %v1781 = vpop.f32.mrb[0].mxu0
    %v1782 = vadd.f32 %v1637, %v1781
    %v1783 = vpop.f32.mrb[0].mxu0
    %1784 = vmatprep.mubr.f32.mxu0 %v1502
    %1785 = vmatmul.mubr.f32.gmra.mrb[0].mxu0 %v1501
    %v1786 = vpop.f32.mrb[0].mxu0
    %v1787 = vadd.f32 %v1642, %v1786
    %v1788 = vpop.f32.mrb[0].mxu0
    %1789 = vmatprep.mubr.f32.mxu0 %v1506
    %1790 = vmatmul.mubr.f32.gmra.mrb[0].mxu0 %v1505
    %v1791 = vpop.f32.mrb[0].mxu0
    %v1792 = vadd.f32 %v1647, %v1791
    %v1793 = vpop.f32.mrb[0].mxu0
    %1794 = vmatprep.mubr.f32.mxu0 %v1510
    %1795 = vmatmul.mubr.f32.gmra.mrb[0].mxu0 %v1509
    %v1796 = vpop.f32.mrb[0].mxu0
    %v1797 = vadd.f32 %v1652, %v1796
    %v1798 = vpop.f32.mrb[0].mxu0
    %1799 = vmatprep.mubr.f32.mxu0 %v1514
    %1800 = vmatmul.mubr.f32.gmra.mrb[0].mxu0 %v1513
    %v1801 = vpop.f32.mrb[0].mxu0
    %v1802 = vadd.f32 %v1657, %v1801
    %v1803 = vpop.f32.mrb[0].mxu0
    %1804 = vdwg.mxu0
    %s1805 = scalar_lea.vmem [#allocation5], 8
    %v1806 = vld [vmem:[%s1805] sm:$0x7]
    %v1808 = vsel %vm1056, %v1727, 0
    %v1811 = vsel %vm1056, %v1732, 0
    %v1814 = vsel %vm1056, %v1737, 0
    %v1817 = vsel %vm1056, %v1742, 0
    %v1820 = vsel %vm1056, %v1747, 0
    %v1823 = vsel %vm1056, %v1752, 0
    %v1826 = vsel %vm1056, %v1757, 0
    %v1829 = vsel %vm1056, %v1762, 0
    %v1832 = vsel %vm1056, %v1767, 0
    %v1835 = vsel %vm1056, %v1772, 0
    %v1838 = vsel %vm1056, %v1777, 0
    %v1841 = vsel %vm1056, %v1782, 0
    %v1844 = vsel %vm1056, %v1787, 0
    %v1847 = vsel %vm1056, %v1792, 0
    %v1850 = vsel %vm1056, %v1797, 0
    %v1853 = vsel %vm1056, %v1802, 0
    %v1856 = vsel %vm1105, %v1806, 0
    %1858 = vmatprep.subr.mxu0 0.0
    %1859 = vmatpush1.msra.mxu0 %v1856
    %1860 = vmatprep.subr.mxu0 0.0
    %1861 = vmatpush1.msra.mxu0 0.0
    %1862 = vmatprep.subr.mxu0 0.0
    %1863 = vmatpush1.msra.mxu0 0.0
    %1864 = vmatprep.subr.mxu0 0.0
    %1865 = vmatpush1.msra.mxu0 0.0
    %1866 = vmatprep.subr.mxu0 0.0
    %1867 = vmatpush1.msra.mxu0 0.0
    %1868 = vmatprep.subr.mxu0 0.0
    %1869 = vmatpush1.msra.mxu0 0.0
    %1870 = vmatprep.subr.mxu0 0.0
    %1871 = vmatpush1.msra.mxu0 0.0
    %1872 = vmatprep.subr.mxu0 0.0
    %1873 = vmatpush1.msra.mxu0 0.0
    %1874 = vmatprep.subr.mxu0 0.0
    %1875 = vmatpush1.msra.mxu0 0.0
    %1876 = vmatprep.subr.mxu0 0.0
    %1877 = vmatpush1.msra.mxu0 0.0
    %1878 = vmatprep.subr.mxu0 0.0
    %1879 = vmatpush1.msra.mxu0 0.0
    %1880 = vmatprep.subr.mxu0 0.0
    %1881 = vmatpush1.msra.mxu0 0.0
    %1882 = vmatprep.subr.mxu0 0.0
    %1883 = vmatpush1.msra.mxu0 0.0
    %1884 = vmatprep.subr.mxu0 0.0
    %1885 = vmatpush1.msra.mxu0 0.0
    %1886 = vmatprep.subr.mxu0 0.0
    %1887 = vmatpush1.msra.mxu0 0.0
    %1888 = vmatprep.subr.mxu0 0.0
    %1889 = vmatpush1.msra.mxu0 0.0
    %1890 = vmatprep.subr.mxu0 0.0
    %1891 = vmatpush1.msra.mxu0 0.0
    %1892 = vmatprep.subr.mxu0 0.0
    %1893 = vmatpush1.msra.mxu0 0.0
    %1894 = vmatprep.subr.mxu0 0.0
    %1895 = vmatpush1.msra.mxu0 0.0
    %1896 = vmatprep.subr.mxu0 0.0
    %1897 = vmatpush1.msra.mxu0 0.0
    %1898 = vmatprep.subr.mxu0 0.0
    %1899 = vmatpush1.msra.mxu0 0.0
    %1900 = vmatprep.subr.mxu0 0.0
    %1901 = vmatpush1.msra.mxu0 0.0
    %1902 = vmatprep.subr.mxu0 0.0
    %1903 = vmatpush1.msra.mxu0 0.0
    %1904 = vmatprep.subr.mxu0 0.0
    %1905 = vmatpush1.msra.mxu0 0.0
    %1906 = vmatprep.subr.mxu0 0.0
    %1907 = vmatpush1.msra.mxu0 0.0
    %1908 = vmatprep.subr.mxu0 0.0
    %1909 = vmatpush1.msra.mxu0 0.0
    %1910 = vmatprep.subr.mxu0 0.0
    %1911 = vmatpush1.msra.mxu0 0.0
    %1912 = vmatprep.subr.mxu0 0.0
    %1913 = vmatpush1.msra.mxu0 0.0
    %1914 = vmatprep.subr.mxu0 0.0
    %1915 = vmatpush1.msra.mxu0 0.0
    %1916 = vmatprep.subr.mxu0 0.0
    %1917 = vmatpush1.msra.mxu0 0.0
    %1918 = vmatprep.subr.mxu0 0.0
    %1919 = vmatpush1.msra.mxu0 0.0
    %1920 = vmatprep.subr.mxu0 0.0
    %1921 = vmatpush1.msra.mxu0 0.0
    %1922 = vmatprep.mubr.f32.mxu0 0.0
    %1923 = vmatmul.mubr.f32.gmra.mrb[0].mxu0 %v1808
    %v1924 = vpop.f32.mrb[0].mxu0
    %v1925 = vadd.f32 0.0, %v1924
    %v1926 = vpop.f32.mrb[0].mxu0
    %1927 = vmatprep.mubr.f32.mxu0 0.0
    %1928 = vmatmul.mubr.f32.gmra.mrb[0].mxu0 %v1811
    %v1929 = vpop.f32.mrb[0].mxu0
    %v1930 = vadd.f32 0.0, %v1929
    %v1931 = vpop.f32.mrb[0].mxu0
    %1932 = vmatprep.mubr.f32.mxu0 0.0
    %1933 = vmatmul.mubr.f32.gmra.mrb[0].mxu0 %v1814
    %v1934 = vpop.f32.mrb[0].mxu0
    %v1935 = vadd.f32 0.0, %v1934
    %v1936 = vpop.f32.mrb[0].mxu0
    %1937 = vmatprep.mubr.f32.mxu0 0.0
    %1938 = vmatmul.mubr.f32.gmra.mrb[0].mxu0 %v1817
    %v1939 = vpop.f32.mrb[0].mxu0
    %v1940 = vadd.f32 0.0, %v1939
    %v1941 = vpop.f32.mrb[0].mxu0
    %1942 = vmatprep.mubr.f32.mxu0 0.0
    %1943 = vmatmul.mubr.f32.gmra.mrb[0].mxu0 %v1820
    %v1944 = vpop.f32.mrb[0].mxu0
    %v1945 = vadd.f32 0.0, %v1944
    %v1946 = vpop.f32.mrb[0].mxu0
    %1947 = vmatprep.mubr.f32.mxu0 0.0
    %1948 = vmatmul.mubr.f32.gmra.mrb[0].mxu0 %v1823
    %v1949 = vpop.f32.mrb[0].mxu0
    %v1950 = vadd.f32 0.0, %v1949
    %v1951 = vpop.f32.mrb[0].mxu0
    %1952 = vmatprep.mubr.f32.mxu0 0.0
    %1953 = vmatmul.mubr.f32.gmra.mrb[0].mxu0 %v1826
    %v1954 = vpop.f32.mrb[0].mxu0
    %v1955 = vadd.f32 0.0, %v1954
    %v1956 = vpop.f32.mrb[0].mxu0
    %1957 = vmatprep.mubr.f32.mxu0 0.0
    %1958 = vmatmul.mubr.f32.gmra.mrb[0].mxu0 %v1829
    %v1959 = vpop.f32.mrb[0].mxu0
    %v1960 = vadd.f32 0.0, %v1959
    %v1961 = vpop.f32.mrb[0].mxu0
    %1962 = vmatprep.mubr.f32.mxu0 0.0
    %1963 = vmatmul.mubr.f32.gmra.mrb[0].mxu0 %v1832
    %v1964 = vpop.f32.mrb[0].mxu0
    %v1965 = vadd.f32 0.0, %v1964
    %v1966 = vpop.f32.mrb[0].mxu0
    %1967 = vmatprep.mubr.f32.mxu0 0.0
    %1968 = vmatmul.mubr.f32.gmra.mrb[0].mxu0 %v1835
    %v1969 = vpop.f32.mrb[0].mxu0
    %v1970 = vadd.f32 0.0, %v1969
    %v1971 = vpop.f32.mrb[0].mxu0
    %1972 = vmatprep.mubr.f32.mxu0 0.0
    %1973 = vmatmul.mubr.f32.gmra.mrb[0].mxu0 %v1838
    %v1974 = vpop.f32.mrb[0].mxu0
    %v1975 = vadd.f32 0.0, %v1974
    %v1976 = vpop.f32.mrb[0].mxu0
    %1977 = vmatprep.mubr.f32.mxu0 0.0
    %1978 = vmatmul.mubr.f32.gmra.mrb[0].mxu0 %v1841
    %v1979 = vpop.f32.mrb[0].mxu0
    %v1980 = vadd.f32 0.0, %v1979
    %v1981 = vpop.f32.mrb[0].mxu0
    %1982 = vmatprep.mubr.f32.mxu0 0.0
    %1983 = vmatmul.mubr.f32.gmra.mrb[0].mxu0 %v1844
    %v1984 = vpop.f32.mrb[0].mxu0
    %v1985 = vadd.f32 0.0, %v1984
    %v1986 = vpop.f32.mrb[0].mxu0
    %1987 = vmatprep.mubr.f32.mxu0 0.0
    %1988 = vmatmul.mubr.f32.gmra.mrb[0].mxu0 %v1847
    %v1989 = vpop.f32.mrb[0].mxu0
    %v1990 = vadd.f32 0.0, %v1989
    %v1991 = vpop.f32.mrb[0].mxu0
    %1992 = vmatprep.mubr.f32.mxu0 0.0
    %1993 = vmatmul.mubr.f32.gmra.mrb[0].mxu0 %v1850
    %v1994 = vpop.f32.mrb[0].mxu0
    %v1995 = vadd.f32 0.0, %v1994
    %v1996 = vpop.f32.mrb[0].mxu0
    %1997 = vmatprep.mubr.f32.mxu0 0.0
    %1998 = vmatmul.mubr.f32.gmra.mrb[0].mxu0 %v1853
    %v1999 = vpop.f32.mrb[0].mxu0
    %v2000 = vadd.f32 0.0, %v1999
    %v2001 = vpop.f32.mrb[0].mxu0
    %2002 = vdwg.mxu0
    %v2003 = vadd.f32 %v1372, %v1925
    %v2004 = vadd.f32 %v1377, %v1930
    %v2005 = vadd.f32 %v1382, %v1935
    %v2006 = vadd.f32 %v1387, %v1940
    %v2007 = vadd.f32 %v1392, %v1945
    %v2008 = vadd.f32 %v1397, %v1950
    %v2009 = vadd.f32 %v1402, %v1955
    %v2010 = vadd.f32 %v1407, %v1960
    %v2011 = vadd.f32 %v1412, %v1965
    %v2012 = vadd.f32 %v1417, %v1970
    %v2013 = vadd.f32 %v1422, %v1975
    %v2014 = vadd.f32 %v1427, %v1980
    %v2015 = vadd.f32 %v1432, %v1985
    %v2016 = vadd.f32 %v1437, %v1990
    %v2017 = vadd.f32 %v1442, %v1995
    %v2018 = vadd.f32 %v1447, %v2000
    %s2019 = scalar_lea.vmem [#allocation3], 1536
    %v2020 = vld [vmem:[%s2019] sm:$0xff]
    %v2021 = vld [vmem:[%s2019 + $0x8] sm:$0xff]
    %v2022 = vld [vmem:[%s2019 + $0x10] sm:$0xff]
    %v2023 = vld [vmem:[%s2019 + $0x18] sm:$0xff]
    %v2024 = vld [vmem:[%s2019 + $0x20] sm:$0xff]
    %v2025 = vld [vmem:[%s2019 + $0x28] sm:$0xff]
    %v2026 = vld [vmem:[%s2019 + $0x30] sm:$0xff]
    %v2027 = vld [vmem:[%s2019 + $0x38] sm:$0xff]
    %v2028 = vld [vmem:[%s2019 + $0x40] sm:$0xff]
    %v2029 = vld [vmem:[%s2019 + $0x48] sm:$0xff]
    %v2030 = vld [vmem:[%s2019 + $0x50] sm:$0xff]
    %v2031 = vld [vmem:[%s2019 + $0x58] sm:$0xff]
    %v2032 = vld [vmem:[%s2019 + $0x60] sm:$0xff]
    %v2033 = vld [vmem:[%s2019 + $0x68] sm:$0xff]
    %v2034 = vld [vmem:[%s2019 + $0x70] sm:$0xff]
    %v2035 = vld [vmem:[%s2019 + $0x78] sm:$0xff]
    %v2036 = vld [vmem:[%s2019 + $0x80] sm:$0xff]
    %v2037 = vld [vmem:[%s2019 + $0x88] sm:$0xff]
    %v2038 = vld [vmem:[%s2019 + $0x90] sm:$0xff]
    %v2039 = vld [vmem:[%s2019 + $0x98] sm:$0xff]
    %v2040 = vld [vmem:[%s2019 + $0xa0] sm:$0xff]
    %v2041 = vld [vmem:[%s2019 + $0xa8] sm:$0xff]
    %v2042 = vld [vmem:[%s2019 + $0xb0] sm:$0xff]
    %v2043 = vld [vmem:[%s2019 + $0xb8] sm:$0xff]
    %v2044 = vld [vmem:[%s2019 + $0xc0] sm:$0xff]
    %v2045 = vld [vmem:[%s2019 + $0xc8] sm:$0xff]
    %v2046 = vld [vmem:[%s2019 + $0xd0] sm:$0xff]
    %v2047 = vld [vmem:[%s2019 + $0xd8] sm:$0xff]
    %v2048 = vld [vmem:[%s2019 + $0xe0] sm:$0xff]
    %v2049 = vld [vmem:[%s2019 + $0xe8] sm:$0xff]
    %v2050 = vld [vmem:[%s2019 + $0xf0] sm:$0xff]
    %v2051 = vld [vmem:[%s2019 + $0xf8] sm:$0xff]
    %v2052 = vld [vmem:[%s2019 + $0x100] sm:$0xff]
    %v2053 = vld [vmem:[%s2019 + $0x108] sm:$0xff]
    %v2054 = vld [vmem:[%s2019 + $0x110] sm:$0xff]
    %v2055 = vld [vmem:[%s2019 + $0x118] sm:$0xff]
    %v2056 = vld [vmem:[%s2019 + $0x120] sm:$0xff]
    %v2057 = vld [vmem:[%s2019 + $0x128] sm:$0xff]
    %v2058 = vld [vmem:[%s2019 + $0x130] sm:$0xff]
    %v2059 = vld [vmem:[%s2019 + $0x138] sm:$0xff]
    %v2060 = vld [vmem:[%s2019 + $0x140] sm:$0xff]
    %v2061 = vld [vmem:[%s2019 + $0x148] sm:$0xff]
    %v2062 = vld [vmem:[%s2019 + $0x150] sm:$0xff]
    %v2063 = vld [vmem:[%s2019 + $0x158] sm:$0xff]
    %v2064 = vld [vmem:[%s2019 + $0x160] sm:$0xff]
    %v2065 = vld [vmem:[%s2019 + $0x168] sm:$0xff]
    %v2066 = vld [vmem:[%s2019 + $0x170] sm:$0xff]
    %v2067 = vld [vmem:[%s2019 + $0x178] sm:$0xff]
    %v2068 = vld [vmem:[%s2019 + $0x180] sm:$0xff]
    %v2069 = vld [vmem:[%s2019 + $0x188] sm:$0xff]
    %v2070 = vld [vmem:[%s2019 + $0x190] sm:$0xff]
    %v2071 = vld [vmem:[%s2019 + $0x198] sm:$0xff]
    %v2072 = vld [vmem:[%s2019 + $0x1a0] sm:$0xff]
    %v2073 = vld [vmem:[%s2019 + $0x1a8] sm:$0xff]
    %v2074 = vld [vmem:[%s2019 + $0x1b0] sm:$0xff]
    %v2075 = vld [vmem:[%s2019 + $0x1b8] sm:$0xff]
    %v2076 = vld [vmem:[%s2019 + $0x1c0] sm:$0xff]
    %v2077 = vld [vmem:[%s2019 + $0x1c8] sm:$0xff]
    %v2078 = vld [vmem:[%s2019 + $0x1d0] sm:$0xff]
    %v2079 = vld [vmem:[%s2019 + $0x1d8] sm:$0xff]
    %v2080 = vld [vmem:[%s2019 + $0x1e0] sm:$0xff]
    %v2081 = vld [vmem:[%s2019 + $0x1e8] sm:$0xff]
    %v2082 = vld [vmem:[%s2019 + $0x1f0] sm:$0xff]
    %v2083 = vld [vmem:[%s2019 + $0x1f8] sm:$0xff]
    %2084 = vmatprep.subr.mxu0 0.0
    %2085 = vmatpush1.msra.mxu0 %v280
    %2086 = vmatprep.subr.mxu0 0.0
    %2087 = vmatpush1.msra.mxu0 %v281
    %2088 = vmatprep.subr.mxu0 0.0
    %2089 = vmatpush1.msra.mxu0 %v282
    %2090 = vmatprep.subr.mxu0 0.0
    %2091 = vmatpush1.msra.mxu0 %v283
    %2092 = vmatprep.subr.mxu0 0.0
    %2093 = vmatpush1.msra.mxu0 %v284
    %2094 = vmatprep.subr.mxu0 0.0
    %2095 = vmatpush1.msra.mxu0 %v285
    %2096 = vmatprep.subr.mxu0 0.0
    %2097 = vmatpush1.msra.mxu0 %v286
    %2098 = vmatprep.subr.mxu0 0.0
    %2099 = vmatpush1.msra.mxu0 %v287
    %2100 = vmatprep.subr.mxu0 0.0
    %2101 = vmatpush1.msra.mxu0 %v288
    %2102 = vmatprep.subr.mxu0 0.0
    %2103 = vmatpush1.msra.mxu0 %v289
    %2104 = vmatprep.subr.mxu0 0.0
    %2105 = vmatpush1.msra.mxu0 %v290
    %2106 = vmatprep.subr.mxu0 0.0
    %2107 = vmatpush1.msra.mxu0 %v291
    %2108 = vmatprep.subr.mxu0 0.0
    %2109 = vmatpush1.msra.mxu0 %v292
    %2110 = vmatprep.subr.mxu0 0.0
    %2111 = vmatpush1.msra.mxu0 %v293
    %2112 = vmatprep.subr.mxu0 0.0
    %2113 = vmatpush1.msra.mxu0 %v294
    %2114 = vmatprep.subr.mxu0 0.0
    %2115 = vmatpush1.msra.mxu0 %v295
    %2116 = vmatprep.subr.mxu0 0.0
    %2117 = vmatpush1.msra.mxu0 %v296
    %2118 = vmatprep.subr.mxu0 0.0
    %2119 = vmatpush1.msra.mxu0 %v297
    %2120 = vmatprep.subr.mxu0 0.0
    %2121 = vmatpush1.msra.mxu0 %v298
    %2122 = vmatprep.subr.mxu0 0.0
    %2123 = vmatpush1.msra.mxu0 %v299
    %2124 = vmatprep.subr.mxu0 0.0
    %2125 = vmatpush1.msra.mxu0 %v300
    %2126 = vmatprep.subr.mxu0 0.0
    %2127 = vmatpush1.msra.mxu0 %v301
    %2128 = vmatprep.subr.mxu0 0.0
    %2129 = vmatpush1.msra.mxu0 %v302
    %2130 = vmatprep.subr.mxu0 0.0
    %2131 = vmatpush1.msra.mxu0 %v303
    %2132 = vmatprep.subr.mxu0 0.0
    %2133 = vmatpush1.msra.mxu0 %v304
    %2134 = vmatprep.subr.mxu0 0.0
    %2135 = vmatpush1.msra.mxu0 %v305
    %2136 = vmatprep.subr.mxu0 0.0
    %2137 = vmatpush1.msra.mxu0 %v306
    %2138 = vmatprep.subr.mxu0 0.0
    %2139 = vmatpush1.msra.mxu0 %v307
    %2140 = vmatprep.subr.mxu0 0.0
    %2141 = vmatpush1.msra.mxu0 %v308
    %2142 = vmatprep.subr.mxu0 0.0
    %2143 = vmatpush1.msra.mxu0 %v309
    %2144 = vmatprep.subr.mxu0 0.0
    %2145 = vmatpush1.msra.mxu0 %v310
    %2146 = vmatprep.subr.mxu0 0.0
    %2147 = vmatpush1.msra.mxu0 %v311
    %2148 = vmatprep.mubr.f32.mxu0 %v2021
    %2149 = vmatmul.mubr.f32.gmra.mrb[0].mxu0 %v2020
    %v2150 = vpop.f32.mrb[0].mxu0
    %v2151 = vadd.f32 0.0, %v2150
    %v2152 = vpop.f32.mrb[0].mxu0
    %2153 = vmatprep.mubr.f32.mxu0 %v2025
    %2154 = vmatmul.mubr.f32.gmra.mrb[0].mxu0 %v2024
    %v2155 = vpop.f32.mrb[0].mxu0
    %v2156 = vadd.f32 0.0, %v2155
    %v2157 = vpop.f32.mrb[0].mxu0
    %2158 = vmatprep.mubr.f32.mxu0 %v2029
    %2159 = vmatmul.mubr.f32.gmra.mrb[0].mxu0 %v2028
    %v2160 = vpop.f32.mrb[0].mxu0
    %v2161 = vadd.f32 0.0, %v2160
    %v2162 = vpop.f32.mrb[0].mxu0
    %2163 = vmatprep.mubr.f32.mxu0 %v2033
    %2164 = vmatmul.mubr.f32.gmra.mrb[0].mxu0 %v2032
    %v2165 = vpop.f32.mrb[0].mxu0
    %v2166 = vadd.f32 0.0, %v2165
    %v2167 = vpop.f32.mrb[0].mxu0
    %2168 = vmatprep.mubr.f32.mxu0 %v2037
    %2169 = vmatmul.mubr.f32.gmra.mrb[0].mxu0 %v2036
    %v2170 = vpop.f32.mrb[0].mxu0
    %v2171 = vadd.f32 0.0, %v2170
    %v2172 = vpop.f32.mrb[0].mxu0
    %2173 = vmatprep.mubr.f32.mxu0 %v2041
    %2174 = vmatmul.mubr.f32.gmra.mrb[0].mxu0 %v2040
    %v2175 = vpop.f32.mrb[0].mxu0
    %v2176 = vadd.f32 0.0, %v2175
    %v2177 = vpop.f32.mrb[0].mxu0
    %2178 = vmatprep.mubr.f32.mxu0 %v2045
    %2179 = vmatmul.mubr.f32.gmra.mrb[0].mxu0 %v2044
    %v2180 = vpop.f32.mrb[0].mxu0
    %v2181 = vadd.f32 0.0, %v2180
    %v2182 = vpop.f32.mrb[0].mxu0
    %2183 = vmatprep.mubr.f32.mxu0 %v2049
    %2184 = vmatmul.mubr.f32.gmra.mrb[0].mxu0 %v2048
    %v2185 = vpop.f32.mrb[0].mxu0
    %v2186 = vadd.f32 0.0, %v2185
    %v2187 = vpop.f32.mrb[0].mxu0
    %2188 = vmatprep.mubr.f32.mxu0 %v2053
    %2189 = vmatmul.mubr.f32.gmra.mrb[0].mxu0 %v2052
    %v2190 = vpop.f32.mrb[0].mxu0
    %v2191 = vadd.f32 0.0, %v2190
    %v2192 = vpop.f32.mrb[0].mxu0
    %2193 = vmatprep.mubr.f32.mxu0 %v2057
    %2194 = vmatmul.mubr.f32.gmra.mrb[0].mxu0 %v2056
    %v2195 = vpop.f32.mrb[0].mxu0
    %v2196 = vadd.f32 0.0, %v2195
    %v2197 = vpop.f32.mrb[0].mxu0
    %2198 = vmatprep.mubr.f32.mxu0 %v2061
    %2199 = vmatmul.mubr.f32.gmra.mrb[0].mxu0 %v2060
    %v2200 = vpop.f32.mrb[0].mxu0
    %v2201 = vadd.f32 0.0, %v2200
    %v2202 = vpop.f32.mrb[0].mxu0
    %2203 = vmatprep.mubr.f32.mxu0 %v2065
    %2204 = vmatmul.mubr.f32.gmra.mrb[0].mxu0 %v2064
    %v2205 = vpop.f32.mrb[0].mxu0
    %v2206 = vadd.f32 0.0, %v2205
    %v2207 = vpop.f32.mrb[0].mxu0
    %2208 = vmatprep.mubr.f32.mxu0 %v2069
    %2209 = vmatmul.mubr.f32.gmra.mrb[0].mxu0 %v2068
    %v2210 = vpop.f32.mrb[0].mxu0
    %v2211 = vadd.f32 0.0, %v2210
    %v2212 = vpop.f32.mrb[0].mxu0
    %2213 = vmatprep.mubr.f32.mxu0 %v2073
    %2214 = vmatmul.mubr.f32.gmra.mrb[0].mxu0 %v2072
    %v2215 = vpop.f32.mrb[0].mxu0
    %v2216 = vadd.f32 0.0, %v2215
    %v2217 = vpop.f32.mrb[0].mxu0
    %2218 = vmatprep.mubr.f32.mxu0 %v2077
    %2219 = vmatmul.mubr.f32.gmra.mrb[0].mxu0 %v2076
    %v2220 = vpop.f32.mrb[0].mxu0
    %v2221 = vadd.f32 0.0, %v2220
    %v2222 = vpop.f32.mrb[0].mxu0
    %2223 = vmatprep.mubr.f32.mxu0 %v2081
    %2224 = vmatmul.mubr.f32.gmra.mrb[0].mxu0 %v2080
    %v2225 = vpop.f32.mrb[0].mxu0
    %v2226 = vadd.f32 0.0, %v2225
    %v2227 = vpop.f32.mrb[0].mxu0
    %2228 = vdwg.mxu0
    %2229 = vmatprep.subr.mxu0 0.0
    %2230 = vmatpush1.msra.mxu0 %v312
    %2231 = vmatprep.subr.mxu0 0.0
    %2232 = vmatpush1.msra.mxu0 %v313
    %2233 = vmatprep.subr.mxu0 0.0
    %2234 = vmatpush1.msra.mxu0 %v314
    %2235 = vmatprep.subr.mxu0 0.0
    %2236 = vmatpush1.msra.mxu0 %v315
    %2237 = vmatprep.subr.mxu0 0.0
    %2238 = vmatpush1.msra.mxu0 %v316
    %2239 = vmatprep.subr.mxu0 0.0
    %2240 = vmatpush1.msra.mxu0 %v317
    %2241 = vmatprep.subr.mxu0 0.0
    %2242 = vmatpush1.msra.mxu0 %v318
    %2243 = vmatprep.subr.mxu0 0.0
    %2244 = vmatpush1.msra.mxu0 %v319
    %2245 = vmatprep.subr.mxu0 0.0
    %2246 = vmatpush1.msra.mxu0 %v320
    %2247 = vmatprep.subr.mxu0 0.0
    %2248 = vmatpush1.msra.mxu0 %v321
    %2249 = vmatprep.subr.mxu0 0.0
    %2250 = vmatpush1.msra.mxu0 %v322
    %2251 = vmatprep.subr.mxu0 0.0
    %2252 = vmatpush1.msra.mxu0 %v323
    %2253 = vmatprep.subr.mxu0 0.0
    %2254 = vmatpush1.msra.mxu0 %v324
    %2255 = vmatprep.subr.mxu0 0.0
    %2256 = vmatpush1.msra.mxu0 %v325
    %2257 = vmatprep.subr.mxu0 0.0
    %2258 = vmatpush1.msra.mxu0 %v326
    %2259 = vmatprep.subr.mxu0 0.0
    %2260 = vmatpush1.msra.mxu0 %v327
    %2261 = vmatprep.subr.mxu0 0.0
    %2262 = vmatpush1.msra.mxu0 %v328
    %2263 = vmatprep.subr.mxu0 0.0
    %2264 = vmatpush1.msra.mxu0 %v329
    %2265 = vmatprep.subr.mxu0 0.0
    %2266 = vmatpush1.msra.mxu0 %v330
    %2267 = vmatprep.subr.mxu0 0.0
    %2268 = vmatpush1.msra.mxu0 %v331
    %2269 = vmatprep.subr.mxu0 0.0
    %2270 = vmatpush1.msra.mxu0 %v332
    %2271 = vmatprep.subr.mxu0 0.0
    %2272 = vmatpush1.msra.mxu0 %v333
    %2273 = vmatprep.subr.mxu0 0.0
    %2274 = vmatpush1.msra.mxu0 %v334
    %2275 = vmatprep.subr.mxu0 0.0
    %2276 = vmatpush1.msra.mxu0 %v335
    %2277 = vmatprep.subr.mxu0 0.0
    %2278 = vmatpush1.msra.mxu0 %v336
    %2279 = vmatprep.subr.mxu0 0.0
    %2280 = vmatpush1.msra.mxu0 %v337
    %2281 = vmatprep.subr.mxu0 0.0
    %2282 = vmatpush1.msra.mxu0 %v338
    %2283 = vmatprep.subr.mxu0 0.0
    %2284 = vmatpush1.msra.mxu0 %v339
    %2285 = vmatprep.subr.mxu0 0.0
    %2286 = vmatpush1.msra.mxu0 %v340
    %2287 = vmatprep.subr.mxu0 0.0
    %2288 = vmatpush1.msra.mxu0 %v341
    %2289 = vmatprep.subr.mxu0 0.0
    %2290 = vmatpush1.msra.mxu0 %v342
    %2291 = vmatprep.subr.mxu0 0.0
    %2292 = vmatpush1.msra.mxu0 %v343
    %2293 = vmatprep.mubr.f32.mxu0 %v2023
    %2294 = vmatmul.mubr.f32.gmra.mrb[0].mxu0 %v2022
    %v2295 = vpop.f32.mrb[0].mxu0
    %v2296 = vadd.f32 %v2151, %v2295
    %v2297 = vpop.f32.mrb[0].mxu0
    %2298 = vmatprep.mubr.f32.mxu0 %v2027
    %2299 = vmatmul.mubr.f32.gmra.mrb[0].mxu0 %v2026
    %v2300 = vpop.f32.mrb[0].mxu0
    %v2301 = vadd.f32 %v2156, %v2300
    %v2302 = vpop.f32.mrb[0].mxu0
    %2303 = vmatprep.mubr.f32.mxu0 %v2031
    %2304 = vmatmul.mubr.f32.gmra.mrb[0].mxu0 %v2030
    %v2305 = vpop.f32.mrb[0].mxu0
    %v2306 = vadd.f32 %v2161, %v2305
    %v2307 = vpop.f32.mrb[0].mxu0
    %2308 = vmatprep.mubr.f32.mxu0 %v2035
    %2309 = vmatmul.mubr.f32.gmra.mrb[0].mxu0 %v2034
    %v2310 = vpop.f32.mrb[0].mxu0
    %v2311 = vadd.f32 %v2166, %v2310
    %v2312 = vpop.f32.mrb[0].mxu0
    %2313 = vmatprep.mubr.f32.mxu0 %v2039
    %2314 = vmatmul.mubr.f32.gmra.mrb[0].mxu0 %v2038
    %v2315 = vpop.f32.mrb[0].mxu0
    %v2316 = vadd.f32 %v2171, %v2315
    %v2317 = vpop.f32.mrb[0].mxu0
    %2318 = vmatprep.mubr.f32.mxu0 %v2043
    %2319 = vmatmul.mubr.f32.gmra.mrb[0].mxu0 %v2042
    %v2320 = vpop.f32.mrb[0].mxu0
    %v2321 = vadd.f32 %v2176, %v2320
    %v2322 = vpop.f32.mrb[0].mxu0
    %2323 = vmatprep.mubr.f32.mxu0 %v2047
    %2324 = vmatmul.mubr.f32.gmra.mrb[0].mxu0 %v2046
    %v2325 = vpop.f32.mrb[0].mxu0
    %v2326 = vadd.f32 %v2181, %v2325
    %v2327 = vpop.f32.mrb[0].mxu0
    %2328 = vmatprep.mubr.f32.mxu0 %v2051
    %2329 = vmatmul.mubr.f32.gmra.mrb[0].mxu0 %v2050
    %v2330 = vpop.f32.mrb[0].mxu0
    %v2331 = vadd.f32 %v2186, %v2330
    %v2332 = vpop.f32.mrb[0].mxu0
    %2333 = vmatprep.mubr.f32.mxu0 %v2055
    %2334 = vmatmul.mubr.f32.gmra.mrb[0].mxu0 %v2054
    %v2335 = vpop.f32.mrb[0].mxu0
    %v2336 = vadd.f32 %v2191, %v2335
    %v2337 = vpop.f32.mrb[0].mxu0
    %2338 = vmatprep.mubr.f32.mxu0 %v2059
    %2339 = vmatmul.mubr.f32.gmra.mrb[0].mxu0 %v2058
    %v2340 = vpop.f32.mrb[0].mxu0
    %v2341 = vadd.f32 %v2196, %v2340
    %v2342 = vpop.f32.mrb[0].mxu0
    %2343 = vmatprep.mubr.f32.mxu0 %v2063
    %2344 = vmatmul.mubr.f32.gmra.mrb[0].mxu0 %v2062
    %v2345 = vpop.f32.mrb[0].mxu0
    %v2346 = vadd.f32 %v2201, %v2345
    %v2347 = vpop.f32.mrb[0].mxu0
    %2348 = vmatprep.mubr.f32.mxu0 %v2067
    %2349 = vmatmul.mubr.f32.gmra.mrb[0].mxu0 %v2066
    %v2350 = vpop.f32.mrb[0].mxu0
    %v2351 = vadd.f32 %v2206, %v2350
    %v2352 = vpop.f32.mrb[0].mxu0
    %2353 = vmatprep.mubr.f32.mxu0 %v2071
    %2354 = vmatmul.mubr.f32.gmra.mrb[0].mxu0 %v2070
    %v2355 = vpop.f32.mrb[0].mxu0
    %v2356 = vadd.f32 %v2211, %v2355
    %v2357 = vpop.f32.mrb[0].mxu0
    %2358 = vmatprep.mubr.f32.mxu0 %v2075
    %2359 = vmatmul.mubr.f32.gmra.mrb[0].mxu0 %v2074
    %v2360 = vpop.f32.mrb[0].mxu0
    %v2361 = vadd.f32 %v2216, %v2360
    %v2362 = vpop.f32.mrb[0].mxu0
    %2363 = vmatprep.mubr.f32.mxu0 %v2079
    %2364 = vmatmul.mubr.f32.gmra.mrb[0].mxu0 %v2078
    %v2365 = vpop.f32.mrb[0].mxu0
    %v2366 = vadd.f32 %v2221, %v2365
    %v2367 = vpop.f32.mrb[0].mxu0
    %2368 = vmatprep.mubr.f32.mxu0 %v2083
    %2369 = vmatmul.mubr.f32.gmra.mrb[0].mxu0 %v2082
    %v2370 = vpop.f32.mrb[0].mxu0
    %v2371 = vadd.f32 %v2226, %v2370
    %v2372 = vpop.f32.mrb[0].mxu0
    %2373 = vdwg.mxu0
    %s2374 = scalar_lea.vmem [#allocation5], 12
    %v2375 = vld [vmem:[%s2374] sm:$0x7]
    %v2377 = vsel %vm1056, %v2296, 0
    %v2380 = vsel %vm1056, %v2301, 0
    %v2383 = vsel %vm1056, %v2306, 0
    %v2386 = vsel %vm1056, %v2311, 0
    %v2389 = vsel %vm1056, %v2316, 0
    %v2392 = vsel %vm1056, %v2321, 0
    %v2395 = vsel %vm1056, %v2326, 0
    %v2398 = vsel %vm1056, %v2331, 0
    %v2401 = vsel %vm1056, %v2336, 0
    %v2404 = vsel %vm1056, %v2341, 0
    %v2407 = vsel %vm1056, %v2346, 0
    %v2410 = vsel %vm1056, %v2351, 0
    %v2413 = vsel %vm1056, %v2356, 0
    %v2416 = vsel %vm1056, %v2361, 0
    %v2419 = vsel %vm1056, %v2366, 0
    %v2422 = vsel %vm1056, %v2371, 0
    %v2425 = vsel %vm1105, %v2375, 0
    %2427 = vmatprep.subr.mxu0 0.0
    %2428 = vmatpush1.msra.mxu0 %v2425
    %2429 = vmatprep.subr.mxu0 0.0
    %2430 = vmatpush1.msra.mxu0 0.0
    %2431 = vmatprep.subr.mxu0 0.0
    %2432 = vmatpush1.msra.mxu0 0.0
    %2433 = vmatprep.subr.mxu0 0.0
    %2434 = vmatpush1.msra.mxu0 0.0
    %2435 = vmatprep.subr.mxu0 0.0
    %2436 = vmatpush1.msra.mxu0 0.0
    %2437 = vmatprep.subr.mxu0 0.0
    %2438 = vmatpush1.msra.mxu0 0.0
    %2439 = vmatprep.subr.mxu0 0.0
    %2440 = vmatpush1.msra.mxu0 0.0
    %2441 = vmatprep.subr.mxu0 0.0
    %2442 = vmatpush1.msra.mxu0 0.0
    %2443 = vmatprep.subr.mxu0 0.0
    %2444 = vmatpush1.msra.mxu0 0.0
    %2445 = vmatprep.subr.mxu0 0.0
    %2446 = vmatpush1.msra.mxu0 0.0
    %2447 = vmatprep.subr.mxu0 0.0
    %2448 = vmatpush1.msra.mxu0 0.0
    %2449 = vmatprep.subr.mxu0 0.0
    %2450 = vmatpush1.msra.mxu0 0.0
    %2451 = vmatprep.subr.mxu0 0.0
    %2452 = vmatpush1.msra.mxu0 0.0
    %2453 = vmatprep.subr.mxu0 0.0
    %2454 = vmatpush1.msra.mxu0 0.0
    %2455 = vmatprep.subr.mxu0 0.0
    %2456 = vmatpush1.msra.mxu0 0.0
    %2457 = vmatprep.subr.mxu0 0.0
    %2458 = vmatpush1.msra.mxu0 0.0
    %2459 = vmatprep.subr.mxu0 0.0
    %2460 = vmatpush1.msra.mxu0 0.0
    %2461 = vmatprep.subr.mxu0 0.0
    %2462 = vmatpush1.msra.mxu0 0.0
    %2463 = vmatprep.subr.mxu0 0.0
    %2464 = vmatpush1.msra.mxu0 0.0
    %2465 = vmatprep.subr.mxu0 0.0
    %2466 = vmatpush1.msra.mxu0 0.0
    %2467 = vmatprep.subr.mxu0 0.0
    %2468 = vmatpush1.msra.mxu0 0.0
    %2469 = vmatprep.subr.mxu0 0.0
    %2470 = vmatpush1.msra.mxu0 0.0
    %2471 = vmatprep.subr.mxu0 0.0
    %2472 = vmatpush1.msra.mxu0 0.0
    %2473 = vmatprep.subr.mxu0 0.0
    %2474 = vmatpush1.msra.mxu0 0.0
    %2475 = vmatprep.subr.mxu0 0.0
    %2476 = vmatpush1.msra.mxu0 0.0
    %2477 = vmatprep.subr.mxu0 0.0
    %2478 = vmatpush1.msra.mxu0 0.0
    %2479 = vmatprep.subr.mxu0 0.0
    %2480 = vmatpush1.msra.mxu0 0.0
    %2481 = vmatprep.subr.mxu0 0.0
    %2482 = vmatpush1.msra.mxu0 0.0
    %2483 = vmatprep.subr.mxu0 0.0
    %2484 = vmatpush1.msra.mxu0 0.0
    %2485 = vmatprep.subr.mxu0 0.0
    %2486 = vmatpush1.msra.mxu0 0.0
    %2487 = vmatprep.subr.mxu0 0.0
    %2488 = vmatpush1.msra.mxu0 0.0
    %2489 = vmatprep.subr.mxu0 0.0
    %2490 = vmatpush1.msra.mxu0 0.0
    %2491 = vmatprep.mubr.f32.mxu0 0.0
    %2492 = vmatmul.mubr.f32.gmra.mrb[0].mxu0 %v2377
    %v2493 = vpop.f32.mrb[0].mxu0
    %v2494 = vadd.f32 0.0, %v2493
    %v2495 = vpop.f32.mrb[0].mxu0
    %2496 = vmatprep.mubr.f32.mxu0 0.0
    %2497 = vmatmul.mubr.f32.gmra.mrb[0].mxu0 %v2380
    %v2498 = vpop.f32.mrb[0].mxu0
    %v2499 = vadd.f32 0.0, %v2498
    %v2500 = vpop.f32.mrb[0].mxu0
    %2501 = vmatprep.mubr.f32.mxu0 0.0
    %2502 = vmatmul.mubr.f32.gmra.mrb[0].mxu0 %v2383
    %v2503 = vpop.f32.mrb[0].mxu0
    %v2504 = vadd.f32 0.0, %v2503
    %v2505 = vpop.f32.mrb[0].mxu0
    %2506 = vmatprep.mubr.f32.mxu0 0.0
    %2507 = vmatmul.mubr.f32.gmra.mrb[0].mxu0 %v2386
    %v2508 = vpop.f32.mrb[0].mxu0
    %v2509 = vadd.f32 0.0, %v2508
    %v2510 = vpop.f32.mrb[0].mxu0
    %2511 = vmatprep.mubr.f32.mxu0 0.0
    %2512 = vmatmul.mubr.f32.gmra.mrb[0].mxu0 %v2389
    %v2513 = vpop.f32.mrb[0].mxu0
    %v2514 = vadd.f32 0.0, %v2513
    %v2515 = vpop.f32.mrb[0].mxu0
    %2516 = vmatprep.mubr.f32.mxu0 0.0
    %2517 = vmatmul.mubr.f32.gmra.mrb[0].mxu0 %v2392
    %v2518 = vpop.f32.mrb[0].mxu0
    %v2519 = vadd.f32 0.0, %v2518
    %v2520 = vpop.f32.mrb[0].mxu0
    %2521 = vmatprep.mubr.f32.mxu0 0.0
    %2522 = vmatmul.mubr.f32.gmra.mrb[0].mxu0 %v2395
    %v2523 = vpop.f32.mrb[0].mxu0
    %v2524 = vadd.f32 0.0, %v2523
    %v2525 = vpop.f32.mrb[0].mxu0
    %2526 = vmatprep.mubr.f32.mxu0 0.0
    %2527 = vmatmul.mubr.f32.gmra.mrb[0].mxu0 %v2398
    %v2528 = vpop.f32.mrb[0].mxu0
    %v2529 = vadd.f32 0.0, %v2528
    %v2530 = vpop.f32.mrb[0].mxu0
    %2531 = vmatprep.mubr.f32.mxu0 0.0
    %2532 = vmatmul.mubr.f32.gmra.mrb[0].mxu0 %v2401
    %v2533 = vpop.f32.mrb[0].mxu0
    %v2534 = vadd.f32 0.0, %v2533
    %v2535 = vpop.f32.mrb[0].mxu0
    %2536 = vmatprep.mubr.f32.mxu0 0.0
    %2537 = vmatmul.mubr.f32.gmra.mrb[0].mxu0 %v2404
    %v2538 = vpop.f32.mrb[0].mxu0
    %v2539 = vadd.f32 0.0, %v2538
    %v2540 = vpop.f32.mrb[0].mxu0
    %2541 = vmatprep.mubr.f32.mxu0 0.0
    %2542 = vmatmul.mubr.f32.gmra.mrb[0].mxu0 %v2407
    %v2543 = vpop.f32.mrb[0].mxu0
    %v2544 = vadd.f32 0.0, %v2543
    %v2545 = vpop.f32.mrb[0].mxu0
    %2546 = vmatprep.mubr.f32.mxu0 0.0
    %2547 = vmatmul.mubr.f32.gmra.mrb[0].mxu0 %v2410
    %v2548 = vpop.f32.mrb[0].mxu0
    %v2549 = vadd.f32 0.0, %v2548
    %v2550 = vpop.f32.mrb[0].mxu0
    %2551 = vmatprep.mubr.f32.mxu0 0.0
    %2552 = vmatmul.mubr.f32.gmra.mrb[0].mxu0 %v2413
    %v2553 = vpop.f32.mrb[0].mxu0
    %v2554 = vadd.f32 0.0, %v2553
    %v2555 = vpop.f32.mrb[0].mxu0
    %2556 = vmatprep.mubr.f32.mxu0 0.0
    %2557 = vmatmul.mubr.f32.gmra.mrb[0].mxu0 %v2416
    %v2558 = vpop.f32.mrb[0].mxu0
    %v2559 = vadd.f32 0.0, %v2558
    %v2560 = vpop.f32.mrb[0].mxu0
    %2561 = vmatprep.mubr.f32.mxu0 0.0
    %2562 = vmatmul.mubr.f32.gmra.mrb[0].mxu0 %v2419
    %v2563 = vpop.f32.mrb[0].mxu0
    %v2564 = vadd.f32 0.0, %v2563
    %v2565 = vpop.f32.mrb[0].mxu0
    %2566 = vmatprep.mubr.f32.mxu0 0.0
    %2567 = vmatmul.mubr.f32.gmra.mrb[0].mxu0 %v2422
    %v2568 = vpop.f32.mrb[0].mxu0
    %v2569 = vadd.f32 0.0, %v2568
    %v2570 = vpop.f32.mrb[0].mxu0
    %2571 = vdwg.mxu0
    %v2572 = vadd.f32 %v2003, %v2494
    %v2573 = vadd.f32 %v2004, %v2499
    %v2574 = vadd.f32 %v2005, %v2504
    %v2575 = vadd.f32 %v2006, %v2509
    %v2576 = vadd.f32 %v2007, %v2514
    %v2577 = vadd.f32 %v2008, %v2519
    %v2578 = vadd.f32 %v2009, %v2524
    %v2579 = vadd.f32 %v2010, %v2529
    %v2580 = vadd.f32 %v2011, %v2534
    %v2581 = vadd.f32 %v2012, %v2539
    %v2582 = vadd.f32 %v2013, %v2544
    %v2583 = vadd.f32 %v2014, %v2549
    %v2584 = vadd.f32 %v2015, %v2554
    %v2585 = vadd.f32 %v2016, %v2559
    %v2586 = vadd.f32 %v2017, %v2564
    %v2587 = vadd.f32 %v2018, %v2569
    %s2588 = scalar_lea.vmem [#allocation3], 2048
    %v2589 = vld [vmem:[%s2588] sm:$0xff]
    %v2590 = vld [vmem:[%s2588 + $0x8] sm:$0xff]
    %v2591 = vld [vmem:[%s2588 + $0x10] sm:$0xff]
    %v2592 = vld [vmem:[%s2588 + $0x18] sm:$0xff]
    %v2593 = vld [vmem:[%s2588 + $0x20] sm:$0xff]
    %v2594 = vld [vmem:[%s2588 + $0x28] sm:$0xff]
    %v2595 = vld [vmem:[%s2588 + $0x30] sm:$0xff]
    %v2596 = vld [vmem:[%s2588 + $0x38] sm:$0xff]
    %v2597 = vld [vmem:[%s2588 + $0x40] sm:$0xff]
    %v2598 = vld [vmem:[%s2588 + $0x48] sm:$0xff]
    %v2599 = vld [vmem:[%s2588 + $0x50] sm:$0xff]
    %v2600 = vld [vmem:[%s2588 + $0x58] sm:$0xff]
    %v2601 = vld [vmem:[%s2588 + $0x60] sm:$0xff]
    %v2602 = vld [vmem:[%s2588 + $0x68] sm:$0xff]
    %v2603 = vld [vmem:[%s2588 + $0x70] sm:$0xff]
    %v2604 = vld [vmem:[%s2588 + $0x78] sm:$0xff]
    %v2605 = vld [vmem:[%s2588 + $0x80] sm:$0xff]
    %v2606 = vld [vmem:[%s2588 + $0x88] sm:$0xff]
    %v2607 = vld [vmem:[%s2588 + $0x90] sm:$0xff]
    %v2608 = vld [vmem:[%s2588 + $0x98] sm:$0xff]
    %v2609 = vld [vmem:[%s2588 + $0xa0] sm:$0xff]
    %v2610 = vld [vmem:[%s2588 + $0xa8] sm:$0xff]
    %v2611 = vld [vmem:[%s2588 + $0xb0] sm:$0xff]
    %v2612 = vld [vmem:[%s2588 + $0xb8] sm:$0xff]
    %v2613 = vld [vmem:[%s2588 + $0xc0] sm:$0xff]
    %v2614 = vld [vmem:[%s2588 + $0xc8] sm:$0xff]
    %v2615 = vld [vmem:[%s2588 + $0xd0] sm:$0xff]
    %v2616 = vld [vmem:[%s2588 + $0xd8] sm:$0xff]
    %v2617 = vld [vmem:[%s2588 + $0xe0] sm:$0xff]
    %v2618 = vld [vmem:[%s2588 + $0xe8] sm:$0xff]
    %v2619 = vld [vmem:[%s2588 + $0xf0] sm:$0xff]
    %v2620 = vld [vmem:[%s2588 + $0xf8] sm:$0xff]
    %v2621 = vld [vmem:[%s2588 + $0x100] sm:$0xff]
    %v2622 = vld [vmem:[%s2588 + $0x108] sm:$0xff]
    %v2623 = vld [vmem:[%s2588 + $0x110] sm:$0xff]
    %v2624 = vld [vmem:[%s2588 + $0x118] sm:$0xff]
    %v2625 = vld [vmem:[%s2588 + $0x120] sm:$0xff]
    %v2626 = vld [vmem:[%s2588 + $0x128] sm:$0xff]
    %v2627 = vld [vmem:[%s2588 + $0x130] sm:$0xff]
    %v2628 = vld [vmem:[%s2588 + $0x138] sm:$0xff]
    %v2629 = vld [vmem:[%s2588 + $0x140] sm:$0xff]
    %v2630 = vld [vmem:[%s2588 + $0x148] sm:$0xff]
    %v2631 = vld [vmem:[%s2588 + $0x150] sm:$0xff]
    %v2632 = vld [vmem:[%s2588 + $0x158] sm:$0xff]
    %v2633 = vld [vmem:[%s2588 + $0x160] sm:$0xff]
    %v2634 = vld [vmem:[%s2588 + $0x168] sm:$0xff]
    %v2635 = vld [vmem:[%s2588 + $0x170] sm:$0xff]
    %v2636 = vld [vmem:[%s2588 + $0x178] sm:$0xff]
    %v2637 = vld [vmem:[%s2588 + $0x180] sm:$0xff]
    %v2638 = vld [vmem:[%s2588 + $0x188] sm:$0xff]
    %v2639 = vld [vmem:[%s2588 + $0x190] sm:$0xff]
    %v2640 = vld [vmem:[%s2588 + $0x198] sm:$0xff]
    %v2641 = vld [vmem:[%s2588 + $0x1a0] sm:$0xff]
    %v2642 = vld [vmem:[%s2588 + $0x1a8] sm:$0xff]
    %v2643 = vld [vmem:[%s2588 + $0x1b0] sm:$0xff]
    %v2644 = vld [vmem:[%s2588 + $0x1b8] sm:$0xff]
    %v2645 = vld [vmem:[%s2588 + $0x1c0] sm:$0xff]
    %v2646 = vld [vmem:[%s2588 + $0x1c8] sm:$0xff]
    %v2647 = vld [vmem:[%s2588 + $0x1d0] sm:$0xff]
    %v2648 = vld [vmem:[%s2588 + $0x1d8] sm:$0xff]
    %v2649 = vld [vmem:[%s2588 + $0x1e0] sm:$0xff]
    %v2650 = vld [vmem:[%s2588 + $0x1e8] sm:$0xff]
    %v2651 = vld [vmem:[%s2588 + $0x1f0] sm:$0xff]
    %v2652 = vld [vmem:[%s2588 + $0x1f8] sm:$0xff]
    %2653 = vmatprep.subr.mxu0 0.0
    %2654 = vmatpush1.msra.mxu0 %v280
    %2655 = vmatprep.subr.mxu0 0.0
    %2656 = vmatpush1.msra.mxu0 %v281
    %2657 = vmatprep.subr.mxu0 0.0
    %2658 = vmatpush1.msra.mxu0 %v282
    %2659 = vmatprep.subr.mxu0 0.0
    %2660 = vmatpush1.msra.mxu0 %v283
    %2661 = vmatprep.subr.mxu0 0.0
    %2662 = vmatpush1.msra.mxu0 %v284
    %2663 = vmatprep.subr.mxu0 0.0
    %2664 = vmatpush1.msra.mxu0 %v285
    %2665 = vmatprep.subr.mxu0 0.0
    %2666 = vmatpush1.msra.mxu0 %v286
    %2667 = vmatprep.subr.mxu0 0.0
    %2668 = vmatpush1.msra.mxu0 %v287
    %2669 = vmatprep.subr.mxu0 0.0
    %2670 = vmatpush1.msra.mxu0 %v288
    %2671 = vmatprep.subr.mxu0 0.0
    %2672 = vmatpush1.msra.mxu0 %v289
    %2673 = vmatprep.subr.mxu0 0.0
    %2674 = vmatpush1.msra.mxu0 %v290
    %2675 = vmatprep.subr.mxu0 0.0
    %2676 = vmatpush1.msra.mxu0 %v291
    %2677 = vmatprep.subr.mxu0 0.0
    %2678 = vmatpush1.msra.mxu0 %v292
    %2679 = vmatprep.subr.mxu0 0.0
    %2680 = vmatpush1.msra.mxu0 %v293
    %2681 = vmatprep.subr.mxu0 0.0
    %2682 = vmatpush1.msra.mxu0 %v294
    %2683 = vmatprep.subr.mxu0 0.0
    %2684 = vmatpush1.msra.mxu0 %v295
    %2685 = vmatprep.subr.mxu0 0.0
    %2686 = vmatpush1.msra.mxu0 %v296
    %2687 = vmatprep.subr.mxu0 0.0
    %2688 = vmatpush1.msra.mxu0 %v297
    %2689 = vmatprep.subr.mxu0 0.0
    %2690 = vmatpush1.msra.mxu0 %v298
    %2691 = vmatprep.subr.mxu0 0.0
    %2692 = vmatpush1.msra.mxu0 %v299
    %2693 = vmatprep.subr.mxu0 0.0
    %2694 = vmatpush1.msra.mxu0 %v300
    %2695 = vmatprep.subr.mxu0 0.0
    %2696 = vmatpush1.msra.mxu0 %v301
    %2697 = vmatprep.subr.mxu0 0.0
    %2698 = vmatpush1.msra.mxu0 %v302
    %2699 = vmatprep.subr.mxu0 0.0
    %2700 = vmatpush1.msra.mxu0 %v303
    %2701 = vmatprep.subr.mxu0 0.0
    %2702 = vmatpush1.msra.mxu0 %v304
    %2703 = vmatprep.subr.mxu0 0.0
    %2704 = vmatpush1.msra.mxu0 %v305
    %2705 = vmatprep.subr.mxu0 0.0
    %2706 = vmatpush1.msra.mxu0 %v306
    %2707 = vmatprep.subr.mxu0 0.0
    %2708 = vmatpush1.msra.mxu0 %v307
    %2709 = vmatprep.subr.mxu0 0.0
    %2710 = vmatpush1.msra.mxu0 %v308
    %2711 = vmatprep.subr.mxu0 0.0
    %2712 = vmatpush1.msra.mxu0 %v309
    %2713 = vmatprep.subr.mxu0 0.0
    %2714 = vmatpush1.msra.mxu0 %v310
    %2715 = vmatprep.subr.mxu0 0.0
    %2716 = vmatpush1.msra.mxu0 %v311
    %2717 = vmatprep.mubr.f32.mxu0 %v2590
    %2718 = vmatmul.mubr.f32.gmra.mrb[0].mxu0 %v2589
    %v2719 = vpop.f32.mrb[0].mxu0
    %v2720 = vadd.f32 0.0, %v2719
    %v2721 = vpop.f32.mrb[0].mxu0
    %2722 = vmatprep.mubr.f32.mxu0 %v2594
    %2723 = vmatmul.mubr.f32.gmra.mrb[0].mxu0 %v2593
    %v2724 = vpop.f32.mrb[0].mxu0
    %v2725 = vadd.f32 0.0, %v2724
    %v2726 = vpop.f32.mrb[0].mxu0
    %2727 = vmatprep.mubr.f32.mxu0 %v2598
    %2728 = vmatmul.mubr.f32.gmra.mrb[0].mxu0 %v2597
    %v2729 = vpop.f32.mrb[0].mxu0
    %v2730 = vadd.f32 0.0, %v2729
    %v2731 = vpop.f32.mrb[0].mxu0
    %2732 = vmatprep.mubr.f32.mxu0 %v2602
    %2733 = vmatmul.mubr.f32.gmra.mrb[0].mxu0 %v2601
    %v2734 = vpop.f32.mrb[0].mxu0
    %v2735 = vadd.f32 0.0, %v2734
    %v2736 = vpop.f32.mrb[0].mxu0
    %2737 = vmatprep.mubr.f32.mxu0 %v2606
    %2738 = vmatmul.mubr.f32.gmra.mrb[0].mxu0 %v2605
    %v2739 = vpop.f32.mrb[0].mxu0
    %v2740 = vadd.f32 0.0, %v2739
    %v2741 = vpop.f32.mrb[0].mxu0
    %2742 = vmatprep.mubr.f32.mxu0 %v2610
    %2743 = vmatmul.mubr.f32.gmra.mrb[0].mxu0 %v2609
    %v2744 = vpop.f32.mrb[0].mxu0
    %v2745 = vadd.f32 0.0, %v2744
    %v2746 = vpop.f32.mrb[0].mxu0
    %2747 = vmatprep.mubr.f32.mxu0 %v2614
    %2748 = vmatmul.mubr.f32.gmra.mrb[0].mxu0 %v2613
    %v2749 = vpop.f32.mrb[0].mxu0
    %v2750 = vadd.f32 0.0, %v2749
    %v2751 = vpop.f32.mrb[0].mxu0
    %2752 = vmatprep.mubr.f32.mxu0 %v2618
    %2753 = vmatmul.mubr.f32.gmra.mrb[0].mxu0 %v2617
    %v2754 = vpop.f32.mrb[0].mxu0
    %v2755 = vadd.f32 0.0, %v2754
    %v2756 = vpop.f32.mrb[0].mxu0
    %2757 = vmatprep.mubr.f32.mxu0 %v2622
    %2758 = vmatmul.mubr.f32.gmra.mrb[0].mxu0 %v2621
    %v2759 = vpop.f32.mrb[0].mxu0
    %v2760 = vadd.f32 0.0, %v2759
    %v2761 = vpop.f32.mrb[0].mxu0
    %2762 = vmatprep.mubr.f32.mxu0 %v2626
    %2763 = vmatmul.mubr.f32.gmra.mrb[0].mxu0 %v2625
    %v2764 = vpop.f32.mrb[0].mxu0
    %v2765 = vadd.f32 0.0, %v2764
    %v2766 = vpop.f32.mrb[0].mxu0
    %2767 = vmatprep.mubr.f32.mxu0 %v2630
    %2768 = vmatmul.mubr.f32.gmra.mrb[0].mxu0 %v2629
    %v2769 = vpop.f32.mrb[0].mxu0
    %v2770 = vadd.f32 0.0, %v2769
    %v2771 = vpop.f32.mrb[0].mxu0
    %2772 = vmatprep.mubr.f32.mxu0 %v2634
    %2773 = vmatmul.mubr.f32.gmra.mrb[0].mxu0 %v2633
    %v2774 = vpop.f32.mrb[0].mxu0
    %v2775 = vadd.f32 0.0, %v2774
    %v2776 = vpop.f32.mrb[0].mxu0
    %2777 = vmatprep.mubr.f32.mxu0 %v2638
    %2778 = vmatmul.mubr.f32.gmra.mrb[0].mxu0 %v2637
    %v2779 = vpop.f32.mrb[0].mxu0
    %v2780 = vadd.f32 0.0, %v2779
    %v2781 = vpop.f32.mrb[0].mxu0
    %2782 = vmatprep.mubr.f32.mxu0 %v2642
    %2783 = vmatmul.mubr.f32.gmra.mrb[0].mxu0 %v2641
    %v2784 = vpop.f32.mrb[0].mxu0
    %v2785 = vadd.f32 0.0, %v2784
    %v2786 = vpop.f32.mrb[0].mxu0
    %2787 = vmatprep.mubr.f32.mxu0 %v2646
    %2788 = vmatmul.mubr.f32.gmra.mrb[0].mxu0 %v2645
    %v2789 = vpop.f32.mrb[0].mxu0
    %v2790 = vadd.f32 0.0, %v2789
    %v2791 = vpop.f32.mrb[0].mxu0
    %2792 = vmatprep.mubr.f32.mxu0 %v2650
    %2793 = vmatmul.mubr.f32.gmra.mrb[0].mxu0 %v2649
    %v2794 = vpop.f32.mrb[0].mxu0
    %v2795 = vadd.f32 0.0, %v2794
    %v2796 = vpop.f32.mrb[0].mxu0
    %2797 = vdwg.mxu0
    %2798 = vmatprep.subr.mxu0 0.0
    %2799 = vmatpush1.msra.mxu0 %v312
    %2800 = vmatprep.subr.mxu0 0.0
    %2801 = vmatpush1.msra.mxu0 %v313
    %2802 = vmatprep.subr.mxu0 0.0
    %2803 = vmatpush1.msra.mxu0 %v314
    %2804 = vmatprep.subr.mxu0 0.0
    %2805 = vmatpush1.msra.mxu0 %v315
    %2806 = vmatprep.subr.mxu0 0.0
    %2807 = vmatpush1.msra.mxu0 %v316
    %2808 = vmatprep.subr.mxu0 0.0
    %2809 = vmatpush1.msra.mxu0 %v317
    %2810 = vmatprep.subr.mxu0 0.0
    %2811 = vmatpush1.msra.mxu0 %v318
    %2812 = vmatprep.subr.mxu0 0.0
    %2813 = vmatpush1.msra.mxu0 %v319
    %2814 = vmatprep.subr.mxu0 0.0
    %2815 = vmatpush1.msra.mxu0 %v320
    %2816 = vmatprep.subr.mxu0 0.0
    %2817 = vmatpush1.msra.mxu0 %v321
    %2818 = vmatprep.subr.mxu0 0.0
    %2819 = vmatpush1.msra.mxu0 %v322
    %2820 = vmatprep.subr.mxu0 0.0
    %2821 = vmatpush1.msra.mxu0 %v323
    %2822 = vmatprep.subr.mxu0 0.0
    %2823 = vmatpush1.msra.mxu0 %v324
    %2824 = vmatprep.subr.mxu0 0.0
    %2825 = vmatpush1.msra.mxu0 %v325
    %2826 = vmatprep.subr.mxu0 0.0
    %2827 = vmatpush1.msra.mxu0 %v326
    %2828 = vmatprep.subr.mxu0 0.0
    %2829 = vmatpush1.msra.mxu0 %v327
    %2830 = vmatprep.subr.mxu0 0.0
    %2831 = vmatpush1.msra.mxu0 %v328
    %2832 = vmatprep.subr.mxu0 0.0
    %2833 = vmatpush1.msra.mxu0 %v329
    %2834 = vmatprep.subr.mxu0 0.0
    %2835 = vmatpush1.msra.mxu0 %v330
    %2836 = vmatprep.subr.mxu0 0.0
    %2837 = vmatpush1.msra.mxu0 %v331
    %2838 = vmatprep.subr.mxu0 0.0
    %2839 = vmatpush1.msra.mxu0 %v332
    %2840 = vmatprep.subr.mxu0 0.0
    %2841 = vmatpush1.msra.mxu0 %v333
    %2842 = vmatprep.subr.mxu0 0.0
    %2843 = vmatpush1.msra.mxu0 %v334
    %2844 = vmatprep.subr.mxu0 0.0
    %2845 = vmatpush1.msra.mxu0 %v335
    %2846 = vmatprep.subr.mxu0 0.0
    %2847 = vmatpush1.msra.mxu0 %v336
    %2848 = vmatprep.subr.mxu0 0.0
    %2849 = vmatpush1.msra.mxu0 %v337
    %2850 = vmatprep.subr.mxu0 0.0
    %2851 = vmatpush1.msra.mxu0 %v338
    %2852 = vmatprep.subr.mxu0 0.0
    %2853 = vmatpush1.msra.mxu0 %v339
    %2854 = vmatprep.subr.mxu0 0.0
    %2855 = vmatpush1.msra.mxu0 %v340
    %2856 = vmatprep.subr.mxu0 0.0
    %2857 = vmatpush1.msra.mxu0 %v341
    %2858 = vmatprep.subr.mxu0 0.0
    %2859 = vmatpush1.msra.mxu0 %v342
    %2860 = vmatprep.subr.mxu0 0.0
    %2861 = vmatpush1.msra.mxu0 %v343
    %2862 = vmatprep.mubr.f32.mxu0 %v2592
    %2863 = vmatmul.mubr.f32.gmra.mrb[0].mxu0 %v2591
    %v2864 = vpop.f32.mrb[0].mxu0
    %v2865 = vadd.f32 %v2720, %v2864
    %v2866 = vpop.f32.mrb[0].mxu0
    %2867 = vmatprep.mubr.f32.mxu0 %v2596
    %2868 = vmatmul.mubr.f32.gmra.mrb[0].mxu0 %v2595
    %v2869 = vpop.f32.mrb[0].mxu0
    %v2870 = vadd.f32 %v2725, %v2869
    %v2871 = vpop.f32.mrb[0].mxu0
    %2872 = vmatprep.mubr.f32.mxu0 %v2600
    %2873 = vmatmul.mubr.f32.gmra.mrb[0].mxu0 %v2599
    %v2874 = vpop.f32.mrb[0].mxu0
    %v2875 = vadd.f32 %v2730, %v2874
    %v2876 = vpop.f32.mrb[0].mxu0
    %2877 = vmatprep.mubr.f32.mxu0 %v2604
    %2878 = vmatmul.mubr.f32.gmra.mrb[0].mxu0 %v2603
    %v2879 = vpop.f32.mrb[0].mxu0
    %v2880 = vadd.f32 %v2735, %v2879
    %v2881 = vpop.f32.mrb[0].mxu0
    %2882 = vmatprep.mubr.f32.mxu0 %v2608
    %2883 = vmatmul.mubr.f32.gmra.mrb[0].mxu0 %v2607
    %v2884 = vpop.f32.mrb[0].mxu0
    %v2885 = vadd.f32 %v2740, %v2884
    %v2886 = vpop.f32.mrb[0].mxu0
    %2887 = vmatprep.mubr.f32.mxu0 %v2612
    %2888 = vmatmul.mubr.f32.gmra.mrb[0].mxu0 %v2611
    %v2889 = vpop.f32.mrb[0].mxu0
    %v2890 = vadd.f32 %v2745, %v2889
    %v2891 = vpop.f32.mrb[0].mxu0
    %2892 = vmatprep.mubr.f32.mxu0 %v2616
    %2893 = vmatmul.mubr.f32.gmra.mrb[0].mxu0 %v2615
    %v2894 = vpop.f32.mrb[0].mxu0
    %v2895 = vadd.f32 %v2750, %v2894
    %v2896 = vpop.f32.mrb[0].mxu0
    %2897 = vmatprep.mubr.f32.mxu0 %v2620
    %2898 = vmatmul.mubr.f32.gmra.mrb[0].mxu0 %v2619
    %v2899 = vpop.f32.mrb[0].mxu0
    %v2900 = vadd.f32 %v2755, %v2899
    %v2901 = vpop.f32.mrb[0].mxu0
    %2902 = vmatprep.mubr.f32.mxu0 %v2624
    %2903 = vmatmul.mubr.f32.gmra.mrb[0].mxu0 %v2623
    %v2904 = vpop.f32.mrb[0].mxu0
    %v2905 = vadd.f32 %v2760, %v2904
    %v2906 = vpop.f32.mrb[0].mxu0
    %2907 = vmatprep.mubr.f32.mxu0 %v2628
    %2908 = vmatmul.mubr.f32.gmra.mrb[0].mxu0 %v2627
    %v2909 = vpop.f32.mrb[0].mxu0
    %v2910 = vadd.f32 %v2765, %v2909
    %v2911 = vpop.f32.mrb[0].mxu0
    %2912 = vmatprep.mubr.f32.mxu0 %v2632
    %2913 = vmatmul.mubr.f32.gmra.mrb[0].mxu0 %v2631
    %v2914 = vpop.f32.mrb[0].mxu0
    %v2915 = vadd.f32 %v2770, %v2914
    %v2916 = vpop.f32.mrb[0].mxu0
    %2917 = vmatprep.mubr.f32.mxu0 %v2636
    %2918 = vmatmul.mubr.f32.gmra.mrb[0].mxu0 %v2635
    %v2919 = vpop.f32.mrb[0].mxu0
    %v2920 = vadd.f32 %v2775, %v2919
    %v2921 = vpop.f32.mrb[0].mxu0
    %2922 = vmatprep.mubr.f32.mxu0 %v2640
    %2923 = vmatmul.mubr.f32.gmra.mrb[0].mxu0 %v2639
    %v2924 = vpop.f32.mrb[0].mxu0
    %v2925 = vadd.f32 %v2780, %v2924
    %v2926 = vpop.f32.mrb[0].mxu0
    %2927 = vmatprep.mubr.f32.mxu0 %v2644
    %2928 = vmatmul.mubr.f32.gmra.mrb[0].mxu0 %v2643
    %v2929 = vpop.f32.mrb[0].mxu0
    %v2930 = vadd.f32 %v2785, %v2929
    %v2931 = vpop.f32.mrb[0].mxu0
    %2932 = vmatprep.mubr.f32.mxu0 %v2648
    %2933 = vmatmul.mubr.f32.gmra.mrb[0].mxu0 %v2647
    %v2934 = vpop.f32.mrb[0].mxu0
    %v2935 = vadd.f32 %v2790, %v2934
    %v2936 = vpop.f32.mrb[0].mxu0
    %2937 = vmatprep.mubr.f32.mxu0 %v2652
    %2938 = vmatmul.mubr.f32.gmra.mrb[0].mxu0 %v2651
    %v2939 = vpop.f32.mrb[0].mxu0
    %v2940 = vadd.f32 %v2795, %v2939
    %v2941 = vpop.f32.mrb[0].mxu0
    %2942 = vdwg.mxu0
    %s2943 = scalar_lea.vmem [#allocation5], 16
    %v2944 = vld [vmem:[%s2943] sm:$0x7]
    %v2946 = vsel %vm1056, %v2865, 0
    %v2949 = vsel %vm1056, %v2870, 0
    %v2952 = vsel %vm1056, %v2875, 0
    %v2955 = vsel %vm1056, %v2880, 0
    %v2958 = vsel %vm1056, %v2885, 0
    %v2961 = vsel %vm1056, %v2890, 0
    %v2964 = vsel %vm1056, %v2895, 0
    %v2967 = vsel %vm1056, %v2900, 0
    %v2970 = vsel %vm1056, %v2905, 0
    %v2973 = vsel %vm1056, %v2910, 0
    %v2976 = vsel %vm1056, %v2915, 0
    %v2979 = vsel %vm1056, %v2920, 0
    %v2982 = vsel %vm1056, %v2925, 0
    %v2985 = vsel %vm1056, %v2930, 0
    %v2988 = vsel %vm1056, %v2935, 0
    %v2991 = vsel %vm1056, %v2940, 0
    %v2994 = vsel %vm1105, %v2944, 0
    %2996 = vmatprep.subr.mxu0 0.0
    %2997 = vmatpush1.msra.mxu0 %v2994
    %2998 = vmatprep.subr.mxu0 0.0
    %2999 = vmatpush1.msra.mxu0 0.0
    %3000 = vmatprep.subr.mxu0 0.0
    %3001 = vmatpush1.msra.mxu0 0.0
    %3002 = vmatprep.subr.mxu0 0.0
    %3003 = vmatpush1.msra.mxu0 0.0
    %3004 = vmatprep.subr.mxu0 0.0
    %3005 = vmatpush1.msra.mxu0 0.0
    %3006 = vmatprep.subr.mxu0 0.0
    %3007 = vmatpush1.msra.mxu0 0.0
    %3008 = vmatprep.subr.mxu0 0.0
    %3009 = vmatpush1.msra.mxu0 0.0
    %3010 = vmatprep.subr.mxu0 0.0
    %3011 = vmatpush1.msra.mxu0 0.0
    %3012 = vmatprep.subr.mxu0 0.0
    %3013 = vmatpush1.msra.mxu0 0.0
    %3014 = vmatprep.subr.mxu0 0.0
    %3015 = vmatpush1.msra.mxu0 0.0
    %3016 = vmatprep.subr.mxu0 0.0
    %3017 = vmatpush1.msra.mxu0 0.0
    %3018 = vmatprep.subr.mxu0 0.0
    %3019 = vmatpush1.msra.mxu0 0.0
    %3020 = vmatprep.subr.mxu0 0.0
    %3021 = vmatpush1.msra.mxu0 0.0
    %3022 = vmatprep.subr.mxu0 0.0
    %3023 = vmatpush1.msra.mxu0 0.0
    %3024 = vmatprep.subr.mxu0 0.0
    %3025 = vmatpush1.msra.mxu0 0.0
    %3026 = vmatprep.subr.mxu0 0.0
    %3027 = vmatpush1.msra.mxu0 0.0
    %3028 = vmatprep.subr.mxu0 0.0
    %3029 = vmatpush1.msra.mxu0 0.0
    %3030 = vmatprep.subr.mxu0 0.0
    %3031 = vmatpush1.msra.mxu0 0.0
    %3032 = vmatprep.subr.mxu0 0.0
    %3033 = vmatpush1.msra.mxu0 0.0
    %3034 = vmatprep.subr.mxu0 0.0
    %3035 = vmatpush1.msra.mxu0 0.0
    %3036 = vmatprep.subr.mxu0 0.0
    %3037 = vmatpush1.msra.mxu0 0.0
    %3038 = vmatprep.subr.mxu0 0.0
    %3039 = vmatpush1.msra.mxu0 0.0
    %3040 = vmatprep.subr.mxu0 0.0
    %3041 = vmatpush1.msra.mxu0 0.0
    %3042 = vmatprep.subr.mxu0 0.0
    %3043 = vmatpush1.msra.mxu0 0.0
    %3044 = vmatprep.subr.mxu0 0.0
    %3045 = vmatpush1.msra.mxu0 0.0
    %3046 = vmatprep.subr.mxu0 0.0
    %3047 = vmatpush1.msra.mxu0 0.0
    %3048 = vmatprep.subr.mxu0 0.0
    %3049 = vmatpush1.msra.mxu0 0.0
    %3050 = vmatprep.subr.mxu0 0.0
    %3051 = vmatpush1.msra.mxu0 0.0
    %3052 = vmatprep.subr.mxu0 0.0
    %3053 = vmatpush1.msra.mxu0 0.0
    %3054 = vmatprep.subr.mxu0 0.0
    %3055 = vmatpush1.msra.mxu0 0.0
    %3056 = vmatprep.subr.mxu0 0.0
    %3057 = vmatpush1.msra.mxu0 0.0
    %3058 = vmatprep.subr.mxu0 0.0
    %3059 = vmatpush1.msra.mxu0 0.0
    %3060 = vmatprep.mubr.f32.mxu0 0.0
    %3061 = vmatmul.mubr.f32.gmra.mrb[0].mxu0 %v2946
    %v3062 = vpop.f32.mrb[0].mxu0
    %v3063 = vadd.f32 0.0, %v3062
    %v3064 = vpop.f32.mrb[0].mxu0
    %3065 = vmatprep.mubr.f32.mxu0 0.0
    %3066 = vmatmul.mubr.f32.gmra.mrb[0].mxu0 %v2949
    %v3067 = vpop.f32.mrb[0].mxu0
    %v3068 = vadd.f32 0.0, %v3067
    %v3069 = vpop.f32.mrb[0].mxu0
    %3070 = vmatprep.mubr.f32.mxu0 0.0
    %3071 = vmatmul.mubr.f32.gmra.mrb[0].mxu0 %v2952
    %v3072 = vpop.f32.mrb[0].mxu0
    %v3073 = vadd.f32 0.0, %v3072
    %v3074 = vpop.f32.mrb[0].mxu0
    %3075 = vmatprep.mubr.f32.mxu0 0.0
    %3076 = vmatmul.mubr.f32.gmra.mrb[0].mxu0 %v2955
    %v3077 = vpop.f32.mrb[0].mxu0
    %v3078 = vadd.f32 0.0, %v3077
    %v3079 = vpop.f32.mrb[0].mxu0
    %3080 = vmatprep.mubr.f32.mxu0 0.0
    %3081 = vmatmul.mubr.f32.gmra.mrb[0].mxu0 %v2958
    %v3082 = vpop.f32.mrb[0].mxu0
    %v3083 = vadd.f32 0.0, %v3082
    %v3084 = vpop.f32.mrb[0].mxu0
    %3085 = vmatprep.mubr.f32.mxu0 0.0
    %3086 = vmatmul.mubr.f32.gmra.mrb[0].mxu0 %v2961
    %v3087 = vpop.f32.mrb[0].mxu0
    %v3088 = vadd.f32 0.0, %v3087
    %v3089 = vpop.f32.mrb[0].mxu0
    %3090 = vmatprep.mubr.f32.mxu0 0.0
    %3091 = vmatmul.mubr.f32.gmra.mrb[0].mxu0 %v2964
    %v3092 = vpop.f32.mrb[0].mxu0
    %v3093 = vadd.f32 0.0, %v3092
    %v3094 = vpop.f32.mrb[0].mxu0
    %3095 = vmatprep.mubr.f32.mxu0 0.0
    %3096 = vmatmul.mubr.f32.gmra.mrb[0].mxu0 %v2967
    %v3097 = vpop.f32.mrb[0].mxu0
    %v3098 = vadd.f32 0.0, %v3097
    %v3099 = vpop.f32.mrb[0].mxu0
    %3100 = vmatprep.mubr.f32.mxu0 0.0
    %3101 = vmatmul.mubr.f32.gmra.mrb[0].mxu0 %v2970
    %v3102 = vpop.f32.mrb[0].mxu0
    %v3103 = vadd.f32 0.0, %v3102
    %v3104 = vpop.f32.mrb[0].mxu0
    %3105 = vmatprep.mubr.f32.mxu0 0.0
    %3106 = vmatmul.mubr.f32.gmra.mrb[0].mxu0 %v2973
    %v3107 = vpop.f32.mrb[0].mxu0
    %v3108 = vadd.f32 0.0, %v3107
    %v3109 = vpop.f32.mrb[0].mxu0
    %3110 = vmatprep.mubr.f32.mxu0 0.0
    %3111 = vmatmul.mubr.f32.gmra.mrb[0].mxu0 %v2976
    %v3112 = vpop.f32.mrb[0].mxu0
    %v3113 = vadd.f32 0.0, %v3112
    %v3114 = vpop.f32.mrb[0].mxu0
    %3115 = vmatprep.mubr.f32.mxu0 0.0
    %3116 = vmatmul.mubr.f32.gmra.mrb[0].mxu0 %v2979
    %v3117 = vpop.f32.mrb[0].mxu0
    %v3118 = vadd.f32 0.0, %v3117
    %v3119 = vpop.f32.mrb[0].mxu0
    %3120 = vmatprep.mubr.f32.mxu0 0.0
    %3121 = vmatmul.mubr.f32.gmra.mrb[0].mxu0 %v2982
    %v3122 = vpop.f32.mrb[0].mxu0
    %v3123 = vadd.f32 0.0, %v3122
    %v3124 = vpop.f32.mrb[0].mxu0
    %3125 = vmatprep.mubr.f32.mxu0 0.0
    %3126 = vmatmul.mubr.f32.gmra.mrb[0].mxu0 %v2985
    %v3127 = vpop.f32.mrb[0].mxu0
    %v3128 = vadd.f32 0.0, %v3127
    %v3129 = vpop.f32.mrb[0].mxu0
    %3130 = vmatprep.mubr.f32.mxu0 0.0
    %3131 = vmatmul.mubr.f32.gmra.mrb[0].mxu0 %v2988
    %v3132 = vpop.f32.mrb[0].mxu0
    %v3133 = vadd.f32 0.0, %v3132
    %v3134 = vpop.f32.mrb[0].mxu0
    %3135 = vmatprep.mubr.f32.mxu0 0.0
    %3136 = vmatmul.mubr.f32.gmra.mrb[0].mxu0 %v2991
    %v3137 = vpop.f32.mrb[0].mxu0
    %v3138 = vadd.f32 0.0, %v3137
    %v3139 = vpop.f32.mrb[0].mxu0
    %3140 = vdwg.mxu0
    %v3141 = vadd.f32 %v2572, %v3063
    %v3142 = vadd.f32 %v2573, %v3068
    %v3143 = vadd.f32 %v2574, %v3073
    %v3144 = vadd.f32 %v2575, %v3078
    %v3145 = vadd.f32 %v2576, %v3083
    %v3146 = vadd.f32 %v2577, %v3088
    %v3147 = vadd.f32 %v2578, %v3093
    %v3148 = vadd.f32 %v2579, %v3098
    %v3149 = vadd.f32 %v2580, %v3103
    %v3150 = vadd.f32 %v2581, %v3108
    %v3151 = vadd.f32 %v2582, %v3113
    %v3152 = vadd.f32 %v2583, %v3118
    %v3153 = vadd.f32 %v2584, %v3123
    %v3154 = vadd.f32 %v2585, %v3128
    %v3155 = vadd.f32 %v2586, %v3133
    %v3156 = vadd.f32 %v2587, %v3138
    %s3157 = scalar_lea.vmem [#allocation3], 2560
    %v3158 = vld [vmem:[%s3157] sm:$0xff]
    %v3159 = vld [vmem:[%s3157 + $0x8] sm:$0xff]
    %v3160 = vld [vmem:[%s3157 + $0x10] sm:$0xff]
    %v3161 = vld [vmem:[%s3157 + $0x18] sm:$0xff]
    %v3162 = vld [vmem:[%s3157 + $0x20] sm:$0xff]
    %v3163 = vld [vmem:[%s3157 + $0x28] sm:$0xff]
    %v3164 = vld [vmem:[%s3157 + $0x30] sm:$0xff]
    %v3165 = vld [vmem:[%s3157 + $0x38] sm:$0xff]
    %v3166 = vld [vmem:[%s3157 + $0x40] sm:$0xff]
    %v3167 = vld [vmem:[%s3157 + $0x48] sm:$0xff]
    %v3168 = vld [vmem:[%s3157 + $0x50] sm:$0xff]
    %v3169 = vld [vmem:[%s3157 + $0x58] sm:$0xff]
    %v3170 = vld [vmem:[%s3157 + $0x60] sm:$0xff]
    %v3171 = vld [vmem:[%s3157 + $0x68] sm:$0xff]
    %v3172 = vld [vmem:[%s3157 + $0x70] sm:$0xff]
    %v3173 = vld [vmem:[%s3157 + $0x78] sm:$0xff]
    %v3174 = vld [vmem:[%s3157 + $0x80] sm:$0xff]
    %v3175 = vld [vmem:[%s3157 + $0x88] sm:$0xff]
    %v3176 = vld [vmem:[%s3157 + $0x90] sm:$0xff]
    %v3177 = vld [vmem:[%s3157 + $0x98] sm:$0xff]
    %v3178 = vld [vmem:[%s3157 + $0xa0] sm:$0xff]
    %v3179 = vld [vmem:[%s3157 + $0xa8] sm:$0xff]
    %v3180 = vld [vmem:[%s3157 + $0xb0] sm:$0xff]
    %v3181 = vld [vmem:[%s3157 + $0xb8] sm:$0xff]
    %v3182 = vld [vmem:[%s3157 + $0xc0] sm:$0xff]
    %v3183 = vld [vmem:[%s3157 + $0xc8] sm:$0xff]
    %v3184 = vld [vmem:[%s3157 + $0xd0] sm:$0xff]
    %v3185 = vld [vmem:[%s3157 + $0xd8] sm:$0xff]
    %v3186 = vld [vmem:[%s3157 + $0xe0] sm:$0xff]
    %v3187 = vld [vmem:[%s3157 + $0xe8] sm:$0xff]
    %v3188 = vld [vmem:[%s3157 + $0xf0] sm:$0xff]
    %v3189 = vld [vmem:[%s3157 + $0xf8] sm:$0xff]
    %v3190 = vld [vmem:[%s3157 + $0x100] sm:$0xff]
    %v3191 = vld [vmem:[%s3157 + $0x108] sm:$0xff]
    %v3192 = vld [vmem:[%s3157 + $0x110] sm:$0xff]
    %v3193 = vld [vmem:[%s3157 + $0x118] sm:$0xff]
    %v3194 = vld [vmem:[%s3157 + $0x120] sm:$0xff]
    %v3195 = vld [vmem:[%s3157 + $0x128] sm:$0xff]
    %v3196 = vld [vmem:[%s3157 + $0x130] sm:$0xff]
    %v3197 = vld [vmem:[%s3157 + $0x138] sm:$0xff]
    %v3198 = vld [vmem:[%s3157 + $0x140] sm:$0xff]
    %v3199 = vld [vmem:[%s3157 + $0x148] sm:$0xff]
    %v3200 = vld [vmem:[%s3157 + $0x150] sm:$0xff]
    %v3201 = vld [vmem:[%s3157 + $0x158] sm:$0xff]
    %v3202 = vld [vmem:[%s3157 + $0x160] sm:$0xff]
    %v3203 = vld [vmem:[%s3157 + $0x168] sm:$0xff]
    %v3204 = vld [vmem:[%s3157 + $0x170] sm:$0xff]
    %v3205 = vld [vmem:[%s3157 + $0x178] sm:$0xff]
    %v3206 = vld [vmem:[%s3157 + $0x180] sm:$0xff]
    %v3207 = vld [vmem:[%s3157 + $0x188] sm:$0xff]
    %v3208 = vld [vmem:[%s3157 + $0x190] sm:$0xff]
    %v3209 = vld [vmem:[%s3157 + $0x198] sm:$0xff]
    %v3210 = vld [vmem:[%s3157 + $0x1a0] sm:$0xff]
    %v3211 = vld [vmem:[%s3157 + $0x1a8] sm:$0xff]
    %v3212 = vld [vmem:[%s3157 + $0x1b0] sm:$0xff]
    %v3213 = vld [vmem:[%s3157 + $0x1b8] sm:$0xff]
    %v3214 = vld [vmem:[%s3157 + $0x1c0] sm:$0xff]
    %v3215 = vld [vmem:[%s3157 + $0x1c8] sm:$0xff]
    %v3216 = vld [vmem:[%s3157 + $0x1d0] sm:$0xff]
    %v3217 = vld [vmem:[%s3157 + $0x1d8] sm:$0xff]
    %v3218 = vld [vmem:[%s3157 + $0x1e0] sm:$0xff]
    %v3219 = vld [vmem:[%s3157 + $0x1e8] sm:$0xff]
    %v3220 = vld [vmem:[%s3157 + $0x1f0] sm:$0xff]
    %v3221 = vld [vmem:[%s3157 + $0x1f8] sm:$0xff]
    %3222 = vmatprep.subr.mxu0 0.0
    %3223 = vmatpush1.msra.mxu0 %v280
    %3224 = vmatprep.subr.mxu0 0.0
    %3225 = vmatpush1.msra.mxu0 %v281
    %3226 = vmatprep.subr.mxu0 0.0
    %3227 = vmatpush1.msra.mxu0 %v282
    %3228 = vmatprep.subr.mxu0 0.0
    %3229 = vmatpush1.msra.mxu0 %v283
    %3230 = vmatprep.subr.mxu0 0.0
    %3231 = vmatpush1.msra.mxu0 %v284
    %3232 = vmatprep.subr.mxu0 0.0
    %3233 = vmatpush1.msra.mxu0 %v285
    %3234 = vmatprep.subr.mxu0 0.0
    %3235 = vmatpush1.msra.mxu0 %v286
    %3236 = vmatprep.subr.mxu0 0.0
    %3237 = vmatpush1.msra.mxu0 %v287
    %3238 = vmatprep.subr.mxu0 0.0
    %3239 = vmatpush1.msra.mxu0 %v288
    %3240 = vmatprep.subr.mxu0 0.0
    %3241 = vmatpush1.msra.mxu0 %v289
    %3242 = vmatprep.subr.mxu0 0.0
    %3243 = vmatpush1.msra.mxu0 %v290
    %3244 = vmatprep.subr.mxu0 0.0
    %3245 = vmatpush1.msra.mxu0 %v291
    %3246 = vmatprep.subr.mxu0 0.0
    %3247 = vmatpush1.msra.mxu0 %v292
    %3248 = vmatprep.subr.mxu0 0.0
    %3249 = vmatpush1.msra.mxu0 %v293
    %3250 = vmatprep.subr.mxu0 0.0
    %3251 = vmatpush1.msra.mxu0 %v294
    %3252 = vmatprep.subr.mxu0 0.0
    %3253 = vmatpush1.msra.mxu0 %v295
    %3254 = vmatprep.subr.mxu0 0.0
    %3255 = vmatpush1.msra.mxu0 %v296
    %3256 = vmatprep.subr.mxu0 0.0
    %3257 = vmatpush1.msra.mxu0 %v297
    %3258 = vmatprep.subr.mxu0 0.0
    %3259 = vmatpush1.msra.mxu0 %v298
    %3260 = vmatprep.subr.mxu0 0.0
    %3261 = vmatpush1.msra.mxu0 %v299
    %3262 = vmatprep.subr.mxu0 0.0
    %3263 = vmatpush1.msra.mxu0 %v300
    %3264 = vmatprep.subr.mxu0 0.0
    %3265 = vmatpush1.msra.mxu0 %v301
    %3266 = vmatprep.subr.mxu0 0.0
    %3267 = vmatpush1.msra.mxu0 %v302
    %3268 = vmatprep.subr.mxu0 0.0
    %3269 = vmatpush1.msra.mxu0 %v303
    %3270 = vmatprep.subr.mxu0 0.0
    %3271 = vmatpush1.msra.mxu0 %v304
    %3272 = vmatprep.subr.mxu0 0.0
    %3273 = vmatpush1.msra.mxu0 %v305
    %3274 = vmatprep.subr.mxu0 0.0
    %3275 = vmatpush1.msra.mxu0 %v306
    %3276 = vmatprep.subr.mxu0 0.0
    %3277 = vmatpush1.msra.mxu0 %v307
    %3278 = vmatprep.subr.mxu0 0.0
    %3279 = vmatpush1.msra.mxu0 %v308
    %3280 = vmatprep.subr.mxu0 0.0
    %3281 = vmatpush1.msra.mxu0 %v309
    %3282 = vmatprep.subr.mxu0 0.0
    %3283 = vmatpush1.msra.mxu0 %v310
    %3284 = vmatprep.subr.mxu0 0.0
    %3285 = vmatpush1.msra.mxu0 %v311
    %3286 = vmatprep.mubr.f32.mxu0 %v3159
    %3287 = vmatmul.mubr.f32.gmra.mrb[0].mxu0 %v3158
    %v3288 = vpop.f32.mrb[0].mxu0
    %v3289 = vadd.f32 0.0, %v3288
    %v3290 = vpop.f32.mrb[0].mxu0
    %3291 = vmatprep.mubr.f32.mxu0 %v3163
    %3292 = vmatmul.mubr.f32.gmra.mrb[0].mxu0 %v3162
    %v3293 = vpop.f32.mrb[0].mxu0
    %v3294 = vadd.f32 0.0, %v3293
    %v3295 = vpop.f32.mrb[0].mxu0
    %3296 = vmatprep.mubr.f32.mxu0 %v3167
    %3297 = vmatmul.mubr.f32.gmra.mrb[0].mxu0 %v3166
    %v3298 = vpop.f32.mrb[0].mxu0
    %v3299 = vadd.f32 0.0, %v3298
    %v3300 = vpop.f32.mrb[0].mxu0
    %3301 = vmatprep.mubr.f32.mxu0 %v3171
    %3302 = vmatmul.mubr.f32.gmra.mrb[0].mxu0 %v3170
    %v3303 = vpop.f32.mrb[0].mxu0
    %v3304 = vadd.f32 0.0, %v3303
    %v3305 = vpop.f32.mrb[0].mxu0
    %3306 = vmatprep.mubr.f32.mxu0 %v3175
    %3307 = vmatmul.mubr.f32.gmra.mrb[0].mxu0 %v3174
    %v3308 = vpop.f32.mrb[0].mxu0
    %v3309 = vadd.f32 0.0, %v3308
    %v3310 = vpop.f32.mrb[0].mxu0
    %3311 = vmatprep.mubr.f32.mxu0 %v3179
    %3312 = vmatmul.mubr.f32.gmra.mrb[0].mxu0 %v3178
    %v3313 = vpop.f32.mrb[0].mxu0
    %v3314 = vadd.f32 0.0, %v3313
    %v3315 = vpop.f32.mrb[0].mxu0
    %3316 = vmatprep.mubr.f32.mxu0 %v3183
    %3317 = vmatmul.mubr.f32.gmra.mrb[0].mxu0 %v3182
    %v3318 = vpop.f32.mrb[0].mxu0
    %v3319 = vadd.f32 0.0, %v3318
    %v3320 = vpop.f32.mrb[0].mxu0
    %3321 = vmatprep.mubr.f32.mxu0 %v3187
    %3322 = vmatmul.mubr.f32.gmra.mrb[0].mxu0 %v3186
    %v3323 = vpop.f32.mrb[0].mxu0
    %v3324 = vadd.f32 0.0, %v3323
    %v3325 = vpop.f32.mrb[0].mxu0
    %3326 = vmatprep.mubr.f32.mxu0 %v3191
    %3327 = vmatmul.mubr.f32.gmra.mrb[0].mxu0 %v3190
    %v3328 = vpop.f32.mrb[0].mxu0
    %v3329 = vadd.f32 0.0, %v3328
    %v3330 = vpop.f32.mrb[0].mxu0
    %3331 = vmatprep.mubr.f32.mxu0 %v3195
    %3332 = vmatmul.mubr.f32.gmra.mrb[0].mxu0 %v3194
    %v3333 = vpop.f32.mrb[0].mxu0
    %v3334 = vadd.f32 0.0, %v3333
    %v3335 = vpop.f32.mrb[0].mxu0
    %3336 = vmatprep.mubr.f32.mxu0 %v3199
    %3337 = vmatmul.mubr.f32.gmra.mrb[0].mxu0 %v3198
    %v3338 = vpop.f32.mrb[0].mxu0
    %v3339 = vadd.f32 0.0, %v3338
    %v3340 = vpop.f32.mrb[0].mxu0
    %3341 = vmatprep.mubr.f32.mxu0 %v3203
    %3342 = vmatmul.mubr.f32.gmra.mrb[0].mxu0 %v3202
    %v3343 = vpop.f32.mrb[0].mxu0
    %v3344 = vadd.f32 0.0, %v3343
    %v3345 = vpop.f32.mrb[0].mxu0
    %3346 = vmatprep.mubr.f32.mxu0 %v3207
    %3347 = vmatmul.mubr.f32.gmra.mrb[0].mxu0 %v3206
    %v3348 = vpop.f32.mrb[0].mxu0
    %v3349 = vadd.f32 0.0, %v3348
    %v3350 = vpop.f32.mrb[0].mxu0
    %3351 = vmatprep.mubr.f32.mxu0 %v3211
    %3352 = vmatmul.mubr.f32.gmra.mrb[0].mxu0 %v3210
    %v3353 = vpop.f32.mrb[0].mxu0
    %v3354 = vadd.f32 0.0, %v3353
    %v3355 = vpop.f32.mrb[0].mxu0
    %3356 = vmatprep.mubr.f32.mxu0 %v3215
    %3357 = vmatmul.mubr.f32.gmra.mrb[0].mxu0 %v3214
    %v3358 = vpop.f32.mrb[0].mxu0
    %v3359 = vadd.f32 0.0, %v3358
    %v3360 = vpop.f32.mrb[0].mxu0
    %3361 = vmatprep.mubr.f32.mxu0 %v3219
    %3362 = vmatmul.mubr.f32.gmra.mrb[0].mxu0 %v3218
    %v3363 = vpop.f32.mrb[0].mxu0
    %v3364 = vadd.f32 0.0, %v3363
    %v3365 = vpop.f32.mrb[0].mxu0
    %3366 = vdwg.mxu0
    %3367 = vmatprep.subr.mxu0 0.0
    %3368 = vmatpush1.msra.mxu0 %v312
    %3369 = vmatprep.subr.mxu0 0.0
    %3370 = vmatpush1.msra.mxu0 %v313
    %3371 = vmatprep.subr.mxu0 0.0
    %3372 = vmatpush1.msra.mxu0 %v314
    %3373 = vmatprep.subr.mxu0 0.0
    %3374 = vmatpush1.msra.mxu0 %v315
    %3375 = vmatprep.subr.mxu0 0.0
    %3376 = vmatpush1.msra.mxu0 %v316
    %3377 = vmatprep.subr.mxu0 0.0
    %3378 = vmatpush1.msra.mxu0 %v317
    %3379 = vmatprep.subr.mxu0 0.0
    %3380 = vmatpush1.msra.mxu0 %v318
    %3381 = vmatprep.subr.mxu0 0.0
    %3382 = vmatpush1.msra.mxu0 %v319
    %3383 = vmatprep.subr.mxu0 0.0
    %3384 = vmatpush1.msra.mxu0 %v320
    %3385 = vmatprep.subr.mxu0 0.0
    %3386 = vmatpush1.msra.mxu0 %v321
    %3387 = vmatprep.subr.mxu0 0.0
    %3388 = vmatpush1.msra.mxu0 %v322
    %3389 = vmatprep.subr.mxu0 0.0
    %3390 = vmatpush1.msra.mxu0 %v323
    %3391 = vmatprep.subr.mxu0 0.0
    %3392 = vmatpush1.msra.mxu0 %v324
    %3393 = vmatprep.subr.mxu0 0.0
    %3394 = vmatpush1.msra.mxu0 %v325
    %3395 = vmatprep.subr.mxu0 0.0
    %3396 = vmatpush1.msra.mxu0 %v326
    %3397 = vmatprep.subr.mxu0 0.0
    %3398 = vmatpush1.msra.mxu0 %v327
    %3399 = vmatprep.subr.mxu0 0.0
    %3400 = vmatpush1.msra.mxu0 %v328
    %3401 = vmatprep.subr.mxu0 0.0
    %3402 = vmatpush1.msra.mxu0 %v329
    %3403 = vmatprep.subr.mxu0 0.0
    %3404 = vmatpush1.msra.mxu0 %v330
    %3405 = vmatprep.subr.mxu0 0.0
    %3406 = vmatpush1.msra.mxu0 %v331
    %3407 = vmatprep.subr.mxu0 0.0
    %3408 = vmatpush1.msra.mxu0 %v332
    %3409 = vmatprep.subr.mxu0 0.0
    %3410 = vmatpush1.msra.mxu0 %v333
    %3411 = vmatprep.subr.mxu0 0.0
    %3412 = vmatpush1.msra.mxu0 %v334
    %3413 = vmatprep.subr.mxu0 0.0
    %3414 = vmatpush1.msra.mxu0 %v335
    %3415 = vmatprep.subr.mxu0 0.0
    %3416 = vmatpush1.msra.mxu0 %v336
    %3417 = vmatprep.subr.mxu0 0.0
    %3418 = vmatpush1.msra.mxu0 %v337
    %3419 = vmatprep.subr.mxu0 0.0
    %3420 = vmatpush1.msra.mxu0 %v338
    %3421 = vmatprep.subr.mxu0 0.0
    %3422 = vmatpush1.msra.mxu0 %v339
    %3423 = vmatprep.subr.mxu0 0.0
    %3424 = vmatpush1.msra.mxu0 %v340
    %3425 = vmatprep.subr.mxu0 0.0
    %3426 = vmatpush1.msra.mxu0 %v341
    %3427 = vmatprep.subr.mxu0 0.0
    %3428 = vmatpush1.msra.mxu0 %v342
    %3429 = vmatprep.subr.mxu0 0.0
    %3430 = vmatpush1.msra.mxu0 %v343
    %3431 = vmatprep.mubr.f32.mxu0 %v3161
    %3432 = vmatmul.mubr.f32.gmra.mrb[0].mxu0 %v3160
    %v3433 = vpop.f32.mrb[0].mxu0
    %v3434 = vadd.f32 %v3289, %v3433
    %v3435 = vpop.f32.mrb[0].mxu0
    %3436 = vmatprep.mubr.f32.mxu0 %v3165
    %3437 = vmatmul.mubr.f32.gmra.mrb[0].mxu0 %v3164
    %v3438 = vpop.f32.mrb[0].mxu0
    %v3439 = vadd.f32 %v3294, %v3438
    %v3440 = vpop.f32.mrb[0].mxu0
    %3441 = vmatprep.mubr.f32.mxu0 %v3169
    %3442 = vmatmul.mubr.f32.gmra.mrb[0].mxu0 %v3168
    %v3443 = vpop.f32.mrb[0].mxu0
    %v3444 = vadd.f32 %v3299, %v3443
    %v3445 = vpop.f32.mrb[0].mxu0
    %3446 = vmatprep.mubr.f32.mxu0 %v3173
    %3447 = vmatmul.mubr.f32.gmra.mrb[0].mxu0 %v3172
    %v3448 = vpop.f32.mrb[0].mxu0
    %v3449 = vadd.f32 %v3304, %v3448
    %v3450 = vpop.f32.mrb[0].mxu0
    %3451 = vmatprep.mubr.f32.mxu0 %v3177
    %3452 = vmatmul.mubr.f32.gmra.mrb[0].mxu0 %v3176
    %v3453 = vpop.f32.mrb[0].mxu0
    %v3454 = vadd.f32 %v3309, %v3453
    %v3455 = vpop.f32.mrb[0].mxu0
    %3456 = vmatprep.mubr.f32.mxu0 %v3181
    %3457 = vmatmul.mubr.f32.gmra.mrb[0].mxu0 %v3180
    %v3458 = vpop.f32.mrb[0].mxu0
    %v3459 = vadd.f32 %v3314, %v3458
    %v3460 = vpop.f32.mrb[0].mxu0
    %3461 = vmatprep.mubr.f32.mxu0 %v3185
    %3462 = vmatmul.mubr.f32.gmra.mrb[0].mxu0 %v3184
    %v3463 = vpop.f32.mrb[0].mxu0
    %v3464 = vadd.f32 %v3319, %v3463
    %v3465 = vpop.f32.mrb[0].mxu0
    %3466 = vmatprep.mubr.f32.mxu0 %v3189
    %3467 = vmatmul.mubr.f32.gmra.mrb[0].mxu0 %v3188
    %v3468 = vpop.f32.mrb[0].mxu0
    %v3469 = vadd.f32 %v3324, %v3468
    %v3470 = vpop.f32.mrb[0].mxu0
    %3471 = vmatprep.mubr.f32.mxu0 %v3193
    %3472 = vmatmul.mubr.f32.gmra.mrb[0].mxu0 %v3192
    %v3473 = vpop.f32.mrb[0].mxu0
    %v3474 = vadd.f32 %v3329, %v3473
    %v3475 = vpop.f32.mrb[0].mxu0
    %3476 = vmatprep.mubr.f32.mxu0 %v3197
    %3477 = vmatmul.mubr.f32.gmra.mrb[0].mxu0 %v3196
    %v3478 = vpop.f32.mrb[0].mxu0
    %v3479 = vadd.f32 %v3334, %v3478
    %v3480 = vpop.f32.mrb[0].mxu0
    %3481 = vmatprep.mubr.f32.mxu0 %v3201
    %3482 = vmatmul.mubr.f32.gmra.mrb[0].mxu0 %v3200
    %v3483 = vpop.f32.mrb[0].mxu0
    %v3484 = vadd.f32 %v3339, %v3483
    %v3485 = vpop.f32.mrb[0].mxu0
    %3486 = vmatprep.mubr.f32.mxu0 %v3205
    %3487 = vmatmul.mubr.f32.gmra.mrb[0].mxu0 %v3204
    %v3488 = vpop.f32.mrb[0].mxu0
    %v3489 = vadd.f32 %v3344, %v3488
    %v3490 = vpop.f32.mrb[0].mxu0
    %3491 = vmatprep.mubr.f32.mxu0 %v3209
    %3492 = vmatmul.mubr.f32.gmra.mrb[0].mxu0 %v3208
    %v3493 = vpop.f32.mrb[0].mxu0
    %v3494 = vadd.f32 %v3349, %v3493
    %v3495 = vpop.f32.mrb[0].mxu0
    %3496 = vmatprep.mubr.f32.mxu0 %v3213
    %3497 = vmatmul.mubr.f32.gmra.mrb[0].mxu0 %v3212
    %v3498 = vpop.f32.mrb[0].mxu0
    %v3499 = vadd.f32 %v3354, %v3498
    %v3500 = vpop.f32.mrb[0].mxu0
    %3501 = vmatprep.mubr.f32.mxu0 %v3217
    %3502 = vmatmul.mubr.f32.gmra.mrb[0].mxu0 %v3216
    %v3503 = vpop.f32.mrb[0].mxu0
    %v3504 = vadd.f32 %v3359, %v3503
    %v3505 = vpop.f32.mrb[0].mxu0
    %3506 = vmatprep.mubr.f32.mxu0 %v3221
    %3507 = vmatmul.mubr.f32.gmra.mrb[0].mxu0 %v3220
    %v3508 = vpop.f32.mrb[0].mxu0
    %v3509 = vadd.f32 %v3364, %v3508
    %v3510 = vpop.f32.mrb[0].mxu0
    %3511 = vdwg.mxu0
    %s3512 = scalar_lea.vmem [#allocation5], 20
    %v3513 = vld [vmem:[%s3512] sm:$0x7]
    %v3515 = vsel %vm1056, %v3434, 0
    %v3518 = vsel %vm1056, %v3439, 0
    %v3521 = vsel %vm1056, %v3444, 0
    %v3524 = vsel %vm1056, %v3449, 0
    %v3527 = vsel %vm1056, %v3454, 0
    %v3530 = vsel %vm1056, %v3459, 0
    %v3533 = vsel %vm1056, %v3464, 0
    %v3536 = vsel %vm1056, %v3469, 0
    %v3539 = vsel %vm1056, %v3474, 0
    %v3542 = vsel %vm1056, %v3479, 0
    %v3545 = vsel %vm1056, %v3484, 0
    %v3548 = vsel %vm1056, %v3489, 0
    %v3551 = vsel %vm1056, %v3494, 0
    %v3554 = vsel %vm1056, %v3499, 0
    %v3557 = vsel %vm1056, %v3504, 0
    %v3560 = vsel %vm1056, %v3509, 0
    %v3563 = vsel %vm1105, %v3513, 0
    %3565 = vmatprep.subr.mxu0 0.0
    %3566 = vmatpush1.msra.mxu0 %v3563
    %3567 = vmatprep.subr.mxu0 0.0
    %3568 = vmatpush1.msra.mxu0 0.0
    %3569 = vmatprep.subr.mxu0 0.0
    %3570 = vmatpush1.msra.mxu0 0.0
    %3571 = vmatprep.subr.mxu0 0.0
    %3572 = vmatpush1.msra.mxu0 0.0
    %3573 = vmatprep.subr.mxu0 0.0
    %3574 = vmatpush1.msra.mxu0 0.0
    %3575 = vmatprep.subr.mxu0 0.0
    %3576 = vmatpush1.msra.mxu0 0.0
    %3577 = vmatprep.subr.mxu0 0.0
    %3578 = vmatpush1.msra.mxu0 0.0
    %3579 = vmatprep.subr.mxu0 0.0
    %3580 = vmatpush1.msra.mxu0 0.0
    %3581 = vmatprep.subr.mxu0 0.0
    %3582 = vmatpush1.msra.mxu0 0.0
    %3583 = vmatprep.subr.mxu0 0.0
    %3584 = vmatpush1.msra.mxu0 0.0
    %3585 = vmatprep.subr.mxu0 0.0
    %3586 = vmatpush1.msra.mxu0 0.0
    %3587 = vmatprep.subr.mxu0 0.0
    %3588 = vmatpush1.msra.mxu0 0.0
    %3589 = vmatprep.subr.mxu0 0.0
    %3590 = vmatpush1.msra.mxu0 0.0
    %3591 = vmatprep.subr.mxu0 0.0
    %3592 = vmatpush1.msra.mxu0 0.0
    %3593 = vmatprep.subr.mxu0 0.0
    %3594 = vmatpush1.msra.mxu0 0.0
    %3595 = vmatprep.subr.mxu0 0.0
    %3596 = vmatpush1.msra.mxu0 0.0
    %3597 = vmatprep.subr.mxu0 0.0
    %3598 = vmatpush1.msra.mxu0 0.0
    %3599 = vmatprep.subr.mxu0 0.0
    %3600 = vmatpush1.msra.mxu0 0.0
    %3601 = vmatprep.subr.mxu0 0.0
    %3602 = vmatpush1.msra.mxu0 0.0
    %3603 = vmatprep.subr.mxu0 0.0
    %3604 = vmatpush1.msra.mxu0 0.0
    %3605 = vmatprep.subr.mxu0 0.0
    %3606 = vmatpush1.msra.mxu0 0.0
    %3607 = vmatprep.subr.mxu0 0.0
    %3608 = vmatpush1.msra.mxu0 0.0
    %3609 = vmatprep.subr.mxu0 0.0
    %3610 = vmatpush1.msra.mxu0 0.0
    %3611 = vmatprep.subr.mxu0 0.0
    %3612 = vmatpush1.msra.mxu0 0.0
    %3613 = vmatprep.subr.mxu0 0.0
    %3614 = vmatpush1.msra.mxu0 0.0
    %3615 = vmatprep.subr.mxu0 0.0
    %3616 = vmatpush1.msra.mxu0 0.0
    %3617 = vmatprep.subr.mxu0 0.0
    %3618 = vmatpush1.msra.mxu0 0.0
    %3619 = vmatprep.subr.mxu0 0.0
    %3620 = vmatpush1.msra.mxu0 0.0
    %3621 = vmatprep.subr.mxu0 0.0
    %3622 = vmatpush1.msra.mxu0 0.0
    %3623 = vmatprep.subr.mxu0 0.0
    %3624 = vmatpush1.msra.mxu0 0.0
    %3625 = vmatprep.subr.mxu0 0.0
    %3626 = vmatpush1.msra.mxu0 0.0
    %3627 = vmatprep.subr.mxu0 0.0
    %3628 = vmatpush1.msra.mxu0 0.0
    %3629 = vmatprep.mubr.f32.mxu0 0.0
    %3630 = vmatmul.mubr.f32.gmra.mrb[0].mxu0 %v3515
    %v3631 = vpop.f32.mrb[0].mxu0
    %v3632 = vadd.f32 0.0, %v3631
    %v3633 = vpop.f32.mrb[0].mxu0
    %3634 = vmatprep.mubr.f32.mxu0 0.0
    %3635 = vmatmul.mubr.f32.gmra.mrb[0].mxu0 %v3518
    %v3636 = vpop.f32.mrb[0].mxu0
    %v3637 = vadd.f32 0.0, %v3636
    %v3638 = vpop.f32.mrb[0].mxu0
    %3639 = vmatprep.mubr.f32.mxu0 0.0
    %3640 = vmatmul.mubr.f32.gmra.mrb[0].mxu0 %v3521
    %v3641 = vpop.f32.mrb[0].mxu0
    %v3642 = vadd.f32 0.0, %v3641
    %v3643 = vpop.f32.mrb[0].mxu0
    %3644 = vmatprep.mubr.f32.mxu0 0.0
    %3645 = vmatmul.mubr.f32.gmra.mrb[0].mxu0 %v3524
    %v3646 = vpop.f32.mrb[0].mxu0
    %v3647 = vadd.f32 0.0, %v3646
    %v3648 = vpop.f32.mrb[0].mxu0
    %3649 = vmatprep.mubr.f32.mxu0 0.0
    %3650 = vmatmul.mubr.f32.gmra.mrb[0].mxu0 %v3527
    %v3651 = vpop.f32.mrb[0].mxu0
    %v3652 = vadd.f32 0.0, %v3651
    %v3653 = vpop.f32.mrb[0].mxu0
    %3654 = vmatprep.mubr.f32.mxu0 0.0
    %3655 = vmatmul.mubr.f32.gmra.mrb[0].mxu0 %v3530
    %v3656 = vpop.f32.mrb[0].mxu0
    %v3657 = vadd.f32 0.0, %v3656
    %v3658 = vpop.f32.mrb[0].mxu0
    %3659 = vmatprep.mubr.f32.mxu0 0.0
    %3660 = vmatmul.mubr.f32.gmra.mrb[0].mxu0 %v3533
    %v3661 = vpop.f32.mrb[0].mxu0
    %v3662 = vadd.f32 0.0, %v3661
    %v3663 = vpop.f32.mrb[0].mxu0
    %3664 = vmatprep.mubr.f32.mxu0 0.0
    %3665 = vmatmul.mubr.f32.gmra.mrb[0].mxu0 %v3536
    %v3666 = vpop.f32.mrb[0].mxu0
    %v3667 = vadd.f32 0.0, %v3666
    %v3668 = vpop.f32.mrb[0].mxu0
    %3669 = vmatprep.mubr.f32.mxu0 0.0
    %3670 = vmatmul.mubr.f32.gmra.mrb[0].mxu0 %v3539
    %v3671 = vpop.f32.mrb[0].mxu0
    %v3672 = vadd.f32 0.0, %v3671
    %v3673 = vpop.f32.mrb[0].mxu0
    %3674 = vmatprep.mubr.f32.mxu0 0.0
    %3675 = vmatmul.mubr.f32.gmra.mrb[0].mxu0 %v3542
    %v3676 = vpop.f32.mrb[0].mxu0
    %v3677 = vadd.f32 0.0, %v3676
    %v3678 = vpop.f32.mrb[0].mxu0
    %3679 = vmatprep.mubr.f32.mxu0 0.0
    %3680 = vmatmul.mubr.f32.gmra.mrb[0].mxu0 %v3545
    %v3681 = vpop.f32.mrb[0].mxu0
    %v3682 = vadd.f32 0.0, %v3681
    %v3683 = vpop.f32.mrb[0].mxu0
    %3684 = vmatprep.mubr.f32.mxu0 0.0
    %3685 = vmatmul.mubr.f32.gmra.mrb[0].mxu0 %v3548
    %v3686 = vpop.f32.mrb[0].mxu0
    %v3687 = vadd.f32 0.0, %v3686
    %v3688 = vpop.f32.mrb[0].mxu0
    %3689 = vmatprep.mubr.f32.mxu0 0.0
    %3690 = vmatmul.mubr.f32.gmra.mrb[0].mxu0 %v3551
    %v3691 = vpop.f32.mrb[0].mxu0
    %v3692 = vadd.f32 0.0, %v3691
    %v3693 = vpop.f32.mrb[0].mxu0
    %3694 = vmatprep.mubr.f32.mxu0 0.0
    %3695 = vmatmul.mubr.f32.gmra.mrb[0].mxu0 %v3554
    %v3696 = vpop.f32.mrb[0].mxu0
    %v3697 = vadd.f32 0.0, %v3696
    %v3698 = vpop.f32.mrb[0].mxu0
    %3699 = vmatprep.mubr.f32.mxu0 0.0
    %3700 = vmatmul.mubr.f32.gmra.mrb[0].mxu0 %v3557
    %v3701 = vpop.f32.mrb[0].mxu0
    %v3702 = vadd.f32 0.0, %v3701
    %v3703 = vpop.f32.mrb[0].mxu0
    %3704 = vmatprep.mubr.f32.mxu0 0.0
    %3705 = vmatmul.mubr.f32.gmra.mrb[0].mxu0 %v3560
    %v3706 = vpop.f32.mrb[0].mxu0
    %v3707 = vadd.f32 0.0, %v3706
    %v3708 = vpop.f32.mrb[0].mxu0
    %3709 = vdwg.mxu0
    %v3710 = vadd.f32 %v3141, %v3632
    %v3711 = vadd.f32 %v3142, %v3637
    %v3712 = vadd.f32 %v3143, %v3642
    %v3713 = vadd.f32 %v3144, %v3647
    %v3714 = vadd.f32 %v3145, %v3652
    %v3715 = vadd.f32 %v3146, %v3657
    %v3716 = vadd.f32 %v3147, %v3662
    %v3717 = vadd.f32 %v3148, %v3667
    %v3718 = vadd.f32 %v3149, %v3672
    %v3719 = vadd.f32 %v3150, %v3677
    %v3720 = vadd.f32 %v3151, %v3682
    %v3721 = vadd.f32 %v3152, %v3687
    %v3722 = vadd.f32 %v3153, %v3692
    %v3723 = vadd.f32 %v3154, %v3697
    %v3724 = vadd.f32 %v3155, %v3702
    %v3725 = vadd.f32 %v3156, %v3707
    %s3726 = scalar_lea.vmem [#allocation3], 3072
    %v3727 = vld [vmem:[%s3726] sm:$0xff]
    %v3728 = vld [vmem:[%s3726 + $0x8] sm:$0xff]
    %v3729 = vld [vmem:[%s3726 + $0x10] sm:$0xff]
    %v3730 = vld [vmem:[%s3726 + $0x18] sm:$0xff]
    %v3731 = vld [vmem:[%s3726 + $0x20] sm:$0xff]
    %v3732 = vld [vmem:[%s3726 + $0x28] sm:$0xff]
    %v3733 = vld [vmem:[%s3726 + $0x30] sm:$0xff]
    %v3734 = vld [vmem:[%s3726 + $0x38] sm:$0xff]
    %v3735 = vld [vmem:[%s3726 + $0x40] sm:$0xff]
    %v3736 = vld [vmem:[%s3726 + $0x48] sm:$0xff]
    %v3737 = vld [vmem:[%s3726 + $0x50] sm:$0xff]
    %v3738 = vld [vmem:[%s3726 + $0x58] sm:$0xff]
    %v3739 = vld [vmem:[%s3726 + $0x60] sm:$0xff]
    %v3740 = vld [vmem:[%s3726 + $0x68] sm:$0xff]
    %v3741 = vld [vmem:[%s3726 + $0x70] sm:$0xff]
    %v3742 = vld [vmem:[%s3726 + $0x78] sm:$0xff]
    %v3743 = vld [vmem:[%s3726 + $0x80] sm:$0xff]
    %v3744 = vld [vmem:[%s3726 + $0x88] sm:$0xff]
    %v3745 = vld [vmem:[%s3726 + $0x90] sm:$0xff]
    %v3746 = vld [vmem:[%s3726 + $0x98] sm:$0xff]
    %v3747 = vld [vmem:[%s3726 + $0xa0] sm:$0xff]
    %v3748 = vld [vmem:[%s3726 + $0xa8] sm:$0xff]
    %v3749 = vld [vmem:[%s3726 + $0xb0] sm:$0xff]
    %v3750 = vld [vmem:[%s3726 + $0xb8] sm:$0xff]
    %v3751 = vld [vmem:[%s3726 + $0xc0] sm:$0xff]
    %v3752 = vld [vmem:[%s3726 + $0xc8] sm:$0xff]
    %v3753 = vld [vmem:[%s3726 + $0xd0] sm:$0xff]
    %v3754 = vld [vmem:[%s3726 + $0xd8] sm:$0xff]
    %v3755 = vld [vmem:[%s3726 + $0xe0] sm:$0xff]
    %v3756 = vld [vmem:[%s3726 + $0xe8] sm:$0xff]
    %v3757 = vld [vmem:[%s3726 + $0xf0] sm:$0xff]
    %v3758 = vld [vmem:[%s3726 + $0xf8] sm:$0xff]
    %v3759 = vld [vmem:[%s3726 + $0x100] sm:$0xff]
    %v3760 = vld [vmem:[%s3726 + $0x108] sm:$0xff]
    %v3761 = vld [vmem:[%s3726 + $0x110] sm:$0xff]
    %v3762 = vld [vmem:[%s3726 + $0x118] sm:$0xff]
    %v3763 = vld [vmem:[%s3726 + $0x120] sm:$0xff]
    %v3764 = vld [vmem:[%s3726 + $0x128] sm:$0xff]
    %v3765 = vld [vmem:[%s3726 + $0x130] sm:$0xff]
    %v3766 = vld [vmem:[%s3726 + $0x138] sm:$0xff]
    %v3767 = vld [vmem:[%s3726 + $0x140] sm:$0xff]
    %v3768 = vld [vmem:[%s3726 + $0x148] sm:$0xff]
    %v3769 = vld [vmem:[%s3726 + $0x150] sm:$0xff]
    %v3770 = vld [vmem:[%s3726 + $0x158] sm:$0xff]
    %v3771 = vld [vmem:[%s3726 + $0x160] sm:$0xff]
    %v3772 = vld [vmem:[%s3726 + $0x168] sm:$0xff]
    %v3773 = vld [vmem:[%s3726 + $0x170] sm:$0xff]
    %v3774 = vld [vmem:[%s3726 + $0x178] sm:$0xff]
    %v3775 = vld [vmem:[%s3726 + $0x180] sm:$0xff]
    %v3776 = vld [vmem:[%s3726 + $0x188] sm:$0xff]
    %v3777 = vld [vmem:[%s3726 + $0x190] sm:$0xff]
    %v3778 = vld [vmem:[%s3726 + $0x198] sm:$0xff]
    %v3779 = vld [vmem:[%s3726 + $0x1a0] sm:$0xff]
    %v3780 = vld [vmem:[%s3726 + $0x1a8] sm:$0xff]
    %v3781 = vld [vmem:[%s3726 + $0x1b0] sm:$0xff]
    %v3782 = vld [vmem:[%s3726 + $0x1b8] sm:$0xff]
    %v3783 = vld [vmem:[%s3726 + $0x1c0] sm:$0xff]
    %v3784 = vld [vmem:[%s3726 + $0x1c8] sm:$0xff]
    %v3785 = vld [vmem:[%s3726 + $0x1d0] sm:$0xff]
    %v3786 = vld [vmem:[%s3726 + $0x1d8] sm:$0xff]
    %v3787 = vld [vmem:[%s3726 + $0x1e0] sm:$0xff]
    %v3788 = vld [vmem:[%s3726 + $0x1e8] sm:$0xff]
    %v3789 = vld [vmem:[%s3726 + $0x1f0] sm:$0xff]
    %v3790 = vld [vmem:[%s3726 + $0x1f8] sm:$0xff]
    %3791 = vmatprep.subr.mxu0 0.0
    %3792 = vmatpush1.msra.mxu0 %v280
    %3793 = vmatprep.subr.mxu0 0.0
    %3794 = vmatpush1.msra.mxu0 %v281
    %3795 = vmatprep.subr.mxu0 0.0
    %3796 = vmatpush1.msra.mxu0 %v282
    %3797 = vmatprep.subr.mxu0 0.0
    %3798 = vmatpush1.msra.mxu0 %v283
    %3799 = vmatprep.subr.mxu0 0.0
    %3800 = vmatpush1.msra.mxu0 %v284
    %3801 = vmatprep.subr.mxu0 0.0
    %3802 = vmatpush1.msra.mxu0 %v285
    %3803 = vmatprep.subr.mxu0 0.0
    %3804 = vmatpush1.msra.mxu0 %v286
    %3805 = vmatprep.subr.mxu0 0.0
    %3806 = vmatpush1.msra.mxu0 %v287
    %3807 = vmatprep.subr.mxu0 0.0
    %3808 = vmatpush1.msra.mxu0 %v288
    %3809 = vmatprep.subr.mxu0 0.0
    %3810 = vmatpush1.msra.mxu0 %v289
    %3811 = vmatprep.subr.mxu0 0.0
    %3812 = vmatpush1.msra.mxu0 %v290
    %3813 = vmatprep.subr.mxu0 0.0
    %3814 = vmatpush1.msra.mxu0 %v291
    %3815 = vmatprep.subr.mxu0 0.0
    %3816 = vmatpush1.msra.mxu0 %v292
    %3817 = vmatprep.subr.mxu0 0.0
    %3818 = vmatpush1.msra.mxu0 %v293
    %3819 = vmatprep.subr.mxu0 0.0
    %3820 = vmatpush1.msra.mxu0 %v294
    %3821 = vmatprep.subr.mxu0 0.0
    %3822 = vmatpush1.msra.mxu0 %v295
    %3823 = vmatprep.subr.mxu0 0.0
    %3824 = vmatpush1.msra.mxu0 %v296
    %3825 = vmatprep.subr.mxu0 0.0
    %3826 = vmatpush1.msra.mxu0 %v297
    %3827 = vmatprep.subr.mxu0 0.0
    %3828 = vmatpush1.msra.mxu0 %v298
    %3829 = vmatprep.subr.mxu0 0.0
    %3830 = vmatpush1.msra.mxu0 %v299
    %3831 = vmatprep.subr.mxu0 0.0
    %3832 = vmatpush1.msra.mxu0 %v300
    %3833 = vmatprep.subr.mxu0 0.0
    %3834 = vmatpush1.msra.mxu0 %v301
    %3835 = vmatprep.subr.mxu0 0.0
    %3836 = vmatpush1.msra.mxu0 %v302
    %3837 = vmatprep.subr.mxu0 0.0
    %3838 = vmatpush1.msra.mxu0 %v303
    %3839 = vmatprep.subr.mxu0 0.0
    %3840 = vmatpush1.msra.mxu0 %v304
    %3841 = vmatprep.subr.mxu0 0.0
    %3842 = vmatpush1.msra.mxu0 %v305
    %3843 = vmatprep.subr.mxu0 0.0
    %3844 = vmatpush1.msra.mxu0 %v306
    %3845 = vmatprep.subr.mxu0 0.0
    %3846 = vmatpush1.msra.mxu0 %v307
    %3847 = vmatprep.subr.mxu0 0.0
    %3848 = vmatpush1.msra.mxu0 %v308
    %3849 = vmatprep.subr.mxu0 0.0
    %3850 = vmatpush1.msra.mxu0 %v309
    %3851 = vmatprep.subr.mxu0 0.0
    %3852 = vmatpush1.msra.mxu0 %v310
    %3853 = vmatprep.subr.mxu0 0.0
    %3854 = vmatpush1.msra.mxu0 %v311
    %3855 = vmatprep.mubr.f32.mxu0 %v3728
    %3856 = vmatmul.mubr.f32.gmra.mrb[0].mxu0 %v3727
    %v3857 = vpop.f32.mrb[0].mxu0
    %v3858 = vadd.f32 0.0, %v3857
    %v3859 = vpop.f32.mrb[0].mxu0
    %3860 = vmatprep.mubr.f32.mxu0 %v3732
    %3861 = vmatmul.mubr.f32.gmra.mrb[0].mxu0 %v3731
    %v3862 = vpop.f32.mrb[0].mxu0
    %v3863 = vadd.f32 0.0, %v3862
    %v3864 = vpop.f32.mrb[0].mxu0
    %3865 = vmatprep.mubr.f32.mxu0 %v3736
    %3866 = vmatmul.mubr.f32.gmra.mrb[0].mxu0 %v3735
    %v3867 = vpop.f32.mrb[0].mxu0
    %v3868 = vadd.f32 0.0, %v3867
    %v3869 = vpop.f32.mrb[0].mxu0
    %3870 = vmatprep.mubr.f32.mxu0 %v3740
    %3871 = vmatmul.mubr.f32.gmra.mrb[0].mxu0 %v3739
    %v3872 = vpop.f32.mrb[0].mxu0
    %v3873 = vadd.f32 0.0, %v3872
    %v3874 = vpop.f32.mrb[0].mxu0
    %3875 = vmatprep.mubr.f32.mxu0 %v3744
    %3876 = vmatmul.mubr.f32.gmra.mrb[0].mxu0 %v3743
    %v3877 = vpop.f32.mrb[0].mxu0
    %v3878 = vadd.f32 0.0, %v3877
    %v3879 = vpop.f32.mrb[0].mxu0
    %3880 = vmatprep.mubr.f32.mxu0 %v3748
    %3881 = vmatmul.mubr.f32.gmra.mrb[0].mxu0 %v3747
    %v3882 = vpop.f32.mrb[0].mxu0
    %v3883 = vadd.f32 0.0, %v3882
    %v3884 = vpop.f32.mrb[0].mxu0
    %3885 = vmatprep.mubr.f32.mxu0 %v3752
    %3886 = vmatmul.mubr.f32.gmra.mrb[0].mxu0 %v3751
    %v3887 = vpop.f32.mrb[0].mxu0
    %v3888 = vadd.f32 0.0, %v3887
    %v3889 = vpop.f32.mrb[0].mxu0
    %3890 = vmatprep.mubr.f32.mxu0 %v3756
    %3891 = vmatmul.mubr.f32.gmra.mrb[0].mxu0 %v3755
    %v3892 = vpop.f32.mrb[0].mxu0
    %v3893 = vadd.f32 0.0, %v3892
    %v3894 = vpop.f32.mrb[0].mxu0
    %3895 = vmatprep.mubr.f32.mxu0 %v3760
    %3896 = vmatmul.mubr.f32.gmra.mrb[0].mxu0 %v3759
    %v3897 = vpop.f32.mrb[0].mxu0
    %v3898 = vadd.f32 0.0, %v3897
    %v3899 = vpop.f32.mrb[0].mxu0
    %3900 = vmatprep.mubr.f32.mxu0 %v3764
    %3901 = vmatmul.mubr.f32.gmra.mrb[0].mxu0 %v3763
    %v3902 = vpop.f32.mrb[0].mxu0
    %v3903 = vadd.f32 0.0, %v3902
    %v3904 = vpop.f32.mrb[0].mxu0
    %3905 = vmatprep.mubr.f32.mxu0 %v3768
    %3906 = vmatmul.mubr.f32.gmra.mrb[0].mxu0 %v3767
    %v3907 = vpop.f32.mrb[0].mxu0
    %v3908 = vadd.f32 0.0, %v3907
    %v3909 = vpop.f32.mrb[0].mxu0
    %3910 = vmatprep.mubr.f32.mxu0 %v3772
    %3911 = vmatmul.mubr.f32.gmra.mrb[0].mxu0 %v3771
    %v3912 = vpop.f32.mrb[0].mxu0
    %v3913 = vadd.f32 0.0, %v3912
    %v3914 = vpop.f32.mrb[0].mxu0
    %3915 = vmatprep.mubr.f32.mxu0 %v3776
    %3916 = vmatmul.mubr.f32.gmra.mrb[0].mxu0 %v3775
    %v3917 = vpop.f32.mrb[0].mxu0
    %v3918 = vadd.f32 0.0, %v3917
    %v3919 = vpop.f32.mrb[0].mxu0
    %3920 = vmatprep.mubr.f32.mxu0 %v3780
    %3921 = vmatmul.mubr.f32.gmra.mrb[0].mxu0 %v3779
    %v3922 = vpop.f32.mrb[0].mxu0
    %v3923 = vadd.f32 0.0, %v3922
    %v3924 = vpop.f32.mrb[0].mxu0
    %3925 = vmatprep.mubr.f32.mxu0 %v3784
    %3926 = vmatmul.mubr.f32.gmra.mrb[0].mxu0 %v3783
    %v3927 = vpop.f32.mrb[0].mxu0
    %v3928 = vadd.f32 0.0, %v3927
    %v3929 = vpop.f32.mrb[0].mxu0
    %3930 = vmatprep.mubr.f32.mxu0 %v3788
    %3931 = vmatmul.mubr.f32.gmra.mrb[0].mxu0 %v3787
    %v3932 = vpop.f32.mrb[0].mxu0
    %v3933 = vadd.f32 0.0, %v3932
    %v3934 = vpop.f32.mrb[0].mxu0
    %3935 = vdwg.mxu0
    %3936 = vmatprep.subr.mxu0 0.0
    %3937 = vmatpush1.msra.mxu0 %v312
    %3938 = vmatprep.subr.mxu0 0.0
    %3939 = vmatpush1.msra.mxu0 %v313
    %3940 = vmatprep.subr.mxu0 0.0
    %3941 = vmatpush1.msra.mxu0 %v314
    %3942 = vmatprep.subr.mxu0 0.0
    %3943 = vmatpush1.msra.mxu0 %v315
    %3944 = vmatprep.subr.mxu0 0.0
    %3945 = vmatpush1.msra.mxu0 %v316
    %3946 = vmatprep.subr.mxu0 0.0
    %3947 = vmatpush1.msra.mxu0 %v317
    %3948 = vmatprep.subr.mxu0 0.0
    %3949 = vmatpush1.msra.mxu0 %v318
    %3950 = vmatprep.subr.mxu0 0.0
    %3951 = vmatpush1.msra.mxu0 %v319
    %3952 = vmatprep.subr.mxu0 0.0
    %3953 = vmatpush1.msra.mxu0 %v320
    %3954 = vmatprep.subr.mxu0 0.0
    %3955 = vmatpush1.msra.mxu0 %v321
    %3956 = vmatprep.subr.mxu0 0.0
    %3957 = vmatpush1.msra.mxu0 %v322
    %3958 = vmatprep.subr.mxu0 0.0
    %3959 = vmatpush1.msra.mxu0 %v323
    %3960 = vmatprep.subr.mxu0 0.0
    %3961 = vmatpush1.msra.mxu0 %v324
    %3962 = vmatprep.subr.mxu0 0.0
    %3963 = vmatpush1.msra.mxu0 %v325
    %3964 = vmatprep.subr.mxu0 0.0
    %3965 = vmatpush1.msra.mxu0 %v326
    %3966 = vmatprep.subr.mxu0 0.0
    %3967 = vmatpush1.msra.mxu0 %v327
    %3968 = vmatprep.subr.mxu0 0.0
    %3969 = vmatpush1.msra.mxu0 %v328
    %3970 = vmatprep.subr.mxu0 0.0
    %3971 = vmatpush1.msra.mxu0 %v329
    %3972 = vmatprep.subr.mxu0 0.0
    %3973 = vmatpush1.msra.mxu0 %v330
    %3974 = vmatprep.subr.mxu0 0.0
    %3975 = vmatpush1.msra.mxu0 %v331
    %3976 = vmatprep.subr.mxu0 0.0
    %3977 = vmatpush1.msra.mxu0 %v332
    %3978 = vmatprep.subr.mxu0 0.0
    %3979 = vmatpush1.msra.mxu0 %v333
    %3980 = vmatprep.subr.mxu0 0.0
    %3981 = vmatpush1.msra.mxu0 %v334
    %3982 = vmatprep.subr.mxu0 0.0
    %3983 = vmatpush1.msra.mxu0 %v335
    %3984 = vmatprep.subr.mxu0 0.0
    %3985 = vmatpush1.msra.mxu0 %v336
    %3986 = vmatprep.subr.mxu0 0.0
    %3987 = vmatpush1.msra.mxu0 %v337
    %3988 = vmatprep.subr.mxu0 0.0
    %3989 = vmatpush1.msra.mxu0 %v338
    %3990 = vmatprep.subr.mxu0 0.0
    %3991 = vmatpush1.msra.mxu0 %v339
    %3992 = vmatprep.subr.mxu0 0.0
    %3993 = vmatpush1.msra.mxu0 %v340
    %3994 = vmatprep.subr.mxu0 0.0
    %3995 = vmatpush1.msra.mxu0 %v341
    %3996 = vmatprep.subr.mxu0 0.0
    %3997 = vmatpush1.msra.mxu0 %v342
    %3998 = vmatprep.subr.mxu0 0.0
    %3999 = vmatpush1.msra.mxu0 %v343
    %4000 = vmatprep.mubr.f32.mxu0 %v3730
    %4001 = vmatmul.mubr.f32.gmra.mrb[0].mxu0 %v3729
    %v4002 = vpop.f32.mrb[0].mxu0
    %v4003 = vadd.f32 %v3858, %v4002
    %v4004 = vpop.f32.mrb[0].mxu0
    %4005 = vmatprep.mubr.f32.mxu0 %v3734
    %4006 = vmatmul.mubr.f32.gmra.mrb[0].mxu0 %v3733
    %v4007 = vpop.f32.mrb[0].mxu0
    %v4008 = vadd.f32 %v3863, %v4007
    %v4009 = vpop.f32.mrb[0].mxu0
    %4010 = vmatprep.mubr.f32.mxu0 %v3738
    %4011 = vmatmul.mubr.f32.gmra.mrb[0].mxu0 %v3737
    %v4012 = vpop.f32.mrb[0].mxu0
    %v4013 = vadd.f32 %v3868, %v4012
    %v4014 = vpop.f32.mrb[0].mxu0
    %4015 = vmatprep.mubr.f32.mxu0 %v3742
    %4016 = vmatmul.mubr.f32.gmra.mrb[0].mxu0 %v3741
    %v4017 = vpop.f32.mrb[0].mxu0
    %v4018 = vadd.f32 %v3873, %v4017
    %v4019 = vpop.f32.mrb[0].mxu0
    %4020 = vmatprep.mubr.f32.mxu0 %v3746
    %4021 = vmatmul.mubr.f32.gmra.mrb[0].mxu0 %v3745
    %v4022 = vpop.f32.mrb[0].mxu0
    %v4023 = vadd.f32 %v3878, %v4022
    %v4024 = vpop.f32.mrb[0].mxu0
    %4025 = vmatprep.mubr.f32.mxu0 %v3750
    %4026 = vmatmul.mubr.f32.gmra.mrb[0].mxu0 %v3749
    %v4027 = vpop.f32.mrb[0].mxu0
    %v4028 = vadd.f32 %v3883, %v4027
    %v4029 = vpop.f32.mrb[0].mxu0
    %4030 = vmatprep.mubr.f32.mxu0 %v3754
    %4031 = vmatmul.mubr.f32.gmra.mrb[0].mxu0 %v3753
    %v4032 = vpop.f32.mrb[0].mxu0
    %v4033 = vadd.f32 %v3888, %v4032
    %v4034 = vpop.f32.mrb[0].mxu0
    %4035 = vmatprep.mubr.f32.mxu0 %v3758
    %4036 = vmatmul.mubr.f32.gmra.mrb[0].mxu0 %v3757
    %v4037 = vpop.f32.mrb[0].mxu0
    %v4038 = vadd.f32 %v3893, %v4037
    %v4039 = vpop.f32.mrb[0].mxu0
    %4040 = vmatprep.mubr.f32.mxu0 %v3762
    %4041 = vmatmul.mubr.f32.gmra.mrb[0].mxu0 %v3761
    %v4042 = vpop.f32.mrb[0].mxu0
    %v4043 = vadd.f32 %v3898, %v4042
    %v4044 = vpop.f32.mrb[0].mxu0
    %4045 = vmatprep.mubr.f32.mxu0 %v3766
    %4046 = vmatmul.mubr.f32.gmra.mrb[0].mxu0 %v3765
    %v4047 = vpop.f32.mrb[0].mxu0
    %v4048 = vadd.f32 %v3903, %v4047
    %v4049 = vpop.f32.mrb[0].mxu0
    %4050 = vmatprep.mubr.f32.mxu0 %v3770
    %4051 = vmatmul.mubr.f32.gmra.mrb[0].mxu0 %v3769
    %v4052 = vpop.f32.mrb[0].mxu0
    %v4053 = vadd.f32 %v3908, %v4052
    %v4054 = vpop.f32.mrb[0].mxu0
    %4055 = vmatprep.mubr.f32.mxu0 %v3774
    %4056 = vmatmul.mubr.f32.gmra.mrb[0].mxu0 %v3773
    %v4057 = vpop.f32.mrb[0].mxu0
    %v4058 = vadd.f32 %v3913, %v4057
    %v4059 = vpop.f32.mrb[0].mxu0
    %4060 = vmatprep.mubr.f32.mxu0 %v3778
    %4061 = vmatmul.mubr.f32.gmra.mrb[0].mxu0 %v3777
    %v4062 = vpop.f32.mrb[0].mxu0
    %v4063 = vadd.f32 %v3918, %v4062
    %v4064 = vpop.f32.mrb[0].mxu0
    %4065 = vmatprep.mubr.f32.mxu0 %v3782
    %4066 = vmatmul.mubr.f32.gmra.mrb[0].mxu0 %v3781
    %v4067 = vpop.f32.mrb[0].mxu0
    %v4068 = vadd.f32 %v3923, %v4067
    %v4069 = vpop.f32.mrb[0].mxu0
    %4070 = vmatprep.mubr.f32.mxu0 %v3786
    %4071 = vmatmul.mubr.f32.gmra.mrb[0].mxu0 %v3785
    %v4072 = vpop.f32.mrb[0].mxu0
    %v4073 = vadd.f32 %v3928, %v4072
    %v4074 = vpop.f32.mrb[0].mxu0
    %4075 = vmatprep.mubr.f32.mxu0 %v3790
    %4076 = vmatmul.mubr.f32.gmra.mrb[0].mxu0 %v3789
    %v4077 = vpop.f32.mrb[0].mxu0
    %v4078 = vadd.f32 %v3933, %v4077
    %v4079 = vpop.f32.mrb[0].mxu0
    %4080 = vdwg.mxu0
    %s4081 = scalar_lea.vmem [#allocation5], 24
    %v4082 = vld [vmem:[%s4081] sm:$0x7]
    %v4084 = vsel %vm1056, %v4003, 0
    %v4087 = vsel %vm1056, %v4008, 0
    %v4090 = vsel %vm1056, %v4013, 0
    %v4093 = vsel %vm1056, %v4018, 0
    %v4096 = vsel %vm1056, %v4023, 0
    %v4099 = vsel %vm1056, %v4028, 0
    %v4102 = vsel %vm1056, %v4033, 0
    %v4105 = vsel %vm1056, %v4038, 0
    %v4108 = vsel %vm1056, %v4043, 0
    %v4111 = vsel %vm1056, %v4048, 0
    %v4114 = vsel %vm1056, %v4053, 0
    %v4117 = vsel %vm1056, %v4058, 0
    %v4120 = vsel %vm1056, %v4063, 0
    %v4123 = vsel %vm1056, %v4068, 0
    %v4126 = vsel %vm1056, %v4073, 0
    %v4129 = vsel %vm1056, %v4078, 0
    %v4132 = vsel %vm1105, %v4082, 0
    %4134 = vmatprep.subr.mxu0 0.0
    %4135 = vmatpush1.msra.mxu0 %v4132
    %4136 = vmatprep.subr.mxu0 0.0
    %4137 = vmatpush1.msra.mxu0 0.0
    %4138 = vmatprep.subr.mxu0 0.0
    %4139 = vmatpush1.msra.mxu0 0.0
    %4140 = vmatprep.subr.mxu0 0.0
    %4141 = vmatpush1.msra.mxu0 0.0
    %4142 = vmatprep.subr.mxu0 0.0
    %4143 = vmatpush1.msra.mxu0 0.0
    %4144 = vmatprep.subr.mxu0 0.0
    %4145 = vmatpush1.msra.mxu0 0.0
    %4146 = vmatprep.subr.mxu0 0.0
    %4147 = vmatpush1.msra.mxu0 0.0
    %4148 = vmatprep.subr.mxu0 0.0
    %4149 = vmatpush1.msra.mxu0 0.0
    %4150 = vmatprep.subr.mxu0 0.0
    %4151 = vmatpush1.msra.mxu0 0.0
    %4152 = vmatprep.subr.mxu0 0.0
    %4153 = vmatpush1.msra.mxu0 0.0
    %4154 = vmatprep.subr.mxu0 0.0
    %4155 = vmatpush1.msra.mxu0 0.0
    %4156 = vmatprep.subr.mxu0 0.0
    %4157 = vmatpush1.msra.mxu0 0.0
    %4158 = vmatprep.subr.mxu0 0.0
    %4159 = vmatpush1.msra.mxu0 0.0
    %4160 = vmatprep.subr.mxu0 0.0
    %4161 = vmatpush1.msra.mxu0 0.0
    %4162 = vmatprep.subr.mxu0 0.0
    %4163 = vmatpush1.msra.mxu0 0.0
    %4164 = vmatprep.subr.mxu0 0.0
    %4165 = vmatpush1.msra.mxu0 0.0
    %4166 = vmatprep.subr.mxu0 0.0
    %4167 = vmatpush1.msra.mxu0 0.0
    %4168 = vmatprep.subr.mxu0 0.0
    %4169 = vmatpush1.msra.mxu0 0.0
    %4170 = vmatprep.subr.mxu0 0.0
    %4171 = vmatpush1.msra.mxu0 0.0
    %4172 = vmatprep.subr.mxu0 0.0
    %4173 = vmatpush1.msra.mxu0 0.0
    %4174 = vmatprep.subr.mxu0 0.0
    %4175 = vmatpush1.msra.mxu0 0.0
    %4176 = vmatprep.subr.mxu0 0.0
    %4177 = vmatpush1.msra.mxu0 0.0
    %4178 = vmatprep.subr.mxu0 0.0
    %4179 = vmatpush1.msra.mxu0 0.0
    %4180 = vmatprep.subr.mxu0 0.0
    %4181 = vmatpush1.msra.mxu0 0.0
    %4182 = vmatprep.subr.mxu0 0.0
    %4183 = vmatpush1.msra.mxu0 0.0
    %4184 = vmatprep.subr.mxu0 0.0
    %4185 = vmatpush1.msra.mxu0 0.0
    %4186 = vmatprep.subr.mxu0 0.0
    %4187 = vmatpush1.msra.mxu0 0.0
    %4188 = vmatprep.subr.mxu0 0.0
    %4189 = vmatpush1.msra.mxu0 0.0
    %4190 = vmatprep.subr.mxu0 0.0
    %4191 = vmatpush1.msra.mxu0 0.0
    %4192 = vmatprep.subr.mxu0 0.0
    %4193 = vmatpush1.msra.mxu0 0.0
    %4194 = vmatprep.subr.mxu0 0.0
    %4195 = vmatpush1.msra.mxu0 0.0
    %4196 = vmatprep.subr.mxu0 0.0
    %4197 = vmatpush1.msra.mxu0 0.0
    %4198 = vmatprep.mubr.f32.mxu0 0.0
    %4199 = vmatmul.mubr.f32.gmra.mrb[0].mxu0 %v4084
    %v4200 = vpop.f32.mrb[0].mxu0
    %v4201 = vadd.f32 0.0, %v4200
    %v4202 = vpop.f32.mrb[0].mxu0
    %4203 = vmatprep.mubr.f32.mxu0 0.0
    %4204 = vmatmul.mubr.f32.gmra.mrb[0].mxu0 %v4087
    %v4205 = vpop.f32.mrb[0].mxu0
    %v4206 = vadd.f32 0.0, %v4205
    %v4207 = vpop.f32.mrb[0].mxu0
    %4208 = vmatprep.mubr.f32.mxu0 0.0
    %4209 = vmatmul.mubr.f32.gmra.mrb[0].mxu0 %v4090
    %v4210 = vpop.f32.mrb[0].mxu0
    %v4211 = vadd.f32 0.0, %v4210
    %v4212 = vpop.f32.mrb[0].mxu0
    %4213 = vmatprep.mubr.f32.mxu0 0.0
    %4214 = vmatmul.mubr.f32.gmra.mrb[0].mxu0 %v4093
    %v4215 = vpop.f32.mrb[0].mxu0
    %v4216 = vadd.f32 0.0, %v4215
    %v4217 = vpop.f32.mrb[0].mxu0
    %4218 = vmatprep.mubr.f32.mxu0 0.0
    %4219 = vmatmul.mubr.f32.gmra.mrb[0].mxu0 %v4096
    %v4220 = vpop.f32.mrb[0].mxu0
    %v4221 = vadd.f32 0.0, %v4220
    %v4222 = vpop.f32.mrb[0].mxu0
    %4223 = vmatprep.mubr.f32.mxu0 0.0
    %4224 = vmatmul.mubr.f32.gmra.mrb[0].mxu0 %v4099
    %v4225 = vpop.f32.mrb[0].mxu0
    %v4226 = vadd.f32 0.0, %v4225
    %v4227 = vpop.f32.mrb[0].mxu0
    %4228 = vmatprep.mubr.f32.mxu0 0.0
    %4229 = vmatmul.mubr.f32.gmra.mrb[0].mxu0 %v4102
    %v4230 = vpop.f32.mrb[0].mxu0
    %v4231 = vadd.f32 0.0, %v4230
    %v4232 = vpop.f32.mrb[0].mxu0
    %4233 = vmatprep.mubr.f32.mxu0 0.0
    %4234 = vmatmul.mubr.f32.gmra.mrb[0].mxu0 %v4105
    %v4235 = vpop.f32.mrb[0].mxu0
    %v4236 = vadd.f32 0.0, %v4235
    %v4237 = vpop.f32.mrb[0].mxu0
    %4238 = vmatprep.mubr.f32.mxu0 0.0
    %4239 = vmatmul.mubr.f32.gmra.mrb[0].mxu0 %v4108
    %v4240 = vpop.f32.mrb[0].mxu0
    %v4241 = vadd.f32 0.0, %v4240
    %v4242 = vpop.f32.mrb[0].mxu0
    %4243 = vmatprep.mubr.f32.mxu0 0.0
    %4244 = vmatmul.mubr.f32.gmra.mrb[0].mxu0 %v4111
    %v4245 = vpop.f32.mrb[0].mxu0
    %v4246 = vadd.f32 0.0, %v4245
    %v4247 = vpop.f32.mrb[0].mxu0
    %4248 = vmatprep.mubr.f32.mxu0 0.0
    %4249 = vmatmul.mubr.f32.gmra.mrb[0].mxu0 %v4114
    %v4250 = vpop.f32.mrb[0].mxu0
    %v4251 = vadd.f32 0.0, %v4250
    %v4252 = vpop.f32.mrb[0].mxu0
    %4253 = vmatprep.mubr.f32.mxu0 0.0
    %4254 = vmatmul.mubr.f32.gmra.mrb[0].mxu0 %v4117
    %v4255 = vpop.f32.mrb[0].mxu0
    %v4256 = vadd.f32 0.0, %v4255
    %v4257 = vpop.f32.mrb[0].mxu0
    %4258 = vmatprep.mubr.f32.mxu0 0.0
    %4259 = vmatmul.mubr.f32.gmra.mrb[0].mxu0 %v4120
    %v4260 = vpop.f32.mrb[0].mxu0
    %v4261 = vadd.f32 0.0, %v4260
    %v4262 = vpop.f32.mrb[0].mxu0
    %4263 = vmatprep.mubr.f32.mxu0 0.0
    %4264 = vmatmul.mubr.f32.gmra.mrb[0].mxu0 %v4123
    %v4265 = vpop.f32.mrb[0].mxu0
    %v4266 = vadd.f32 0.0, %v4265
    %v4267 = vpop.f32.mrb[0].mxu0
    %4268 = vmatprep.mubr.f32.mxu0 0.0
    %4269 = vmatmul.mubr.f32.gmra.mrb[0].mxu0 %v4126
    %v4270 = vpop.f32.mrb[0].mxu0
    %v4271 = vadd.f32 0.0, %v4270
    %v4272 = vpop.f32.mrb[0].mxu0
    %4273 = vmatprep.mubr.f32.mxu0 0.0
    %4274 = vmatmul.mubr.f32.gmra.mrb[0].mxu0 %v4129
    %v4275 = vpop.f32.mrb[0].mxu0
    %v4276 = vadd.f32 0.0, %v4275
    %v4277 = vpop.f32.mrb[0].mxu0
    %4278 = vdwg.mxu0
    %v4279 = vadd.f32 %v3710, %v4201
    %v4280 = vadd.f32 %v3711, %v4206
    %v4281 = vadd.f32 %v3712, %v4211
    %v4282 = vadd.f32 %v3713, %v4216
    %v4283 = vadd.f32 %v3714, %v4221
    %v4284 = vadd.f32 %v3715, %v4226
    %v4285 = vadd.f32 %v3716, %v4231
    %v4286 = vadd.f32 %v3717, %v4236
    %v4287 = vadd.f32 %v3718, %v4241
    %v4288 = vadd.f32 %v3719, %v4246
    %v4289 = vadd.f32 %v3720, %v4251
    %v4290 = vadd.f32 %v3721, %v4256
    %v4291 = vadd.f32 %v3722, %v4261
    %v4292 = vadd.f32 %v3723, %v4266
    %v4293 = vadd.f32 %v3724, %v4271
    %v4294 = vadd.f32 %v3725, %v4276
    %s4295 = scalar_lea.vmem [#allocation3], 3584
    %v4296 = vld [vmem:[%s4295] sm:$0xff]
    %v4297 = vld [vmem:[%s4295 + $0x8] sm:$0xff]
    %v4298 = vld [vmem:[%s4295 + $0x10] sm:$0xff]
    %v4299 = vld [vmem:[%s4295 + $0x18] sm:$0xff]
    %v4300 = vld [vmem:[%s4295 + $0x20] sm:$0xff]
    %v4301 = vld [vmem:[%s4295 + $0x28] sm:$0xff]
    %v4302 = vld [vmem:[%s4295 + $0x30] sm:$0xff]
    %v4303 = vld [vmem:[%s4295 + $0x38] sm:$0xff]
    %v4304 = vld [vmem:[%s4295 + $0x40] sm:$0xff]
    %v4305 = vld [vmem:[%s4295 + $0x48] sm:$0xff]
    %v4306 = vld [vmem:[%s4295 + $0x50] sm:$0xff]
    %v4307 = vld [vmem:[%s4295 + $0x58] sm:$0xff]
    %v4308 = vld [vmem:[%s4295 + $0x60] sm:$0xff]
    %v4309 = vld [vmem:[%s4295 + $0x68] sm:$0xff]
    %v4310 = vld [vmem:[%s4295 + $0x70] sm:$0xff]
    %v4311 = vld [vmem:[%s4295 + $0x78] sm:$0xff]
    %v4312 = vld [vmem:[%s4295 + $0x80] sm:$0xff]
    %v4313 = vld [vmem:[%s4295 + $0x88] sm:$0xff]
    %v4314 = vld [vmem:[%s4295 + $0x90] sm:$0xff]
    %v4315 = vld [vmem:[%s4295 + $0x98] sm:$0xff]
    %v4316 = vld [vmem:[%s4295 + $0xa0] sm:$0xff]
    %v4317 = vld [vmem:[%s4295 + $0xa8] sm:$0xff]
    %v4318 = vld [vmem:[%s4295 + $0xb0] sm:$0xff]
    %v4319 = vld [vmem:[%s4295 + $0xb8] sm:$0xff]
    %v4320 = vld [vmem:[%s4295 + $0xc0] sm:$0xff]
    %v4321 = vld [vmem:[%s4295 + $0xc8] sm:$0xff]
    %v4322 = vld [vmem:[%s4295 + $0xd0] sm:$0xff]
    %v4323 = vld [vmem:[%s4295 + $0xd8] sm:$0xff]
    %v4324 = vld [vmem:[%s4295 + $0xe0] sm:$0xff]
    %v4325 = vld [vmem:[%s4295 + $0xe8] sm:$0xff]
    %v4326 = vld [vmem:[%s4295 + $0xf0] sm:$0xff]
    %v4327 = vld [vmem:[%s4295 + $0xf8] sm:$0xff]
    %v4328 = vld [vmem:[%s4295 + $0x100] sm:$0xff]
    %v4329 = vld [vmem:[%s4295 + $0x108] sm:$0xff]
    %v4330 = vld [vmem:[%s4295 + $0x110] sm:$0xff]
    %v4331 = vld [vmem:[%s4295 + $0x118] sm:$0xff]
    %v4332 = vld [vmem:[%s4295 + $0x120] sm:$0xff]
    %v4333 = vld [vmem:[%s4295 + $0x128] sm:$0xff]
    %v4334 = vld [vmem:[%s4295 + $0x130] sm:$0xff]
    %v4335 = vld [vmem:[%s4295 + $0x138] sm:$0xff]
    %v4336 = vld [vmem:[%s4295 + $0x140] sm:$0xff]
    %v4337 = vld [vmem:[%s4295 + $0x148] sm:$0xff]
    %v4338 = vld [vmem:[%s4295 + $0x150] sm:$0xff]
    %v4339 = vld [vmem:[%s4295 + $0x158] sm:$0xff]
    %v4340 = vld [vmem:[%s4295 + $0x160] sm:$0xff]
    %v4341 = vld [vmem:[%s4295 + $0x168] sm:$0xff]
    %v4342 = vld [vmem:[%s4295 + $0x170] sm:$0xff]
    %v4343 = vld [vmem:[%s4295 + $0x178] sm:$0xff]
    %v4344 = vld [vmem:[%s4295 + $0x180] sm:$0xff]
    %v4345 = vld [vmem:[%s4295 + $0x188] sm:$0xff]
    %v4346 = vld [vmem:[%s4295 + $0x190] sm:$0xff]
    %v4347 = vld [vmem:[%s4295 + $0x198] sm:$0xff]
    %v4348 = vld [vmem:[%s4295 + $0x1a0] sm:$0xff]
    %v4349 = vld [vmem:[%s4295 + $0x1a8] sm:$0xff]
    %v4350 = vld [vmem:[%s4295 + $0x1b0] sm:$0xff]
    %v4351 = vld [vmem:[%s4295 + $0x1b8] sm:$0xff]
    %v4352 = vld [vmem:[%s4295 + $0x1c0] sm:$0xff]
    %v4353 = vld [vmem:[%s4295 + $0x1c8] sm:$0xff]
    %v4354 = vld [vmem:[%s4295 + $0x1d0] sm:$0xff]
    %v4355 = vld [vmem:[%s4295 + $0x1d8] sm:$0xff]
    %v4356 = vld [vmem:[%s4295 + $0x1e0] sm:$0xff]
    %v4357 = vld [vmem:[%s4295 + $0x1e8] sm:$0xff]
    %v4358 = vld [vmem:[%s4295 + $0x1f0] sm:$0xff]
    %v4359 = vld [vmem:[%s4295 + $0x1f8] sm:$0xff]
    %4360 = vmatprep.subr.mxu0 0.0
    %4361 = vmatpush1.msra.mxu0 %v280
    %4362 = vmatprep.subr.mxu0 0.0
    %4363 = vmatpush1.msra.mxu0 %v281
    %4364 = vmatprep.subr.mxu0 0.0
    %4365 = vmatpush1.msra.mxu0 %v282
    %4366 = vmatprep.subr.mxu0 0.0
    %4367 = vmatpush1.msra.mxu0 %v283
    %4368 = vmatprep.subr.mxu0 0.0
    %4369 = vmatpush1.msra.mxu0 %v284
    %4370 = vmatprep.subr.mxu0 0.0
    %4371 = vmatpush1.msra.mxu0 %v285
    %4372 = vmatprep.subr.mxu0 0.0
    %4373 = vmatpush1.msra.mxu0 %v286
    %4374 = vmatprep.subr.mxu0 0.0
    %4375 = vmatpush1.msra.mxu0 %v287
    %4376 = vmatprep.subr.mxu0 0.0
    %4377 = vmatpush1.msra.mxu0 %v288
    %4378 = vmatprep.subr.mxu0 0.0
    %4379 = vmatpush1.msra.mxu0 %v289
    %4380 = vmatprep.subr.mxu0 0.0
    %4381 = vmatpush1.msra.mxu0 %v290
    %4382 = vmatprep.subr.mxu0 0.0
    %4383 = vmatpush1.msra.mxu0 %v291
    %4384 = vmatprep.subr.mxu0 0.0
    %4385 = vmatpush1.msra.mxu0 %v292
    %4386 = vmatprep.subr.mxu0 0.0
    %4387 = vmatpush1.msra.mxu0 %v293
    %4388 = vmatprep.subr.mxu0 0.0
    %4389 = vmatpush1.msra.mxu0 %v294
    %4390 = vmatprep.subr.mxu0 0.0
    %4391 = vmatpush1.msra.mxu0 %v295
    %4392 = vmatprep.subr.mxu0 0.0
    %4393 = vmatpush1.msra.mxu0 %v296
    %4394 = vmatprep.subr.mxu0 0.0
    %4395 = vmatpush1.msra.mxu0 %v297
    %4396 = vmatprep.subr.mxu0 0.0
    %4397 = vmatpush1.msra.mxu0 %v298
    %4398 = vmatprep.subr.mxu0 0.0
    %4399 = vmatpush1.msra.mxu0 %v299
    %4400 = vmatprep.subr.mxu0 0.0
    %4401 = vmatpush1.msra.mxu0 %v300
    %4402 = vmatprep.subr.mxu0 0.0
    %4403 = vmatpush1.msra.mxu0 %v301
    %4404 = vmatprep.subr.mxu0 0.0
    %4405 = vmatpush1.msra.mxu0 %v302
    %4406 = vmatprep.subr.mxu0 0.0
    %4407 = vmatpush1.msra.mxu0 %v303
    %4408 = vmatprep.subr.mxu0 0.0
    %4409 = vmatpush1.msra.mxu0 %v304
    %4410 = vmatprep.subr.mxu0 0.0
    %4411 = vmatpush1.msra.mxu0 %v305
    %4412 = vmatprep.subr.mxu0 0.0
    %4413 = vmatpush1.msra.mxu0 %v306
    %4414 = vmatprep.subr.mxu0 0.0
    %4415 = vmatpush1.msra.mxu0 %v307
    %4416 = vmatprep.subr.mxu0 0.0
    %4417 = vmatpush1.msra.mxu0 %v308
    %4418 = vmatprep.subr.mxu0 0.0
    %4419 = vmatpush1.msra.mxu0 %v309
    %4420 = vmatprep.subr.mxu0 0.0
    %4421 = vmatpush1.msra.mxu0 %v310
    %4422 = vmatprep.subr.mxu0 0.0
    %4423 = vmatpush1.msra.mxu0 %v311
    %4424 = vmatprep.mubr.f32.mxu0 %v4297
    %4425 = vmatmul.mubr.f32.gmra.mrb[0].mxu0 %v4296
    %v4426 = vpop.f32.mrb[0].mxu0
    %v4427 = vadd.f32 0.0, %v4426
    %v4428 = vpop.f32.mrb[0].mxu0
    %4429 = vmatprep.mubr.f32.mxu0 %v4301
    %4430 = vmatmul.mubr.f32.gmra.mrb[0].mxu0 %v4300
    %v4431 = vpop.f32.mrb[0].mxu0
    %v4432 = vadd.f32 0.0, %v4431
    %v4433 = vpop.f32.mrb[0].mxu0
    %4434 = vmatprep.mubr.f32.mxu0 %v4305
    %4435 = vmatmul.mubr.f32.gmra.mrb[0].mxu0 %v4304
    %v4436 = vpop.f32.mrb[0].mxu0
    %v4437 = vadd.f32 0.0, %v4436
    %v4438 = vpop.f32.mrb[0].mxu0
    %4439 = vmatprep.mubr.f32.mxu0 %v4309
    %4440 = vmatmul.mubr.f32.gmra.mrb[0].mxu0 %v4308
    %v4441 = vpop.f32.mrb[0].mxu0
    %v4442 = vadd.f32 0.0, %v4441
    %v4443 = vpop.f32.mrb[0].mxu0
    %4444 = vmatprep.mubr.f32.mxu0 %v4313
    %4445 = vmatmul.mubr.f32.gmra.mrb[0].mxu0 %v4312
    %v4446 = vpop.f32.mrb[0].mxu0
    %v4447 = vadd.f32 0.0, %v4446
    %v4448 = vpop.f32.mrb[0].mxu0
    %4449 = vmatprep.mubr.f32.mxu0 %v4317
    %4450 = vmatmul.mubr.f32.gmra.mrb[0].mxu0 %v4316
    %v4451 = vpop.f32.mrb[0].mxu0
    %v4452 = vadd.f32 0.0, %v4451
    %v4453 = vpop.f32.mrb[0].mxu0
    %4454 = vmatprep.mubr.f32.mxu0 %v4321
    %4455 = vmatmul.mubr.f32.gmra.mrb[0].mxu0 %v4320
    %v4456 = vpop.f32.mrb[0].mxu0
    %v4457 = vadd.f32 0.0, %v4456
    %v4458 = vpop.f32.mrb[0].mxu0
    %4459 = vmatprep.mubr.f32.mxu0 %v4325
    %4460 = vmatmul.mubr.f32.gmra.mrb[0].mxu0 %v4324
    %v4461 = vpop.f32.mrb[0].mxu0
    %v4462 = vadd.f32 0.0, %v4461
    %v4463 = vpop.f32.mrb[0].mxu0
    %4464 = vmatprep.mubr.f32.mxu0 %v4329
    %4465 = vmatmul.mubr.f32.gmra.mrb[0].mxu0 %v4328
    %v4466 = vpop.f32.mrb[0].mxu0
    %v4467 = vadd.f32 0.0, %v4466
    %v4468 = vpop.f32.mrb[0].mxu0
    %4469 = vmatprep.mubr.f32.mxu0 %v4333
    %4470 = vmatmul.mubr.f32.gmra.mrb[0].mxu0 %v4332
    %v4471 = vpop.f32.mrb[0].mxu0
    %v4472 = vadd.f32 0.0, %v4471
    %v4473 = vpop.f32.mrb[0].mxu0
    %4474 = vmatprep.mubr.f32.mxu0 %v4337
    %4475 = vmatmul.mubr.f32.gmra.mrb[0].mxu0 %v4336
    %v4476 = vpop.f32.mrb[0].mxu0
    %v4477 = vadd.f32 0.0, %v4476
    %v4478 = vpop.f32.mrb[0].mxu0
    %4479 = vmatprep.mubr.f32.mxu0 %v4341
    %4480 = vmatmul.mubr.f32.gmra.mrb[0].mxu0 %v4340
    %v4481 = vpop.f32.mrb[0].mxu0
    %v4482 = vadd.f32 0.0, %v4481
    %v4483 = vpop.f32.mrb[0].mxu0
    %4484 = vmatprep.mubr.f32.mxu0 %v4345
    %4485 = vmatmul.mubr.f32.gmra.mrb[0].mxu0 %v4344
    %v4486 = vpop.f32.mrb[0].mxu0
    %v4487 = vadd.f32 0.0, %v4486
    %v4488 = vpop.f32.mrb[0].mxu0
    %4489 = vmatprep.mubr.f32.mxu0 %v4349
    %4490 = vmatmul.mubr.f32.gmra.mrb[0].mxu0 %v4348
    %v4491 = vpop.f32.mrb[0].mxu0
    %v4492 = vadd.f32 0.0, %v4491
    %v4493 = vpop.f32.mrb[0].mxu0
    %4494 = vmatprep.mubr.f32.mxu0 %v4353
    %4495 = vmatmul.mubr.f32.gmra.mrb[0].mxu0 %v4352
    %v4496 = vpop.f32.mrb[0].mxu0
    %v4497 = vadd.f32 0.0, %v4496
    %v4498 = vpop.f32.mrb[0].mxu0
    %4499 = vmatprep.mubr.f32.mxu0 %v4357
    %4500 = vmatmul.mubr.f32.gmra.mrb[0].mxu0 %v4356
    %v4501 = vpop.f32.mrb[0].mxu0
    %v4502 = vadd.f32 0.0, %v4501
    %v4503 = vpop.f32.mrb[0].mxu0
    %4504 = vdwg.mxu0
    %4505 = vmatprep.subr.mxu0 0.0
    %4506 = vmatpush1.msra.mxu0 %v312
    %4507 = vmatprep.subr.mxu0 0.0
    %4508 = vmatpush1.msra.mxu0 %v313
    %4509 = vmatprep.subr.mxu0 0.0
    %4510 = vmatpush1.msra.mxu0 %v314
    %4511 = vmatprep.subr.mxu0 0.0
    %4512 = vmatpush1.msra.mxu0 %v315
    %4513 = vmatprep.subr.mxu0 0.0
    %4514 = vmatpush1.msra.mxu0 %v316
    %4515 = vmatprep.subr.mxu0 0.0
    %4516 = vmatpush1.msra.mxu0 %v317
    %4517 = vmatprep.subr.mxu0 0.0
    %4518 = vmatpush1.msra.mxu0 %v318
    %4519 = vmatprep.subr.mxu0 0.0
    %4520 = vmatpush1.msra.mxu0 %v319
    %4521 = vmatprep.subr.mxu0 0.0
    %4522 = vmatpush1.msra.mxu0 %v320
    %4523 = vmatprep.subr.mxu0 0.0
    %4524 = vmatpush1.msra.mxu0 %v321
    %4525 = vmatprep.subr.mxu0 0.0
    %4526 = vmatpush1.msra.mxu0 %v322
    %4527 = vmatprep.subr.mxu0 0.0
    %4528 = vmatpush1.msra.mxu0 %v323
    %4529 = vmatprep.subr.mxu0 0.0
    %4530 = vmatpush1.msra.mxu0 %v324
    %4531 = vmatprep.subr.mxu0 0.0
    %4532 = vmatpush1.msra.mxu0 %v325
    %4533 = vmatprep.subr.mxu0 0.0
    %4534 = vmatpush1.msra.mxu0 %v326
    %4535 = vmatprep.subr.mxu0 0.0
    %4536 = vmatpush1.msra.mxu0 %v327
    %4537 = vmatprep.subr.mxu0 0.0
    %4538 = vmatpush1.msra.mxu0 %v328
    %4539 = vmatprep.subr.mxu0 0.0
    %4540 = vmatpush1.msra.mxu0 %v329
    %4541 = vmatprep.subr.mxu0 0.0
    %4542 = vmatpush1.msra.mxu0 %v330
    %4543 = vmatprep.subr.mxu0 0.0
    %4544 = vmatpush1.msra.mxu0 %v331
    %4545 = vmatprep.subr.mxu0 0.0
    %4546 = vmatpush1.msra.mxu0 %v332
    %4547 = vmatprep.subr.mxu0 0.0
    %4548 = vmatpush1.msra.mxu0 %v333
    %4549 = vmatprep.subr.mxu0 0.0
    %4550 = vmatpush1.msra.mxu0 %v334
    %4551 = vmatprep.subr.mxu0 0.0
    %4552 = vmatpush1.msra.mxu0 %v335
    %4553 = vmatprep.subr.mxu0 0.0
    %4554 = vmatpush1.msra.mxu0 %v336
    %4555 = vmatprep.subr.mxu0 0.0
    %4556 = vmatpush1.msra.mxu0 %v337
    %4557 = vmatprep.subr.mxu0 0.0
    %4558 = vmatpush1.msra.mxu0 %v338
    %4559 = vmatprep.subr.mxu0 0.0
    %4560 = vmatpush1.msra.mxu0 %v339
    %4561 = vmatprep.subr.mxu0 0.0
    %4562 = vmatpush1.msra.mxu0 %v340
    %4563 = vmatprep.subr.mxu0 0.0
    %4564 = vmatpush1.msra.mxu0 %v341
    %4565 = vmatprep.subr.mxu0 0.0
    %4566 = vmatpush1.msra.mxu0 %v342
    %4567 = vmatprep.subr.mxu0 0.0
    %4568 = vmatpush1.msra.mxu0 %v343
    %4569 = vmatprep.mubr.f32.mxu0 %v4299
    %4570 = vmatmul.mubr.f32.gmra.mrb[0].mxu0 %v4298
    %v4571 = vpop.f32.mrb[0].mxu0
    %v4572 = vadd.f32 %v4427, %v4571
    %v4573 = vpop.f32.mrb[0].mxu0
    %4574 = vmatprep.mubr.f32.mxu0 %v4303
    %4575 = vmatmul.mubr.f32.gmra.mrb[0].mxu0 %v4302
    %v4576 = vpop.f32.mrb[0].mxu0
    %v4577 = vadd.f32 %v4432, %v4576
    %v4578 = vpop.f32.mrb[0].mxu0
    %4579 = vmatprep.mubr.f32.mxu0 %v4307
    %4580 = vmatmul.mubr.f32.gmra.mrb[0].mxu0 %v4306
    %v4581 = vpop.f32.mrb[0].mxu0
    %v4582 = vadd.f32 %v4437, %v4581
    %v4583 = vpop.f32.mrb[0].mxu0
    %4584 = vmatprep.mubr.f32.mxu0 %v4311
    %4585 = vmatmul.mubr.f32.gmra.mrb[0].mxu0 %v4310
    %v4586 = vpop.f32.mrb[0].mxu0
    %v4587 = vadd.f32 %v4442, %v4586
    %v4588 = vpop.f32.mrb[0].mxu0
    %4589 = vmatprep.mubr.f32.mxu0 %v4315
    %4590 = vmatmul.mubr.f32.gmra.mrb[0].mxu0 %v4314
    %v4591 = vpop.f32.mrb[0].mxu0
    %v4592 = vadd.f32 %v4447, %v4591
    %v4593 = vpop.f32.mrb[0].mxu0
    %4594 = vmatprep.mubr.f32.mxu0 %v4319
    %4595 = vmatmul.mubr.f32.gmra.mrb[0].mxu0 %v4318
    %v4596 = vpop.f32.mrb[0].mxu0
    %v4597 = vadd.f32 %v4452, %v4596
    %v4598 = vpop.f32.mrb[0].mxu0
    %4599 = vmatprep.mubr.f32.mxu0 %v4323
    %4600 = vmatmul.mubr.f32.gmra.mrb[0].mxu0 %v4322
    %v4601 = vpop.f32.mrb[0].mxu0
    %v4602 = vadd.f32 %v4457, %v4601
    %v4603 = vpop.f32.mrb[0].mxu0
    %4604 = vmatprep.mubr.f32.mxu0 %v4327
    %4605 = vmatmul.mubr.f32.gmra.mrb[0].mxu0 %v4326
    %v4606 = vpop.f32.mrb[0].mxu0
    %v4607 = vadd.f32 %v4462, %v4606
    %v4608 = vpop.f32.mrb[0].mxu0
    %4609 = vmatprep.mubr.f32.mxu0 %v4331
    %4610 = vmatmul.mubr.f32.gmra.mrb[0].mxu0 %v4330
    %v4611 = vpop.f32.mrb[0].mxu0
    %v4612 = vadd.f32 %v4467, %v4611
    %v4613 = vpop.f32.mrb[0].mxu0
    %4614 = vmatprep.mubr.f32.mxu0 %v4335
    %4615 = vmatmul.mubr.f32.gmra.mrb[0].mxu0 %v4334
    %v4616 = vpop.f32.mrb[0].mxu0
    %v4617 = vadd.f32 %v4472, %v4616
    %v4618 = vpop.f32.mrb[0].mxu0
    %4619 = vmatprep.mubr.f32.mxu0 %v4339
    %4620 = vmatmul.mubr.f32.gmra.mrb[0].mxu0 %v4338
    %v4621 = vpop.f32.mrb[0].mxu0
    %v4622 = vadd.f32 %v4477, %v4621
    %v4623 = vpop.f32.mrb[0].mxu0
    %4624 = vmatprep.mubr.f32.mxu0 %v4343
    %4625 = vmatmul.mubr.f32.gmra.mrb[0].mxu0 %v4342
    %v4626 = vpop.f32.mrb[0].mxu0
    %v4627 = vadd.f32 %v4482, %v4626
    %v4628 = vpop.f32.mrb[0].mxu0
    %4629 = vmatprep.mubr.f32.mxu0 %v4347
    %4630 = vmatmul.mubr.f32.gmra.mrb[0].mxu0 %v4346
    %v4631 = vpop.f32.mrb[0].mxu0
    %v4632 = vadd.f32 %v4487, %v4631
    %v4633 = vpop.f32.mrb[0].mxu0
    %4634 = vmatprep.mubr.f32.mxu0 %v4351
    %4635 = vmatmul.mubr.f32.gmra.mrb[0].mxu0 %v4350
    %v4636 = vpop.f32.mrb[0].mxu0
    %v4637 = vadd.f32 %v4492, %v4636
    %v4638 = vpop.f32.mrb[0].mxu0
    %4639 = vmatprep.mubr.f32.mxu0 %v4355
    %4640 = vmatmul.mubr.f32.gmra.mrb[0].mxu0 %v4354
    %v4641 = vpop.f32.mrb[0].mxu0
    %v4642 = vadd.f32 %v4497, %v4641
    %v4643 = vpop.f32.mrb[0].mxu0
    %4644 = vmatprep.mubr.f32.mxu0 %v4359
    %4645 = vmatmul.mubr.f32.gmra.mrb[0].mxu0 %v4358
    %v4646 = vpop.f32.mrb[0].mxu0
    %v4647 = vadd.f32 %v4502, %v4646
    %v4648 = vpop.f32.mrb[0].mxu0
    %4649 = vdwg.mxu0
    %s4650 = scalar_lea.vmem [#allocation5], 28
    %v4651 = vld [vmem:[%s4650] sm:$0x7]
    %v4653 = vsel %vm1056, %v4572, 0
    %v4656 = vsel %vm1056, %v4577, 0
    %v4659 = vsel %vm1056, %v4582, 0
    %v4662 = vsel %vm1056, %v4587, 0
    %v4665 = vsel %vm1056, %v4592, 0
    %v4668 = vsel %vm1056, %v4597, 0
    %v4671 = vsel %vm1056, %v4602, 0
    %v4674 = vsel %vm1056, %v4607, 0
    %v4677 = vsel %vm1056, %v4612, 0
    %v4680 = vsel %vm1056, %v4617, 0
    %v4683 = vsel %vm1056, %v4622, 0
    %v4686 = vsel %vm1056, %v4627, 0
    %v4689 = vsel %vm1056, %v4632, 0
    %v4692 = vsel %vm1056, %v4637, 0
    %v4695 = vsel %vm1056, %v4642, 0
    %v4698 = vsel %vm1056, %v4647, 0
    %v4701 = vsel %vm1105, %v4651, 0
    %4703 = vmatprep.subr.mxu0 0.0
    %4704 = vmatpush1.msra.mxu0 %v4701
    %4705 = vmatprep.subr.mxu0 0.0
    %4706 = vmatpush1.msra.mxu0 0.0
    %4707 = vmatprep.subr.mxu0 0.0
    %4708 = vmatpush1.msra.mxu0 0.0
    %4709 = vmatprep.subr.mxu0 0.0
    %4710 = vmatpush1.msra.mxu0 0.0
    %4711 = vmatprep.subr.mxu0 0.0
    %4712 = vmatpush1.msra.mxu0 0.0
    %4713 = vmatprep.subr.mxu0 0.0
    %4714 = vmatpush1.msra.mxu0 0.0
    %4715 = vmatprep.subr.mxu0 0.0
    %4716 = vmatpush1.msra.mxu0 0.0
    %4717 = vmatprep.subr.mxu0 0.0
    %4718 = vmatpush1.msra.mxu0 0.0
    %4719 = vmatprep.subr.mxu0 0.0
    %4720 = vmatpush1.msra.mxu0 0.0
    %4721 = vmatprep.subr.mxu0 0.0
    %4722 = vmatpush1.msra.mxu0 0.0
    %4723 = vmatprep.subr.mxu0 0.0
    %4724 = vmatpush1.msra.mxu0 0.0
    %4725 = vmatprep.subr.mxu0 0.0
    %4726 = vmatpush1.msra.mxu0 0.0
    %4727 = vmatprep.subr.mxu0 0.0
    %4728 = vmatpush1.msra.mxu0 0.0
    %4729 = vmatprep.subr.mxu0 0.0
    %4730 = vmatpush1.msra.mxu0 0.0
    %4731 = vmatprep.subr.mxu0 0.0
    %4732 = vmatpush1.msra.mxu0 0.0
    %4733 = vmatprep.subr.mxu0 0.0
    %4734 = vmatpush1.msra.mxu0 0.0
    %4735 = vmatprep.subr.mxu0 0.0
    %4736 = vmatpush1.msra.mxu0 0.0
    %4737 = vmatprep.subr.mxu0 0.0
    %4738 = vmatpush1.msra.mxu0 0.0
    %4739 = vmatprep.subr.mxu0 0.0
    %4740 = vmatpush1.msra.mxu0 0.0
    %4741 = vmatprep.subr.mxu0 0.0
    %4742 = vmatpush1.msra.mxu0 0.0
    %4743 = vmatprep.subr.mxu0 0.0
    %4744 = vmatpush1.msra.mxu0 0.0
    %4745 = vmatprep.subr.mxu0 0.0
    %4746 = vmatpush1.msra.mxu0 0.0
    %4747 = vmatprep.subr.mxu0 0.0
    %4748 = vmatpush1.msra.mxu0 0.0
    %4749 = vmatprep.subr.mxu0 0.0
    %4750 = vmatpush1.msra.mxu0 0.0
    %4751 = vmatprep.subr.mxu0 0.0
    %4752 = vmatpush1.msra.mxu0 0.0
    %4753 = vmatprep.subr.mxu0 0.0
    %4754 = vmatpush1.msra.mxu0 0.0
    %4755 = vmatprep.subr.mxu0 0.0
    %4756 = vmatpush1.msra.mxu0 0.0
    %4757 = vmatprep.subr.mxu0 0.0
    %4758 = vmatpush1.msra.mxu0 0.0
    %4759 = vmatprep.subr.mxu0 0.0
    %4760 = vmatpush1.msra.mxu0 0.0
    %4761 = vmatprep.subr.mxu0 0.0
    %4762 = vmatpush1.msra.mxu0 0.0
    %4763 = vmatprep.subr.mxu0 0.0
    %4764 = vmatpush1.msra.mxu0 0.0
    %4765 = vmatprep.subr.mxu0 0.0
    %4766 = vmatpush1.msra.mxu0 0.0
    %4767 = vmatprep.mubr.f32.mxu0 0.0
    %4768 = vmatmul.mubr.f32.gmra.mrb[0].mxu0 %v4653
    %v4769 = vpop.f32.mrb[0].mxu0
    %v4770 = vadd.f32 0.0, %v4769
    %v4771 = vpop.f32.mrb[0].mxu0
    %4772 = vmatprep.mubr.f32.mxu0 0.0
    %4773 = vmatmul.mubr.f32.gmra.mrb[0].mxu0 %v4656
    %v4774 = vpop.f32.mrb[0].mxu0
    %v4775 = vadd.f32 0.0, %v4774
    %v4776 = vpop.f32.mrb[0].mxu0
    %4777 = vmatprep.mubr.f32.mxu0 0.0
    %4778 = vmatmul.mubr.f32.gmra.mrb[0].mxu0 %v4659
    %v4779 = vpop.f32.mrb[0].mxu0
    %v4780 = vadd.f32 0.0, %v4779
    %v4781 = vpop.f32.mrb[0].mxu0
    %4782 = vmatprep.mubr.f32.mxu0 0.0
    %4783 = vmatmul.mubr.f32.gmra.mrb[0].mxu0 %v4662
    %v4784 = vpop.f32.mrb[0].mxu0
    %v4785 = vadd.f32 0.0, %v4784
    %v4786 = vpop.f32.mrb[0].mxu0
    %4787 = vmatprep.mubr.f32.mxu0 0.0
    %4788 = vmatmul.mubr.f32.gmra.mrb[0].mxu0 %v4665
    %v4789 = vpop.f32.mrb[0].mxu0
    %v4790 = vadd.f32 0.0, %v4789
    %v4791 = vpop.f32.mrb[0].mxu0
    %4792 = vmatprep.mubr.f32.mxu0 0.0
    %4793 = vmatmul.mubr.f32.gmra.mrb[0].mxu0 %v4668
    %v4794 = vpop.f32.mrb[0].mxu0
    %v4795 = vadd.f32 0.0, %v4794
    %v4796 = vpop.f32.mrb[0].mxu0
    %4797 = vmatprep.mubr.f32.mxu0 0.0
    %4798 = vmatmul.mubr.f32.gmra.mrb[0].mxu0 %v4671
    %v4799 = vpop.f32.mrb[0].mxu0
    %v4800 = vadd.f32 0.0, %v4799
    %v4801 = vpop.f32.mrb[0].mxu0
    %4802 = vmatprep.mubr.f32.mxu0 0.0
    %4803 = vmatmul.mubr.f32.gmra.mrb[0].mxu0 %v4674
    %v4804 = vpop.f32.mrb[0].mxu0
    %v4805 = vadd.f32 0.0, %v4804
    %v4806 = vpop.f32.mrb[0].mxu0
    %4807 = vmatprep.mubr.f32.mxu0 0.0
    %4808 = vmatmul.mubr.f32.gmra.mrb[0].mxu0 %v4677
    %v4809 = vpop.f32.mrb[0].mxu0
    %v4810 = vadd.f32 0.0, %v4809
    %v4811 = vpop.f32.mrb[0].mxu0
    %4812 = vmatprep.mubr.f32.mxu0 0.0
    %4813 = vmatmul.mubr.f32.gmra.mrb[0].mxu0 %v4680
    %v4814 = vpop.f32.mrb[0].mxu0
    %v4815 = vadd.f32 0.0, %v4814
    %v4816 = vpop.f32.mrb[0].mxu0
    %4817 = vmatprep.mubr.f32.mxu0 0.0
    %4818 = vmatmul.mubr.f32.gmra.mrb[0].mxu0 %v4683
    %v4819 = vpop.f32.mrb[0].mxu0
    %v4820 = vadd.f32 0.0, %v4819
    %v4821 = vpop.f32.mrb[0].mxu0
    %4822 = vmatprep.mubr.f32.mxu0 0.0
    %4823 = vmatmul.mubr.f32.gmra.mrb[0].mxu0 %v4686
    %v4824 = vpop.f32.mrb[0].mxu0
    %v4825 = vadd.f32 0.0, %v4824
    %v4826 = vpop.f32.mrb[0].mxu0
    %4827 = vmatprep.mubr.f32.mxu0 0.0
    %4828 = vmatmul.mubr.f32.gmra.mrb[0].mxu0 %v4689
    %v4829 = vpop.f32.mrb[0].mxu0
    %v4830 = vadd.f32 0.0, %v4829
    %v4831 = vpop.f32.mrb[0].mxu0
    %4832 = vmatprep.mubr.f32.mxu0 0.0
    %4833 = vmatmul.mubr.f32.gmra.mrb[0].mxu0 %v4692
    %v4834 = vpop.f32.mrb[0].mxu0
    %v4835 = vadd.f32 0.0, %v4834
    %v4836 = vpop.f32.mrb[0].mxu0
    %4837 = vmatprep.mubr.f32.mxu0 0.0
    %4838 = vmatmul.mubr.f32.gmra.mrb[0].mxu0 %v4695
    %v4839 = vpop.f32.mrb[0].mxu0
    %v4840 = vadd.f32 0.0, %v4839
    %v4841 = vpop.f32.mrb[0].mxu0
    %4842 = vmatprep.mubr.f32.mxu0 0.0
    %4843 = vmatmul.mubr.f32.gmra.mrb[0].mxu0 %v4698
    %v4844 = vpop.f32.mrb[0].mxu0
    %v4845 = vadd.f32 0.0, %v4844
    %v4846 = vpop.f32.mrb[0].mxu0
    %4847 = vdwg.mxu0
    %v4848 = vadd.f32 %v4279, %v4770
    %v4849 = vadd.f32 %v4280, %v4775
    %v4850 = vadd.f32 %v4281, %v4780
    %v4851 = vadd.f32 %v4282, %v4785
    %v4852 = vadd.f32 %v4283, %v4790
    %v4853 = vadd.f32 %v4284, %v4795
    %v4854 = vadd.f32 %v4285, %v4800
    %v4855 = vadd.f32 %v4286, %v4805
    %v4856 = vadd.f32 %v4287, %v4810
    %v4857 = vadd.f32 %v4288, %v4815
    %v4858 = vadd.f32 %v4289, %v4820
    %v4859 = vadd.f32 %v4290, %v4825
    %v4860 = vadd.f32 %v4291, %v4830
    %v4861 = vadd.f32 %v4292, %v4835
    %v4862 = vadd.f32 %v4293, %v4840
    %v4863 = vadd.f32 %v4294, %v4845
    %s4864 = scalar_lea.vmem [#allocation3], 4096
    %v4865 = vld [vmem:[%s4864] sm:$0xff]
    %v4866 = vld [vmem:[%s4864 + $0x8] sm:$0xff]
    %v4867 = vld [vmem:[%s4864 + $0x10] sm:$0xff]
    %v4868 = vld [vmem:[%s4864 + $0x18] sm:$0xff]
    %v4869 = vld [vmem:[%s4864 + $0x20] sm:$0xff]
    %v4870 = vld [vmem:[%s4864 + $0x28] sm:$0xff]
    %v4871 = vld [vmem:[%s4864 + $0x30] sm:$0xff]
    %v4872 = vld [vmem:[%s4864 + $0x38] sm:$0xff]
    %v4873 = vld [vmem:[%s4864 + $0x40] sm:$0xff]
    %v4874 = vld [vmem:[%s4864 + $0x48] sm:$0xff]
    %v4875 = vld [vmem:[%s4864 + $0x50] sm:$0xff]
    %v4876 = vld [vmem:[%s4864 + $0x58] sm:$0xff]
    %v4877 = vld [vmem:[%s4864 + $0x60] sm:$0xff]
    %v4878 = vld [vmem:[%s4864 + $0x68] sm:$0xff]
    %v4879 = vld [vmem:[%s4864 + $0x70] sm:$0xff]
    %v4880 = vld [vmem:[%s4864 + $0x78] sm:$0xff]
    %v4881 = vld [vmem:[%s4864 + $0x80] sm:$0xff]
    %v4882 = vld [vmem:[%s4864 + $0x88] sm:$0xff]
    %v4883 = vld [vmem:[%s4864 + $0x90] sm:$0xff]
    %v4884 = vld [vmem:[%s4864 + $0x98] sm:$0xff]
    %v4885 = vld [vmem:[%s4864 + $0xa0] sm:$0xff]
    %v4886 = vld [vmem:[%s4864 + $0xa8] sm:$0xff]
    %v4887 = vld [vmem:[%s4864 + $0xb0] sm:$0xff]
    %v4888 = vld [vmem:[%s4864 + $0xb8] sm:$0xff]
    %v4889 = vld [vmem:[%s4864 + $0xc0] sm:$0xff]
    %v4890 = vld [vmem:[%s4864 + $0xc8] sm:$0xff]
    %v4891 = vld [vmem:[%s4864 + $0xd0] sm:$0xff]
    %v4892 = vld [vmem:[%s4864 + $0xd8] sm:$0xff]
    %v4893 = vld [vmem:[%s4864 + $0xe0] sm:$0xff]
    %v4894 = vld [vmem:[%s4864 + $0xe8] sm:$0xff]
    %v4895 = vld [vmem:[%s4864 + $0xf0] sm:$0xff]
    %v4896 = vld [vmem:[%s4864 + $0xf8] sm:$0xff]
    %v4897 = vld [vmem:[%s4864 + $0x100] sm:$0xff]
    %v4898 = vld [vmem:[%s4864 + $0x108] sm:$0xff]
    %v4899 = vld [vmem:[%s4864 + $0x110] sm:$0xff]
    %v4900 = vld [vmem:[%s4864 + $0x118] sm:$0xff]
    %v4901 = vld [vmem:[%s4864 + $0x120] sm:$0xff]
    %v4902 = vld [vmem:[%s4864 + $0x128] sm:$0xff]
    %v4903 = vld [vmem:[%s4864 + $0x130] sm:$0xff]
    %v4904 = vld [vmem:[%s4864 + $0x138] sm:$0xff]
    %v4905 = vld [vmem:[%s4864 + $0x140] sm:$0xff]
    %v4906 = vld [vmem:[%s4864 + $0x148] sm:$0xff]
    %v4907 = vld [vmem:[%s4864 + $0x150] sm:$0xff]
    %v4908 = vld [vmem:[%s4864 + $0x158] sm:$0xff]
    %v4909 = vld [vmem:[%s4864 + $0x160] sm:$0xff]
    %v4910 = vld [vmem:[%s4864 + $0x168] sm:$0xff]
    %v4911 = vld [vmem:[%s4864 + $0x170] sm:$0xff]
    %v4912 = vld [vmem:[%s4864 + $0x178] sm:$0xff]
    %v4913 = vld [vmem:[%s4864 + $0x180] sm:$0xff]
    %v4914 = vld [vmem:[%s4864 + $0x188] sm:$0xff]
    %v4915 = vld [vmem:[%s4864 + $0x190] sm:$0xff]
    %v4916 = vld [vmem:[%s4864 + $0x198] sm:$0xff]
    %v4917 = vld [vmem:[%s4864 + $0x1a0] sm:$0xff]
    %v4918 = vld [vmem:[%s4864 + $0x1a8] sm:$0xff]
    %v4919 = vld [vmem:[%s4864 + $0x1b0] sm:$0xff]
    %v4920 = vld [vmem:[%s4864 + $0x1b8] sm:$0xff]
    %v4921 = vld [vmem:[%s4864 + $0x1c0] sm:$0xff]
    %v4922 = vld [vmem:[%s4864 + $0x1c8] sm:$0xff]
    %v4923 = vld [vmem:[%s4864 + $0x1d0] sm:$0xff]
    %v4924 = vld [vmem:[%s4864 + $0x1d8] sm:$0xff]
    %v4925 = vld [vmem:[%s4864 + $0x1e0] sm:$0xff]
    %v4926 = vld [vmem:[%s4864 + $0x1e8] sm:$0xff]
    %v4927 = vld [vmem:[%s4864 + $0x1f0] sm:$0xff]
    %v4928 = vld [vmem:[%s4864 + $0x1f8] sm:$0xff]
    %4929 = vmatprep.subr.mxu0 0.0
    %4930 = vmatpush1.msra.mxu0 %v280
    %4931 = vmatprep.subr.mxu0 0.0
    %4932 = vmatpush1.msra.mxu0 %v281
    %4933 = vmatprep.subr.mxu0 0.0
    %4934 = vmatpush1.msra.mxu0 %v282
    %4935 = vmatprep.subr.mxu0 0.0
    %4936 = vmatpush1.msra.mxu0 %v283
    %4937 = vmatprep.subr.mxu0 0.0
    %4938 = vmatpush1.msra.mxu0 %v284
    %4939 = vmatprep.subr.mxu0 0.0
    %4940 = vmatpush1.msra.mxu0 %v285
    %4941 = vmatprep.subr.mxu0 0.0
    %4942 = vmatpush1.msra.mxu0 %v286
    %4943 = vmatprep.subr.mxu0 0.0
    %4944 = vmatpush1.msra.mxu0 %v287
    %4945 = vmatprep.subr.mxu0 0.0
    %4946 = vmatpush1.msra.mxu0 %v288
    %4947 = vmatprep.subr.mxu0 0.0
    %4948 = vmatpush1.msra.mxu0 %v289
    %4949 = vmatprep.subr.mxu0 0.0
    %4950 = vmatpush1.msra.mxu0 %v290
    %4951 = vmatprep.subr.mxu0 0.0
    %4952 = vmatpush1.msra.mxu0 %v291
    %4953 = vmatprep.subr.mxu0 0.0
    %4954 = vmatpush1.msra.mxu0 %v292
    %4955 = vmatprep.subr.mxu0 0.0
    %4956 = vmatpush1.msra.mxu0 %v293
    %4957 = vmatprep.subr.mxu0 0.0
    %4958 = vmatpush1.msra.mxu0 %v294
    %4959 = vmatprep.subr.mxu0 0.0
    %4960 = vmatpush1.msra.mxu0 %v295
    %4961 = vmatprep.subr.mxu0 0.0
    %4962 = vmatpush1.msra.mxu0 %v296
    %4963 = vmatprep.subr.mxu0 0.0
    %4964 = vmatpush1.msra.mxu0 %v297
    %4965 = vmatprep.subr.mxu0 0.0
    %4966 = vmatpush1.msra.mxu0 %v298
    %4967 = vmatprep.subr.mxu0 0.0
    %4968 = vmatpush1.msra.mxu0 %v299
    %4969 = vmatprep.subr.mxu0 0.0
    %4970 = vmatpush1.msra.mxu0 %v300
    %4971 = vmatprep.subr.mxu0 0.0
    %4972 = vmatpush1.msra.mxu0 %v301
    %4973 = vmatprep.subr.mxu0 0.0
    %4974 = vmatpush1.msra.mxu0 %v302
    %4975 = vmatprep.subr.mxu0 0.0
    %4976 = vmatpush1.msra.mxu0 %v303
    %4977 = vmatprep.subr.mxu0 0.0
    %4978 = vmatpush1.msra.mxu0 %v304
    %4979 = vmatprep.subr.mxu0 0.0
    %4980 = vmatpush1.msra.mxu0 %v305
    %4981 = vmatprep.subr.mxu0 0.0
    %4982 = vmatpush1.msra.mxu0 %v306
    %4983 = vmatprep.subr.mxu0 0.0
    %4984 = vmatpush1.msra.mxu0 %v307
    %4985 = vmatprep.subr.mxu0 0.0
    %4986 = vmatpush1.msra.mxu0 %v308
    %4987 = vmatprep.subr.mxu0 0.0
    %4988 = vmatpush1.msra.mxu0 %v309
    %4989 = vmatprep.subr.mxu0 0.0
    %4990 = vmatpush1.msra.mxu0 %v310
    %4991 = vmatprep.subr.mxu0 0.0
    %4992 = vmatpush1.msra.mxu0 %v311
    %4993 = vmatprep.mubr.f32.mxu0 %v4866
    %4994 = vmatmul.mubr.f32.gmra.mrb[0].mxu0 %v4865
    %v4995 = vpop.f32.mrb[0].mxu0
    %v4996 = vadd.f32 0.0, %v4995
    %v4997 = vpop.f32.mrb[0].mxu0
    %4998 = vmatprep.mubr.f32.mxu0 %v4870
    %4999 = vmatmul.mubr.f32.gmra.mrb[0].mxu0 %v4869
    %v5000 = vpop.f32.mrb[0].mxu0
    %v5001 = vadd.f32 0.0, %v5000
    %v5002 = vpop.f32.mrb[0].mxu0
    %5003 = vmatprep.mubr.f32.mxu0 %v4874
    %5004 = vmatmul.mubr.f32.gmra.mrb[0].mxu0 %v4873
    %v5005 = vpop.f32.mrb[0].mxu0
    %v5006 = vadd.f32 0.0, %v5005
    %v5007 = vpop.f32.mrb[0].mxu0
    %5008 = vmatprep.mubr.f32.mxu0 %v4878
    %5009 = vmatmul.mubr.f32.gmra.mrb[0].mxu0 %v4877
    %v5010 = vpop.f32.mrb[0].mxu0
    %v5011 = vadd.f32 0.0, %v5010
    %v5012 = vpop.f32.mrb[0].mxu0
    %5013 = vmatprep.mubr.f32.mxu0 %v4882
    %5014 = vmatmul.mubr.f32.gmra.mrb[0].mxu0 %v4881
    %v5015 = vpop.f32.mrb[0].mxu0
    %v5016 = vadd.f32 0.0, %v5015
    %v5017 = vpop.f32.mrb[0].mxu0
    %5018 = vmatprep.mubr.f32.mxu0 %v4886
    %5019 = vmatmul.mubr.f32.gmra.mrb[0].mxu0 %v4885
    %v5020 = vpop.f32.mrb[0].mxu0
    %v5021 = vadd.f32 0.0, %v5020
    %v5022 = vpop.f32.mrb[0].mxu0
    %5023 = vmatprep.mubr.f32.mxu0 %v4890
    %5024 = vmatmul.mubr.f32.gmra.mrb[0].mxu0 %v4889
    %v5025 = vpop.f32.mrb[0].mxu0
    %v5026 = vadd.f32 0.0, %v5025
    %v5027 = vpop.f32.mrb[0].mxu0
    %5028 = vmatprep.mubr.f32.mxu0 %v4894
    %5029 = vmatmul.mubr.f32.gmra.mrb[0].mxu0 %v4893
    %v5030 = vpop.f32.mrb[0].mxu0
    %v5031 = vadd.f32 0.0, %v5030
    %v5032 = vpop.f32.mrb[0].mxu0
    %5033 = vmatprep.mubr.f32.mxu0 %v4898
    %5034 = vmatmul.mubr.f32.gmra.mrb[0].mxu0 %v4897
    %v5035 = vpop.f32.mrb[0].mxu0
    %v5036 = vadd.f32 0.0, %v5035
    %v5037 = vpop.f32.mrb[0].mxu0
    %5038 = vmatprep.mubr.f32.mxu0 %v4902
    %5039 = vmatmul.mubr.f32.gmra.mrb[0].mxu0 %v4901
    %v5040 = vpop.f32.mrb[0].mxu0
    %v5041 = vadd.f32 0.0, %v5040
    %v5042 = vpop.f32.mrb[0].mxu0
    %5043 = vmatprep.mubr.f32.mxu0 %v4906
    %5044 = vmatmul.mubr.f32.gmra.mrb[0].mxu0 %v4905
    %v5045 = vpop.f32.mrb[0].mxu0
    %v5046 = vadd.f32 0.0, %v5045
    %v5047 = vpop.f32.mrb[0].mxu0
    %5048 = vmatprep.mubr.f32.mxu0 %v4910
    %5049 = vmatmul.mubr.f32.gmra.mrb[0].mxu0 %v4909
    %v5050 = vpop.f32.mrb[0].mxu0
    %v5051 = vadd.f32 0.0, %v5050
    %v5052 = vpop.f32.mrb[0].mxu0
    %5053 = vmatprep.mubr.f32.mxu0 %v4914
    %5054 = vmatmul.mubr.f32.gmra.mrb[0].mxu0 %v4913
    %v5055 = vpop.f32.mrb[0].mxu0
    %v5056 = vadd.f32 0.0, %v5055
    %v5057 = vpop.f32.mrb[0].mxu0
    %5058 = vmatprep.mubr.f32.mxu0 %v4918
    %5059 = vmatmul.mubr.f32.gmra.mrb[0].mxu0 %v4917
    %v5060 = vpop.f32.mrb[0].mxu0
    %v5061 = vadd.f32 0.0, %v5060
    %v5062 = vpop.f32.mrb[0].mxu0
    %5063 = vmatprep.mubr.f32.mxu0 %v4922
    %5064 = vmatmul.mubr.f32.gmra.mrb[0].mxu0 %v4921
    %v5065 = vpop.f32.mrb[0].mxu0
    %v5066 = vadd.f32 0.0, %v5065
    %v5067 = vpop.f32.mrb[0].mxu0
    %5068 = vmatprep.mubr.f32.mxu0 %v4926
    %5069 = vmatmul.mubr.f32.gmra.mrb[0].mxu0 %v4925
    %v5070 = vpop.f32.mrb[0].mxu0
    %v5071 = vadd.f32 0.0, %v5070
    %v5072 = vpop.f32.mrb[0].mxu0
    %5073 = vdwg.mxu0
    %5074 = vmatprep.subr.mxu0 0.0
    %5075 = vmatpush1.msra.mxu0 %v312
    %5076 = vmatprep.subr.mxu0 0.0
    %5077 = vmatpush1.msra.mxu0 %v313
    %5078 = vmatprep.subr.mxu0 0.0
    %5079 = vmatpush1.msra.mxu0 %v314
    %5080 = vmatprep.subr.mxu0 0.0
    %5081 = vmatpush1.msra.mxu0 %v315
    %5082 = vmatprep.subr.mxu0 0.0
    %5083 = vmatpush1.msra.mxu0 %v316
    %5084 = vmatprep.subr.mxu0 0.0
    %5085 = vmatpush1.msra.mxu0 %v317
    %5086 = vmatprep.subr.mxu0 0.0
    %5087 = vmatpush1.msra.mxu0 %v318
    %5088 = vmatprep.subr.mxu0 0.0
    %5089 = vmatpush1.msra.mxu0 %v319
    %5090 = vmatprep.subr.mxu0 0.0
    %5091 = vmatpush1.msra.mxu0 %v320
    %5092 = vmatprep.subr.mxu0 0.0
    %5093 = vmatpush1.msra.mxu0 %v321
    %5094 = vmatprep.subr.mxu0 0.0
    %5095 = vmatpush1.msra.mxu0 %v322
    %5096 = vmatprep.subr.mxu0 0.0
    %5097 = vmatpush1.msra.mxu0 %v323
    %5098 = vmatprep.subr.mxu0 0.0
    %5099 = vmatpush1.msra.mxu0 %v324
    %5100 = vmatprep.subr.mxu0 0.0
    %5101 = vmatpush1.msra.mxu0 %v325
    %5102 = vmatprep.subr.mxu0 0.0
    %5103 = vmatpush1.msra.mxu0 %v326
    %5104 = vmatprep.subr.mxu0 0.0
    %5105 = vmatpush1.msra.mxu0 %v327
    %5106 = vmatprep.subr.mxu0 0.0
    %5107 = vmatpush1.msra.mxu0 %v328
    %5108 = vmatprep.subr.mxu0 0.0
    %5109 = vmatpush1.msra.mxu0 %v329
    %5110 = vmatprep.subr.mxu0 0.0
    %5111 = vmatpush1.msra.mxu0 %v330
    %5112 = vmatprep.subr.mxu0 0.0
    %5113 = vmatpush1.msra.mxu0 %v331
    %5114 = vmatprep.subr.mxu0 0.0
    %5115 = vmatpush1.msra.mxu0 %v332
    %5116 = vmatprep.subr.mxu0 0.0
    %5117 = vmatpush1.msra.mxu0 %v333
    %5118 = vmatprep.subr.mxu0 0.0
    %5119 = vmatpush1.msra.mxu0 %v334
    %5120 = vmatprep.subr.mxu0 0.0
    %5121 = vmatpush1.msra.mxu0 %v335
    %5122 = vmatprep.subr.mxu0 0.0
    %5123 = vmatpush1.msra.mxu0 %v336
    %5124 = vmatprep.subr.mxu0 0.0
    %5125 = vmatpush1.msra.mxu0 %v337
    %5126 = vmatprep.subr.mxu0 0.0
    %5127 = vmatpush1.msra.mxu0 %v338
    %5128 = vmatprep.subr.mxu0 0.0
    %5129 = vmatpush1.msra.mxu0 %v339
    %5130 = vmatprep.subr.mxu0 0.0
    %5131 = vmatpush1.msra.mxu0 %v340
    %5132 = vmatprep.subr.mxu0 0.0
    %5133 = vmatpush1.msra.mxu0 %v341
    %5134 = vmatprep.subr.mxu0 0.0
    %5135 = vmatpush1.msra.mxu0 %v342
    %5136 = vmatprep.subr.mxu0 0.0
    %5137 = vmatpush1.msra.mxu0 %v343
    %5138 = vmatprep.mubr.f32.mxu0 %v4868
    %5139 = vmatmul.mubr.f32.gmra.mrb[0].mxu0 %v4867
    %v5140 = vpop.f32.mrb[0].mxu0
    %v5141 = vadd.f32 %v4996, %v5140
    %v5142 = vpop.f32.mrb[0].mxu0
    %5143 = vmatprep.mubr.f32.mxu0 %v4872
    %5144 = vmatmul.mubr.f32.gmra.mrb[0].mxu0 %v4871
    %v5145 = vpop.f32.mrb[0].mxu0
    %v5146 = vadd.f32 %v5001, %v5145
    %v5147 = vpop.f32.mrb[0].mxu0
    %5148 = vmatprep.mubr.f32.mxu0 %v4876
    %5149 = vmatmul.mubr.f32.gmra.mrb[0].mxu0 %v4875
    %v5150 = vpop.f32.mrb[0].mxu0
    %v5151 = vadd.f32 %v5006, %v5150
    %v5152 = vpop.f32.mrb[0].mxu0
    %5153 = vmatprep.mubr.f32.mxu0 %v4880
    %5154 = vmatmul.mubr.f32.gmra.mrb[0].mxu0 %v4879
    %v5155 = vpop.f32.mrb[0].mxu0
    %v5156 = vadd.f32 %v5011, %v5155
    %v5157 = vpop.f32.mrb[0].mxu0
    %5158 = vmatprep.mubr.f32.mxu0 %v4884
    %5159 = vmatmul.mubr.f32.gmra.mrb[0].mxu0 %v4883
    %v5160 = vpop.f32.mrb[0].mxu0
    %v5161 = vadd.f32 %v5016, %v5160
    %v5162 = vpop.f32.mrb[0].mxu0
    %5163 = vmatprep.mubr.f32.mxu0 %v4888
    %5164 = vmatmul.mubr.f32.gmra.mrb[0].mxu0 %v4887
    %v5165 = vpop.f32.mrb[0].mxu0
    %v5166 = vadd.f32 %v5021, %v5165
    %v5167 = vpop.f32.mrb[0].mxu0
    %5168 = vmatprep.mubr.f32.mxu0 %v4892
    %5169 = vmatmul.mubr.f32.gmra.mrb[0].mxu0 %v4891
    %v5170 = vpop.f32.mrb[0].mxu0
    %v5171 = vadd.f32 %v5026, %v5170
    %v5172 = vpop.f32.mrb[0].mxu0
    %5173 = vmatprep.mubr.f32.mxu0 %v4896
    %5174 = vmatmul.mubr.f32.gmra.mrb[0].mxu0 %v4895
    %v5175 = vpop.f32.mrb[0].mxu0
    %v5176 = vadd.f32 %v5031, %v5175
    %v5177 = vpop.f32.mrb[0].mxu0
    %5178 = vmatprep.mubr.f32.mxu0 %v4900
    %5179 = vmatmul.mubr.f32.gmra.mrb[0].mxu0 %v4899
    %v5180 = vpop.f32.mrb[0].mxu0
    %v5181 = vadd.f32 %v5036, %v5180
    %v5182 = vpop.f32.mrb[0].mxu0
    %5183 = vmatprep.mubr.f32.mxu0 %v4904
    %5184 = vmatmul.mubr.f32.gmra.mrb[0].mxu0 %v4903
    %v5185 = vpop.f32.mrb[0].mxu0
    %v5186 = vadd.f32 %v5041, %v5185
    %v5187 = vpop.f32.mrb[0].mxu0
    %5188 = vmatprep.mubr.f32.mxu0 %v4908
    %5189 = vmatmul.mubr.f32.gmra.mrb[0].mxu0 %v4907
    %v5190 = vpop.f32.mrb[0].mxu0
    %v5191 = vadd.f32 %v5046, %v5190
    %v5192 = vpop.f32.mrb[0].mxu0
    %5193 = vmatprep.mubr.f32.mxu0 %v4912
    %5194 = vmatmul.mubr.f32.gmra.mrb[0].mxu0 %v4911
    %v5195 = vpop.f32.mrb[0].mxu0
    %v5196 = vadd.f32 %v5051, %v5195
    %v5197 = vpop.f32.mrb[0].mxu0
    %5198 = vmatprep.mubr.f32.mxu0 %v4916
    %5199 = vmatmul.mubr.f32.gmra.mrb[0].mxu0 %v4915
    %v5200 = vpop.f32.mrb[0].mxu0
    %v5201 = vadd.f32 %v5056, %v5200
    %v5202 = vpop.f32.mrb[0].mxu0
    %5203 = vmatprep.mubr.f32.mxu0 %v4920
    %5204 = vmatmul.mubr.f32.gmra.mrb[0].mxu0 %v4919
    %v5205 = vpop.f32.mrb[0].mxu0
    %v5206 = vadd.f32 %v5061, %v5205
    %v5207 = vpop.f32.mrb[0].mxu0
    %5208 = vmatprep.mubr.f32.mxu0 %v4924
    %5209 = vmatmul.mubr.f32.gmra.mrb[0].mxu0 %v4923
    %v5210 = vpop.f32.mrb[0].mxu0
    %v5211 = vadd.f32 %v5066, %v5210
    %v5212 = vpop.f32.mrb[0].mxu0
    %5213 = vmatprep.mubr.f32.mxu0 %v4928
    %5214 = vmatmul.mubr.f32.gmra.mrb[0].mxu0 %v4927
    %v5215 = vpop.f32.mrb[0].mxu0
    %v5216 = vadd.f32 %v5071, %v5215
    %v5217 = vpop.f32.mrb[0].mxu0
    %5218 = vdwg.mxu0
    %s5219 = scalar_lea.vmem [#allocation5], 32
    %v5220 = vld [vmem:[%s5219] sm:$0x7]
    %v5222 = vsel %vm1056, %v5141, 0
    %v5225 = vsel %vm1056, %v5146, 0
    %v5228 = vsel %vm1056, %v5151, 0
    %v5231 = vsel %vm1056, %v5156, 0
    %v5234 = vsel %vm1056, %v5161, 0
    %v5237 = vsel %vm1056, %v5166, 0
    %v5240 = vsel %vm1056, %v5171, 0
    %v5243 = vsel %vm1056, %v5176, 0
    %v5246 = vsel %vm1056, %v5181, 0
    %v5249 = vsel %vm1056, %v5186, 0
    %v5252 = vsel %vm1056, %v5191, 0
    %v5255 = vsel %vm1056, %v5196, 0
    %v5258 = vsel %vm1056, %v5201, 0
    %v5261 = vsel %vm1056, %v5206, 0
    %v5264 = vsel %vm1056, %v5211, 0
    %v5267 = vsel %vm1056, %v5216, 0
    %v5270 = vsel %vm1105, %v5220, 0
    %5272 = vmatprep.subr.mxu0 0.0
    %5273 = vmatpush1.msra.mxu0 %v5270
    %5274 = vmatprep.subr.mxu0 0.0
    %5275 = vmatpush1.msra.mxu0 0.0
    %5276 = vmatprep.subr.mxu0 0.0
    %5277 = vmatpush1.msra.mxu0 0.0
    %5278 = vmatprep.subr.mxu0 0.0
    %5279 = vmatpush1.msra.mxu0 0.0
    %5280 = vmatprep.subr.mxu0 0.0
    %5281 = vmatpush1.msra.mxu0 0.0
    %5282 = vmatprep.subr.mxu0 0.0
    %5283 = vmatpush1.msra.mxu0 0.0
    %5284 = vmatprep.subr.mxu0 0.0
    %5285 = vmatpush1.msra.mxu0 0.0
    %5286 = vmatprep.subr.mxu0 0.0
    %5287 = vmatpush1.msra.mxu0 0.0
    %5288 = vmatprep.subr.mxu0 0.0
    %5289 = vmatpush1.msra.mxu0 0.0
    %5290 = vmatprep.subr.mxu0 0.0
    %5291 = vmatpush1.msra.mxu0 0.0
    %5292 = vmatprep.subr.mxu0 0.0
    %5293 = vmatpush1.msra.mxu0 0.0
    %5294 = vmatprep.subr.mxu0 0.0
    %5295 = vmatpush1.msra.mxu0 0.0
    %5296 = vmatprep.subr.mxu0 0.0
    %5297 = vmatpush1.msra.mxu0 0.0
    %5298 = vmatprep.subr.mxu0 0.0
    %5299 = vmatpush1.msra.mxu0 0.0
    %5300 = vmatprep.subr.mxu0 0.0
    %5301 = vmatpush1.msra.mxu0 0.0
    %5302 = vmatprep.subr.mxu0 0.0
    %5303 = vmatpush1.msra.mxu0 0.0
    %5304 = vmatprep.subr.mxu0 0.0
    %5305 = vmatpush1.msra.mxu0 0.0
    %5306 = vmatprep.subr.mxu0 0.0
    %5307 = vmatpush1.msra.mxu0 0.0
    %5308 = vmatprep.subr.mxu0 0.0
    %5309 = vmatpush1.msra.mxu0 0.0
    %5310 = vmatprep.subr.mxu0 0.0
    %5311 = vmatpush1.msra.mxu0 0.0
    %5312 = vmatprep.subr.mxu0 0.0
    %5313 = vmatpush1.msra.mxu0 0.0
    %5314 = vmatprep.subr.mxu0 0.0
    %5315 = vmatpush1.msra.mxu0 0.0
    %5316 = vmatprep.subr.mxu0 0.0
    %5317 = vmatpush1.msra.mxu0 0.0
    %5318 = vmatprep.subr.mxu0 0.0
    %5319 = vmatpush1.msra.mxu0 0.0
    %5320 = vmatprep.subr.mxu0 0.0
    %5321 = vmatpush1.msra.mxu0 0.0
    %5322 = vmatprep.subr.mxu0 0.0
    %5323 = vmatpush1.msra.mxu0 0.0
    %5324 = vmatprep.subr.mxu0 0.0
    %5325 = vmatpush1.msra.mxu0 0.0
    %5326 = vmatprep.subr.mxu0 0.0
    %5327 = vmatpush1.msra.mxu0 0.0
    %5328 = vmatprep.subr.mxu0 0.0
    %5329 = vmatpush1.msra.mxu0 0.0
    %5330 = vmatprep.subr.mxu0 0.0
    %5331 = vmatpush1.msra.mxu0 0.0
    %5332 = vmatprep.subr.mxu0 0.0
    %5333 = vmatpush1.msra.mxu0 0.0
    %5334 = vmatprep.subr.mxu0 0.0
    %5335 = vmatpush1.msra.mxu0 0.0
    %5336 = vmatprep.mubr.f32.mxu0 0.0
    %5337 = vmatmul.mubr.f32.gmra.mrb[0].mxu0 %v5222
    %v5338 = vpop.f32.mrb[0].mxu0
    %v5339 = vadd.f32 0.0, %v5338
    %v5340 = vpop.f32.mrb[0].mxu0
    %5341 = vmatprep.mubr.f32.mxu0 0.0
    %5342 = vmatmul.mubr.f32.gmra.mrb[0].mxu0 %v5225
    %v5343 = vpop.f32.mrb[0].mxu0
    %v5344 = vadd.f32 0.0, %v5343
    %v5345 = vpop.f32.mrb[0].mxu0
    %5346 = vmatprep.mubr.f32.mxu0 0.0
    %5347 = vmatmul.mubr.f32.gmra.mrb[0].mxu0 %v5228
    %v5348 = vpop.f32.mrb[0].mxu0
    %v5349 = vadd.f32 0.0, %v5348
    %v5350 = vpop.f32.mrb[0].mxu0
    %5351 = vmatprep.mubr.f32.mxu0 0.0
    %5352 = vmatmul.mubr.f32.gmra.mrb[0].mxu0 %v5231
    %v5353 = vpop.f32.mrb[0].mxu0
    %v5354 = vadd.f32 0.0, %v5353
    %v5355 = vpop.f32.mrb[0].mxu0
    %5356 = vmatprep.mubr.f32.mxu0 0.0
    %5357 = vmatmul.mubr.f32.gmra.mrb[0].mxu0 %v5234
    %v5358 = vpop.f32.mrb[0].mxu0
    %v5359 = vadd.f32 0.0, %v5358
    %v5360 = vpop.f32.mrb[0].mxu0
    %5361 = vmatprep.mubr.f32.mxu0 0.0
    %5362 = vmatmul.mubr.f32.gmra.mrb[0].mxu0 %v5237
    %v5363 = vpop.f32.mrb[0].mxu0
    %v5364 = vadd.f32 0.0, %v5363
    %v5365 = vpop.f32.mrb[0].mxu0
    %5366 = vmatprep.mubr.f32.mxu0 0.0
    %5367 = vmatmul.mubr.f32.gmra.mrb[0].mxu0 %v5240
    %v5368 = vpop.f32.mrb[0].mxu0
    %v5369 = vadd.f32 0.0, %v5368
    %v5370 = vpop.f32.mrb[0].mxu0
    %5371 = vmatprep.mubr.f32.mxu0 0.0
    %5372 = vmatmul.mubr.f32.gmra.mrb[0].mxu0 %v5243
    %v5373 = vpop.f32.mrb[0].mxu0
    %v5374 = vadd.f32 0.0, %v5373
    %v5375 = vpop.f32.mrb[0].mxu0
    %5376 = vmatprep.mubr.f32.mxu0 0.0
    %5377 = vmatmul.mubr.f32.gmra.mrb[0].mxu0 %v5246
    %v5378 = vpop.f32.mrb[0].mxu0
    %v5379 = vadd.f32 0.0, %v5378
    %v5380 = vpop.f32.mrb[0].mxu0
    %5381 = vmatprep.mubr.f32.mxu0 0.0
    %5382 = vmatmul.mubr.f32.gmra.mrb[0].mxu0 %v5249
    %v5383 = vpop.f32.mrb[0].mxu0
    %v5384 = vadd.f32 0.0, %v5383
    %v5385 = vpop.f32.mrb[0].mxu0
    %5386 = vmatprep.mubr.f32.mxu0 0.0
    %5387 = vmatmul.mubr.f32.gmra.mrb[0].mxu0 %v5252
    %v5388 = vpop.f32.mrb[0].mxu0
    %v5389 = vadd.f32 0.0, %v5388
    %v5390 = vpop.f32.mrb[0].mxu0
    %5391 = vmatprep.mubr.f32.mxu0 0.0
    %5392 = vmatmul.mubr.f32.gmra.mrb[0].mxu0 %v5255
    %v5393 = vpop.f32.mrb[0].mxu0
    %v5394 = vadd.f32 0.0, %v5393
    %v5395 = vpop.f32.mrb[0].mxu0
    %5396 = vmatprep.mubr.f32.mxu0 0.0
    %5397 = vmatmul.mubr.f32.gmra.mrb[0].mxu0 %v5258
    %v5398 = vpop.f32.mrb[0].mxu0
    %v5399 = vadd.f32 0.0, %v5398
    %v5400 = vpop.f32.mrb[0].mxu0
    %5401 = vmatprep.mubr.f32.mxu0 0.0
    %5402 = vmatmul.mubr.f32.gmra.mrb[0].mxu0 %v5261
    %v5403 = vpop.f32.mrb[0].mxu0
    %v5404 = vadd.f32 0.0, %v5403
    %v5405 = vpop.f32.mrb[0].mxu0
    %5406 = vmatprep.mubr.f32.mxu0 0.0
    %5407 = vmatmul.mubr.f32.gmra.mrb[0].mxu0 %v5264
    %v5408 = vpop.f32.mrb[0].mxu0
    %v5409 = vadd.f32 0.0, %v5408
    %v5410 = vpop.f32.mrb[0].mxu0
    %5411 = vmatprep.mubr.f32.mxu0 0.0
    %5412 = vmatmul.mubr.f32.gmra.mrb[0].mxu0 %v5267
    %v5413 = vpop.f32.mrb[0].mxu0
    %v5414 = vadd.f32 0.0, %v5413
    %v5415 = vpop.f32.mrb[0].mxu0
    %5416 = vdwg.mxu0
    %v5417 = vadd.f32 %v4848, %v5339
    %v5418 = vadd.f32 %v4849, %v5344
    %v5419 = vadd.f32 %v4850, %v5349
    %v5420 = vadd.f32 %v4851, %v5354
    %v5421 = vadd.f32 %v4852, %v5359
    %v5422 = vadd.f32 %v4853, %v5364
    %v5423 = vadd.f32 %v4854, %v5369
    %v5424 = vadd.f32 %v4855, %v5374
    %v5425 = vadd.f32 %v4856, %v5379
    %v5426 = vadd.f32 %v4857, %v5384
    %v5427 = vadd.f32 %v4858, %v5389
    %v5428 = vadd.f32 %v4859, %v5394
    %v5429 = vadd.f32 %v4860, %v5399
    %v5430 = vadd.f32 %v4861, %v5404
    %v5431 = vadd.f32 %v4862, %v5409
    %v5432 = vadd.f32 %v4863, %v5414
    %v5433 = vld [vmem:[#allocation7] sm:$0x1]
    %v5435 = vlaneseq
    %v5436 = vshrl.u32 %v5435, 7
    %v5437 = vsub.s32 0, %v5436
    %v5438 = vrot.slane %v5433, %v5437
    %v5440 = vadd.f32 %v5417, %v5438
    %v5441 = vadd.f32 %v5418, %v5438
    %v5442 = vadd.f32 %v5419, %v5438
    %v5443 = vadd.f32 %v5420, %v5438
    %v5444 = vadd.f32 %v5421, %v5438
    %v5445 = vadd.f32 %v5422, %v5438
    %v5446 = vadd.f32 %v5423, %v5438
    %v5447 = vadd.f32 %v5424, %v5438
    %v5448 = vadd.f32 %v5425, %v5438
    %v5449 = vadd.f32 %v5426, %v5438
    %v5450 = vadd.f32 %v5427, %v5438
    %v5451 = vadd.f32 %v5428, %v5438
    %v5452 = vadd.f32 %v5429, %v5438
    %v5453 = vadd.f32 %v5430, %v5438
    %v5454 = vadd.f32 %v5431, %v5438
    %v5455 = vadd.f32 %v5432, %v5438
    %vm5456 = vcmp.ge.f32.partialorder %v5440, 0.0
    %vm5457 = vcmp.ge.f32.partialorder %v5441, 0.0
    %vm5458 = vcmp.ge.f32.partialorder %v5442, 0.0
    %vm5459 = vcmp.ge.f32.partialorder %v5443, 0.0
    %vm5460 = vcmp.ge.f32.partialorder %v5444, 0.0
    %vm5461 = vcmp.ge.f32.partialorder %v5445, 0.0
    %vm5462 = vcmp.ge.f32.partialorder %v5446, 0.0
    %vm5463 = vcmp.ge.f32.partialorder %v5447, 0.0
    %vm5464 = vcmp.ge.f32.partialorder %v5448, 0.0
    %vm5465 = vcmp.ge.f32.partialorder %v5449, 0.0
    %vm5466 = vcmp.ge.f32.partialorder %v5450, 0.0
    %vm5467 = vcmp.ge.f32.partialorder %v5451, 0.0
    %vm5468 = vcmp.ge.f32.partialorder %v5452, 0.0
    %vm5469 = vcmp.ge.f32.partialorder %v5453, 0.0
    %vm5470 = vcmp.ge.f32.partialorder %v5454, 0.0
    %vm5471 = vcmp.ge.f32.partialorder %v5455, 0.0
    %v5472 = vmul.f32 %v5440, 0.2
    %v5473 = vmul.f32 %v5441, 0.2
    %v5474 = vmul.f32 %v5442, 0.2
    %v5475 = vmul.f32 %v5443, 0.2
    %v5476 = vmul.f32 %v5444, 0.2
    %v5477 = vmul.f32 %v5445, 0.2
    %v5478 = vmul.f32 %v5446, 0.2
    %v5479 = vmul.f32 %v5447, 0.2
    %v5480 = vmul.f32 %v5448, 0.2
    %v5481 = vmul.f32 %v5449, 0.2
    %v5482 = vmul.f32 %v5450, 0.2
    %v5483 = vmul.f32 %v5451, 0.2
    %v5484 = vmul.f32 %v5452, 0.2
    %v5485 = vmul.f32 %v5453, 0.2
    %v5486 = vmul.f32 %v5454, 0.2
    %v5487 = vmul.f32 %v5455, 0.2
    %v5488 = vsel %vm5456, %v5440, %v5472
    %v5489 = vsel %vm5457, %v5441, %v5473
    %v5490 = vsel %vm5458, %v5442, %v5474
    %v5491 = vsel %vm5459, %v5443, %v5475
    %v5492 = vsel %vm5460, %v5444, %v5476
    %v5493 = vsel %vm5461, %v5445, %v5477
    %v5494 = vsel %vm5462, %v5446, %v5478
    %v5495 = vsel %vm5463, %v5447, %v5479
    %v5496 = vsel %vm5464, %v5448, %v5480
    %v5497 = vsel %vm5465, %v5449, %v5481
    %v5498 = vsel %vm5466, %v5450, %v5482
    %v5499 = vsel %vm5467, %v5451, %v5483
    %v5500 = vsel %vm5468, %v5452, %v5484
    %v5501 = vsel %vm5469, %v5453, %v5485
    %v5502 = vsel %vm5470, %v5454, %v5486
    %v5503 = vsel %vm5471, %v5455, %v5487
    %v5504 = vld [vmem:[#allocation8] sm:$0xff]
    %v5505 = vld [vmem:[#allocation8 + $0x8] sm:$0xff]
    %v5506 = vld [vmem:[#allocation8 + $0x10] sm:$0xff]
    %v5507 = vld [vmem:[#allocation8 + $0x18] sm:$0xff]
    %5508 = vmatprep.subr.mxu0 0.0
    %5509 = vmatpush1.msra.mxu0 %v5488
    %5510 = vmatprep.subr.mxu0 0.0
    %5511 = vmatpush1.msra.mxu0 %v5489
    %5512 = vmatprep.subr.mxu0 0.0
    %5513 = vmatpush1.msra.mxu0 %v5490
    %5514 = vmatprep.subr.mxu0 0.0
    %5515 = vmatpush1.msra.mxu0 %v5491
    %5516 = vmatprep.subr.mxu0 0.0
    %5517 = vmatpush1.msra.mxu0 %v5492
    %5518 = vmatprep.subr.mxu0 0.0
    %5519 = vmatpush1.msra.mxu0 %v5493
    %5520 = vmatprep.subr.mxu0 0.0
    %5521 = vmatpush1.msra.mxu0 %v5494
    %5522 = vmatprep.subr.mxu0 0.0
    %5523 = vmatpush1.msra.mxu0 %v5495
    %5524 = vmatprep.subr.mxu0 0.0
    %5525 = vmatpush1.msra.mxu0 %v5496
    %5526 = vmatprep.subr.mxu0 0.0
    %5527 = vmatpush1.msra.mxu0 %v5497
    %5528 = vmatprep.subr.mxu0 0.0
    %5529 = vmatpush1.msra.mxu0 %v5498
    %5530 = vmatprep.subr.mxu0 0.0
    %5531 = vmatpush1.msra.mxu0 %v5499
    %5532 = vmatprep.subr.mxu0 0.0
    %5533 = vmatpush1.msra.mxu0 %v5500
    %5534 = vmatprep.subr.mxu0 0.0
    %5535 = vmatpush1.msra.mxu0 %v5501
    %5536 = vmatprep.subr.mxu0 0.0
    %5537 = vmatpush1.msra.mxu0 %v5502
    %5538 = vmatprep.subr.mxu0 0.0
    %5539 = vmatpush1.msra.mxu0 %v5503
    %5540 = vmatprep.subr.mxu0 0.0
    %5541 = vmatpush1.msra.mxu0 0.0
    %5542 = vmatprep.subr.mxu0 0.0
    %5543 = vmatpush1.msra.mxu0 0.0
    %5544 = vmatprep.subr.mxu0 0.0
    %5545 = vmatpush1.msra.mxu0 0.0
    %5546 = vmatprep.subr.mxu0 0.0
    %5547 = vmatpush1.msra.mxu0 0.0
    %5548 = vmatprep.subr.mxu0 0.0
    %5549 = vmatpush1.msra.mxu0 0.0
    %5550 = vmatprep.subr.mxu0 0.0
    %5551 = vmatpush1.msra.mxu0 0.0
    %5552 = vmatprep.subr.mxu0 0.0
    %5553 = vmatpush1.msra.mxu0 0.0
    %5554 = vmatprep.subr.mxu0 0.0
    %5555 = vmatpush1.msra.mxu0 0.0
    %5556 = vmatprep.subr.mxu0 0.0
    %5557 = vmatpush1.msra.mxu0 0.0
    %5558 = vmatprep.subr.mxu0 0.0
    %5559 = vmatpush1.msra.mxu0 0.0
    %5560 = vmatprep.subr.mxu0 0.0
    %5561 = vmatpush1.msra.mxu0 0.0
    %5562 = vmatprep.subr.mxu0 0.0
    %5563 = vmatpush1.msra.mxu0 0.0
    %5564 = vmatprep.subr.mxu0 0.0
    %5565 = vmatpush1.msra.mxu0 0.0
    %5566 = vmatprep.subr.mxu0 0.0
    %5567 = vmatpush1.msra.mxu0 0.0
    %5568 = vmatprep.subr.mxu0 0.0
    %5569 = vmatpush1.msra.mxu0 0.0
    %5570 = vmatprep.subr.mxu0 0.0
    %5571 = vmatpush1.msra.mxu0 0.0
    %5572 = vmatprep.mubr.f32.mxu0 0.0
    %5573 = vmatmul.mubr.f32.gmra.mrb[0].mxu0 %v5504
    %v5574 = vpop.f32.mrb[0].mxu0
    %v5575 = vadd.f32 0.0, %v5574
    %v5576 = vpop.f32.mrb[0].mxu0
    %5577 = vmatprep.mubr.f32.mxu0 0.0
    %5578 = vmatmul.mubr.f32.gmra.mrb[0].mxu0 %v5505
    %v5579 = vpop.f32.mrb[0].mxu0
    %v5580 = vadd.f32 0.0, %v5579
    %v5581 = vpop.f32.mrb[0].mxu0
    %5582 = vmatprep.mubr.f32.mxu0 0.0
    %5583 = vmatmul.mubr.f32.gmra.mrb[0].mxu0 %v5506
    %v5584 = vpop.f32.mrb[0].mxu0
    %v5585 = vadd.f32 0.0, %v5584
    %v5586 = vpop.f32.mrb[0].mxu0
    %5587 = vmatprep.mubr.f32.mxu0 0.0
    %5588 = vmatmul.mubr.f32.gmra.mrb[0].mxu0 %v5507
    %v5589 = vpop.f32.mrb[0].mxu0
    %v5590 = vadd.f32 0.0, %v5589
    %v5591 = vpop.f32.mrb[0].mxu0
    %5592 = vdwg.mxu0
    %v5593 = vld [vmem:[#allocation10] sm:$0xff]
    %v5594 = vld [vmem:[#allocation10 + $0x8] sm:$0xff]
    %s5595 = scalar_lea.vmem [#allocation8], 32
    %v5596 = vld [vmem:[%s5595] sm:$0xff]
    %v5597 = vld [vmem:[%s5595 + $0x8] sm:$0xff]
    %v5598 = vld [vmem:[%s5595 + $0x10] sm:$0xff]
    %v5599 = vld [vmem:[%s5595 + $0x18] sm:$0xff]
    %5600 = vmatprep.subr.mxu0 0.0
    %5601 = vmatpush1.msra.mxu0 %v5488
    %5602 = vmatprep.subr.mxu0 0.0
    %5603 = vmatpush1.msra.mxu0 %v5489
    %5604 = vmatprep.subr.mxu0 0.0
    %5605 = vmatpush1.msra.mxu0 %v5490
    %5606 = vmatprep.subr.mxu0 0.0
    %5607 = vmatpush1.msra.mxu0 %v5491
    %5608 = vmatprep.subr.mxu0 0.0
    %5609 = vmatpush1.msra.mxu0 %v5492
    %5610 = vmatprep.subr.mxu0 0.0
    %5611 = vmatpush1.msra.mxu0 %v5493
    %5612 = vmatprep.subr.mxu0 0.0
    %5613 = vmatpush1.msra.mxu0 %v5494
    %5614 = vmatprep.subr.mxu0 0.0
    %5615 = vmatpush1.msra.mxu0 %v5495
    %5616 = vmatprep.subr.mxu0 0.0
    %5617 = vmatpush1.msra.mxu0 %v5496
    %5618 = vmatprep.subr.mxu0 0.0
    %5619 = vmatpush1.msra.mxu0 %v5497
    %5620 = vmatprep.subr.mxu0 0.0
    %5621 = vmatpush1.msra.mxu0 %v5498
    %5622 = vmatprep.subr.mxu0 0.0
    %5623 = vmatpush1.msra.mxu0 %v5499
    %5624 = vmatprep.subr.mxu0 0.0
    %5625 = vmatpush1.msra.mxu0 %v5500
    %5626 = vmatprep.subr.mxu0 0.0
    %5627 = vmatpush1.msra.mxu0 %v5501
    %5628 = vmatprep.subr.mxu0 0.0
    %5629 = vmatpush1.msra.mxu0 %v5502
    %5630 = vmatprep.subr.mxu0 0.0
    %5631 = vmatpush1.msra.mxu0 %v5503
    %5632 = vmatprep.subr.mxu0 0.0
    %5633 = vmatpush1.msra.mxu0 0.0
    %5634 = vmatprep.subr.mxu0 0.0
    %5635 = vmatpush1.msra.mxu0 0.0
    %5636 = vmatprep.subr.mxu0 0.0
    %5637 = vmatpush1.msra.mxu0 0.0
    %5638 = vmatprep.subr.mxu0 0.0
    %5639 = vmatpush1.msra.mxu0 0.0
    %5640 = vmatprep.subr.mxu0 0.0
    %5641 = vmatpush1.msra.mxu0 0.0
    %5642 = vmatprep.subr.mxu0 0.0
    %5643 = vmatpush1.msra.mxu0 0.0
    %5644 = vmatprep.subr.mxu0 0.0
    %5645 = vmatpush1.msra.mxu0 0.0
    %5646 = vmatprep.subr.mxu0 0.0
    %5647 = vmatpush1.msra.mxu0 0.0
    %5648 = vmatprep.subr.mxu0 0.0
    %5649 = vmatpush1.msra.mxu0 0.0
    %5650 = vmatprep.subr.mxu0 0.0
    %5651 = vmatpush1.msra.mxu0 0.0
    %5652 = vmatprep.subr.mxu0 0.0
    %5653 = vmatpush1.msra.mxu0 0.0
    %5654 = vmatprep.subr.mxu0 0.0
    %5655 = vmatpush1.msra.mxu0 0.0
    %5656 = vmatprep.subr.mxu0 0.0
    %5657 = vmatpush1.msra.mxu0 0.0
    %5658 = vmatprep.subr.mxu0 0.0
    %5659 = vmatpush1.msra.mxu0 0.0
    %5660 = vmatprep.subr.mxu0 0.0
    %5661 = vmatpush1.msra.mxu0 0.0
    %5662 = vmatprep.subr.mxu0 0.0
    %5663 = vmatpush1.msra.mxu0 0.0
    %5664 = vmatprep.mubr.f32.mxu0 0.0
    %5665 = vmatmul.mubr.f32.gmra.mrb[0].mxu0 %v5596
    %v5666 = vpop.f32.mrb[0].mxu0
    %v5667 = vadd.f32 0.0, %v5666
    %v5668 = vpop.f32.mrb[0].mxu0
    %5669 = vmatprep.mubr.f32.mxu0 0.0
    %5670 = vmatmul.mubr.f32.gmra.mrb[0].mxu0 %v5597
    %v5671 = vpop.f32.mrb[0].mxu0
    %v5672 = vadd.f32 0.0, %v5671
    %v5673 = vpop.f32.mrb[0].mxu0
    %5674 = vmatprep.mubr.f32.mxu0 0.0
    %5675 = vmatmul.mubr.f32.gmra.mrb[0].mxu0 %v5598
    %v5676 = vpop.f32.mrb[0].mxu0
    %v5677 = vadd.f32 0.0, %v5676
    %v5678 = vpop.f32.mrb[0].mxu0
    %5679 = vmatprep.mubr.f32.mxu0 0.0
    %5680 = vmatmul.mubr.f32.gmra.mrb[0].mxu0 %v5599
    %v5681 = vpop.f32.mrb[0].mxu0
    %v5682 = vadd.f32 0.0, %v5681
    %v5683 = vpop.f32.mrb[0].mxu0
    %5684 = vdwg.mxu0
    %s5685 = scalar_lea.vmem [#allocation10], 16
    %v5686 = vld [vmem:[%s5685] sm:$0xff]
    %v5687 = vld [vmem:[%s5685 + $0x8] sm:$0xff]
    %vm5688 = vcmask 130048
    %v5690 = vsel %vm5688, %v5667, 0
    %v5693 = vsel %vm5688, %v5672, 0
    %v5696 = vsel %vm5688, %v5677, 0
    %v5699 = vsel %vm5688, %v5682, 0
    %5701 = vmatprep.subr.mxu0 0.0
    %5702 = vmatpush1.msra.mxu0 %v5686
    %5703 = vmatprep.subr.mxu0 0.0
    %5704 = vmatpush1.msra.mxu0 %v5687
    %5705 = vmatprep.subr.mxu0 0.0
    %5706 = vmatpush1.msra.mxu0 0.0
    %5707 = vmatprep.subr.mxu0 0.0
    %5708 = vmatpush1.msra.mxu0 0.0
    %5709 = vmatprep.subr.mxu0 0.0
    %5710 = vmatpush1.msra.mxu0 0.0
    %5711 = vmatprep.subr.mxu0 0.0
    %5712 = vmatpush1.msra.mxu0 0.0
    %5713 = vmatprep.subr.mxu0 0.0
    %5714 = vmatpush1.msra.mxu0 0.0
    %5715 = vmatprep.subr.mxu0 0.0
    %5716 = vmatpush1.msra.mxu0 0.0
    %5717 = vmatprep.subr.mxu0 0.0
    %5718 = vmatpush1.msra.mxu0 0.0
    %5719 = vmatprep.subr.mxu0 0.0
    %5720 = vmatpush1.msra.mxu0 0.0
    %5721 = vmatprep.subr.mxu0 0.0
    %5722 = vmatpush1.msra.mxu0 0.0
    %5723 = vmatprep.subr.mxu0 0.0
    %5724 = vmatpush1.msra.mxu0 0.0
    %5725 = vmatprep.subr.mxu0 0.0
    %5726 = vmatpush1.msra.mxu0 0.0
    %5727 = vmatprep.subr.mxu0 0.0
    %5728 = vmatpush1.msra.mxu0 0.0
    %5729 = vmatprep.subr.mxu0 0.0
    %5730 = vmatpush1.msra.mxu0 0.0
    %5731 = vmatprep.subr.mxu0 0.0
    %5732 = vmatpush1.msra.mxu0 0.0
    %5733 = vmatprep.subr.mxu0 0.0
    %5734 = vmatpush1.msra.mxu0 0.0
    %5735 = vmatprep.subr.mxu0 0.0
    %5736 = vmatpush1.msra.mxu0 0.0
    %5737 = vmatprep.subr.mxu0 0.0
    %5738 = vmatpush1.msra.mxu0 0.0
    %5739 = vmatprep.subr.mxu0 0.0
    %5740 = vmatpush1.msra.mxu0 0.0
    %5741 = vmatprep.subr.mxu0 0.0
    %5742 = vmatpush1.msra.mxu0 0.0
    %5743 = vmatprep.subr.mxu0 0.0
    %5744 = vmatpush1.msra.mxu0 0.0
    %5745 = vmatprep.subr.mxu0 0.0
    %5746 = vmatpush1.msra.mxu0 0.0
    %5747 = vmatprep.subr.mxu0 0.0
    %5748 = vmatpush1.msra.mxu0 0.0
    %5749 = vmatprep.subr.mxu0 0.0
    %5750 = vmatpush1.msra.mxu0 0.0
    %5751 = vmatprep.subr.mxu0 0.0
    %5752 = vmatpush1.msra.mxu0 0.0
    %5753 = vmatprep.subr.mxu0 0.0
    %5754 = vmatpush1.msra.mxu0 0.0
    %5755 = vmatprep.subr.mxu0 0.0
    %5756 = vmatpush1.msra.mxu0 0.0
    %5757 = vmatprep.subr.mxu0 0.0
    %5758 = vmatpush1.msra.mxu0 0.0
    %5759 = vmatprep.subr.mxu0 0.0
    %5760 = vmatpush1.msra.mxu0 0.0
    %5761 = vmatprep.subr.mxu0 0.0
    %5762 = vmatpush1.msra.mxu0 0.0
    %5763 = vmatprep.subr.mxu0 0.0
    %5764 = vmatpush1.msra.mxu0 0.0
    %5765 = vmatprep.mubr.f32.mxu0 0.0
    %5766 = vmatmul.mubr.f32.gmra.mrb[0].mxu0 %v5690
    %v5767 = vpop.f32.mrb[0].mxu0
    %v5768 = vadd.f32 0.0, %v5767
    %v5769 = vpop.f32.mrb[0].mxu0
    %5770 = vmatprep.mubr.f32.mxu0 0.0
    %5771 = vmatmul.mubr.f32.gmra.mrb[0].mxu0 %v5693
    %v5772 = vpop.f32.mrb[0].mxu0
    %v5773 = vadd.f32 0.0, %v5772
    %v5774 = vpop.f32.mrb[0].mxu0
    %5775 = vmatprep.mubr.f32.mxu0 0.0
    %5776 = vmatmul.mubr.f32.gmra.mrb[0].mxu0 %v5696
    %v5777 = vpop.f32.mrb[0].mxu0
    %v5778 = vadd.f32 0.0, %v5777
    %v5779 = vpop.f32.mrb[0].mxu0
    %5780 = vmatprep.mubr.f32.mxu0 0.0
    %5781 = vmatmul.mubr.f32.gmra.mrb[0].mxu0 %v5699
    %v5782 = vpop.f32.mrb[0].mxu0
    %v5783 = vadd.f32 0.0, %v5782
    %v5784 = vpop.f32.mrb[0].mxu0
    %5785 = vdwg.mxu0
    %v5787 = vsel %vm5688, %v5575, 0
    %v5790 = vsel %vm5688, %v5580, 0
    %v5793 = vsel %vm5688, %v5585, 0
    %v5796 = vsel %vm5688, %v5590, 0
    %5798 = vmatprep.subr.mxu0 0.0
    %5799 = vmatpush1.msra.mxu0 %v5593
    %5800 = vmatprep.subr.mxu0 0.0
    %5801 = vmatpush1.msra.mxu0 %v5594
    %5802 = vmatprep.subr.mxu0 0.0
    %5803 = vmatpush1.msra.mxu0 0.0
    %5804 = vmatprep.subr.mxu0 0.0
    %5805 = vmatpush1.msra.mxu0 0.0
    %5806 = vmatprep.subr.mxu0 0.0
    %5807 = vmatpush1.msra.mxu0 0.0
    %5808 = vmatprep.subr.mxu0 0.0
    %5809 = vmatpush1.msra.mxu0 0.0
    %5810 = vmatprep.subr.mxu0 0.0
    %5811 = vmatpush1.msra.mxu0 0.0
    %5812 = vmatprep.subr.mxu0 0.0
    %5813 = vmatpush1.msra.mxu0 0.0
    %5814 = vmatprep.subr.mxu0 0.0
    %5815 = vmatpush1.msra.mxu0 0.0
    %5816 = vmatprep.subr.mxu0 0.0
    %5817 = vmatpush1.msra.mxu0 0.0
    %5818 = vmatprep.subr.mxu0 0.0
    %5819 = vmatpush1.msra.mxu0 0.0
    %5820 = vmatprep.subr.mxu0 0.0
    %5821 = vmatpush1.msra.mxu0 0.0
    %5822 = vmatprep.subr.mxu0 0.0
    %5823 = vmatpush1.msra.mxu0 0.0
    %5824 = vmatprep.subr.mxu0 0.0
    %5825 = vmatpush1.msra.mxu0 0.0
    %5826 = vmatprep.subr.mxu0 0.0
    %5827 = vmatpush1.msra.mxu0 0.0
    %5828 = vmatprep.subr.mxu0 0.0
    %5829 = vmatpush1.msra.mxu0 0.0
    %5830 = vmatprep.subr.mxu0 0.0
    %5831 = vmatpush1.msra.mxu0 0.0
    %5832 = vmatprep.subr.mxu0 0.0
    %5833 = vmatpush1.msra.mxu0 0.0
    %5834 = vmatprep.subr.mxu0 0.0
    %5835 = vmatpush1.msra.mxu0 0.0
    %5836 = vmatprep.subr.mxu0 0.0
    %5837 = vmatpush1.msra.mxu0 0.0
    %5838 = vmatprep.subr.mxu0 0.0
    %5839 = vmatpush1.msra.mxu0 0.0
    %5840 = vmatprep.subr.mxu0 0.0
    %5841 = vmatpush1.msra.mxu0 0.0
    %5842 = vmatprep.subr.mxu0 0.0
    %5843 = vmatpush1.msra.mxu0 0.0
    %5844 = vmatprep.subr.mxu0 0.0
    %5845 = vmatpush1.msra.mxu0 0.0
    %5846 = vmatprep.subr.mxu0 0.0
    %5847 = vmatpush1.msra.mxu0 0.0
    %5848 = vmatprep.subr.mxu0 0.0
    %5849 = vmatpush1.msra.mxu0 0.0
    %5850 = vmatprep.subr.mxu0 0.0
    %5851 = vmatpush1.msra.mxu0 0.0
    %5852 = vmatprep.subr.mxu0 0.0
    %5853 = vmatpush1.msra.mxu0 0.0
    %5854 = vmatprep.subr.mxu0 0.0
    %5855 = vmatpush1.msra.mxu0 0.0
    %5856 = vmatprep.subr.mxu0 0.0
    %5857 = vmatpush1.msra.mxu0 0.0
    %5858 = vmatprep.subr.mxu0 0.0
    %5859 = vmatpush1.msra.mxu0 0.0
    %5860 = vmatprep.subr.mxu0 0.0
    %5861 = vmatpush1.msra.mxu0 0.0
    %5862 = vmatprep.mubr.f32.mxu0 0.0
    %5863 = vmatmul.mubr.f32.gmra.mrb[0].mxu0 %v5787
    %v5864 = vpop.f32.mrb[0].mxu0
    %v5865 = vadd.f32 %v5768, %v5864
    %v5866 = vpop.f32.mrb[0].mxu0
    %5867 = vmatprep.mubr.f32.mxu0 0.0
    %5868 = vmatmul.mubr.f32.gmra.mrb[0].mxu0 %v5790
    %v5869 = vpop.f32.mrb[0].mxu0
    %v5870 = vadd.f32 %v5773, %v5869
    %v5871 = vpop.f32.mrb[0].mxu0
    %5872 = vmatprep.mubr.f32.mxu0 0.0
    %5873 = vmatmul.mubr.f32.gmra.mrb[0].mxu0 %v5793
    %v5874 = vpop.f32.mrb[0].mxu0
    %v5875 = vadd.f32 %v5778, %v5874
    %v5876 = vpop.f32.mrb[0].mxu0
    %5877 = vmatprep.mubr.f32.mxu0 0.0
    %5878 = vmatmul.mubr.f32.gmra.mrb[0].mxu0 %v5796
    %v5879 = vpop.f32.mrb[0].mxu0
    %v5880 = vadd.f32 %v5783, %v5879
    %v5881 = vpop.f32.mrb[0].mxu0
    %5882 = vdwg.mxu0
    %s5883 = scalar_lea.vmem [#allocation8], 64
    %v5884 = vld [vmem:[%s5883] sm:$0xff]
    %v5885 = vld [vmem:[%s5883 + $0x8] sm:$0xff]
    %v5886 = vld [vmem:[%s5883 + $0x10] sm:$0xff]
    %v5887 = vld [vmem:[%s5883 + $0x18] sm:$0xff]
    %5888 = vmatprep.subr.mxu0 0.0
    %5889 = vmatpush1.msra.mxu0 %v5488
    %5890 = vmatprep.subr.mxu0 0.0
    %5891 = vmatpush1.msra.mxu0 %v5489
    %5892 = vmatprep.subr.mxu0 0.0
    %5893 = vmatpush1.msra.mxu0 %v5490
    %5894 = vmatprep.subr.mxu0 0.0
    %5895 = vmatpush1.msra.mxu0 %v5491
    %5896 = vmatprep.subr.mxu0 0.0
    %5897 = vmatpush1.msra.mxu0 %v5492
    %5898 = vmatprep.subr.mxu0 0.0
    %5899 = vmatpush1.msra.mxu0 %v5493
    %5900 = vmatprep.subr.mxu0 0.0
    %5901 = vmatpush1.msra.mxu0 %v5494
    %5902 = vmatprep.subr.mxu0 0.0
    %5903 = vmatpush1.msra.mxu0 %v5495
    %5904 = vmatprep.subr.mxu0 0.0
    %5905 = vmatpush1.msra.mxu0 %v5496
    %5906 = vmatprep.subr.mxu0 0.0
    %5907 = vmatpush1.msra.mxu0 %v5497
    %5908 = vmatprep.subr.mxu0 0.0
    %5909 = vmatpush1.msra.mxu0 %v5498
    %5910 = vmatprep.subr.mxu0 0.0
    %5911 = vmatpush1.msra.mxu0 %v5499
    %5912 = vmatprep.subr.mxu0 0.0
    %5913 = vmatpush1.msra.mxu0 %v5500
    %5914 = vmatprep.subr.mxu0 0.0
    %5915 = vmatpush1.msra.mxu0 %v5501
    %5916 = vmatprep.subr.mxu0 0.0
    %5917 = vmatpush1.msra.mxu0 %v5502
    %5918 = vmatprep.subr.mxu0 0.0
    %5919 = vmatpush1.msra.mxu0 %v5503
    %5920 = vmatprep.subr.mxu0 0.0
    %5921 = vmatpush1.msra.mxu0 0.0
    %5922 = vmatprep.subr.mxu0 0.0
    %5923 = vmatpush1.msra.mxu0 0.0
    %5924 = vmatprep.subr.mxu0 0.0
    %5925 = vmatpush1.msra.mxu0 0.0
    %5926 = vmatprep.subr.mxu0 0.0
    %5927 = vmatpush1.msra.mxu0 0.0
    %5928 = vmatprep.subr.mxu0 0.0
    %5929 = vmatpush1.msra.mxu0 0.0
    %5930 = vmatprep.subr.mxu0 0.0
    %5931 = vmatpush1.msra.mxu0 0.0
    %5932 = vmatprep.subr.mxu0 0.0
    %5933 = vmatpush1.msra.mxu0 0.0
    %5934 = vmatprep.subr.mxu0 0.0
    %5935 = vmatpush1.msra.mxu0 0.0
    %5936 = vmatprep.subr.mxu0 0.0
    %5937 = vmatpush1.msra.mxu0 0.0
    %5938 = vmatprep.subr.mxu0 0.0
    %5939 = vmatpush1.msra.mxu0 0.0
    %5940 = vmatprep.subr.mxu0 0.0
    %5941 = vmatpush1.msra.mxu0 0.0
    %5942 = vmatprep.subr.mxu0 0.0
    %5943 = vmatpush1.msra.mxu0 0.0
    %5944 = vmatprep.subr.mxu0 0.0
    %5945 = vmatpush1.msra.mxu0 0.0
    %5946 = vmatprep.subr.mxu0 0.0
    %5947 = vmatpush1.msra.mxu0 0.0
    %5948 = vmatprep.subr.mxu0 0.0
    %5949 = vmatpush1.msra.mxu0 0.0
    %5950 = vmatprep.subr.mxu0 0.0
    %5951 = vmatpush1.msra.mxu0 0.0
    %5952 = vmatprep.mubr.f32.mxu0 0.0
    %5953 = vmatmul.mubr.f32.gmra.mrb[0].mxu0 %v5884
    %v5954 = vpop.f32.mrb[0].mxu0
    %v5955 = vadd.f32 0.0, %v5954
    %v5956 = vpop.f32.mrb[0].mxu0
    %5957 = vmatprep.mubr.f32.mxu0 0.0
    %5958 = vmatmul.mubr.f32.gmra.mrb[0].mxu0 %v5885
    %v5959 = vpop.f32.mrb[0].mxu0
    %v5960 = vadd.f32 0.0, %v5959
    %v5961 = vpop.f32.mrb[0].mxu0
    %5962 = vmatprep.mubr.f32.mxu0 0.0
    %5963 = vmatmul.mubr.f32.gmra.mrb[0].mxu0 %v5886
    %v5964 = vpop.f32.mrb[0].mxu0
    %v5965 = vadd.f32 0.0, %v5964
    %v5966 = vpop.f32.mrb[0].mxu0
    %5967 = vmatprep.mubr.f32.mxu0 0.0
    %5968 = vmatmul.mubr.f32.gmra.mrb[0].mxu0 %v5887
    %v5969 = vpop.f32.mrb[0].mxu0
    %v5970 = vadd.f32 0.0, %v5969
    %v5971 = vpop.f32.mrb[0].mxu0
    %5972 = vdwg.mxu0
    %s5973 = scalar_lea.vmem [#allocation10], 32
    %v5974 = vld [vmem:[%s5973] sm:$0xff]
    %v5975 = vld [vmem:[%s5973 + $0x8] sm:$0xff]
    %v5977 = vsel %vm5688, %v5955, 0
    %v5980 = vsel %vm5688, %v5960, 0
    %v5983 = vsel %vm5688, %v5965, 0
    %v5986 = vsel %vm5688, %v5970, 0
    %5988 = vmatprep.subr.mxu0 0.0
    %5989 = vmatpush1.msra.mxu0 %v5974
    %5990 = vmatprep.subr.mxu0 0.0
    %5991 = vmatpush1.msra.mxu0 %v5975
    %5992 = vmatprep.subr.mxu0 0.0
    %5993 = vmatpush1.msra.mxu0 0.0
    %5994 = vmatprep.subr.mxu0 0.0
    %5995 = vmatpush1.msra.mxu0 0.0
    %5996 = vmatprep.subr.mxu0 0.0
    %5997 = vmatpush1.msra.mxu0 0.0
    %5998 = vmatprep.subr.mxu0 0.0
    %5999 = vmatpush1.msra.mxu0 0.0
    %6000 = vmatprep.subr.mxu0 0.0
    %6001 = vmatpush1.msra.mxu0 0.0
    %6002 = vmatprep.subr.mxu0 0.0
    %6003 = vmatpush1.msra.mxu0 0.0
    %6004 = vmatprep.subr.mxu0 0.0
    %6005 = vmatpush1.msra.mxu0 0.0
    %6006 = vmatprep.subr.mxu0 0.0
    %6007 = vmatpush1.msra.mxu0 0.0
    %6008 = vmatprep.subr.mxu0 0.0
    %6009 = vmatpush1.msra.mxu0 0.0
    %6010 = vmatprep.subr.mxu0 0.0
    %6011 = vmatpush1.msra.mxu0 0.0
    %6012 = vmatprep.subr.mxu0 0.0
    %6013 = vmatpush1.msra.mxu0 0.0
    %6014 = vmatprep.subr.mxu0 0.0
    %6015 = vmatpush1.msra.mxu0 0.0
    %6016 = vmatprep.subr.mxu0 0.0
    %6017 = vmatpush1.msra.mxu0 0.0
    %6018 = vmatprep.subr.mxu0 0.0
    %6019 = vmatpush1.msra.mxu0 0.0
    %6020 = vmatprep.subr.mxu0 0.0
    %6021 = vmatpush1.msra.mxu0 0.0
    %6022 = vmatprep.subr.mxu0 0.0
    %6023 = vmatpush1.msra.mxu0 0.0
    %6024 = vmatprep.subr.mxu0 0.0
    %6025 = vmatpush1.msra.mxu0 0.0
    %6026 = vmatprep.subr.mxu0 0.0
    %6027 = vmatpush1.msra.mxu0 0.0
    %6028 = vmatprep.subr.mxu0 0.0
    %6029 = vmatpush1.msra.mxu0 0.0
    %6030 = vmatprep.subr.mxu0 0.0
    %6031 = vmatpush1.msra.mxu0 0.0
    %6032 = vmatprep.subr.mxu0 0.0
    %6033 = vmatpush1.msra.mxu0 0.0
    %6034 = vmatprep.subr.mxu0 0.0
    %6035 = vmatpush1.msra.mxu0 0.0
    %6036 = vmatprep.subr.mxu0 0.0
    %6037 = vmatpush1.msra.mxu0 0.0
    %6038 = vmatprep.subr.mxu0 0.0
    %6039 = vmatpush1.msra.mxu0 0.0
    %6040 = vmatprep.subr.mxu0 0.0
    %6041 = vmatpush1.msra.mxu0 0.0
    %6042 = vmatprep.subr.mxu0 0.0
    %6043 = vmatpush1.msra.mxu0 0.0
    %6044 = vmatprep.subr.mxu0 0.0
    %6045 = vmatpush1.msra.mxu0 0.0
    %6046 = vmatprep.subr.mxu0 0.0
    %6047 = vmatpush1.msra.mxu0 0.0
    %6048 = vmatprep.subr.mxu0 0.0
    %6049 = vmatpush1.msra.mxu0 0.0
    %6050 = vmatprep.subr.mxu0 0.0
    %6051 = vmatpush1.msra.mxu0 0.0
    %6052 = vmatprep.mubr.f32.mxu0 0.0
    %6053 = vmatmul.mubr.f32.gmra.mrb[0].mxu0 %v5977
    %v6054 = vpop.f32.mrb[0].mxu0
    %v6055 = vadd.f32 0.0, %v6054
    %v6056 = vpop.f32.mrb[0].mxu0
    %6057 = vmatprep.mubr.f32.mxu0 0.0
    %6058 = vmatmul.mubr.f32.gmra.mrb[0].mxu0 %v5980
    %v6059 = vpop.f32.mrb[0].mxu0
    %v6060 = vadd.f32 0.0, %v6059
    %v6061 = vpop.f32.mrb[0].mxu0
    %6062 = vmatprep.mubr.f32.mxu0 0.0
    %6063 = vmatmul.mubr.f32.gmra.mrb[0].mxu0 %v5983
    %v6064 = vpop.f32.mrb[0].mxu0
    %v6065 = vadd.f32 0.0, %v6064
    %v6066 = vpop.f32.mrb[0].mxu0
    %6067 = vmatprep.mubr.f32.mxu0 0.0
    %6068 = vmatmul.mubr.f32.gmra.mrb[0].mxu0 %v5986
    %v6069 = vpop.f32.mrb[0].mxu0
    %v6070 = vadd.f32 0.0, %v6069
    %v6071 = vpop.f32.mrb[0].mxu0
    %6072 = vdwg.mxu0
    %v6073 = vadd.f32 %v5865, %v6055
    %v6074 = vadd.f32 %v5870, %v6060
    %v6075 = vadd.f32 %v5875, %v6065
    %v6076 = vadd.f32 %v5880, %v6070
    %s6077 = scalar_lea.vmem [#allocation8], 96
    %v6078 = vld [vmem:[%s6077] sm:$0xff]
    %v6079 = vld [vmem:[%s6077 + $0x8] sm:$0xff]
    %v6080 = vld [vmem:[%s6077 + $0x10] sm:$0xff]
    %v6081 = vld [vmem:[%s6077 + $0x18] sm:$0xff]
    %6082 = vmatprep.subr.mxu0 0.0
    %6083 = vmatpush1.msra.mxu0 %v5488
    %6084 = vmatprep.subr.mxu0 0.0
    %6085 = vmatpush1.msra.mxu0 %v5489
    %6086 = vmatprep.subr.mxu0 0.0
    %6087 = vmatpush1.msra.mxu0 %v5490
    %6088 = vmatprep.subr.mxu0 0.0
    %6089 = vmatpush1.msra.mxu0 %v5491
    %6090 = vmatprep.subr.mxu0 0.0
    %6091 = vmatpush1.msra.mxu0 %v5492
    %6092 = vmatprep.subr.mxu0 0.0
    %6093 = vmatpush1.msra.mxu0 %v5493
    %6094 = vmatprep.subr.mxu0 0.0
    %6095 = vmatpush1.msra.mxu0 %v5494
    %6096 = vmatprep.subr.mxu0 0.0
    %6097 = vmatpush1.msra.mxu0 %v5495
    %6098 = vmatprep.subr.mxu0 0.0
    %6099 = vmatpush1.msra.mxu0 %v5496
    %6100 = vmatprep.subr.mxu0 0.0
    %6101 = vmatpush1.msra.mxu0 %v5497
    %6102 = vmatprep.subr.mxu0 0.0
    %6103 = vmatpush1.msra.mxu0 %v5498
    %6104 = vmatprep.subr.mxu0 0.0
    %6105 = vmatpush1.msra.mxu0 %v5499
    %6106 = vmatprep.subr.mxu0 0.0
    %6107 = vmatpush1.msra.mxu0 %v5500
    %6108 = vmatprep.subr.mxu0 0.0
    %6109 = vmatpush1.msra.mxu0 %v5501
    %6110 = vmatprep.subr.mxu0 0.0
    %6111 = vmatpush1.msra.mxu0 %v5502
    %6112 = vmatprep.subr.mxu0 0.0
    %6113 = vmatpush1.msra.mxu0 %v5503
    %6114 = vmatprep.subr.mxu0 0.0
    %6115 = vmatpush1.msra.mxu0 0.0
    %6116 = vmatprep.subr.mxu0 0.0
    %6117 = vmatpush1.msra.mxu0 0.0
    %6118 = vmatprep.subr.mxu0 0.0
    %6119 = vmatpush1.msra.mxu0 0.0
    %6120 = vmatprep.subr.mxu0 0.0
    %6121 = vmatpush1.msra.mxu0 0.0
    %6122 = vmatprep.subr.mxu0 0.0
    %6123 = vmatpush1.msra.mxu0 0.0
    %6124 = vmatprep.subr.mxu0 0.0
    %6125 = vmatpush1.msra.mxu0 0.0
    %6126 = vmatprep.subr.mxu0 0.0
    %6127 = vmatpush1.msra.mxu0 0.0
    %6128 = vmatprep.subr.mxu0 0.0
    %6129 = vmatpush1.msra.mxu0 0.0
    %6130 = vmatprep.subr.mxu0 0.0
    %6131 = vmatpush1.msra.mxu0 0.0
    %6132 = vmatprep.subr.mxu0 0.0
    %6133 = vmatpush1.msra.mxu0 0.0
    %6134 = vmatprep.subr.mxu0 0.0
    %6135 = vmatpush1.msra.mxu0 0.0
    %6136 = vmatprep.subr.mxu0 0.0
    %6137 = vmatpush1.msra.mxu0 0.0
    %6138 = vmatprep.subr.mxu0 0.0
    %6139 = vmatpush1.msra.mxu0 0.0
    %6140 = vmatprep.subr.mxu0 0.0
    %6141 = vmatpush1.msra.mxu0 0.0
    %6142 = vmatprep.subr.mxu0 0.0
    %6143 = vmatpush1.msra.mxu0 0.0
    %6144 = vmatprep.subr.mxu0 0.0
    %6145 = vmatpush1.msra.mxu0 0.0
    %6146 = vmatprep.mubr.f32.mxu0 0.0
    %6147 = vmatmul.mubr.f32.gmra.mrb[0].mxu0 %v6078
    %v6148 = vpop.f32.mrb[0].mxu0
    %v6149 = vadd.f32 0.0, %v6148
    %v6150 = vpop.f32.mrb[0].mxu0
    %6151 = vmatprep.mubr.f32.mxu0 0.0
    %6152 = vmatmul.mubr.f32.gmra.mrb[0].mxu0 %v6079
    %v6153 = vpop.f32.mrb[0].mxu0
    %v6154 = vadd.f32 0.0, %v6153
    %v6155 = vpop.f32.mrb[0].mxu0
    %6156 = vmatprep.mubr.f32.mxu0 0.0
    %6157 = vmatmul.mubr.f32.gmra.mrb[0].mxu0 %v6080
    %v6158 = vpop.f32.mrb[0].mxu0
    %v6159 = vadd.f32 0.0, %v6158
    %v6160 = vpop.f32.mrb[0].mxu0
    %6161 = vmatprep.mubr.f32.mxu0 0.0
    %6162 = vmatmul.mubr.f32.gmra.mrb[0].mxu0 %v6081
    %v6163 = vpop.f32.mrb[0].mxu0
    %v6164 = vadd.f32 0.0, %v6163
    %v6165 = vpop.f32.mrb[0].mxu0
    %6166 = vdwg.mxu0
    %s6167 = scalar_lea.vmem [#allocation10], 48
    %v6168 = vld [vmem:[%s6167] sm:$0xff]
    %v6169 = vld [vmem:[%s6167 + $0x8] sm:$0xff]
    %v6171 = vsel %vm5688, %v6149, 0
    %v6174 = vsel %vm5688, %v6154, 0
    %v6177 = vsel %vm5688, %v6159, 0
    %v6180 = vsel %vm5688, %v6164, 0
    %6182 = vmatprep.subr.mxu0 0.0
    %6183 = vmatpush1.msra.mxu0 %v6168
    %6184 = vmatprep.subr.mxu0 0.0
    %6185 = vmatpush1.msra.mxu0 %v6169
    %6186 = vmatprep.subr.mxu0 0.0
    %6187 = vmatpush1.msra.mxu0 0.0
    %6188 = vmatprep.subr.mxu0 0.0
    %6189 = vmatpush1.msra.mxu0 0.0
    %6190 = vmatprep.subr.mxu0 0.0
    %6191 = vmatpush1.msra.mxu0 0.0
    %6192 = vmatprep.subr.mxu0 0.0
    %6193 = vmatpush1.msra.mxu0 0.0
    %6194 = vmatprep.subr.mxu0 0.0
    %6195 = vmatpush1.msra.mxu0 0.0
    %6196 = vmatprep.subr.mxu0 0.0
    %6197 = vmatpush1.msra.mxu0 0.0
    %6198 = vmatprep.subr.mxu0 0.0
    %6199 = vmatpush1.msra.mxu0 0.0
    %6200 = vmatprep.subr.mxu0 0.0
    %6201 = vmatpush1.msra.mxu0 0.0
    %6202 = vmatprep.subr.mxu0 0.0
    %6203 = vmatpush1.msra.mxu0 0.0
    %6204 = vmatprep.subr.mxu0 0.0
    %6205 = vmatpush1.msra.mxu0 0.0
    %6206 = vmatprep.subr.mxu0 0.0
    %6207 = vmatpush1.msra.mxu0 0.0
    %6208 = vmatprep.subr.mxu0 0.0
    %6209 = vmatpush1.msra.mxu0 0.0
    %6210 = vmatprep.subr.mxu0 0.0
    %6211 = vmatpush1.msra.mxu0 0.0
    %6212 = vmatprep.subr.mxu0 0.0
    %6213 = vmatpush1.msra.mxu0 0.0
    %6214 = vmatprep.subr.mxu0 0.0
    %6215 = vmatpush1.msra.mxu0 0.0
    %6216 = vmatprep.subr.mxu0 0.0
    %6217 = vmatpush1.msra.mxu0 0.0
    %6218 = vmatprep.subr.mxu0 0.0
    %6219 = vmatpush1.msra.mxu0 0.0
    %6220 = vmatprep.subr.mxu0 0.0
    %6221 = vmatpush1.msra.mxu0 0.0
    %6222 = vmatprep.subr.mxu0 0.0
    %6223 = vmatpush1.msra.mxu0 0.0
    %6224 = vmatprep.subr.mxu0 0.0
    %6225 = vmatpush1.msra.mxu0 0.0
    %6226 = vmatprep.subr.mxu0 0.0
    %6227 = vmatpush1.msra.mxu0 0.0
    %6228 = vmatprep.subr.mxu0 0.0
    %6229 = vmatpush1.msra.mxu0 0.0
    %6230 = vmatprep.subr.mxu0 0.0
    %6231 = vmatpush1.msra.mxu0 0.0
    %6232 = vmatprep.subr.mxu0 0.0
    %6233 = vmatpush1.msra.mxu0 0.0
    %6234 = vmatprep.subr.mxu0 0.0
    %6235 = vmatpush1.msra.mxu0 0.0
    %6236 = vmatprep.subr.mxu0 0.0
    %6237 = vmatpush1.msra.mxu0 0.0
    %6238 = vmatprep.subr.mxu0 0.0
    %6239 = vmatpush1.msra.mxu0 0.0
    %6240 = vmatprep.subr.mxu0 0.0
    %6241 = vmatpush1.msra.mxu0 0.0
    %6242 = vmatprep.subr.mxu0 0.0
    %6243 = vmatpush1.msra.mxu0 0.0
    %6244 = vmatprep.subr.mxu0 0.0
    %6245 = vmatpush1.msra.mxu0 0.0
    %6246 = vmatprep.mubr.f32.mxu0 0.0
    %6247 = vmatmul.mubr.f32.gmra.mrb[0].mxu0 %v6171
    %v6248 = vpop.f32.mrb[0].mxu0
    %v6249 = vadd.f32 0.0, %v6248
    %v6250 = vpop.f32.mrb[0].mxu0
    %6251 = vmatprep.mubr.f32.mxu0 0.0
    %6252 = vmatmul.mubr.f32.gmra.mrb[0].mxu0 %v6174
    %v6253 = vpop.f32.mrb[0].mxu0
    %v6254 = vadd.f32 0.0, %v6253
    %v6255 = vpop.f32.mrb[0].mxu0
    %6256 = vmatprep.mubr.f32.mxu0 0.0
    %6257 = vmatmul.mubr.f32.gmra.mrb[0].mxu0 %v6177
    %v6258 = vpop.f32.mrb[0].mxu0
    %v6259 = vadd.f32 0.0, %v6258
    %v6260 = vpop.f32.mrb[0].mxu0
    %6261 = vmatprep.mubr.f32.mxu0 0.0
    %6262 = vmatmul.mubr.f32.gmra.mrb[0].mxu0 %v6180
    %v6263 = vpop.f32.mrb[0].mxu0
    %v6264 = vadd.f32 0.0, %v6263
    %v6265 = vpop.f32.mrb[0].mxu0
    %6266 = vdwg.mxu0
    %v6267 = vadd.f32 %v6073, %v6249
    %v6268 = vadd.f32 %v6074, %v6254
    %v6269 = vadd.f32 %v6075, %v6259
    %v6270 = vadd.f32 %v6076, %v6264
    %s6271 = scalar_lea.vmem [#allocation8], 128
    %v6272 = vld [vmem:[%s6271] sm:$0xff]
    %v6273 = vld [vmem:[%s6271 + $0x8] sm:$0xff]
    %v6274 = vld [vmem:[%s6271 + $0x10] sm:$0xff]
    %v6275 = vld [vmem:[%s6271 + $0x18] sm:$0xff]
    %6276 = vmatprep.subr.mxu0 0.0
    %6277 = vmatpush1.msra.mxu0 %v5488
    %6278 = vmatprep.subr.mxu0 0.0
    %6279 = vmatpush1.msra.mxu0 %v5489
    %6280 = vmatprep.subr.mxu0 0.0
    %6281 = vmatpush1.msra.mxu0 %v5490
    %6282 = vmatprep.subr.mxu0 0.0
    %6283 = vmatpush1.msra.mxu0 %v5491
    %6284 = vmatprep.subr.mxu0 0.0
    %6285 = vmatpush1.msra.mxu0 %v5492
    %6286 = vmatprep.subr.mxu0 0.0
    %6287 = vmatpush1.msra.mxu0 %v5493
    %6288 = vmatprep.subr.mxu0 0.0
    %6289 = vmatpush1.msra.mxu0 %v5494
    %6290 = vmatprep.subr.mxu0 0.0
    %6291 = vmatpush1.msra.mxu0 %v5495
    %6292 = vmatprep.subr.mxu0 0.0
    %6293 = vmatpush1.msra.mxu0 %v5496
    %6294 = vmatprep.subr.mxu0 0.0
    %6295 = vmatpush1.msra.mxu0 %v5497
    %6296 = vmatprep.subr.mxu0 0.0
    %6297 = vmatpush1.msra.mxu0 %v5498
    %6298 = vmatprep.subr.mxu0 0.0
    %6299 = vmatpush1.msra.mxu0 %v5499
    %6300 = vmatprep.subr.mxu0 0.0
    %6301 = vmatpush1.msra.mxu0 %v5500
    %6302 = vmatprep.subr.mxu0 0.0
    %6303 = vmatpush1.msra.mxu0 %v5501
    %6304 = vmatprep.subr.mxu0 0.0
    %6305 = vmatpush1.msra.mxu0 %v5502
    %6306 = vmatprep.subr.mxu0 0.0
    %6307 = vmatpush1.msra.mxu0 %v5503
    %6308 = vmatprep.subr.mxu0 0.0
    %6309 = vmatpush1.msra.mxu0 0.0
    %6310 = vmatprep.subr.mxu0 0.0
    %6311 = vmatpush1.msra.mxu0 0.0
    %6312 = vmatprep.subr.mxu0 0.0
    %6313 = vmatpush1.msra.mxu0 0.0
    %6314 = vmatprep.subr.mxu0 0.0
    %6315 = vmatpush1.msra.mxu0 0.0
    %6316 = vmatprep.subr.mxu0 0.0
    %6317 = vmatpush1.msra.mxu0 0.0
    %6318 = vmatprep.subr.mxu0 0.0
    %6319 = vmatpush1.msra.mxu0 0.0
    %6320 = vmatprep.subr.mxu0 0.0
    %6321 = vmatpush1.msra.mxu0 0.0
    %6322 = vmatprep.subr.mxu0 0.0
    %6323 = vmatpush1.msra.mxu0 0.0
    %6324 = vmatprep.subr.mxu0 0.0
    %6325 = vmatpush1.msra.mxu0 0.0
    %6326 = vmatprep.subr.mxu0 0.0
    %6327 = vmatpush1.msra.mxu0 0.0
    %6328 = vmatprep.subr.mxu0 0.0
    %6329 = vmatpush1.msra.mxu0 0.0
    %6330 = vmatprep.subr.mxu0 0.0
    %6331 = vmatpush1.msra.mxu0 0.0
    %6332 = vmatprep.subr.mxu0 0.0
    %6333 = vmatpush1.msra.mxu0 0.0
    %6334 = vmatprep.subr.mxu0 0.0
    %6335 = vmatpush1.msra.mxu0 0.0
    %6336 = vmatprep.subr.mxu0 0.0
    %6337 = vmatpush1.msra.mxu0 0.0
    %6338 = vmatprep.subr.mxu0 0.0
    %6339 = vmatpush1.msra.mxu0 0.0
    %6340 = vmatprep.mubr.f32.mxu0 0.0
    %6341 = vmatmul.mubr.f32.gmra.mrb[0].mxu0 %v6272
    %v6342 = vpop.f32.mrb[0].mxu0
    %v6343 = vadd.f32 0.0, %v6342
    %v6344 = vpop.f32.mrb[0].mxu0
    %6345 = vmatprep.mubr.f32.mxu0 0.0
    %6346 = vmatmul.mubr.f32.gmra.mrb[0].mxu0 %v6273
    %v6347 = vpop.f32.mrb[0].mxu0
    %v6348 = vadd.f32 0.0, %v6347
    %v6349 = vpop.f32.mrb[0].mxu0
    %6350 = vmatprep.mubr.f32.mxu0 0.0
    %6351 = vmatmul.mubr.f32.gmra.mrb[0].mxu0 %v6274
    %v6352 = vpop.f32.mrb[0].mxu0
    %v6353 = vadd.f32 0.0, %v6352
    %v6354 = vpop.f32.mrb[0].mxu0
    %6355 = vmatprep.mubr.f32.mxu0 0.0
    %6356 = vmatmul.mubr.f32.gmra.mrb[0].mxu0 %v6275
    %v6357 = vpop.f32.mrb[0].mxu0
    %v6358 = vadd.f32 0.0, %v6357
    %v6359 = vpop.f32.mrb[0].mxu0
    %6360 = vdwg.mxu0
    %s6361 = scalar_lea.vmem [#allocation10], 64
    %v6362 = vld [vmem:[%s6361] sm:$0xff]
    %v6363 = vld [vmem:[%s6361 + $0x8] sm:$0xff]
    %v6365 = vsel %vm5688, %v6343, 0
    %v6368 = vsel %vm5688, %v6348, 0
    %v6371 = vsel %vm5688, %v6353, 0
    %v6374 = vsel %vm5688, %v6358, 0
    %6376 = vmatprep.subr.mxu0 0.0
    %6377 = vmatpush1.msra.mxu0 %v6362
    %6378 = vmatprep.subr.mxu0 0.0
    %6379 = vmatpush1.msra.mxu0 %v6363
    %6380 = vmatprep.subr.mxu0 0.0
    %6381 = vmatpush1.msra.mxu0 0.0
    %6382 = vmatprep.subr.mxu0 0.0
    %6383 = vmatpush1.msra.mxu0 0.0
    %6384 = vmatprep.subr.mxu0 0.0
    %6385 = vmatpush1.msra.mxu0 0.0
    %6386 = vmatprep.subr.mxu0 0.0
    %6387 = vmatpush1.msra.mxu0 0.0
    %6388 = vmatprep.subr.mxu0 0.0
    %6389 = vmatpush1.msra.mxu0 0.0
    %6390 = vmatprep.subr.mxu0 0.0
    %6391 = vmatpush1.msra.mxu0 0.0
    %6392 = vmatprep.subr.mxu0 0.0
    %6393 = vmatpush1.msra.mxu0 0.0
    %6394 = vmatprep.subr.mxu0 0.0
    %6395 = vmatpush1.msra.mxu0 0.0
    %6396 = vmatprep.subr.mxu0 0.0
    %6397 = vmatpush1.msra.mxu0 0.0
    %6398 = vmatprep.subr.mxu0 0.0
    %6399 = vmatpush1.msra.mxu0 0.0
    %6400 = vmatprep.subr.mxu0 0.0
    %6401 = vmatpush1.msra.mxu0 0.0
    %6402 = vmatprep.subr.mxu0 0.0
    %6403 = vmatpush1.msra.mxu0 0.0
    %6404 = vmatprep.subr.mxu0 0.0
    %6405 = vmatpush1.msra.mxu0 0.0
    %6406 = vmatprep.subr.mxu0 0.0
    %6407 = vmatpush1.msra.mxu0 0.0
    %6408 = vmatprep.subr.mxu0 0.0
    %6409 = vmatpush1.msra.mxu0 0.0
    %6410 = vmatprep.subr.mxu0 0.0
    %6411 = vmatpush1.msra.mxu0 0.0
    %6412 = vmatprep.subr.mxu0 0.0
    %6413 = vmatpush1.msra.mxu0 0.0
    %6414 = vmatprep.subr.mxu0 0.0
    %6415 = vmatpush1.msra.mxu0 0.0
    %6416 = vmatprep.subr.mxu0 0.0
    %6417 = vmatpush1.msra.mxu0 0.0
    %6418 = vmatprep.subr.mxu0 0.0
    %6419 = vmatpush1.msra.mxu0 0.0
    %6420 = vmatprep.subr.mxu0 0.0
    %6421 = vmatpush1.msra.mxu0 0.0
    %6422 = vmatprep.subr.mxu0 0.0
    %6423 = vmatpush1.msra.mxu0 0.0
    %6424 = vmatprep.subr.mxu0 0.0
    %6425 = vmatpush1.msra.mxu0 0.0
    %6426 = vmatprep.subr.mxu0 0.0
    %6427 = vmatpush1.msra.mxu0 0.0
    %6428 = vmatprep.subr.mxu0 0.0
    %6429 = vmatpush1.msra.mxu0 0.0
    %6430 = vmatprep.subr.mxu0 0.0
    %6431 = vmatpush1.msra.mxu0 0.0
    %6432 = vmatprep.subr.mxu0 0.0
    %6433 = vmatpush1.msra.mxu0 0.0
    %6434 = vmatprep.subr.mxu0 0.0
    %6435 = vmatpush1.msra.mxu0 0.0
    %6436 = vmatprep.subr.mxu0 0.0
    %6437 = vmatpush1.msra.mxu0 0.0
    %6438 = vmatprep.subr.mxu0 0.0
    %6439 = vmatpush1.msra.mxu0 0.0
    %6440 = vmatprep.mubr.f32.mxu0 0.0
    %6441 = vmatmul.mubr.f32.gmra.mrb[0].mxu0 %v6365
    %v6442 = vpop.f32.mrb[0].mxu0
    %v6443 = vadd.f32 0.0, %v6442
    %v6444 = vpop.f32.mrb[0].mxu0
    %6445 = vmatprep.mubr.f32.mxu0 0.0
    %6446 = vmatmul.mubr.f32.gmra.mrb[0].mxu0 %v6368
    %v6447 = vpop.f32.mrb[0].mxu0
    %v6448 = vadd.f32 0.0, %v6447
    %v6449 = vpop.f32.mrb[0].mxu0
    %6450 = vmatprep.mubr.f32.mxu0 0.0
    %6451 = vmatmul.mubr.f32.gmra.mrb[0].mxu0 %v6371
    %v6452 = vpop.f32.mrb[0].mxu0
    %v6453 = vadd.f32 0.0, %v6452
    %v6454 = vpop.f32.mrb[0].mxu0
    %6455 = vmatprep.mubr.f32.mxu0 0.0
    %6456 = vmatmul.mubr.f32.gmra.mrb[0].mxu0 %v6374
    %v6457 = vpop.f32.mrb[0].mxu0
    %v6458 = vadd.f32 0.0, %v6457
    %v6459 = vpop.f32.mrb[0].mxu0
    %6460 = vdwg.mxu0
    %v6461 = vadd.f32 %v6267, %v6443
    %v6462 = vadd.f32 %v6268, %v6448
    %v6463 = vadd.f32 %v6269, %v6453
    %v6464 = vadd.f32 %v6270, %v6458
    %s6465 = scalar_lea.vmem [#allocation8], 160
    %v6466 = vld [vmem:[%s6465] sm:$0xff]
    %v6467 = vld [vmem:[%s6465 + $0x8] sm:$0xff]
    %v6468 = vld [vmem:[%s6465 + $0x10] sm:$0xff]
    %v6469 = vld [vmem:[%s6465 + $0x18] sm:$0xff]
    %6470 = vmatprep.subr.mxu0 0.0
    %6471 = vmatpush1.msra.mxu0 %v5488
    %6472 = vmatprep.subr.mxu0 0.0
    %6473 = vmatpush1.msra.mxu0 %v5489
    %6474 = vmatprep.subr.mxu0 0.0
    %6475 = vmatpush1.msra.mxu0 %v5490
    %6476 = vmatprep.subr.mxu0 0.0
    %6477 = vmatpush1.msra.mxu0 %v5491
    %6478 = vmatprep.subr.mxu0 0.0
    %6479 = vmatpush1.msra.mxu0 %v5492
    %6480 = vmatprep.subr.mxu0 0.0
    %6481 = vmatpush1.msra.mxu0 %v5493
    %6482 = vmatprep.subr.mxu0 0.0
    %6483 = vmatpush1.msra.mxu0 %v5494
    %6484 = vmatprep.subr.mxu0 0.0
    %6485 = vmatpush1.msra.mxu0 %v5495
    %6486 = vmatprep.subr.mxu0 0.0
    %6487 = vmatpush1.msra.mxu0 %v5496
    %6488 = vmatprep.subr.mxu0 0.0
    %6489 = vmatpush1.msra.mxu0 %v5497
    %6490 = vmatprep.subr.mxu0 0.0
    %6491 = vmatpush1.msra.mxu0 %v5498
    %6492 = vmatprep.subr.mxu0 0.0
    %6493 = vmatpush1.msra.mxu0 %v5499
    %6494 = vmatprep.subr.mxu0 0.0
    %6495 = vmatpush1.msra.mxu0 %v5500
    %6496 = vmatprep.subr.mxu0 0.0
    %6497 = vmatpush1.msra.mxu0 %v5501
    %6498 = vmatprep.subr.mxu0 0.0
    %6499 = vmatpush1.msra.mxu0 %v5502
    %6500 = vmatprep.subr.mxu0 0.0
    %6501 = vmatpush1.msra.mxu0 %v5503
    %6502 = vmatprep.subr.mxu0 0.0
    %6503 = vmatpush1.msra.mxu0 0.0
    %6504 = vmatprep.subr.mxu0 0.0
    %6505 = vmatpush1.msra.mxu0 0.0
    %6506 = vmatprep.subr.mxu0 0.0
    %6507 = vmatpush1.msra.mxu0 0.0
    %6508 = vmatprep.subr.mxu0 0.0
    %6509 = vmatpush1.msra.mxu0 0.0
    %6510 = vmatprep.subr.mxu0 0.0
    %6511 = vmatpush1.msra.mxu0 0.0
    %6512 = vmatprep.subr.mxu0 0.0
    %6513 = vmatpush1.msra.mxu0 0.0
    %6514 = vmatprep.subr.mxu0 0.0
    %6515 = vmatpush1.msra.mxu0 0.0
    %6516 = vmatprep.subr.mxu0 0.0
    %6517 = vmatpush1.msra.mxu0 0.0
    %6518 = vmatprep.subr.mxu0 0.0
    %6519 = vmatpush1.msra.mxu0 0.0
    %6520 = vmatprep.subr.mxu0 0.0
    %6521 = vmatpush1.msra.mxu0 0.0
    %6522 = vmatprep.subr.mxu0 0.0
    %6523 = vmatpush1.msra.mxu0 0.0
    %6524 = vmatprep.subr.mxu0 0.0
    %6525 = vmatpush1.msra.mxu0 0.0
    %6526 = vmatprep.subr.mxu0 0.0
    %6527 = vmatpush1.msra.mxu0 0.0
    %6528 = vmatprep.subr.mxu0 0.0
    %6529 = vmatpush1.msra.mxu0 0.0
    %6530 = vmatprep.subr.mxu0 0.0
    %6531 = vmatpush1.msra.mxu0 0.0
    %6532 = vmatprep.subr.mxu0 0.0
    %6533 = vmatpush1.msra.mxu0 0.0
    %6534 = vmatprep.mubr.f32.mxu0 0.0
    %6535 = vmatmul.mubr.f32.gmra.mrb[0].mxu0 %v6466
    %v6536 = vpop.f32.mrb[0].mxu0
    %v6537 = vadd.f32 0.0, %v6536
    %v6538 = vpop.f32.mrb[0].mxu0
    %6539 = vmatprep.mubr.f32.mxu0 0.0
    %6540 = vmatmul.mubr.f32.gmra.mrb[0].mxu0 %v6467
    %v6541 = vpop.f32.mrb[0].mxu0
    %v6542 = vadd.f32 0.0, %v6541
    %v6543 = vpop.f32.mrb[0].mxu0
    %6544 = vmatprep.mubr.f32.mxu0 0.0
    %6545 = vmatmul.mubr.f32.gmra.mrb[0].mxu0 %v6468
    %v6546 = vpop.f32.mrb[0].mxu0
    %v6547 = vadd.f32 0.0, %v6546
    %v6548 = vpop.f32.mrb[0].mxu0
    %6549 = vmatprep.mubr.f32.mxu0 0.0
    %6550 = vmatmul.mubr.f32.gmra.mrb[0].mxu0 %v6469
    %v6551 = vpop.f32.mrb[0].mxu0
    %v6552 = vadd.f32 0.0, %v6551
    %v6553 = vpop.f32.mrb[0].mxu0
    %6554 = vdwg.mxu0
    %s6555 = scalar_lea.vmem [#allocation10], 80
    %v6556 = vld [vmem:[%s6555] sm:$0xff]
    %v6557 = vld [vmem:[%s6555 + $0x8] sm:$0xff]
    %v6559 = vsel %vm5688, %v6537, 0
    %v6562 = vsel %vm5688, %v6542, 0
    %v6565 = vsel %vm5688, %v6547, 0
    %v6568 = vsel %vm5688, %v6552, 0
    %6570 = vmatprep.subr.mxu0 0.0
    %6571 = vmatpush1.msra.mxu0 %v6556
    %6572 = vmatprep.subr.mxu0 0.0
    %6573 = vmatpush1.msra.mxu0 %v6557
    %6574 = vmatprep.subr.mxu0 0.0
    %6575 = vmatpush1.msra.mxu0 0.0
    %6576 = vmatprep.subr.mxu0 0.0
    %6577 = vmatpush1.msra.mxu0 0.0
    %6578 = vmatprep.subr.mxu0 0.0
    %6579 = vmatpush1.msra.mxu0 0.0
    %6580 = vmatprep.subr.mxu0 0.0
    %6581 = vmatpush1.msra.mxu0 0.0
    %6582 = vmatprep.subr.mxu0 0.0
    %6583 = vmatpush1.msra.mxu0 0.0
    %6584 = vmatprep.subr.mxu0 0.0
    %6585 = vmatpush1.msra.mxu0 0.0
    %6586 = vmatprep.subr.mxu0 0.0
    %6587 = vmatpush1.msra.mxu0 0.0
    %6588 = vmatprep.subr.mxu0 0.0
    %6589 = vmatpush1.msra.mxu0 0.0
    %6590 = vmatprep.subr.mxu0 0.0
    %6591 = vmatpush1.msra.mxu0 0.0
    %6592 = vmatprep.subr.mxu0 0.0
    %6593 = vmatpush1.msra.mxu0 0.0
    %6594 = vmatprep.subr.mxu0 0.0
    %6595 = vmatpush1.msra.mxu0 0.0
    %6596 = vmatprep.subr.mxu0 0.0
    %6597 = vmatpush1.msra.mxu0 0.0
    %6598 = vmatprep.subr.mxu0 0.0
    %6599 = vmatpush1.msra.mxu0 0.0
    %6600 = vmatprep.subr.mxu0 0.0
    %6601 = vmatpush1.msra.mxu0 0.0
    %6602 = vmatprep.subr.mxu0 0.0
    %6603 = vmatpush1.msra.mxu0 0.0
    %6604 = vmatprep.subr.mxu0 0.0
    %6605 = vmatpush1.msra.mxu0 0.0
    %6606 = vmatprep.subr.mxu0 0.0
    %6607 = vmatpush1.msra.mxu0 0.0
    %6608 = vmatprep.subr.mxu0 0.0
    %6609 = vmatpush1.msra.mxu0 0.0
    %6610 = vmatprep.subr.mxu0 0.0
    %6611 = vmatpush1.msra.mxu0 0.0
    %6612 = vmatprep.subr.mxu0 0.0
    %6613 = vmatpush1.msra.mxu0 0.0
    %6614 = vmatprep.subr.mxu0 0.0
    %6615 = vmatpush1.msra.mxu0 0.0
    %6616 = vmatprep.subr.mxu0 0.0
    %6617 = vmatpush1.msra.mxu0 0.0
    %6618 = vmatprep.subr.mxu0 0.0
    %6619 = vmatpush1.msra.mxu0 0.0
    %6620 = vmatprep.subr.mxu0 0.0
    %6621 = vmatpush1.msra.mxu0 0.0
    %6622 = vmatprep.subr.mxu0 0.0
    %6623 = vmatpush1.msra.mxu0 0.0
    %6624 = vmatprep.subr.mxu0 0.0
    %6625 = vmatpush1.msra.mxu0 0.0
    %6626 = vmatprep.subr.mxu0 0.0
    %6627 = vmatpush1.msra.mxu0 0.0
    %6628 = vmatprep.subr.mxu0 0.0
    %6629 = vmatpush1.msra.mxu0 0.0
    %6630 = vmatprep.subr.mxu0 0.0
    %6631 = vmatpush1.msra.mxu0 0.0
    %6632 = vmatprep.subr.mxu0 0.0
    %6633 = vmatpush1.msra.mxu0 0.0
    %6634 = vmatprep.mubr.f32.mxu0 0.0
    %6635 = vmatmul.mubr.f32.gmra.mrb[0].mxu0 %v6559
    %v6636 = vpop.f32.mrb[0].mxu0
    %v6637 = vadd.f32 0.0, %v6636
    %v6638 = vpop.f32.mrb[0].mxu0
    %6639 = vmatprep.mubr.f32.mxu0 0.0
    %6640 = vmatmul.mubr.f32.gmra.mrb[0].mxu0 %v6562
    %v6641 = vpop.f32.mrb[0].mxu0
    %v6642 = vadd.f32 0.0, %v6641
    %v6643 = vpop.f32.mrb[0].mxu0
    %6644 = vmatprep.mubr.f32.mxu0 0.0
    %6645 = vmatmul.mubr.f32.gmra.mrb[0].mxu0 %v6565
    %v6646 = vpop.f32.mrb[0].mxu0
    %v6647 = vadd.f32 0.0, %v6646
    %v6648 = vpop.f32.mrb[0].mxu0
    %6649 = vmatprep.mubr.f32.mxu0 0.0
    %6650 = vmatmul.mubr.f32.gmra.mrb[0].mxu0 %v6568
    %v6651 = vpop.f32.mrb[0].mxu0
    %v6652 = vadd.f32 0.0, %v6651
    %v6653 = vpop.f32.mrb[0].mxu0
    %6654 = vdwg.mxu0
    %v6655 = vadd.f32 %v6461, %v6637
    %v6656 = vadd.f32 %v6462, %v6642
    %v6657 = vadd.f32 %v6463, %v6647
    %v6658 = vadd.f32 %v6464, %v6652
    %s6659 = scalar_lea.vmem [#allocation8], 192
    %v6660 = vld [vmem:[%s6659] sm:$0xff]
    %v6661 = vld [vmem:[%s6659 + $0x8] sm:$0xff]
    %v6662 = vld [vmem:[%s6659 + $0x10] sm:$0xff]
    %v6663 = vld [vmem:[%s6659 + $0x18] sm:$0xff]
    %6664 = vmatprep.subr.mxu0 0.0
    %6665 = vmatpush1.msra.mxu0 %v5488
    %6666 = vmatprep.subr.mxu0 0.0
    %6667 = vmatpush1.msra.mxu0 %v5489
    %6668 = vmatprep.subr.mxu0 0.0
    %6669 = vmatpush1.msra.mxu0 %v5490
    %6670 = vmatprep.subr.mxu0 0.0
    %6671 = vmatpush1.msra.mxu0 %v5491
    %6672 = vmatprep.subr.mxu0 0.0
    %6673 = vmatpush1.msra.mxu0 %v5492
    %6674 = vmatprep.subr.mxu0 0.0
    %6675 = vmatpush1.msra.mxu0 %v5493
    %6676 = vmatprep.subr.mxu0 0.0
    %6677 = vmatpush1.msra.mxu0 %v5494
    %6678 = vmatprep.subr.mxu0 0.0
    %6679 = vmatpush1.msra.mxu0 %v5495
    %6680 = vmatprep.subr.mxu0 0.0
    %6681 = vmatpush1.msra.mxu0 %v5496
    %6682 = vmatprep.subr.mxu0 0.0
    %6683 = vmatpush1.msra.mxu0 %v5497
    %6684 = vmatprep.subr.mxu0 0.0
    %6685 = vmatpush1.msra.mxu0 %v5498
    %6686 = vmatprep.subr.mxu0 0.0
    %6687 = vmatpush1.msra.mxu0 %v5499
    %6688 = vmatprep.subr.mxu0 0.0
    %6689 = vmatpush1.msra.mxu0 %v5500
    %6690 = vmatprep.subr.mxu0 0.0
    %6691 = vmatpush1.msra.mxu0 %v5501
    %6692 = vmatprep.subr.mxu0 0.0
    %6693 = vmatpush1.msra.mxu0 %v5502
    %6694 = vmatprep.subr.mxu0 0.0
    %6695 = vmatpush1.msra.mxu0 %v5503
    %6696 = vmatprep.subr.mxu0 0.0
    %6697 = vmatpush1.msra.mxu0 0.0
    %6698 = vmatprep.subr.mxu0 0.0
    %6699 = vmatpush1.msra.mxu0 0.0
    %6700 = vmatprep.subr.mxu0 0.0
    %6701 = vmatpush1.msra.mxu0 0.0
    %6702 = vmatprep.subr.mxu0 0.0
    %6703 = vmatpush1.msra.mxu0 0.0
    %6704 = vmatprep.subr.mxu0 0.0
    %6705 = vmatpush1.msra.mxu0 0.0
    %6706 = vmatprep.subr.mxu0 0.0
    %6707 = vmatpush1.msra.mxu0 0.0
    %6708 = vmatprep.subr.mxu0 0.0
    %6709 = vmatpush1.msra.mxu0 0.0
    %6710 = vmatprep.subr.mxu0 0.0
    %6711 = vmatpush1.msra.mxu0 0.0
    %6712 = vmatprep.subr.mxu0 0.0
    %6713 = vmatpush1.msra.mxu0 0.0
    %6714 = vmatprep.subr.mxu0 0.0
    %6715 = vmatpush1.msra.mxu0 0.0
    %6716 = vmatprep.subr.mxu0 0.0
    %6717 = vmatpush1.msra.mxu0 0.0
    %6718 = vmatprep.subr.mxu0 0.0
    %6719 = vmatpush1.msra.mxu0 0.0
    %6720 = vmatprep.subr.mxu0 0.0
    %6721 = vmatpush1.msra.mxu0 0.0
    %6722 = vmatprep.subr.mxu0 0.0
    %6723 = vmatpush1.msra.mxu0 0.0
    %6724 = vmatprep.subr.mxu0 0.0
    %6725 = vmatpush1.msra.mxu0 0.0
    %6726 = vmatprep.subr.mxu0 0.0
    %6727 = vmatpush1.msra.mxu0 0.0
    %6728 = vmatprep.mubr.f32.mxu0 0.0
    %6729 = vmatmul.mubr.f32.gmra.mrb[0].mxu0 %v6660
    %v6730 = vpop.f32.mrb[0].mxu0
    %v6731 = vadd.f32 0.0, %v6730
    %v6732 = vpop.f32.mrb[0].mxu0
    %6733 = vmatprep.mubr.f32.mxu0 0.0
    %6734 = vmatmul.mubr.f32.gmra.mrb[0].mxu0 %v6661
    %v6735 = vpop.f32.mrb[0].mxu0
    %v6736 = vadd.f32 0.0, %v6735
    %v6737 = vpop.f32.mrb[0].mxu0
    %6738 = vmatprep.mubr.f32.mxu0 0.0
    %6739 = vmatmul.mubr.f32.gmra.mrb[0].mxu0 %v6662
    %v6740 = vpop.f32.mrb[0].mxu0
    %v6741 = vadd.f32 0.0, %v6740
    %v6742 = vpop.f32.mrb[0].mxu0
    %6743 = vmatprep.mubr.f32.mxu0 0.0
    %6744 = vmatmul.mubr.f32.gmra.mrb[0].mxu0 %v6663
    %v6745 = vpop.f32.mrb[0].mxu0
    %v6746 = vadd.f32 0.0, %v6745
    %v6747 = vpop.f32.mrb[0].mxu0
    %6748 = vdwg.mxu0
    %s6749 = scalar_lea.vmem [#allocation10], 96
    %v6750 = vld [vmem:[%s6749] sm:$0xff]
    %v6751 = vld [vmem:[%s6749 + $0x8] sm:$0xff]
    %v6753 = vsel %vm5688, %v6731, 0
    %v6756 = vsel %vm5688, %v6736, 0
    %v6759 = vsel %vm5688, %v6741, 0
    %v6762 = vsel %vm5688, %v6746, 0
    %6764 = vmatprep.subr.mxu0 0.0
    %6765 = vmatpush1.msra.mxu0 %v6750
    %6766 = vmatprep.subr.mxu0 0.0
    %6767 = vmatpush1.msra.mxu0 %v6751
    %6768 = vmatprep.subr.mxu0 0.0
    %6769 = vmatpush1.msra.mxu0 0.0
    %6770 = vmatprep.subr.mxu0 0.0
    %6771 = vmatpush1.msra.mxu0 0.0
    %6772 = vmatprep.subr.mxu0 0.0
    %6773 = vmatpush1.msra.mxu0 0.0
    %6774 = vmatprep.subr.mxu0 0.0
    %6775 = vmatpush1.msra.mxu0 0.0
    %6776 = vmatprep.subr.mxu0 0.0
    %6777 = vmatpush1.msra.mxu0 0.0
    %6778 = vmatprep.subr.mxu0 0.0
    %6779 = vmatpush1.msra.mxu0 0.0
    %6780 = vmatprep.subr.mxu0 0.0
    %6781 = vmatpush1.msra.mxu0 0.0
    %6782 = vmatprep.subr.mxu0 0.0
    %6783 = vmatpush1.msra.mxu0 0.0
    %6784 = vmatprep.subr.mxu0 0.0
    %6785 = vmatpush1.msra.mxu0 0.0
    %6786 = vmatprep.subr.mxu0 0.0
    %6787 = vmatpush1.msra.mxu0 0.0
    %6788 = vmatprep.subr.mxu0 0.0
    %6789 = vmatpush1.msra.mxu0 0.0
    %6790 = vmatprep.subr.mxu0 0.0
    %6791 = vmatpush1.msra.mxu0 0.0
    %6792 = vmatprep.subr.mxu0 0.0
    %6793 = vmatpush1.msra.mxu0 0.0
    %6794 = vmatprep.subr.mxu0 0.0
    %6795 = vmatpush1.msra.mxu0 0.0
    %6796 = vmatprep.subr.mxu0 0.0
    %6797 = vmatpush1.msra.mxu0 0.0
    %6798 = vmatprep.subr.mxu0 0.0
    %6799 = vmatpush1.msra.mxu0 0.0
    %6800 = vmatprep.subr.mxu0 0.0
    %6801 = vmatpush1.msra.mxu0 0.0
    %6802 = vmatprep.subr.mxu0 0.0
    %6803 = vmatpush1.msra.mxu0 0.0
    %6804 = vmatprep.subr.mxu0 0.0
    %6805 = vmatpush1.msra.mxu0 0.0
    %6806 = vmatprep.subr.mxu0 0.0
    %6807 = vmatpush1.msra.mxu0 0.0
    %6808 = vmatprep.subr.mxu0 0.0
    %6809 = vmatpush1.msra.mxu0 0.0
    %6810 = vmatprep.subr.mxu0 0.0
    %6811 = vmatpush1.msra.mxu0 0.0
    %6812 = vmatprep.subr.mxu0 0.0
    %6813 = vmatpush1.msra.mxu0 0.0
    %6814 = vmatprep.subr.mxu0 0.0
    %6815 = vmatpush1.msra.mxu0 0.0
    %6816 = vmatprep.subr.mxu0 0.0
    %6817 = vmatpush1.msra.mxu0 0.0
    %6818 = vmatprep.subr.mxu0 0.0
    %6819 = vmatpush1.msra.mxu0 0.0
    %6820 = vmatprep.subr.mxu0 0.0
    %6821 = vmatpush1.msra.mxu0 0.0
    %6822 = vmatprep.subr.mxu0 0.0
    %6823 = vmatpush1.msra.mxu0 0.0
    %6824 = vmatprep.subr.mxu0 0.0
    %6825 = vmatpush1.msra.mxu0 0.0
    %6826 = vmatprep.subr.mxu0 0.0
    %6827 = vmatpush1.msra.mxu0 0.0
    %6828 = vmatprep.mubr.f32.mxu0 0.0
    %6829 = vmatmul.mubr.f32.gmra.mrb[0].mxu0 %v6753
    %v6830 = vpop.f32.mrb[0].mxu0
    %v6831 = vadd.f32 0.0, %v6830
    %v6832 = vpop.f32.mrb[0].mxu0
    %6833 = vmatprep.mubr.f32.mxu0 0.0
    %6834 = vmatmul.mubr.f32.gmra.mrb[0].mxu0 %v6756
    %v6835 = vpop.f32.mrb[0].mxu0
    %v6836 = vadd.f32 0.0, %v6835
    %v6837 = vpop.f32.mrb[0].mxu0
    %6838 = vmatprep.mubr.f32.mxu0 0.0
    %6839 = vmatmul.mubr.f32.gmra.mrb[0].mxu0 %v6759
    %v6840 = vpop.f32.mrb[0].mxu0
    %v6841 = vadd.f32 0.0, %v6840
    %v6842 = vpop.f32.mrb[0].mxu0
    %6843 = vmatprep.mubr.f32.mxu0 0.0
    %6844 = vmatmul.mubr.f32.gmra.mrb[0].mxu0 %v6762
    %v6845 = vpop.f32.mrb[0].mxu0
    %v6846 = vadd.f32 0.0, %v6845
    %v6847 = vpop.f32.mrb[0].mxu0
    %6848 = vdwg.mxu0
    %v6849 = vadd.f32 %v6655, %v6831
    %v6850 = vadd.f32 %v6656, %v6836
    %v6851 = vadd.f32 %v6657, %v6841
    %v6852 = vadd.f32 %v6658, %v6846
    %s6853 = scalar_lea.vmem [#allocation8], 224
    %v6854 = vld [vmem:[%s6853] sm:$0xff]
    %v6855 = vld [vmem:[%s6853 + $0x8] sm:$0xff]
    %v6856 = vld [vmem:[%s6853 + $0x10] sm:$0xff]
    %v6857 = vld [vmem:[%s6853 + $0x18] sm:$0xff]
    %6858 = vmatprep.subr.mxu0 0.0
    %6859 = vmatpush1.msra.mxu0 %v5488
    %6860 = vmatprep.subr.mxu0 0.0
    %6861 = vmatpush1.msra.mxu0 %v5489
    %6862 = vmatprep.subr.mxu0 0.0
    %6863 = vmatpush1.msra.mxu0 %v5490
    %6864 = vmatprep.subr.mxu0 0.0
    %6865 = vmatpush1.msra.mxu0 %v5491
    %6866 = vmatprep.subr.mxu0 0.0
    %6867 = vmatpush1.msra.mxu0 %v5492
    %6868 = vmatprep.subr.mxu0 0.0
    %6869 = vmatpush1.msra.mxu0 %v5493
    %6870 = vmatprep.subr.mxu0 0.0
    %6871 = vmatpush1.msra.mxu0 %v5494
    %6872 = vmatprep.subr.mxu0 0.0
    %6873 = vmatpush1.msra.mxu0 %v5495
    %6874 = vmatprep.subr.mxu0 0.0
    %6875 = vmatpush1.msra.mxu0 %v5496
    %6876 = vmatprep.subr.mxu0 0.0
    %6877 = vmatpush1.msra.mxu0 %v5497
    %6878 = vmatprep.subr.mxu0 0.0
    %6879 = vmatpush1.msra.mxu0 %v5498
    %6880 = vmatprep.subr.mxu0 0.0
    %6881 = vmatpush1.msra.mxu0 %v5499
    %6882 = vmatprep.subr.mxu0 0.0
    %6883 = vmatpush1.msra.mxu0 %v5500
    %6884 = vmatprep.subr.mxu0 0.0
    %6885 = vmatpush1.msra.mxu0 %v5501
    %6886 = vmatprep.subr.mxu0 0.0
    %6887 = vmatpush1.msra.mxu0 %v5502
    %6888 = vmatprep.subr.mxu0 0.0
    %6889 = vmatpush1.msra.mxu0 %v5503
    %6890 = vmatprep.subr.mxu0 0.0
    %6891 = vmatpush1.msra.mxu0 0.0
    %6892 = vmatprep.subr.mxu0 0.0
    %6893 = vmatpush1.msra.mxu0 0.0
    %6894 = vmatprep.subr.mxu0 0.0
    %6895 = vmatpush1.msra.mxu0 0.0
    %6896 = vmatprep.subr.mxu0 0.0
    %6897 = vmatpush1.msra.mxu0 0.0
    %6898 = vmatprep.subr.mxu0 0.0
    %6899 = vmatpush1.msra.mxu0 0.0
    %6900 = vmatprep.subr.mxu0 0.0
    %6901 = vmatpush1.msra.mxu0 0.0
    %6902 = vmatprep.subr.mxu0 0.0
    %6903 = vmatpush1.msra.mxu0 0.0
    %6904 = vmatprep.subr.mxu0 0.0
    %6905 = vmatpush1.msra.mxu0 0.0
    %6906 = vmatprep.subr.mxu0 0.0
    %6907 = vmatpush1.msra.mxu0 0.0
    %6908 = vmatprep.subr.mxu0 0.0
    %6909 = vmatpush1.msra.mxu0 0.0
    %6910 = vmatprep.subr.mxu0 0.0
    %6911 = vmatpush1.msra.mxu0 0.0
    %6912 = vmatprep.subr.mxu0 0.0
    %6913 = vmatpush1.msra.mxu0 0.0
    %6914 = vmatprep.subr.mxu0 0.0
    %6915 = vmatpush1.msra.mxu0 0.0
    %6916 = vmatprep.subr.mxu0 0.0
    %6917 = vmatpush1.msra.mxu0 0.0
    %6918 = vmatprep.subr.mxu0 0.0
    %6919 = vmatpush1.msra.mxu0 0.0
    %6920 = vmatprep.subr.mxu0 0.0
    %6921 = vmatpush1.msra.mxu0 0.0
    %6922 = vmatprep.mubr.f32.mxu0 0.0
    %6923 = vmatmul.mubr.f32.gmra.mrb[0].mxu0 %v6854
    %v6924 = vpop.f32.mrb[0].mxu0
    %v6925 = vadd.f32 0.0, %v6924
    %v6926 = vpop.f32.mrb[0].mxu0
    %6927 = vmatprep.mubr.f32.mxu0 0.0
    %6928 = vmatmul.mubr.f32.gmra.mrb[0].mxu0 %v6855
    %v6929 = vpop.f32.mrb[0].mxu0
    %v6930 = vadd.f32 0.0, %v6929
    %v6931 = vpop.f32.mrb[0].mxu0
    %6932 = vmatprep.mubr.f32.mxu0 0.0
    %6933 = vmatmul.mubr.f32.gmra.mrb[0].mxu0 %v6856
    %v6934 = vpop.f32.mrb[0].mxu0
    %v6935 = vadd.f32 0.0, %v6934
    %v6936 = vpop.f32.mrb[0].mxu0
    %6937 = vmatprep.mubr.f32.mxu0 0.0
    %6938 = vmatmul.mubr.f32.gmra.mrb[0].mxu0 %v6857
    %v6939 = vpop.f32.mrb[0].mxu0
    %v6940 = vadd.f32 0.0, %v6939
    %v6941 = vpop.f32.mrb[0].mxu0
    %6942 = vdwg.mxu0
    %s6943 = scalar_lea.vmem [#allocation10], 112
    %v6944 = vld [vmem:[%s6943] sm:$0xff]
    %v6945 = vld [vmem:[%s6943 + $0x8] sm:$0xff]
    %v6947 = vsel %vm5688, %v6925, 0
    %v6950 = vsel %vm5688, %v6930, 0
    %v6953 = vsel %vm5688, %v6935, 0
    %v6956 = vsel %vm5688, %v6940, 0
    %6958 = vmatprep.subr.mxu0 0.0
    %6959 = vmatpush1.msra.mxu0 %v6944
    %6960 = vmatprep.subr.mxu0 0.0
    %6961 = vmatpush1.msra.mxu0 %v6945
    %6962 = vmatprep.subr.mxu0 0.0
    %6963 = vmatpush1.msra.mxu0 0.0
    %6964 = vmatprep.subr.mxu0 0.0
    %6965 = vmatpush1.msra.mxu0 0.0
    %6966 = vmatprep.subr.mxu0 0.0
    %6967 = vmatpush1.msra.mxu0 0.0
    %6968 = vmatprep.subr.mxu0 0.0
    %6969 = vmatpush1.msra.mxu0 0.0
    %6970 = vmatprep.subr.mxu0 0.0
    %6971 = vmatpush1.msra.mxu0 0.0
    %6972 = vmatprep.subr.mxu0 0.0
    %6973 = vmatpush1.msra.mxu0 0.0
    %6974 = vmatprep.subr.mxu0 0.0
    %6975 = vmatpush1.msra.mxu0 0.0
    %6976 = vmatprep.subr.mxu0 0.0
    %6977 = vmatpush1.msra.mxu0 0.0
    %6978 = vmatprep.subr.mxu0 0.0
    %6979 = vmatpush1.msra.mxu0 0.0
    %6980 = vmatprep.subr.mxu0 0.0
    %6981 = vmatpush1.msra.mxu0 0.0
    %6982 = vmatprep.subr.mxu0 0.0
    %6983 = vmatpush1.msra.mxu0 0.0
    %6984 = vmatprep.subr.mxu0 0.0
    %6985 = vmatpush1.msra.mxu0 0.0
    %6986 = vmatprep.subr.mxu0 0.0
    %6987 = vmatpush1.msra.mxu0 0.0
    %6988 = vmatprep.subr.mxu0 0.0
    %6989 = vmatpush1.msra.mxu0 0.0
    %6990 = vmatprep.subr.mxu0 0.0
    %6991 = vmatpush1.msra.mxu0 0.0
    %6992 = vmatprep.subr.mxu0 0.0
    %6993 = vmatpush1.msra.mxu0 0.0
    %6994 = vmatprep.subr.mxu0 0.0
    %6995 = vmatpush1.msra.mxu0 0.0
    %6996 = vmatprep.subr.mxu0 0.0
    %6997 = vmatpush1.msra.mxu0 0.0
    %6998 = vmatprep.subr.mxu0 0.0
    %6999 = vmatpush1.msra.mxu0 0.0
    %7000 = vmatprep.subr.mxu0 0.0
    %7001 = vmatpush1.msra.mxu0 0.0
    %7002 = vmatprep.subr.mxu0 0.0
    %7003 = vmatpush1.msra.mxu0 0.0
    %7004 = vmatprep.subr.mxu0 0.0
    %7005 = vmatpush1.msra.mxu0 0.0
    %7006 = vmatprep.subr.mxu0 0.0
    %7007 = vmatpush1.msra.mxu0 0.0
    %7008 = vmatprep.subr.mxu0 0.0
    %7009 = vmatpush1.msra.mxu0 0.0
    %7010 = vmatprep.subr.mxu0 0.0
    %7011 = vmatpush1.msra.mxu0 0.0
    %7012 = vmatprep.subr.mxu0 0.0
    %7013 = vmatpush1.msra.mxu0 0.0
    %7014 = vmatprep.subr.mxu0 0.0
    %7015 = vmatpush1.msra.mxu0 0.0
    %7016 = vmatprep.subr.mxu0 0.0
    %7017 = vmatpush1.msra.mxu0 0.0
    %7018 = vmatprep.subr.mxu0 0.0
    %7019 = vmatpush1.msra.mxu0 0.0
    %7020 = vmatprep.subr.mxu0 0.0
    %7021 = vmatpush1.msra.mxu0 0.0
    %7022 = vmatprep.mubr.f32.mxu0 0.0
    %7023 = vmatmul.mubr.f32.gmra.mrb[0].mxu0 %v6947
    %v7024 = vpop.f32.mrb[0].mxu0
    %v7025 = vadd.f32 0.0, %v7024
    %v7026 = vpop.f32.mrb[0].mxu0
    %7027 = vmatprep.mubr.f32.mxu0 0.0
    %7028 = vmatmul.mubr.f32.gmra.mrb[0].mxu0 %v6950
    %v7029 = vpop.f32.mrb[0].mxu0
    %v7030 = vadd.f32 0.0, %v7029
    %v7031 = vpop.f32.mrb[0].mxu0
    %7032 = vmatprep.mubr.f32.mxu0 0.0
    %7033 = vmatmul.mubr.f32.gmra.mrb[0].mxu0 %v6953
    %v7034 = vpop.f32.mrb[0].mxu0
    %v7035 = vadd.f32 0.0, %v7034
    %v7036 = vpop.f32.mrb[0].mxu0
    %7037 = vmatprep.mubr.f32.mxu0 0.0
    %7038 = vmatmul.mubr.f32.gmra.mrb[0].mxu0 %v6956
    %v7039 = vpop.f32.mrb[0].mxu0
    %v7040 = vadd.f32 0.0, %v7039
    %v7041 = vpop.f32.mrb[0].mxu0
    %7042 = vdwg.mxu0
    %v7043 = vadd.f32 %v6849, %v7025
    %v7044 = vadd.f32 %v6850, %v7030
    %v7045 = vadd.f32 %v6851, %v7035
    %v7046 = vadd.f32 %v6852, %v7040
    %s7047 = scalar_lea.vmem [#allocation8], 256
    %v7048 = vld [vmem:[%s7047] sm:$0xff]
    %v7049 = vld [vmem:[%s7047 + $0x8] sm:$0xff]
    %v7050 = vld [vmem:[%s7047 + $0x10] sm:$0xff]
    %v7051 = vld [vmem:[%s7047 + $0x18] sm:$0xff]
    %7052 = vmatprep.subr.mxu0 0.0
    %7053 = vmatpush1.msra.mxu0 %v5488
    %7054 = vmatprep.subr.mxu0 0.0
    %7055 = vmatpush1.msra.mxu0 %v5489
    %7056 = vmatprep.subr.mxu0 0.0
    %7057 = vmatpush1.msra.mxu0 %v5490
    %7058 = vmatprep.subr.mxu0 0.0
    %7059 = vmatpush1.msra.mxu0 %v5491
    %7060 = vmatprep.subr.mxu0 0.0
    %7061 = vmatpush1.msra.mxu0 %v5492
    %7062 = vmatprep.subr.mxu0 0.0
    %7063 = vmatpush1.msra.mxu0 %v5493
    %7064 = vmatprep.subr.mxu0 0.0
    %7065 = vmatpush1.msra.mxu0 %v5494
    %7066 = vmatprep.subr.mxu0 0.0
    %7067 = vmatpush1.msra.mxu0 %v5495
    %7068 = vmatprep.subr.mxu0 0.0
    %7069 = vmatpush1.msra.mxu0 %v5496
    %7070 = vmatprep.subr.mxu0 0.0
    %7071 = vmatpush1.msra.mxu0 %v5497
    %7072 = vmatprep.subr.mxu0 0.0
    %7073 = vmatpush1.msra.mxu0 %v5498
    %7074 = vmatprep.subr.mxu0 0.0
    %7075 = vmatpush1.msra.mxu0 %v5499
    %7076 = vmatprep.subr.mxu0 0.0
    %7077 = vmatpush1.msra.mxu0 %v5500
    %7078 = vmatprep.subr.mxu0 0.0
    %7079 = vmatpush1.msra.mxu0 %v5501
    %7080 = vmatprep.subr.mxu0 0.0
    %7081 = vmatpush1.msra.mxu0 %v5502
    %7082 = vmatprep.subr.mxu0 0.0
    %7083 = vmatpush1.msra.mxu0 %v5503
    %7084 = vmatprep.subr.mxu0 0.0
    %7085 = vmatpush1.msra.mxu0 0.0
    %7086 = vmatprep.subr.mxu0 0.0
    %7087 = vmatpush1.msra.mxu0 0.0
    %7088 = vmatprep.subr.mxu0 0.0
    %7089 = vmatpush1.msra.mxu0 0.0
    %7090 = vmatprep.subr.mxu0 0.0
    %7091 = vmatpush1.msra.mxu0 0.0
    %7092 = vmatprep.subr.mxu0 0.0
    %7093 = vmatpush1.msra.mxu0 0.0
    %7094 = vmatprep.subr.mxu0 0.0
    %7095 = vmatpush1.msra.mxu0 0.0
    %7096 = vmatprep.subr.mxu0 0.0
    %7097 = vmatpush1.msra.mxu0 0.0
    %7098 = vmatprep.subr.mxu0 0.0
    %7099 = vmatpush1.msra.mxu0 0.0
    %7100 = vmatprep.subr.mxu0 0.0
    %7101 = vmatpush1.msra.mxu0 0.0
    %7102 = vmatprep.subr.mxu0 0.0
    %7103 = vmatpush1.msra.mxu0 0.0
    %7104 = vmatprep.subr.mxu0 0.0
    %7105 = vmatpush1.msra.mxu0 0.0
    %7106 = vmatprep.subr.mxu0 0.0
    %7107 = vmatpush1.msra.mxu0 0.0
    %7108 = vmatprep.subr.mxu0 0.0
    %7109 = vmatpush1.msra.mxu0 0.0
    %7110 = vmatprep.subr.mxu0 0.0
    %7111 = vmatpush1.msra.mxu0 0.0
    %7112 = vmatprep.subr.mxu0 0.0
    %7113 = vmatpush1.msra.mxu0 0.0
    %7114 = vmatprep.subr.mxu0 0.0
    %7115 = vmatpush1.msra.mxu0 0.0
    %7116 = vmatprep.mubr.f32.mxu0 0.0
    %7117 = vmatmul.mubr.f32.gmra.mrb[0].mxu0 %v7048
    %v7118 = vpop.f32.mrb[0].mxu0
    %v7119 = vadd.f32 0.0, %v7118
    %v7120 = vpop.f32.mrb[0].mxu0
    %7121 = vmatprep.mubr.f32.mxu0 0.0
    %7122 = vmatmul.mubr.f32.gmra.mrb[0].mxu0 %v7049
    %v7123 = vpop.f32.mrb[0].mxu0
    %v7124 = vadd.f32 0.0, %v7123
    %v7125 = vpop.f32.mrb[0].mxu0
    %7126 = vmatprep.mubr.f32.mxu0 0.0
    %7127 = vmatmul.mubr.f32.gmra.mrb[0].mxu0 %v7050
    %v7128 = vpop.f32.mrb[0].mxu0
    %v7129 = vadd.f32 0.0, %v7128
    %v7130 = vpop.f32.mrb[0].mxu0
    %7131 = vmatprep.mubr.f32.mxu0 0.0
    %7132 = vmatmul.mubr.f32.gmra.mrb[0].mxu0 %v7051
    %v7133 = vpop.f32.mrb[0].mxu0
    %v7134 = vadd.f32 0.0, %v7133
    %v7135 = vpop.f32.mrb[0].mxu0
    %7136 = vdwg.mxu0
    %s7137 = scalar_lea.vmem [#allocation10], 128
    %v7138 = vld [vmem:[%s7137] sm:$0xff]
    %v7139 = vld [vmem:[%s7137 + $0x8] sm:$0xff]
    %v7141 = vsel %vm5688, %v7119, 0
    %v7144 = vsel %vm5688, %v7124, 0
    %v7147 = vsel %vm5688, %v7129, 0
    %v7150 = vsel %vm5688, %v7134, 0
    %7152 = vmatprep.subr.mxu0 0.0
    %7153 = vmatpush1.msra.mxu0 %v7138
    %7154 = vmatprep.subr.mxu0 0.0
    %7155 = vmatpush1.msra.mxu0 %v7139
    %7156 = vmatprep.subr.mxu0 0.0
    %7157 = vmatpush1.msra.mxu0 0.0
    %7158 = vmatprep.subr.mxu0 0.0
    %7159 = vmatpush1.msra.mxu0 0.0
    %7160 = vmatprep.subr.mxu0 0.0
    %7161 = vmatpush1.msra.mxu0 0.0
    %7162 = vmatprep.subr.mxu0 0.0
    %7163 = vmatpush1.msra.mxu0 0.0
    %7164 = vmatprep.subr.mxu0 0.0
    %7165 = vmatpush1.msra.mxu0 0.0
    %7166 = vmatprep.subr.mxu0 0.0
    %7167 = vmatpush1.msra.mxu0 0.0
    %7168 = vmatprep.subr.mxu0 0.0
    %7169 = vmatpush1.msra.mxu0 0.0
    %7170 = vmatprep.subr.mxu0 0.0
    %7171 = vmatpush1.msra.mxu0 0.0
    %7172 = vmatprep.subr.mxu0 0.0
    %7173 = vmatpush1.msra.mxu0 0.0
    %7174 = vmatprep.subr.mxu0 0.0
    %7175 = vmatpush1.msra.mxu0 0.0
    %7176 = vmatprep.subr.mxu0 0.0
    %7177 = vmatpush1.msra.mxu0 0.0
    %7178 = vmatprep.subr.mxu0 0.0
    %7179 = vmatpush1.msra.mxu0 0.0
    %7180 = vmatprep.subr.mxu0 0.0
    %7181 = vmatpush1.msra.mxu0 0.0
    %7182 = vmatprep.subr.mxu0 0.0
    %7183 = vmatpush1.msra.mxu0 0.0
    %7184 = vmatprep.subr.mxu0 0.0
    %7185 = vmatpush1.msra.mxu0 0.0
    %7186 = vmatprep.subr.mxu0 0.0
    %7187 = vmatpush1.msra.mxu0 0.0
    %7188 = vmatprep.subr.mxu0 0.0
    %7189 = vmatpush1.msra.mxu0 0.0
    %7190 = vmatprep.subr.mxu0 0.0
    %7191 = vmatpush1.msra.mxu0 0.0
    %7192 = vmatprep.subr.mxu0 0.0
    %7193 = vmatpush1.msra.mxu0 0.0
    %7194 = vmatprep.subr.mxu0 0.0
    %7195 = vmatpush1.msra.mxu0 0.0
    %7196 = vmatprep.subr.mxu0 0.0
    %7197 = vmatpush1.msra.mxu0 0.0
    %7198 = vmatprep.subr.mxu0 0.0
    %7199 = vmatpush1.msra.mxu0 0.0
    %7200 = vmatprep.subr.mxu0 0.0
    %7201 = vmatpush1.msra.mxu0 0.0
    %7202 = vmatprep.subr.mxu0 0.0
    %7203 = vmatpush1.msra.mxu0 0.0
    %7204 = vmatprep.subr.mxu0 0.0
    %7205 = vmatpush1.msra.mxu0 0.0
    %7206 = vmatprep.subr.mxu0 0.0
    %7207 = vmatpush1.msra.mxu0 0.0
    %7208 = vmatprep.subr.mxu0 0.0
    %7209 = vmatpush1.msra.mxu0 0.0
    %7210 = vmatprep.subr.mxu0 0.0
    %7211 = vmatpush1.msra.mxu0 0.0
    %7212 = vmatprep.subr.mxu0 0.0
    %7213 = vmatpush1.msra.mxu0 0.0
    %7214 = vmatprep.subr.mxu0 0.0
    %7215 = vmatpush1.msra.mxu0 0.0
    %7216 = vmatprep.mubr.f32.mxu0 0.0
    %7217 = vmatmul.mubr.f32.gmra.mrb[0].mxu0 %v7141
    %v7218 = vpop.f32.mrb[0].mxu0
    %v7219 = vadd.f32 0.0, %v7218
    %v7220 = vpop.f32.mrb[0].mxu0
    %7221 = vmatprep.mubr.f32.mxu0 0.0
    %7222 = vmatmul.mubr.f32.gmra.mrb[0].mxu0 %v7144
    %v7223 = vpop.f32.mrb[0].mxu0
    %v7224 = vadd.f32 0.0, %v7223
    %v7225 = vpop.f32.mrb[0].mxu0
    %7226 = vmatprep.mubr.f32.mxu0 0.0
    %7227 = vmatmul.mubr.f32.gmra.mrb[0].mxu0 %v7147
    %v7228 = vpop.f32.mrb[0].mxu0
    %v7229 = vadd.f32 0.0, %v7228
    %v7230 = vpop.f32.mrb[0].mxu0
    %7231 = vmatprep.mubr.f32.mxu0 0.0
    %7232 = vmatmul.mubr.f32.gmra.mrb[0].mxu0 %v7150
    %v7233 = vpop.f32.mrb[0].mxu0
    %v7234 = vadd.f32 0.0, %v7233
    %v7235 = vpop.f32.mrb[0].mxu0
    %7236 = vdwg.mxu0
    %v7237 = vadd.f32 %v7043, %v7219
    %v7238 = vadd.f32 %v7044, %v7224
    %v7239 = vadd.f32 %v7045, %v7229
    %v7240 = vadd.f32 %v7046, %v7234
    %v7241 = vld [vmem:[#allocation11] sm:$0x1]
    %v7243 = vlaneseq
    %v7244 = vshrl.u32 %v7243, 7
    %v7245 = vsub.s32 0, %v7244
    %v7246 = vrot.slane %v7241, %v7245
    %v7248 = vadd.f32 %v7237, %v7246
    %v7249 = vadd.f32 %v7238, %v7246
    %v7250 = vadd.f32 %v7239, %v7246
    %v7251 = vadd.f32 %v7240, %v7246
    %vm7252 = vcmp.ge.f32.partialorder %v7248, 0.0
    %vm7253 = vcmp.ge.f32.partialorder %v7249, 0.0
    %vm7254 = vcmp.ge.f32.partialorder %v7250, 0.0
    %vm7255 = vcmp.ge.f32.partialorder %v7251, 0.0
    %v7256 = vmul.f32 %v7248, 0.2
    %v7257 = vmul.f32 %v7249, 0.2
    %v7258 = vmul.f32 %v7250, 0.2
    %v7259 = vmul.f32 %v7251, 0.2
    %v7260 = vsel %vm7252, %v7248, %v7256
    %v7261 = vsel %vm7253, %v7249, %v7257
    %v7262 = vsel %vm7254, %v7250, %v7258
    %v7263 = vsel %vm7255, %v7251, %v7259
    %vm7264 = vcmask 261120
    %v7265 = vsel %vm7264, %v7260, 0.0
    %v7266 = vsel %vm7264, %v7261, 0.0
    %v7267 = vadd.f32 %v7265, %v7266
    %v7268 = vsel %vm7264, %v7262, 0.0
    %v7269 = vadd.f32 %v7267, %v7268
    %v7270 = vsel %vm7264, %v7263, 0.0
    %v7271 = vadd.f32 %v7269, %v7270
    %v7272 = vrot.slane %v7271, 4
    %v7273 = vadd.f32 %v7271, %v7272
    %v7274 = vrot.slane %v7273, 2
    %v7275 = vadd.f32 %v7273, %v7274
    %v7276 = vrot.slane %v7275, 1
    %v7277 = vadd.f32 %v7275, %v7276
    %v7278 = vrcp.pop 32.0
    %v7279 = vmul.f32 %v7277, %v7278
    %v7280 = vsub.f32 %v7260, %v7279
    %v7281 = vsub.f32 %v7261, %v7279
    %v7282 = vsub.f32 %v7262, %v7279
    %v7283 = vsub.f32 %v7263, %v7279
    %v7284 = vmul.f32 %v7280, %v7280
    %v7285 = vmul.f32 %v7281, %v7281
    %v7286 = vmul.f32 %v7282, %v7282
    %v7287 = vmul.f32 %v7283, %v7283
    %v7288 = vsel %vm7264, %v7284, 0.0
    %v7289 = vsel %vm7264, %v7285, 0.0
    %v7290 = vadd.f32 %v7288, %v7289
    %v7291 = vsel %vm7264, %v7286, 0.0
    %v7292 = vadd.f32 %v7290, %v7291
    %v7293 = vsel %vm7264, %v7287, 0.0
    %v7294 = vadd.f32 %v7292, %v7293
    %v7295 = vrot.slane %v7294, 4
    %v7296 = vadd.f32 %v7294, %v7295
    %v7297 = vrot.slane %v7296, 2
    %v7298 = vadd.f32 %v7296, %v7297
    %v7299 = vrot.slane %v7298, 1
    %v7300 = vadd.f32 %v7298, %v7299
    %v7301 = vmul.f32 %v7300, %v7278
    %v7302 = vadd.f32 %v7301, 1e-05
    %v7303 = vrsqrt.pop %v7302
    %v7304 = vmul.f32 %v7280, %v7303
    %v7305 = vmul.f32 %v7281, %v7303
    %v7306 = vmul.f32 %v7282, %v7303
    %v7307 = vmul.f32 %v7283, %v7303
    %v7308 = vld [vmem:[#allocation13] sm:$0x1]
    %v7310 = vlaneseq
    %v7311 = vshrl.u32 %v7310, 7
    %v7312 = vsub.s32 0, %v7311
    %v7313 = vrot.slane %v7308, %v7312
    %v7315 = vmul.f32 %v7304, %v7313
    %v7316 = vmul.f32 %v7305, %v7313
    %v7317 = vmul.f32 %v7306, %v7313
    %v7318 = vmul.f32 %v7307, %v7313
    %v7319 = vld [vmem:[#allocation14] sm:$0x1]
    %v7321 = vlaneseq
    %v7322 = vshrl.u32 %v7321, 7
    %v7323 = vsub.s32 0, %v7322
    %v7324 = vrot.slane %v7319, %v7323
    %v7326 = vadd.f32 %v7315, %v7324
    %v7327 = vadd.f32 %v7316, %v7324
    %v7328 = vadd.f32 %v7317, %v7324
    %v7329 = vadd.f32 %v7318, %v7324
    %v7330 = vld [vmem:[#allocation16] sm:$0xff]
    %v7332 = vsel %vm7264, %v7330, 0
    %7334 = vmatprep.subr.mxu0 0.0
    %7335 = vmatpush1.msra.mxu0 %v7326
    %7336 = vmatprep.subr.mxu0 0.0
    %7337 = vmatpush1.msra.mxu0 %v7327
    %7338 = vmatprep.subr.mxu0 0.0
    %7339 = vmatpush1.msra.mxu0 %v7328
    %7340 = vmatprep.subr.mxu0 0.0
    %7341 = vmatpush1.msra.mxu0 %v7329
    %7342 = vmatprep.subr.mxu0 0.0
    %7343 = vmatpush1.msra.mxu0 0.0
    %7344 = vmatprep.subr.mxu0 0.0
    %7345 = vmatpush1.msra.mxu0 0.0
    %7346 = vmatprep.subr.mxu0 0.0
    %7347 = vmatpush1.msra.mxu0 0.0
    %7348 = vmatprep.subr.mxu0 0.0
    %7349 = vmatpush1.msra.mxu0 0.0
    %7350 = vmatprep.subr.mxu0 0.0
    %7351 = vmatpush1.msra.mxu0 0.0
    %7352 = vmatprep.subr.mxu0 0.0
    %7353 = vmatpush1.msra.mxu0 0.0
    %7354 = vmatprep.subr.mxu0 0.0
    %7355 = vmatpush1.msra.mxu0 0.0
    %7356 = vmatprep.subr.mxu0 0.0
    %7357 = vmatpush1.msra.mxu0 0.0
    %7358 = vmatprep.subr.mxu0 0.0
    %7359 = vmatpush1.msra.mxu0 0.0
    %7360 = vmatprep.subr.mxu0 0.0
    %7361 = vmatpush1.msra.mxu0 0.0
    %7362 = vmatprep.subr.mxu0 0.0
    %7363 = vmatpush1.msra.mxu0 0.0
    %7364 = vmatprep.subr.mxu0 0.0
    %7365 = vmatpush1.msra.mxu0 0.0
    %7366 = vmatprep.subr.mxu0 0.0
    %7367 = vmatpush1.msra.mxu0 0.0
    %7368 = vmatprep.subr.mxu0 0.0
    %7369 = vmatpush1.msra.mxu0 0.0
    %7370 = vmatprep.subr.mxu0 0.0
    %7371 = vmatpush1.msra.mxu0 0.0
    %7372 = vmatprep.subr.mxu0 0.0
    %7373 = vmatpush1.msra.mxu0 0.0
    %7374 = vmatprep.subr.mxu0 0.0
    %7375 = vmatpush1.msra.mxu0 0.0
    %7376 = vmatprep.subr.mxu0 0.0
    %7377 = vmatpush1.msra.mxu0 0.0
    %7378 = vmatprep.subr.mxu0 0.0
    %7379 = vmatpush1.msra.mxu0 0.0
    %7380 = vmatprep.subr.mxu0 0.0
    %7381 = vmatpush1.msra.mxu0 0.0
    %7382 = vmatprep.subr.mxu0 0.0
    %7383 = vmatpush1.msra.mxu0 0.0
    %7384 = vmatprep.subr.mxu0 0.0
    %7385 = vmatpush1.msra.mxu0 0.0
    %7386 = vmatprep.subr.mxu0 0.0
    %7387 = vmatpush1.msra.mxu0 0.0
    %7388 = vmatprep.subr.mxu0 0.0
    %7389 = vmatpush1.msra.mxu0 0.0
    %7390 = vmatprep.subr.mxu0 0.0
    %7391 = vmatpush1.msra.mxu0 0.0
    %7392 = vmatprep.subr.mxu0 0.0
    %7393 = vmatpush1.msra.mxu0 0.0
    %7394 = vmatprep.subr.mxu0 0.0
    %7395 = vmatpush1.msra.mxu0 0.0
    %7396 = vmatprep.subr.mxu0 0.0
    %7397 = vmatpush1.msra.mxu0 0.0
    %7398 = vmatprep.mubr.f32.mxu0 0.0
    %7399 = vmatmul.mubr.f32.gmra.mrb[0].mxu0 %v7332
    %v7400 = vpop.f32.mrb[0].mxu0
    %v7401 = vadd.f32 0.0, %v7400
    %v7402 = vpop.f32.mrb[0].mxu0
    %7403 = vdwg.mxu0
    %v7404 = vld [vmem:[#allocation17] sm:$0xff]
    %v7405 = vld [vmem:[#allocation17 + $0x8] sm:$0xff]
    %v7406 = vld [vmem:[#allocation17 + $0x10] sm:$0xff]
    %v7407 = vld [vmem:[#allocation17 + $0x18] sm:$0xff]
    %s7408 = scalar_lea.vmem [#allocation16], 8
    %v7409 = vld [vmem:[%s7408] sm:$0xff]
    %v7411 = vsel %vm7264, %v7409, 0
    %7413 = vmatprep.subr.mxu0 0.0
    %7414 = vmatpush1.msra.mxu0 %v7326
    %7415 = vmatprep.subr.mxu0 0.0
    %7416 = vmatpush1.msra.mxu0 %v7327
    %7417 = vmatprep.subr.mxu0 0.0
    %7418 = vmatpush1.msra.mxu0 %v7328
    %7419 = vmatprep.subr.mxu0 0.0
    %7420 = vmatpush1.msra.mxu0 %v7329
    %7421 = vmatprep.subr.mxu0 0.0
    %7422 = vmatpush1.msra.mxu0 0.0
    %7423 = vmatprep.subr.mxu0 0.0
    %7424 = vmatpush1.msra.mxu0 0.0
    %7425 = vmatprep.subr.mxu0 0.0
    %7426 = vmatpush1.msra.mxu0 0.0
    %7427 = vmatprep.subr.mxu0 0.0
    %7428 = vmatpush1.msra.mxu0 0.0
    %7429 = vmatprep.subr.mxu0 0.0
    %7430 = vmatpush1.msra.mxu0 0.0
    %7431 = vmatprep.subr.mxu0 0.0
    %7432 = vmatpush1.msra.mxu0 0.0
    %7433 = vmatprep.subr.mxu0 0.0
    %7434 = vmatpush1.msra.mxu0 0.0
    %7435 = vmatprep.subr.mxu0 0.0
    %7436 = vmatpush1.msra.mxu0 0.0
    %7437 = vmatprep.subr.mxu0 0.0
    %7438 = vmatpush1.msra.mxu0 0.0
    %7439 = vmatprep.subr.mxu0 0.0
    %7440 = vmatpush1.msra.mxu0 0.0
    %7441 = vmatprep.subr.mxu0 0.0
    %7442 = vmatpush1.msra.mxu0 0.0
    %7443 = vmatprep.subr.mxu0 0.0
    %7444 = vmatpush1.msra.mxu0 0.0
    %7445 = vmatprep.subr.mxu0 0.0
    %7446 = vmatpush1.msra.mxu0 0.0
    %7447 = vmatprep.subr.mxu0 0.0
    %7448 = vmatpush1.msra.mxu0 0.0
    %7449 = vmatprep.subr.mxu0 0.0
    %7450 = vmatpush1.msra.mxu0 0.0
    %7451 = vmatprep.subr.mxu0 0.0
    %7452 = vmatpush1.msra.mxu0 0.0
    %7453 = vmatprep.subr.mxu0 0.0
    %7454 = vmatpush1.msra.mxu0 0.0
    %7455 = vmatprep.subr.mxu0 0.0
    %7456 = vmatpush1.msra.mxu0 0.0
    %7457 = vmatprep.subr.mxu0 0.0
    %7458 = vmatpush1.msra.mxu0 0.0
    %7459 = vmatprep.subr.mxu0 0.0
    %7460 = vmatpush1.msra.mxu0 0.0
    %7461 = vmatprep.subr.mxu0 0.0
    %7462 = vmatpush1.msra.mxu0 0.0
    %7463 = vmatprep.subr.mxu0 0.0
    %7464 = vmatpush1.msra.mxu0 0.0
    %7465 = vmatprep.subr.mxu0 0.0
    %7466 = vmatpush1.msra.mxu0 0.0
    %7467 = vmatprep.subr.mxu0 0.0
    %7468 = vmatpush1.msra.mxu0 0.0
    %7469 = vmatprep.subr.mxu0 0.0
    %7470 = vmatpush1.msra.mxu0 0.0
    %7471 = vmatprep.subr.mxu0 0.0
    %7472 = vmatpush1.msra.mxu0 0.0
    %7473 = vmatprep.subr.mxu0 0.0
    %7474 = vmatpush1.msra.mxu0 0.0
    %7475 = vmatprep.subr.mxu0 0.0
    %7476 = vmatpush1.msra.mxu0 0.0
    %7477 = vmatprep.mubr.f32.mxu0 0.0
    %7478 = vmatmul.mubr.f32.gmra.mrb[0].mxu0 %v7411
    %v7479 = vpop.f32.mrb[0].mxu0
    %v7480 = vadd.f32 0.0, %v7479
    %v7481 = vpop.f32.mrb[0].mxu0
    %7482 = vdwg.mxu0
    %s7483 = scalar_lea.vmem [#allocation17], 32
    %v7484 = vld [vmem:[%s7483] sm:$0xff]
    %v7485 = vld [vmem:[%s7483 + $0x8] sm:$0xff]
    %v7486 = vld [vmem:[%s7483 + $0x10] sm:$0xff]
    %v7487 = vld [vmem:[%s7483 + $0x18] sm:$0xff]
    %v7489 = vsel %vm7264, %v7480, 0
    %7491 = vmatprep.subr.mxu0 0.0
    %7492 = vmatpush1.msra.mxu0 %v7484
    %7493 = vmatprep.subr.mxu0 0.0
    %7494 = vmatpush1.msra.mxu0 %v7485
    %7495 = vmatprep.subr.mxu0 0.0
    %7496 = vmatpush1.msra.mxu0 %v7486
    %7497 = vmatprep.subr.mxu0 0.0
    %7498 = vmatpush1.msra.mxu0 %v7487
    %7499 = vmatprep.subr.mxu0 0.0
    %7500 = vmatpush1.msra.mxu0 0.0
    %7501 = vmatprep.subr.mxu0 0.0
    %7502 = vmatpush1.msra.mxu0 0.0
    %7503 = vmatprep.subr.mxu0 0.0
    %7504 = vmatpush1.msra.mxu0 0.0
    %7505 = vmatprep.subr.mxu0 0.0
    %7506 = vmatpush1.msra.mxu0 0.0
    %7507 = vmatprep.subr.mxu0 0.0
    %7508 = vmatpush1.msra.mxu0 0.0
    %7509 = vmatprep.subr.mxu0 0.0
    %7510 = vmatpush1.msra.mxu0 0.0
    %7511 = vmatprep.subr.mxu0 0.0
    %7512 = vmatpush1.msra.mxu0 0.0
    %7513 = vmatprep.subr.mxu0 0.0
    %7514 = vmatpush1.msra.mxu0 0.0
    %7515 = vmatprep.subr.mxu0 0.0
    %7516 = vmatpush1.msra.mxu0 0.0
    %7517 = vmatprep.subr.mxu0 0.0
    %7518 = vmatpush1.msra.mxu0 0.0
    %7519 = vmatprep.subr.mxu0 0.0
    %7520 = vmatpush1.msra.mxu0 0.0
    %7521 = vmatprep.subr.mxu0 0.0
    %7522 = vmatpush1.msra.mxu0 0.0
    %7523 = vmatprep.subr.mxu0 0.0
    %7524 = vmatpush1.msra.mxu0 0.0
    %7525 = vmatprep.subr.mxu0 0.0
    %7526 = vmatpush1.msra.mxu0 0.0
    %7527 = vmatprep.subr.mxu0 0.0
    %7528 = vmatpush1.msra.mxu0 0.0
    %7529 = vmatprep.subr.mxu0 0.0
    %7530 = vmatpush1.msra.mxu0 0.0
    %7531 = vmatprep.subr.mxu0 0.0
    %7532 = vmatpush1.msra.mxu0 0.0
    %7533 = vmatprep.subr.mxu0 0.0
    %7534 = vmatpush1.msra.mxu0 0.0
    %7535 = vmatprep.subr.mxu0 0.0
    %7536 = vmatpush1.msra.mxu0 0.0
    %7537 = vmatprep.subr.mxu0 0.0
    %7538 = vmatpush1.msra.mxu0 0.0
    %7539 = vmatprep.subr.mxu0 0.0
    %7540 = vmatpush1.msra.mxu0 0.0
    %7541 = vmatprep.subr.mxu0 0.0
    %7542 = vmatpush1.msra.mxu0 0.0
    %7543 = vmatprep.subr.mxu0 0.0
    %7544 = vmatpush1.msra.mxu0 0.0
    %7545 = vmatprep.subr.mxu0 0.0
    %7546 = vmatpush1.msra.mxu0 0.0
    %7547 = vmatprep.subr.mxu0 0.0
    %7548 = vmatpush1.msra.mxu0 0.0
    %7549 = vmatprep.subr.mxu0 0.0
    %7550 = vmatpush1.msra.mxu0 0.0
    %7551 = vmatprep.subr.mxu0 0.0
    %7552 = vmatpush1.msra.mxu0 0.0
    %7553 = vmatprep.subr.mxu0 0.0
    %7554 = vmatpush1.msra.mxu0 0.0
    %7555 = vmatprep.mubr.f32.mxu0 0.0
    %7556 = vmatmul.mubr.f32.gmra.mrb[0].mxu0 %v7489
    %v7557 = vpop.f32.mrb[0].mxu0
    %v7558 = vadd.f32 0.0, %v7557
    %v7559 = vpop.f32.mrb[0].mxu0
    %7560 = vdwg.mxu0
    %v7562 = vsel %vm7264, %v7401, 0
    %7564 = vmatprep.subr.mxu0 0.0
    %7565 = vmatpush1.msra.mxu0 %v7404
    %7566 = vmatprep.subr.mxu0 0.0
    %7567 = vmatpush1.msra.mxu0 %v7405
    %7568 = vmatprep.subr.mxu0 0.0
    %7569 = vmatpush1.msra.mxu0 %v7406
    %7570 = vmatprep.subr.mxu0 0.0
    %7571 = vmatpush1.msra.mxu0 %v7407
    %7572 = vmatprep.subr.mxu0 0.0
    %7573 = vmatpush1.msra.mxu0 0.0
    %7574 = vmatprep.subr.mxu0 0.0
    %7575 = vmatpush1.msra.mxu0 0.0
    %7576 = vmatprep.subr.mxu0 0.0
    %7577 = vmatpush1.msra.mxu0 0.0
    %7578 = vmatprep.subr.mxu0 0.0
    %7579 = vmatpush1.msra.mxu0 0.0
    %7580 = vmatprep.subr.mxu0 0.0
    %7581 = vmatpush1.msra.mxu0 0.0
    %7582 = vmatprep.subr.mxu0 0.0
    %7583 = vmatpush1.msra.mxu0 0.0
    %7584 = vmatprep.subr.mxu0 0.0
    %7585 = vmatpush1.msra.mxu0 0.0
    %7586 = vmatprep.subr.mxu0 0.0
    %7587 = vmatpush1.msra.mxu0 0.0
    %7588 = vmatprep.subr.mxu0 0.0
    %7589 = vmatpush1.msra.mxu0 0.0
    %7590 = vmatprep.subr.mxu0 0.0
    %7591 = vmatpush1.msra.mxu0 0.0
    %7592 = vmatprep.subr.mxu0 0.0
    %7593 = vmatpush1.msra.mxu0 0.0
    %7594 = vmatprep.subr.mxu0 0.0
    %7595 = vmatpush1.msra.mxu0 0.0
    %7596 = vmatprep.subr.mxu0 0.0
    %7597 = vmatpush1.msra.mxu0 0.0
    %7598 = vmatprep.subr.mxu0 0.0
    %7599 = vmatpush1.msra.mxu0 0.0
    %7600 = vmatprep.subr.mxu0 0.0
    %7601 = vmatpush1.msra.mxu0 0.0
    %7602 = vmatprep.subr.mxu0 0.0
    %7603 = vmatpush1.msra.mxu0 0.0
    %7604 = vmatprep.subr.mxu0 0.0
    %7605 = vmatpush1.msra.mxu0 0.0
    %7606 = vmatprep.subr.mxu0 0.0
    %7607 = vmatpush1.msra.mxu0 0.0
    %7608 = vmatprep.subr.mxu0 0.0
    %7609 = vmatpush1.msra.mxu0 0.0
    %7610 = vmatprep.subr.mxu0 0.0
    %7611 = vmatpush1.msra.mxu0 0.0
    %7612 = vmatprep.subr.mxu0 0.0
    %7613 = vmatpush1.msra.mxu0 0.0
    %7614 = vmatprep.subr.mxu0 0.0
    %7615 = vmatpush1.msra.mxu0 0.0
    %7616 = vmatprep.subr.mxu0 0.0
    %7617 = vmatpush1.msra.mxu0 0.0
    %7618 = vmatprep.subr.mxu0 0.0
    %7619 = vmatpush1.msra.mxu0 0.0
    %7620 = vmatprep.subr.mxu0 0.0
    %7621 = vmatpush1.msra.mxu0 0.0
    %7622 = vmatprep.subr.mxu0 0.0
    %7623 = vmatpush1.msra.mxu0 0.0
    %7624 = vmatprep.subr.mxu0 0.0
    %7625 = vmatpush1.msra.mxu0 0.0
    %7626 = vmatprep.subr.mxu0 0.0
    %7627 = vmatpush1.msra.mxu0 0.0
    %7628 = vmatprep.mubr.f32.mxu0 0.0
    %7629 = vmatmul.mubr.f32.gmra.mrb[0].mxu0 %v7562
    %v7630 = vpop.f32.mrb[0].mxu0
    %v7631 = vadd.f32 %v7558, %v7630
    %v7632 = vpop.f32.mrb[0].mxu0
    %7633 = vdwg.mxu0
    %s7634 = scalar_lea.vmem [#allocation16], 16
    %v7635 = vld [vmem:[%s7634] sm:$0xff]
    %v7637 = vsel %vm7264, %v7635, 0
    %7639 = vmatprep.subr.mxu0 0.0
    %7640 = vmatpush1.msra.mxu0 %v7326
    %7641 = vmatprep.subr.mxu0 0.0
    %7642 = vmatpush1.msra.mxu0 %v7327
    %7643 = vmatprep.subr.mxu0 0.0
    %7644 = vmatpush1.msra.mxu0 %v7328
    %7645 = vmatprep.subr.mxu0 0.0
    %7646 = vmatpush1.msra.mxu0 %v7329
    %7647 = vmatprep.subr.mxu0 0.0
    %7648 = vmatpush1.msra.mxu0 0.0
    %7649 = vmatprep.subr.mxu0 0.0
    %7650 = vmatpush1.msra.mxu0 0.0
    %7651 = vmatprep.subr.mxu0 0.0
    %7652 = vmatpush1.msra.mxu0 0.0
    %7653 = vmatprep.subr.mxu0 0.0
    %7654 = vmatpush1.msra.mxu0 0.0
    %7655 = vmatprep.subr.mxu0 0.0
    %7656 = vmatpush1.msra.mxu0 0.0
    %7657 = vmatprep.subr.mxu0 0.0
    %7658 = vmatpush1.msra.mxu0 0.0
    %7659 = vmatprep.subr.mxu0 0.0
    %7660 = vmatpush1.msra.mxu0 0.0
    %7661 = vmatprep.subr.mxu0 0.0
    %7662 = vmatpush1.msra.mxu0 0.0
    %7663 = vmatprep.subr.mxu0 0.0
    %7664 = vmatpush1.msra.mxu0 0.0
    %7665 = vmatprep.subr.mxu0 0.0
    %7666 = vmatpush1.msra.mxu0 0.0
    %7667 = vmatprep.subr.mxu0 0.0
    %7668 = vmatpush1.msra.mxu0 0.0
    %7669 = vmatprep.subr.mxu0 0.0
    %7670 = vmatpush1.msra.mxu0 0.0
    %7671 = vmatprep.subr.mxu0 0.0
    %7672 = vmatpush1.msra.mxu0 0.0
    %7673 = vmatprep.subr.mxu0 0.0
    %7674 = vmatpush1.msra.mxu0 0.0
    %7675 = vmatprep.subr.mxu0 0.0
    %7676 = vmatpush1.msra.mxu0 0.0
    %7677 = vmatprep.subr.mxu0 0.0
    %7678 = vmatpush1.msra.mxu0 0.0
    %7679 = vmatprep.subr.mxu0 0.0
    %7680 = vmatpush1.msra.mxu0 0.0
    %7681 = vmatprep.subr.mxu0 0.0
    %7682 = vmatpush1.msra.mxu0 0.0
    %7683 = vmatprep.subr.mxu0 0.0
    %7684 = vmatpush1.msra.mxu0 0.0
    %7685 = vmatprep.subr.mxu0 0.0
    %7686 = vmatpush1.msra.mxu0 0.0
    %7687 = vmatprep.subr.mxu0 0.0
    %7688 = vmatpush1.msra.mxu0 0.0
    %7689 = vmatprep.subr.mxu0 0.0
    %7690 = vmatpush1.msra.mxu0 0.0
    %7691 = vmatprep.subr.mxu0 0.0
    %7692 = vmatpush1.msra.mxu0 0.0
    %7693 = vmatprep.subr.mxu0 0.0
    %7694 = vmatpush1.msra.mxu0 0.0
    %7695 = vmatprep.subr.mxu0 0.0
    %7696 = vmatpush1.msra.mxu0 0.0
    %7697 = vmatprep.subr.mxu0 0.0
    %7698 = vmatpush1.msra.mxu0 0.0
    %7699 = vmatprep.subr.mxu0 0.0
    %7700 = vmatpush1.msra.mxu0 0.0
    %7701 = vmatprep.subr.mxu0 0.0
    %7702 = vmatpush1.msra.mxu0 0.0
    %7703 = vmatprep.mubr.f32.mxu0 0.0
    %7704 = vmatmul.mubr.f32.gmra.mrb[0].mxu0 %v7637
    %v7705 = vpop.f32.mrb[0].mxu0
    %v7706 = vadd.f32 0.0, %v7705
    %v7707 = vpop.f32.mrb[0].mxu0
    %7708 = vdwg.mxu0
    %s7709 = scalar_lea.vmem [#allocation17], 64
    %v7710 = vld [vmem:[%s7709] sm:$0xff]
    %v7711 = vld [vmem:[%s7709 + $0x8] sm:$0xff]
    %v7712 = vld [vmem:[%s7709 + $0x10] sm:$0xff]
    %v7713 = vld [vmem:[%s7709 + $0x18] sm:$0xff]
    %v7715 = vsel %vm7264, %v7706, 0
    %7717 = vmatprep.subr.mxu0 0.0
    %7718 = vmatpush1.msra.mxu0 %v7710
    %7719 = vmatprep.subr.mxu0 0.0
    %7720 = vmatpush1.msra.mxu0 %v7711
    %7721 = vmatprep.subr.mxu0 0.0
    %7722 = vmatpush1.msra.mxu0 %v7712
    %7723 = vmatprep.subr.mxu0 0.0
    %7724 = vmatpush1.msra.mxu0 %v7713
    %7725 = vmatprep.subr.mxu0 0.0
    %7726 = vmatpush1.msra.mxu0 0.0
    %7727 = vmatprep.subr.mxu0 0.0
    %7728 = vmatpush1.msra.mxu0 0.0
    %7729 = vmatprep.subr.mxu0 0.0
    %7730 = vmatpush1.msra.mxu0 0.0
    %7731 = vmatprep.subr.mxu0 0.0
    %7732 = vmatpush1.msra.mxu0 0.0
    %7733 = vmatprep.subr.mxu0 0.0
    %7734 = vmatpush1.msra.mxu0 0.0
    %7735 = vmatprep.subr.mxu0 0.0
    %7736 = vmatpush1.msra.mxu0 0.0
    %7737 = vmatprep.subr.mxu0 0.0
    %7738 = vmatpush1.msra.mxu0 0.0
    %7739 = vmatprep.subr.mxu0 0.0
    %7740 = vmatpush1.msra.mxu0 0.0
    %7741 = vmatprep.subr.mxu0 0.0
    %7742 = vmatpush1.msra.mxu0 0.0
    %7743 = vmatprep.subr.mxu0 0.0
    %7744 = vmatpush1.msra.mxu0 0.0
    %7745 = vmatprep.subr.mxu0 0.0
    %7746 = vmatpush1.msra.mxu0 0.0
    %7747 = vmatprep.subr.mxu0 0.0
    %7748 = vmatpush1.msra.mxu0 0.0
    %7749 = vmatprep.subr.mxu0 0.0
    %7750 = vmatpush1.msra.mxu0 0.0
    %7751 = vmatprep.subr.mxu0 0.0
    %7752 = vmatpush1.msra.mxu0 0.0
    %7753 = vmatprep.subr.mxu0 0.0
    %7754 = vmatpush1.msra.mxu0 0.0
    %7755 = vmatprep.subr.mxu0 0.0
    %7756 = vmatpush1.msra.mxu0 0.0
    %7757 = vmatprep.subr.mxu0 0.0
    %7758 = vmatpush1.msra.mxu0 0.0
    %7759 = vmatprep.subr.mxu0 0.0
    %7760 = vmatpush1.msra.mxu0 0.0
    %7761 = vmatprep.subr.mxu0 0.0
    %7762 = vmatpush1.msra.mxu0 0.0
    %7763 = vmatprep.subr.mxu0 0.0
    %7764 = vmatpush1.msra.mxu0 0.0
    %7765 = vmatprep.subr.mxu0 0.0
    %7766 = vmatpush1.msra.mxu0 0.0
    %7767 = vmatprep.subr.mxu0 0.0
    %7768 = vmatpush1.msra.mxu0 0.0
    %7769 = vmatprep.subr.mxu0 0.0
    %7770 = vmatpush1.msra.mxu0 0.0
    %7771 = vmatprep.subr.mxu0 0.0
    %7772 = vmatpush1.msra.mxu0 0.0
    %7773 = vmatprep.subr.mxu0 0.0
    %7774 = vmatpush1.msra.mxu0 0.0
    %7775 = vmatprep.subr.mxu0 0.0
    %7776 = vmatpush1.msra.mxu0 0.0
    %7777 = vmatprep.subr.mxu0 0.0
    %7778 = vmatpush1.msra.mxu0 0.0
    %7779 = vmatprep.subr.mxu0 0.0
    %7780 = vmatpush1.msra.mxu0 0.0
    %7781 = vmatprep.mubr.f32.mxu0 0.0
    %7782 = vmatmul.mubr.f32.gmra.mrb[0].mxu0 %v7715
    %v7783 = vpop.f32.mrb[0].mxu0
    %v7784 = vadd.f32 0.0, %v7783
    %v7785 = vpop.f32.mrb[0].mxu0
    %7786 = vdwg.mxu0
    %v7787 = vadd.f32 %v7631, %v7784
    %s7788 = scalar_lea.vmem [#allocation16], 24
    %v7789 = vld [vmem:[%s7788] sm:$0xff]
    %v7791 = vsel %vm7264, %v7789, 0
    %7793 = vmatprep.subr.mxu0 0.0
    %7794 = vmatpush1.msra.mxu0 %v7326
    %7795 = vmatprep.subr.mxu0 0.0
    %7796 = vmatpush1.msra.mxu0 %v7327
    %7797 = vmatprep.subr.mxu0 0.0
    %7798 = vmatpush1.msra.mxu0 %v7328
    %7799 = vmatprep.subr.mxu0 0.0
    %7800 = vmatpush1.msra.mxu0 %v7329
    %7801 = vmatprep.subr.mxu0 0.0
    %7802 = vmatpush1.msra.mxu0 0.0
    %7803 = vmatprep.subr.mxu0 0.0
    %7804 = vmatpush1.msra.mxu0 0.0
    %7805 = vmatprep.subr.mxu0 0.0
    %7806 = vmatpush1.msra.mxu0 0.0
    %7807 = vmatprep.subr.mxu0 0.0
    %7808 = vmatpush1.msra.mxu0 0.0
    %7809 = vmatprep.subr.mxu0 0.0
    %7810 = vmatpush1.msra.mxu0 0.0
    %7811 = vmatprep.subr.mxu0 0.0
    %7812 = vmatpush1.msra.mxu0 0.0
    %7813 = vmatprep.subr.mxu0 0.0
    %7814 = vmatpush1.msra.mxu0 0.0
    %7815 = vmatprep.subr.mxu0 0.0
    %7816 = vmatpush1.msra.mxu0 0.0
    %7817 = vmatprep.subr.mxu0 0.0
    %7818 = vmatpush1.msra.mxu0 0.0
    %7819 = vmatprep.subr.mxu0 0.0
    %7820 = vmatpush1.msra.mxu0 0.0
    %7821 = vmatprep.subr.mxu0 0.0
    %7822 = vmatpush1.msra.mxu0 0.0
    %7823 = vmatprep.subr.mxu0 0.0
    %7824 = vmatpush1.msra.mxu0 0.0
    %7825 = vmatprep.subr.mxu0 0.0
    %7826 = vmatpush1.msra.mxu0 0.0
    %7827 = vmatprep.subr.mxu0 0.0
    %7828 = vmatpush1.msra.mxu0 0.0
    %7829 = vmatprep.subr.mxu0 0.0
    %7830 = vmatpush1.msra.mxu0 0.0
    %7831 = vmatprep.subr.mxu0 0.0
    %7832 = vmatpush1.msra.mxu0 0.0
    %7833 = vmatprep.subr.mxu0 0.0
    %7834 = vmatpush1.msra.mxu0 0.0
    %7835 = vmatprep.subr.mxu0 0.0
    %7836 = vmatpush1.msra.mxu0 0.0
    %7837 = vmatprep.subr.mxu0 0.0
    %7838 = vmatpush1.msra.mxu0 0.0
    %7839 = vmatprep.subr.mxu0 0.0
    %7840 = vmatpush1.msra.mxu0 0.0
    %7841 = vmatprep.subr.mxu0 0.0
    %7842 = vmatpush1.msra.mxu0 0.0
    %7843 = vmatprep.subr.mxu0 0.0
    %7844 = vmatpush1.msra.mxu0 0.0
    %7845 = vmatprep.subr.mxu0 0.0
    %7846 = vmatpush1.msra.mxu0 0.0
    %7847 = vmatprep.subr.mxu0 0.0
    %7848 = vmatpush1.msra.mxu0 0.0
    %7849 = vmatprep.subr.mxu0 0.0
    %7850 = vmatpush1.msra.mxu0 0.0
    %7851 = vmatprep.subr.mxu0 0.0
    %7852 = vmatpush1.msra.mxu0 0.0
    %7853 = vmatprep.subr.mxu0 0.0
    %7854 = vmatpush1.msra.mxu0 0.0
    %7855 = vmatprep.subr.mxu0 0.0
    %7856 = vmatpush1.msra.mxu0 0.0
    %7857 = vmatprep.mubr.f32.mxu0 0.0
    %7858 = vmatmul.mubr.f32.gmra.mrb[0].mxu0 %v7791
    %v7859 = vpop.f32.mrb[0].mxu0
    %v7860 = vadd.f32 0.0, %v7859
    %v7861 = vpop.f32.mrb[0].mxu0
    %7862 = vdwg.mxu0
    %s7863 = scalar_lea.vmem [#allocation17], 96
    %v7864 = vld [vmem:[%s7863] sm:$0xff]
    %v7865 = vld [vmem:[%s7863 + $0x8] sm:$0xff]
    %v7866 = vld [vmem:[%s7863 + $0x10] sm:$0xff]
    %v7867 = vld [vmem:[%s7863 + $0x18] sm:$0xff]
    %v7869 = vsel %vm7264, %v7860, 0
    %7871 = vmatprep.subr.mxu0 0.0
    %7872 = vmatpush1.msra.mxu0 %v7864
    %7873 = vmatprep.subr.mxu0 0.0
    %7874 = vmatpush1.msra.mxu0 %v7865
    %7875 = vmatprep.subr.mxu0 0.0
    %7876 = vmatpush1.msra.mxu0 %v7866
    %7877 = vmatprep.subr.mxu0 0.0
    %7878 = vmatpush1.msra.mxu0 %v7867
    %7879 = vmatprep.subr.mxu0 0.0
    %7880 = vmatpush1.msra.mxu0 0.0
    %7881 = vmatprep.subr.mxu0 0.0
    %7882 = vmatpush1.msra.mxu0 0.0
    %7883 = vmatprep.subr.mxu0 0.0
    %7884 = vmatpush1.msra.mxu0 0.0
    %7885 = vmatprep.subr.mxu0 0.0
    %7886 = vmatpush1.msra.mxu0 0.0
    %7887 = vmatprep.subr.mxu0 0.0
    %7888 = vmatpush1.msra.mxu0 0.0
    %7889 = vmatprep.subr.mxu0 0.0
    %7890 = vmatpush1.msra.mxu0 0.0
    %7891 = vmatprep.subr.mxu0 0.0
    %7892 = vmatpush1.msra.mxu0 0.0
    %7893 = vmatprep.subr.mxu0 0.0
    %7894 = vmatpush1.msra.mxu0 0.0
    %7895 = vmatprep.subr.mxu0 0.0
    %7896 = vmatpush1.msra.mxu0 0.0
    %7897 = vmatprep.subr.mxu0 0.0
    %7898 = vmatpush1.msra.mxu0 0.0
    %7899 = vmatprep.subr.mxu0 0.0
    %7900 = vmatpush1.msra.mxu0 0.0
    %7901 = vmatprep.subr.mxu0 0.0
    %7902 = vmatpush1.msra.mxu0 0.0
    %7903 = vmatprep.subr.mxu0 0.0
    %7904 = vmatpush1.msra.mxu0 0.0
    %7905 = vmatprep.subr.mxu0 0.0
    %7906 = vmatpush1.msra.mxu0 0.0
    %7907 = vmatprep.subr.mxu0 0.0
    %7908 = vmatpush1.msra.mxu0 0.0
    %7909 = vmatprep.subr.mxu0 0.0
    %7910 = vmatpush1.msra.mxu0 0.0
    %7911 = vmatprep.subr.mxu0 0.0
    %7912 = vmatpush1.msra.mxu0 0.0
    %7913 = vmatprep.subr.mxu0 0.0
    %7914 = vmatpush1.msra.mxu0 0.0
    %7915 = vmatprep.subr.mxu0 0.0
    %7916 = vmatpush1.msra.mxu0 0.0
    %7917 = vmatprep.subr.mxu0 0.0
    %7918 = vmatpush1.msra.mxu0 0.0
    %7919 = vmatprep.subr.mxu0 0.0
    %7920 = vmatpush1.msra.mxu0 0.0
    %7921 = vmatprep.subr.mxu0 0.0
    %7922 = vmatpush1.msra.mxu0 0.0
    %7923 = vmatprep.subr.mxu0 0.0
    %7924 = vmatpush1.msra.mxu0 0.0
    %7925 = vmatprep.subr.mxu0 0.0
    %7926 = vmatpush1.msra.mxu0 0.0
    %7927 = vmatprep.subr.mxu0 0.0
    %7928 = vmatpush1.msra.mxu0 0.0
    %7929 = vmatprep.subr.mxu0 0.0
    %7930 = vmatpush1.msra.mxu0 0.0
    %7931 = vmatprep.subr.mxu0 0.0
    %7932 = vmatpush1.msra.mxu0 0.0
    %7933 = vmatprep.subr.mxu0 0.0
    %7934 = vmatpush1.msra.mxu0 0.0
    %7935 = vmatprep.mubr.f32.mxu0 0.0
    %7936 = vmatmul.mubr.f32.gmra.mrb[0].mxu0 %v7869
    %v7937 = vpop.f32.mrb[0].mxu0
    %v7938 = vadd.f32 0.0, %v7937
    %v7939 = vpop.f32.mrb[0].mxu0
    %7940 = vdwg.mxu0
    %v7941 = vadd.f32 %v7787, %v7938
    %s7942 = scalar_lea.vmem [#allocation16], 32
    %v7943 = vld [vmem:[%s7942] sm:$0xff]
    %v7945 = vsel %vm7264, %v7943, 0
    %7947 = vmatprep.subr.mxu0 0.0
    %7948 = vmatpush1.msra.mxu0 %v7326
    %7949 = vmatprep.subr.mxu0 0.0
    %7950 = vmatpush1.msra.mxu0 %v7327
    %7951 = vmatprep.subr.mxu0 0.0
    %7952 = vmatpush1.msra.mxu0 %v7328
    %7953 = vmatprep.subr.mxu0 0.0
    %7954 = vmatpush1.msra.mxu0 %v7329
    %7955 = vmatprep.subr.mxu0 0.0
    %7956 = vmatpush1.msra.mxu0 0.0
    %7957 = vmatprep.subr.mxu0 0.0
    %7958 = vmatpush1.msra.mxu0 0.0
    %7959 = vmatprep.subr.mxu0 0.0
    %7960 = vmatpush1.msra.mxu0 0.0
    %7961 = vmatprep.subr.mxu0 0.0
    %7962 = vmatpush1.msra.mxu0 0.0
    %7963 = vmatprep.subr.mxu0 0.0
    %7964 = vmatpush1.msra.mxu0 0.0
    %7965 = vmatprep.subr.mxu0 0.0
    %7966 = vmatpush1.msra.mxu0 0.0
    %7967 = vmatprep.subr.mxu0 0.0
    %7968 = vmatpush1.msra.mxu0 0.0
    %7969 = vmatprep.subr.mxu0 0.0
    %7970 = vmatpush1.msra.mxu0 0.0
    %7971 = vmatprep.subr.mxu0 0.0
    %7972 = vmatpush1.msra.mxu0 0.0
    %7973 = vmatprep.subr.mxu0 0.0
    %7974 = vmatpush1.msra.mxu0 0.0
    %7975 = vmatprep.subr.mxu0 0.0
    %7976 = vmatpush1.msra.mxu0 0.0
    %7977 = vmatprep.subr.mxu0 0.0
    %7978 = vmatpush1.msra.mxu0 0.0
    %7979 = vmatprep.subr.mxu0 0.0
    %7980 = vmatpush1.msra.mxu0 0.0
    %7981 = vmatprep.subr.mxu0 0.0
    %7982 = vmatpush1.msra.mxu0 0.0
    %7983 = vmatprep.subr.mxu0 0.0
    %7984 = vmatpush1.msra.mxu0 0.0
    %7985 = vmatprep.subr.mxu0 0.0
    %7986 = vmatpush1.msra.mxu0 0.0
    %7987 = vmatprep.subr.mxu0 0.0
    %7988 = vmatpush1.msra.mxu0 0.0
    %7989 = vmatprep.subr.mxu0 0.0
    %7990 = vmatpush1.msra.mxu0 0.0
    %7991 = vmatprep.subr.mxu0 0.0
    %7992 = vmatpush1.msra.mxu0 0.0
    %7993 = vmatprep.subr.mxu0 0.0
    %7994 = vmatpush1.msra.mxu0 0.0
    %7995 = vmatprep.subr.mxu0 0.0
    %7996 = vmatpush1.msra.mxu0 0.0
    %7997 = vmatprep.subr.mxu0 0.0
    %7998 = vmatpush1.msra.mxu0 0.0
    %7999 = vmatprep.subr.mxu0 0.0
    %8000 = vmatpush1.msra.mxu0 0.0
    %8001 = vmatprep.subr.mxu0 0.0
    %8002 = vmatpush1.msra.mxu0 0.0
    %8003 = vmatprep.subr.mxu0 0.0
    %8004 = vmatpush1.msra.mxu0 0.0
    %8005 = vmatprep.subr.mxu0 0.0
    %8006 = vmatpush1.msra.mxu0 0.0
    %8007 = vmatprep.subr.mxu0 0.0
    %8008 = vmatpush1.msra.mxu0 0.0
    %8009 = vmatprep.subr.mxu0 0.0
    %8010 = vmatpush1.msra.mxu0 0.0
    %8011 = vmatprep.mubr.f32.mxu0 0.0
    %8012 = vmatmul.mubr.f32.gmra.mrb[0].mxu0 %v7945
    %v8013 = vpop.f32.mrb[0].mxu0
    %v8014 = vadd.f32 0.0, %v8013
    %v8015 = vpop.f32.mrb[0].mxu0
    %8016 = vdwg.mxu0
    %s8017 = scalar_lea.vmem [#allocation17], 128
    %v8018 = vld [vmem:[%s8017] sm:$0xff]
    %v8019 = vld [vmem:[%s8017 + $0x8] sm:$0xff]
    %v8020 = vld [vmem:[%s8017 + $0x10] sm:$0xff]
    %v8021 = vld [vmem:[%s8017 + $0x18] sm:$0xff]
    %v8023 = vsel %vm7264, %v8014, 0
    %8025 = vmatprep.subr.mxu0 0.0
    %8026 = vmatpush1.msra.mxu0 %v8018
    %8027 = vmatprep.subr.mxu0 0.0
    %8028 = vmatpush1.msra.mxu0 %v8019
    %8029 = vmatprep.subr.mxu0 0.0
    %8030 = vmatpush1.msra.mxu0 %v8020
    %8031 = vmatprep.subr.mxu0 0.0
    %8032 = vmatpush1.msra.mxu0 %v8021
    %8033 = vmatprep.subr.mxu0 0.0
    %8034 = vmatpush1.msra.mxu0 0.0
    %8035 = vmatprep.subr.mxu0 0.0
    %8036 = vmatpush1.msra.mxu0 0.0
    %8037 = vmatprep.subr.mxu0 0.0
    %8038 = vmatpush1.msra.mxu0 0.0
    %8039 = vmatprep.subr.mxu0 0.0
    %8040 = vmatpush1.msra.mxu0 0.0
    %8041 = vmatprep.subr.mxu0 0.0
    %8042 = vmatpush1.msra.mxu0 0.0
    %8043 = vmatprep.subr.mxu0 0.0
    %8044 = vmatpush1.msra.mxu0 0.0
    %8045 = vmatprep.subr.mxu0 0.0
    %8046 = vmatpush1.msra.mxu0 0.0
    %8047 = vmatprep.subr.mxu0 0.0
    %8048 = vmatpush1.msra.mxu0 0.0
    %8049 = vmatprep.subr.mxu0 0.0
    %8050 = vmatpush1.msra.mxu0 0.0
    %8051 = vmatprep.subr.mxu0 0.0
    %8052 = vmatpush1.msra.mxu0 0.0
    %8053 = vmatprep.subr.mxu0 0.0
    %8054 = vmatpush1.msra.mxu0 0.0
    %8055 = vmatprep.subr.mxu0 0.0
    %8056 = vmatpush1.msra.mxu0 0.0
    %8057 = vmatprep.subr.mxu0 0.0
    %8058 = vmatpush1.msra.mxu0 0.0
    %8059 = vmatprep.subr.mxu0 0.0
    %8060 = vmatpush1.msra.mxu0 0.0
    %8061 = vmatprep.subr.mxu0 0.0
    %8062 = vmatpush1.msra.mxu0 0.0
    %8063 = vmatprep.subr.mxu0 0.0
    %8064 = vmatpush1.msra.mxu0 0.0
    %8065 = vmatprep.subr.mxu0 0.0
    %8066 = vmatpush1.msra.mxu0 0.0
    %8067 = vmatprep.subr.mxu0 0.0
    %8068 = vmatpush1.msra.mxu0 0.0
    %8069 = vmatprep.subr.mxu0 0.0
    %8070 = vmatpush1.msra.mxu0 0.0
    %8071 = vmatprep.subr.mxu0 0.0
    %8072 = vmatpush1.msra.mxu0 0.0
    %8073 = vmatprep.subr.mxu0 0.0
    %8074 = vmatpush1.msra.mxu0 0.0
    %8075 = vmatprep.subr.mxu0 0.0
    %8076 = vmatpush1.msra.mxu0 0.0
    %8077 = vmatprep.subr.mxu0 0.0
    %8078 = vmatpush1.msra.mxu0 0.0
    %8079 = vmatprep.subr.mxu0 0.0
    %8080 = vmatpush1.msra.mxu0 0.0
    %8081 = vmatprep.subr.mxu0 0.0
    %8082 = vmatpush1.msra.mxu0 0.0
    %8083 = vmatprep.subr.mxu0 0.0
    %8084 = vmatpush1.msra.mxu0 0.0
    %8085 = vmatprep.subr.mxu0 0.0
    %8086 = vmatpush1.msra.mxu0 0.0
    %8087 = vmatprep.subr.mxu0 0.0
    %8088 = vmatpush1.msra.mxu0 0.0
    %8089 = vmatprep.mubr.f32.mxu0 0.0
    %8090 = vmatmul.mubr.f32.gmra.mrb[0].mxu0 %v8023
    %v8091 = vpop.f32.mrb[0].mxu0
    %v8092 = vadd.f32 0.0, %v8091
    %v8093 = vpop.f32.mrb[0].mxu0
    %8094 = vdwg.mxu0
    %v8095 = vadd.f32 %v7941, %v8092
    %s8096 = scalar_lea.vmem [#allocation16], 40
    %v8097 = vld [vmem:[%s8096] sm:$0xff]
    %v8099 = vsel %vm7264, %v8097, 0
    %8101 = vmatprep.subr.mxu0 0.0
    %8102 = vmatpush1.msra.mxu0 %v7326
    %8103 = vmatprep.subr.mxu0 0.0
    %8104 = vmatpush1.msra.mxu0 %v7327
    %8105 = vmatprep.subr.mxu0 0.0
    %8106 = vmatpush1.msra.mxu0 %v7328
    %8107 = vmatprep.subr.mxu0 0.0
    %8108 = vmatpush1.msra.mxu0 %v7329
    %8109 = vmatprep.subr.mxu0 0.0
    %8110 = vmatpush1.msra.mxu0 0.0
    %8111 = vmatprep.subr.mxu0 0.0
    %8112 = vmatpush1.msra.mxu0 0.0
    %8113 = vmatprep.subr.mxu0 0.0
    %8114 = vmatpush1.msra.mxu0 0.0
    %8115 = vmatprep.subr.mxu0 0.0
    %8116 = vmatpush1.msra.mxu0 0.0
    %8117 = vmatprep.subr.mxu0 0.0
    %8118 = vmatpush1.msra.mxu0 0.0
    %8119 = vmatprep.subr.mxu0 0.0
    %8120 = vmatpush1.msra.mxu0 0.0
    %8121 = vmatprep.subr.mxu0 0.0
    %8122 = vmatpush1.msra.mxu0 0.0
    %8123 = vmatprep.subr.mxu0 0.0
    %8124 = vmatpush1.msra.mxu0 0.0
    %8125 = vmatprep.subr.mxu0 0.0
    %8126 = vmatpush1.msra.mxu0 0.0
    %8127 = vmatprep.subr.mxu0 0.0
    %8128 = vmatpush1.msra.mxu0 0.0
    %8129 = vmatprep.subr.mxu0 0.0
    %8130 = vmatpush1.msra.mxu0 0.0
    %8131 = vmatprep.subr.mxu0 0.0
    %8132 = vmatpush1.msra.mxu0 0.0
    %8133 = vmatprep.subr.mxu0 0.0
    %8134 = vmatpush1.msra.mxu0 0.0
    %8135 = vmatprep.subr.mxu0 0.0
    %8136 = vmatpush1.msra.mxu0 0.0
    %8137 = vmatprep.subr.mxu0 0.0
    %8138 = vmatpush1.msra.mxu0 0.0
    %8139 = vmatprep.subr.mxu0 0.0
    %8140 = vmatpush1.msra.mxu0 0.0
    %8141 = vmatprep.subr.mxu0 0.0
    %8142 = vmatpush1.msra.mxu0 0.0
    %8143 = vmatprep.subr.mxu0 0.0
    %8144 = vmatpush1.msra.mxu0 0.0
    %8145 = vmatprep.subr.mxu0 0.0
    %8146 = vmatpush1.msra.mxu0 0.0
    %8147 = vmatprep.subr.mxu0 0.0
    %8148 = vmatpush1.msra.mxu0 0.0
    %8149 = vmatprep.subr.mxu0 0.0
    %8150 = vmatpush1.msra.mxu0 0.0
    %8151 = vmatprep.subr.mxu0 0.0
    %8152 = vmatpush1.msra.mxu0 0.0
    %8153 = vmatprep.subr.mxu0 0.0
    %8154 = vmatpush1.msra.mxu0 0.0
    %8155 = vmatprep.subr.mxu0 0.0
    %8156 = vmatpush1.msra.mxu0 0.0
    %8157 = vmatprep.subr.mxu0 0.0
    %8158 = vmatpush1.msra.mxu0 0.0
    %8159 = vmatprep.subr.mxu0 0.0
    %8160 = vmatpush1.msra.mxu0 0.0
    %8161 = vmatprep.subr.mxu0 0.0
    %8162 = vmatpush1.msra.mxu0 0.0
    %8163 = vmatprep.subr.mxu0 0.0
    %8164 = vmatpush1.msra.mxu0 0.0
    %8165 = vmatprep.mubr.f32.mxu0 0.0
    %8166 = vmatmul.mubr.f32.gmra.mrb[0].mxu0 %v8099
    %v8167 = vpop.f32.mrb[0].mxu0
    %v8168 = vadd.f32 0.0, %v8167
    %v8169 = vpop.f32.mrb[0].mxu0
    %8170 = vdwg.mxu0
    %s8171 = scalar_lea.vmem [#allocation17], 160
    %v8172 = vld [vmem:[%s8171] sm:$0xff]
    %v8173 = vld [vmem:[%s8171 + $0x8] sm:$0xff]
    %v8174 = vld [vmem:[%s8171 + $0x10] sm:$0xff]
    %v8175 = vld [vmem:[%s8171 + $0x18] sm:$0xff]
    %v8177 = vsel %vm7264, %v8168, 0
    %8179 = vmatprep.subr.mxu0 0.0
    %8180 = vmatpush1.msra.mxu0 %v8172
    %8181 = vmatprep.subr.mxu0 0.0
    %8182 = vmatpush1.msra.mxu0 %v8173
    %8183 = vmatprep.subr.mxu0 0.0
    %8184 = vmatpush1.msra.mxu0 %v8174
    %8185 = vmatprep.subr.mxu0 0.0
    %8186 = vmatpush1.msra.mxu0 %v8175
    %8187 = vmatprep.subr.mxu0 0.0
    %8188 = vmatpush1.msra.mxu0 0.0
    %8189 = vmatprep.subr.mxu0 0.0
    %8190 = vmatpush1.msra.mxu0 0.0
    %8191 = vmatprep.subr.mxu0 0.0
    %8192 = vmatpush1.msra.mxu0 0.0
    %8193 = vmatprep.subr.mxu0 0.0
    %8194 = vmatpush1.msra.mxu0 0.0
    %8195 = vmatprep.subr.mxu0 0.0
    %8196 = vmatpush1.msra.mxu0 0.0
    %8197 = vmatprep.subr.mxu0 0.0
    %8198 = vmatpush1.msra.mxu0 0.0
    %8199 = vmatprep.subr.mxu0 0.0
    %8200 = vmatpush1.msra.mxu0 0.0
    %8201 = vmatprep.subr.mxu0 0.0
    %8202 = vmatpush1.msra.mxu0 0.0
    %8203 = vmatprep.subr.mxu0 0.0
    %8204 = vmatpush1.msra.mxu0 0.0
    %8205 = vmatprep.subr.mxu0 0.0
    %8206 = vmatpush1.msra.mxu0 0.0
    %8207 = vmatprep.subr.mxu0 0.0
    %8208 = vmatpush1.msra.mxu0 0.0
    %8209 = vmatprep.subr.mxu0 0.0
    %8210 = vmatpush1.msra.mxu0 0.0
    %8211 = vmatprep.subr.mxu0 0.0
    %8212 = vmatpush1.msra.mxu0 0.0
    %8213 = vmatprep.subr.mxu0 0.0
    %8214 = vmatpush1.msra.mxu0 0.0
    %8215 = vmatprep.subr.mxu0 0.0
    %8216 = vmatpush1.msra.mxu0 0.0
    %8217 = vmatprep.subr.mxu0 0.0
    %8218 = vmatpush1.msra.mxu0 0.0
    %8219 = vmatprep.subr.mxu0 0.0
    %8220 = vmatpush1.msra.mxu0 0.0
    %8221 = vmatprep.subr.mxu0 0.0
    %8222 = vmatpush1.msra.mxu0 0.0
    %8223 = vmatprep.subr.mxu0 0.0
    %8224 = vmatpush1.msra.mxu0 0.0
    %8225 = vmatprep.subr.mxu0 0.0
    %8226 = vmatpush1.msra.mxu0 0.0
    %8227 = vmatprep.subr.mxu0 0.0
    %8228 = vmatpush1.msra.mxu0 0.0
    %8229 = vmatprep.subr.mxu0 0.0
    %8230 = vmatpush1.msra.mxu0 0.0
    %8231 = vmatprep.subr.mxu0 0.0
    %8232 = vmatpush1.msra.mxu0 0.0
    %8233 = vmatprep.subr.mxu0 0.0
    %8234 = vmatpush1.msra.mxu0 0.0
    %8235 = vmatprep.subr.mxu0 0.0
    %8236 = vmatpush1.msra.mxu0 0.0
    %8237 = vmatprep.subr.mxu0 0.0
    %8238 = vmatpush1.msra.mxu0 0.0
    %8239 = vmatprep.subr.mxu0 0.0
    %8240 = vmatpush1.msra.mxu0 0.0
    %8241 = vmatprep.subr.mxu0 0.0
    %8242 = vmatpush1.msra.mxu0 0.0
    %8243 = vmatprep.mubr.f32.mxu0 0.0
    %8244 = vmatmul.mubr.f32.gmra.mrb[0].mxu0 %v8177
    %v8245 = vpop.f32.mrb[0].mxu0
    %v8246 = vadd.f32 0.0, %v8245
    %v8247 = vpop.f32.mrb[0].mxu0
    %8248 = vdwg.mxu0
    %v8249 = vadd.f32 %v8095, %v8246
    %s8250 = scalar_lea.vmem [#allocation16], 48
    %v8251 = vld [vmem:[%s8250] sm:$0xff]
    %v8253 = vsel %vm7264, %v8251, 0
    %8255 = vmatprep.subr.mxu0 0.0
    %8256 = vmatpush1.msra.mxu0 %v7326
    %8257 = vmatprep.subr.mxu0 0.0
    %8258 = vmatpush1.msra.mxu0 %v7327
    %8259 = vmatprep.subr.mxu0 0.0
    %8260 = vmatpush1.msra.mxu0 %v7328
    %8261 = vmatprep.subr.mxu0 0.0
    %8262 = vmatpush1.msra.mxu0 %v7329
    %8263 = vmatprep.subr.mxu0 0.0
    %8264 = vmatpush1.msra.mxu0 0.0
    %8265 = vmatprep.subr.mxu0 0.0
    %8266 = vmatpush1.msra.mxu0 0.0
    %8267 = vmatprep.subr.mxu0 0.0
    %8268 = vmatpush1.msra.mxu0 0.0
    %8269 = vmatprep.subr.mxu0 0.0
    %8270 = vmatpush1.msra.mxu0 0.0
    %8271 = vmatprep.subr.mxu0 0.0
    %8272 = vmatpush1.msra.mxu0 0.0
    %8273 = vmatprep.subr.mxu0 0.0
    %8274 = vmatpush1.msra.mxu0 0.0
    %8275 = vmatprep.subr.mxu0 0.0
    %8276 = vmatpush1.msra.mxu0 0.0
    %8277 = vmatprep.subr.mxu0 0.0
    %8278 = vmatpush1.msra.mxu0 0.0
    %8279 = vmatprep.subr.mxu0 0.0
    %8280 = vmatpush1.msra.mxu0 0.0
    %8281 = vmatprep.subr.mxu0 0.0
    %8282 = vmatpush1.msra.mxu0 0.0
    %8283 = vmatprep.subr.mxu0 0.0
    %8284 = vmatpush1.msra.mxu0 0.0
    %8285 = vmatprep.subr.mxu0 0.0
    %8286 = vmatpush1.msra.mxu0 0.0
    %8287 = vmatprep.subr.mxu0 0.0
    %8288 = vmatpush1.msra.mxu0 0.0
    %8289 = vmatprep.subr.mxu0 0.0
    %8290 = vmatpush1.msra.mxu0 0.0
    %8291 = vmatprep.subr.mxu0 0.0
    %8292 = vmatpush1.msra.mxu0 0.0
    %8293 = vmatprep.subr.mxu0 0.0
    %8294 = vmatpush1.msra.mxu0 0.0
    %8295 = vmatprep.subr.mxu0 0.0
    %8296 = vmatpush1.msra.mxu0 0.0
    %8297 = vmatprep.subr.mxu0 0.0
    %8298 = vmatpush1.msra.mxu0 0.0
    %8299 = vmatprep.subr.mxu0 0.0
    %8300 = vmatpush1.msra.mxu0 0.0
    %8301 = vmatprep.subr.mxu0 0.0
    %8302 = vmatpush1.msra.mxu0 0.0
    %8303 = vmatprep.subr.mxu0 0.0
    %8304 = vmatpush1.msra.mxu0 0.0
    %8305 = vmatprep.subr.mxu0 0.0
    %8306 = vmatpush1.msra.mxu0 0.0
    %8307 = vmatprep.subr.mxu0 0.0
    %8308 = vmatpush1.msra.mxu0 0.0
    %8309 = vmatprep.subr.mxu0 0.0
    %8310 = vmatpush1.msra.mxu0 0.0
    %8311 = vmatprep.subr.mxu0 0.0
    %8312 = vmatpush1.msra.mxu0 0.0
    %8313 = vmatprep.subr.mxu0 0.0
    %8314 = vmatpush1.msra.mxu0 0.0
    %8315 = vmatprep.subr.mxu0 0.0
    %8316 = vmatpush1.msra.mxu0 0.0
    %8317 = vmatprep.subr.mxu0 0.0
    %8318 = vmatpush1.msra.mxu0 0.0
    %8319 = vmatprep.mubr.f32.mxu0 0.0
    %8320 = vmatmul.mubr.f32.gmra.mrb[0].mxu0 %v8253
    %v8321 = vpop.f32.mrb[0].mxu0
    %v8322 = vadd.f32 0.0, %v8321
    %v8323 = vpop.f32.mrb[0].mxu0
    %8324 = vdwg.mxu0
    %s8325 = scalar_lea.vmem [#allocation17], 192
    %v8326 = vld [vmem:[%s8325] sm:$0xff]
    %v8327 = vld [vmem:[%s8325 + $0x8] sm:$0xff]
    %v8328 = vld [vmem:[%s8325 + $0x10] sm:$0xff]
    %v8329 = vld [vmem:[%s8325 + $0x18] sm:$0xff]
    %v8331 = vsel %vm7264, %v8322, 0
    %8333 = vmatprep.subr.mxu0 0.0
    %8334 = vmatpush1.msra.mxu0 %v8326
    %8335 = vmatprep.subr.mxu0 0.0
    %8336 = vmatpush1.msra.mxu0 %v8327
    %8337 = vmatprep.subr.mxu0 0.0
    %8338 = vmatpush1.msra.mxu0 %v8328
    %8339 = vmatprep.subr.mxu0 0.0
    %8340 = vmatpush1.msra.mxu0 %v8329
    %8341 = vmatprep.subr.mxu0 0.0
    %8342 = vmatpush1.msra.mxu0 0.0
    %8343 = vmatprep.subr.mxu0 0.0
    %8344 = vmatpush1.msra.mxu0 0.0
    %8345 = vmatprep.subr.mxu0 0.0
    %8346 = vmatpush1.msra.mxu0 0.0
    %8347 = vmatprep.subr.mxu0 0.0
    %8348 = vmatpush1.msra.mxu0 0.0
    %8349 = vmatprep.subr.mxu0 0.0
    %8350 = vmatpush1.msra.mxu0 0.0
    %8351 = vmatprep.subr.mxu0 0.0
    %8352 = vmatpush1.msra.mxu0 0.0
    %8353 = vmatprep.subr.mxu0 0.0
    %8354 = vmatpush1.msra.mxu0 0.0
    %8355 = vmatprep.subr.mxu0 0.0
    %8356 = vmatpush1.msra.mxu0 0.0
    %8357 = vmatprep.subr.mxu0 0.0
    %8358 = vmatpush1.msra.mxu0 0.0
    %8359 = vmatprep.subr.mxu0 0.0
    %8360 = vmatpush1.msra.mxu0 0.0
    %8361 = vmatprep.subr.mxu0 0.0
    %8362 = vmatpush1.msra.mxu0 0.0
    %8363 = vmatprep.subr.mxu0 0.0
    %8364 = vmatpush1.msra.mxu0 0.0
    %8365 = vmatprep.subr.mxu0 0.0
    %8366 = vmatpush1.msra.mxu0 0.0
    %8367 = vmatprep.subr.mxu0 0.0
    %8368 = vmatpush1.msra.mxu0 0.0
    %8369 = vmatprep.subr.mxu0 0.0
    %8370 = vmatpush1.msra.mxu0 0.0
    %8371 = vmatprep.subr.mxu0 0.0
    %8372 = vmatpush1.msra.mxu0 0.0
    %8373 = vmatprep.subr.mxu0 0.0
    %8374 = vmatpush1.msra.mxu0 0.0
    %8375 = vmatprep.subr.mxu0 0.0
    %8376 = vmatpush1.msra.mxu0 0.0
    %8377 = vmatprep.subr.mxu0 0.0
    %8378 = vmatpush1.msra.mxu0 0.0
    %8379 = vmatprep.subr.mxu0 0.0
    %8380 = vmatpush1.msra.mxu0 0.0
    %8381 = vmatprep.subr.mxu0 0.0
    %8382 = vmatpush1.msra.mxu0 0.0
    %8383 = vmatprep.subr.mxu0 0.0
    %8384 = vmatpush1.msra.mxu0 0.0
    %8385 = vmatprep.subr.mxu0 0.0
    %8386 = vmatpush1.msra.mxu0 0.0
    %8387 = vmatprep.subr.mxu0 0.0
    %8388 = vmatpush1.msra.mxu0 0.0
    %8389 = vmatprep.subr.mxu0 0.0
    %8390 = vmatpush1.msra.mxu0 0.0
    %8391 = vmatprep.subr.mxu0 0.0
    %8392 = vmatpush1.msra.mxu0 0.0
    %8393 = vmatprep.subr.mxu0 0.0
    %8394 = vmatpush1.msra.mxu0 0.0
    %8395 = vmatprep.subr.mxu0 0.0
    %8396 = vmatpush1.msra.mxu0 0.0
    %8397 = vmatprep.mubr.f32.mxu0 0.0
    %8398 = vmatmul.mubr.f32.gmra.mrb[0].mxu0 %v8331
    %v8399 = vpop.f32.mrb[0].mxu0
    %v8400 = vadd.f32 0.0, %v8399
    %v8401 = vpop.f32.mrb[0].mxu0
    %8402 = vdwg.mxu0
    %v8403 = vadd.f32 %v8249, %v8400
    %s8404 = scalar_lea.vmem [#allocation16], 56
    %v8405 = vld [vmem:[%s8404] sm:$0xff]
    %v8407 = vsel %vm7264, %v8405, 0
    %8409 = vmatprep.subr.mxu0 0.0
    %8410 = vmatpush1.msra.mxu0 %v7326
    %8411 = vmatprep.subr.mxu0 0.0
    %8412 = vmatpush1.msra.mxu0 %v7327
    %8413 = vmatprep.subr.mxu0 0.0
    %8414 = vmatpush1.msra.mxu0 %v7328
    %8415 = vmatprep.subr.mxu0 0.0
    %8416 = vmatpush1.msra.mxu0 %v7329
    %8417 = vmatprep.subr.mxu0 0.0
    %8418 = vmatpush1.msra.mxu0 0.0
    %8419 = vmatprep.subr.mxu0 0.0
    %8420 = vmatpush1.msra.mxu0 0.0
    %8421 = vmatprep.subr.mxu0 0.0
    %8422 = vmatpush1.msra.mxu0 0.0
    %8423 = vmatprep.subr.mxu0 0.0
    %8424 = vmatpush1.msra.mxu0 0.0
    %8425 = vmatprep.subr.mxu0 0.0
    %8426 = vmatpush1.msra.mxu0 0.0
    %8427 = vmatprep.subr.mxu0 0.0
    %8428 = vmatpush1.msra.mxu0 0.0
    %8429 = vmatprep.subr.mxu0 0.0
    %8430 = vmatpush1.msra.mxu0 0.0
    %8431 = vmatprep.subr.mxu0 0.0
    %8432 = vmatpush1.msra.mxu0 0.0
    %8433 = vmatprep.subr.mxu0 0.0
    %8434 = vmatpush1.msra.mxu0 0.0
    %8435 = vmatprep.subr.mxu0 0.0
    %8436 = vmatpush1.msra.mxu0 0.0
    %8437 = vmatprep.subr.mxu0 0.0
    %8438 = vmatpush1.msra.mxu0 0.0
    %8439 = vmatprep.subr.mxu0 0.0
    %8440 = vmatpush1.msra.mxu0 0.0
    %8441 = vmatprep.subr.mxu0 0.0
    %8442 = vmatpush1.msra.mxu0 0.0
    %8443 = vmatprep.subr.mxu0 0.0
    %8444 = vmatpush1.msra.mxu0 0.0
    %8445 = vmatprep.subr.mxu0 0.0
    %8446 = vmatpush1.msra.mxu0 0.0
    %8447 = vmatprep.subr.mxu0 0.0
    %8448 = vmatpush1.msra.mxu0 0.0
    %8449 = vmatprep.subr.mxu0 0.0
    %8450 = vmatpush1.msra.mxu0 0.0
    %8451 = vmatprep.subr.mxu0 0.0
    %8452 = vmatpush1.msra.mxu0 0.0
    %8453 = vmatprep.subr.mxu0 0.0
    %8454 = vmatpush1.msra.mxu0 0.0
    %8455 = vmatprep.subr.mxu0 0.0
    %8456 = vmatpush1.msra.mxu0 0.0
    %8457 = vmatprep.subr.mxu0 0.0
    %8458 = vmatpush1.msra.mxu0 0.0
    %8459 = vmatprep.subr.mxu0 0.0
    %8460 = vmatpush1.msra.mxu0 0.0
    %8461 = vmatprep.subr.mxu0 0.0
    %8462 = vmatpush1.msra.mxu0 0.0
    %8463 = vmatprep.subr.mxu0 0.0
    %8464 = vmatpush1.msra.mxu0 0.0
    %8465 = vmatprep.subr.mxu0 0.0
    %8466 = vmatpush1.msra.mxu0 0.0
    %8467 = vmatprep.subr.mxu0 0.0
    %8468 = vmatpush1.msra.mxu0 0.0
    %8469 = vmatprep.subr.mxu0 0.0
    %8470 = vmatpush1.msra.mxu0 0.0
    %8471 = vmatprep.subr.mxu0 0.0
    %8472 = vmatpush1.msra.mxu0 0.0
    %8473 = vmatprep.mubr.f32.mxu0 0.0
    %8474 = vmatmul.mubr.f32.gmra.mrb[0].mxu0 %v8407
    %v8475 = vpop.f32.mrb[0].mxu0
    %v8476 = vadd.f32 0.0, %v8475
    %v8477 = vpop.f32.mrb[0].mxu0
    %8478 = vdwg.mxu0
    %s8479 = scalar_lea.vmem [#allocation17], 224
    %v8480 = vld [vmem:[%s8479] sm:$0xff]
    %v8481 = vld [vmem:[%s8479 + $0x8] sm:$0xff]
    %v8482 = vld [vmem:[%s8479 + $0x10] sm:$0xff]
    %v8483 = vld [vmem:[%s8479 + $0x18] sm:$0xff]
    %v8485 = vsel %vm7264, %v8476, 0
    %8487 = vmatprep.subr.mxu0 0.0
    %8488 = vmatpush1.msra.mxu0 %v8480
    %8489 = vmatprep.subr.mxu0 0.0
    %8490 = vmatpush1.msra.mxu0 %v8481
    %8491 = vmatprep.subr.mxu0 0.0
    %8492 = vmatpush1.msra.mxu0 %v8482
    %8493 = vmatprep.subr.mxu0 0.0
    %8494 = vmatpush1.msra.mxu0 %v8483
    %8495 = vmatprep.subr.mxu0 0.0
    %8496 = vmatpush1.msra.mxu0 0.0
    %8497 = vmatprep.subr.mxu0 0.0
    %8498 = vmatpush1.msra.mxu0 0.0
    %8499 = vmatprep.subr.mxu0 0.0
    %8500 = vmatpush1.msra.mxu0 0.0
    %8501 = vmatprep.subr.mxu0 0.0
    %8502 = vmatpush1.msra.mxu0 0.0
    %8503 = vmatprep.subr.mxu0 0.0
    %8504 = vmatpush1.msra.mxu0 0.0
    %8505 = vmatprep.subr.mxu0 0.0
    %8506 = vmatpush1.msra.mxu0 0.0
    %8507 = vmatprep.subr.mxu0 0.0
    %8508 = vmatpush1.msra.mxu0 0.0
    %8509 = vmatprep.subr.mxu0 0.0
    %8510 = vmatpush1.msra.mxu0 0.0
    %8511 = vmatprep.subr.mxu0 0.0
    %8512 = vmatpush1.msra.mxu0 0.0
    %8513 = vmatprep.subr.mxu0 0.0
    %8514 = vmatpush1.msra.mxu0 0.0
    %8515 = vmatprep.subr.mxu0 0.0
    %8516 = vmatpush1.msra.mxu0 0.0
    %8517 = vmatprep.subr.mxu0 0.0
    %8518 = vmatpush1.msra.mxu0 0.0
    %8519 = vmatprep.subr.mxu0 0.0
    %8520 = vmatpush1.msra.mxu0 0.0
    %8521 = vmatprep.subr.mxu0 0.0
    %8522 = vmatpush1.msra.mxu0 0.0
    %8523 = vmatprep.subr.mxu0 0.0
    %8524 = vmatpush1.msra.mxu0 0.0
    %8525 = vmatprep.subr.mxu0 0.0
    %8526 = vmatpush1.msra.mxu0 0.0
    %8527 = vmatprep.subr.mxu0 0.0
    %8528 = vmatpush1.msra.mxu0 0.0
    %8529 = vmatprep.subr.mxu0 0.0
    %8530 = vmatpush1.msra.mxu0 0.0
    %8531 = vmatprep.subr.mxu0 0.0
    %8532 = vmatpush1.msra.mxu0 0.0
    %8533 = vmatprep.subr.mxu0 0.0
    %8534 = vmatpush1.msra.mxu0 0.0
    %8535 = vmatprep.subr.mxu0 0.0
    %8536 = vmatpush1.msra.mxu0 0.0
    %8537 = vmatprep.subr.mxu0 0.0
    %8538 = vmatpush1.msra.mxu0 0.0
    %8539 = vmatprep.subr.mxu0 0.0
    %8540 = vmatpush1.msra.mxu0 0.0
    %8541 = vmatprep.subr.mxu0 0.0
    %8542 = vmatpush1.msra.mxu0 0.0
    %8543 = vmatprep.subr.mxu0 0.0
    %8544 = vmatpush1.msra.mxu0 0.0
    %8545 = vmatprep.subr.mxu0 0.0
    %8546 = vmatpush1.msra.mxu0 0.0
    %8547 = vmatprep.subr.mxu0 0.0
    %8548 = vmatpush1.msra.mxu0 0.0
    %8549 = vmatprep.subr.mxu0 0.0
    %8550 = vmatpush1.msra.mxu0 0.0
    %8551 = vmatprep.mubr.f32.mxu0 0.0
    %8552 = vmatmul.mubr.f32.gmra.mrb[0].mxu0 %v8485
    %v8553 = vpop.f32.mrb[0].mxu0
    %v8554 = vadd.f32 0.0, %v8553
    %v8555 = vpop.f32.mrb[0].mxu0
    %8556 = vdwg.mxu0
    %v8557 = vadd.f32 %v8403, %v8554
    %s8558 = scalar_lea.vmem [#allocation16], 64
    %v8559 = vld [vmem:[%s8558] sm:$0xff]
    %v8561 = vsel %vm7264, %v8559, 0
    %8563 = vmatprep.subr.mxu0 0.0
    %8564 = vmatpush1.msra.mxu0 %v7326
    %8565 = vmatprep.subr.mxu0 0.0
    %8566 = vmatpush1.msra.mxu0 %v7327
    %8567 = vmatprep.subr.mxu0 0.0
    %8568 = vmatpush1.msra.mxu0 %v7328
    %8569 = vmatprep.subr.mxu0 0.0
    %8570 = vmatpush1.msra.mxu0 %v7329
    %8571 = vmatprep.subr.mxu0 0.0
    %8572 = vmatpush1.msra.mxu0 0.0
    %8573 = vmatprep.subr.mxu0 0.0
    %8574 = vmatpush1.msra.mxu0 0.0
    %8575 = vmatprep.subr.mxu0 0.0
    %8576 = vmatpush1.msra.mxu0 0.0
    %8577 = vmatprep.subr.mxu0 0.0
    %8578 = vmatpush1.msra.mxu0 0.0
    %8579 = vmatprep.subr.mxu0 0.0
    %8580 = vmatpush1.msra.mxu0 0.0
    %8581 = vmatprep.subr.mxu0 0.0
    %8582 = vmatpush1.msra.mxu0 0.0
    %8583 = vmatprep.subr.mxu0 0.0
    %8584 = vmatpush1.msra.mxu0 0.0
    %8585 = vmatprep.subr.mxu0 0.0
    %8586 = vmatpush1.msra.mxu0 0.0
    %8587 = vmatprep.subr.mxu0 0.0
    %8588 = vmatpush1.msra.mxu0 0.0
    %8589 = vmatprep.subr.mxu0 0.0
    %8590 = vmatpush1.msra.mxu0 0.0
    %8591 = vmatprep.subr.mxu0 0.0
    %8592 = vmatpush1.msra.mxu0 0.0
    %8593 = vmatprep.subr.mxu0 0.0
    %8594 = vmatpush1.msra.mxu0 0.0
    %8595 = vmatprep.subr.mxu0 0.0
    %8596 = vmatpush1.msra.mxu0 0.0
    %8597 = vmatprep.subr.mxu0 0.0
    %8598 = vmatpush1.msra.mxu0 0.0
    %8599 = vmatprep.subr.mxu0 0.0
    %8600 = vmatpush1.msra.mxu0 0.0
    %8601 = vmatprep.subr.mxu0 0.0
    %8602 = vmatpush1.msra.mxu0 0.0
    %8603 = vmatprep.subr.mxu0 0.0
    %8604 = vmatpush1.msra.mxu0 0.0
    %8605 = vmatprep.subr.mxu0 0.0
    %8606 = vmatpush1.msra.mxu0 0.0
    %8607 = vmatprep.subr.mxu0 0.0
    %8608 = vmatpush1.msra.mxu0 0.0
    %8609 = vmatprep.subr.mxu0 0.0
    %8610 = vmatpush1.msra.mxu0 0.0
    %8611 = vmatprep.subr.mxu0 0.0
    %8612 = vmatpush1.msra.mxu0 0.0
    %8613 = vmatprep.subr.mxu0 0.0
    %8614 = vmatpush1.msra.mxu0 0.0
    %8615 = vmatprep.subr.mxu0 0.0
    %8616 = vmatpush1.msra.mxu0 0.0
    %8617 = vmatprep.subr.mxu0 0.0
    %8618 = vmatpush1.msra.mxu0 0.0
    %8619 = vmatprep.subr.mxu0 0.0
    %8620 = vmatpush1.msra.mxu0 0.0
    %8621 = vmatprep.subr.mxu0 0.0
    %8622 = vmatpush1.msra.mxu0 0.0
    %8623 = vmatprep.subr.mxu0 0.0
    %8624 = vmatpush1.msra.mxu0 0.0
    %8625 = vmatprep.subr.mxu0 0.0
    %8626 = vmatpush1.msra.mxu0 0.0
    %8627 = vmatprep.mubr.f32.mxu0 0.0
    %8628 = vmatmul.mubr.f32.gmra.mrb[0].mxu0 %v8561
    %v8629 = vpop.f32.mrb[0].mxu0
    %v8630 = vadd.f32 0.0, %v8629
    %v8631 = vpop.f32.mrb[0].mxu0
    %8632 = vdwg.mxu0
    %s8633 = scalar_lea.vmem [#allocation17], 256
    %v8634 = vld [vmem:[%s8633] sm:$0xff]
    %v8635 = vld [vmem:[%s8633 + $0x8] sm:$0xff]
    %v8636 = vld [vmem:[%s8633 + $0x10] sm:$0xff]
    %v8637 = vld [vmem:[%s8633 + $0x18] sm:$0xff]
    %v8639 = vsel %vm7264, %v8630, 0
    %8641 = vmatprep.subr.mxu0 0.0
    %8642 = vmatpush1.msra.mxu0 %v8634
    %8643 = vmatprep.subr.mxu0 0.0
    %8644 = vmatpush1.msra.mxu0 %v8635
    %8645 = vmatprep.subr.mxu0 0.0
    %8646 = vmatpush1.msra.mxu0 %v8636
    %8647 = vmatprep.subr.mxu0 0.0
    %8648 = vmatpush1.msra.mxu0 %v8637
    %8649 = vmatprep.subr.mxu0 0.0
    %8650 = vmatpush1.msra.mxu0 0.0
    %8651 = vmatprep.subr.mxu0 0.0
    %8652 = vmatpush1.msra.mxu0 0.0
    %8653 = vmatprep.subr.mxu0 0.0
    %8654 = vmatpush1.msra.mxu0 0.0
    %8655 = vmatprep.subr.mxu0 0.0
    %8656 = vmatpush1.msra.mxu0 0.0
    %8657 = vmatprep.subr.mxu0 0.0
    %8658 = vmatpush1.msra.mxu0 0.0
    %8659 = vmatprep.subr.mxu0 0.0
    %8660 = vmatpush1.msra.mxu0 0.0
    %8661 = vmatprep.subr.mxu0 0.0
    %8662 = vmatpush1.msra.mxu0 0.0
    %8663 = vmatprep.subr.mxu0 0.0
    %8664 = vmatpush1.msra.mxu0 0.0
    %8665 = vmatprep.subr.mxu0 0.0
    %8666 = vmatpush1.msra.mxu0 0.0
    %8667 = vmatprep.subr.mxu0 0.0
    %8668 = vmatpush1.msra.mxu0 0.0
    %8669 = vmatprep.subr.mxu0 0.0
    %8670 = vmatpush1.msra.mxu0 0.0
    %8671 = vmatprep.subr.mxu0 0.0
    %8672 = vmatpush1.msra.mxu0 0.0
    %8673 = vmatprep.subr.mxu0 0.0
    %8674 = vmatpush1.msra.mxu0 0.0
    %8675 = vmatprep.subr.mxu0 0.0
    %8676 = vmatpush1.msra.mxu0 0.0
    %8677 = vmatprep.subr.mxu0 0.0
    %8678 = vmatpush1.msra.mxu0 0.0
    %8679 = vmatprep.subr.mxu0 0.0
    %8680 = vmatpush1.msra.mxu0 0.0
    %8681 = vmatprep.subr.mxu0 0.0
    %8682 = vmatpush1.msra.mxu0 0.0
    %8683 = vmatprep.subr.mxu0 0.0
    %8684 = vmatpush1.msra.mxu0 0.0
    %8685 = vmatprep.subr.mxu0 0.0
    %8686 = vmatpush1.msra.mxu0 0.0
    %8687 = vmatprep.subr.mxu0 0.0
    %8688 = vmatpush1.msra.mxu0 0.0
    %8689 = vmatprep.subr.mxu0 0.0
    %8690 = vmatpush1.msra.mxu0 0.0
    %8691 = vmatprep.subr.mxu0 0.0
    %8692 = vmatpush1.msra.mxu0 0.0
    %8693 = vmatprep.subr.mxu0 0.0
    %8694 = vmatpush1.msra.mxu0 0.0
    %8695 = vmatprep.subr.mxu0 0.0
    %8696 = vmatpush1.msra.mxu0 0.0
    %8697 = vmatprep.subr.mxu0 0.0
    %8698 = vmatpush1.msra.mxu0 0.0
    %8699 = vmatprep.subr.mxu0 0.0
    %8700 = vmatpush1.msra.mxu0 0.0
    %8701 = vmatprep.subr.mxu0 0.0
    %8702 = vmatpush1.msra.mxu0 0.0
    %8703 = vmatprep.subr.mxu0 0.0
    %8704 = vmatpush1.msra.mxu0 0.0
    %8705 = vmatprep.mubr.f32.mxu0 0.0
    %8706 = vmatmul.mubr.f32.gmra.mrb[0].mxu0 %v8639
    %v8707 = vpop.f32.mrb[0].mxu0
    %v8708 = vadd.f32 0.0, %v8707
    %v8709 = vpop.f32.mrb[0].mxu0
    %8710 = vdwg.mxu0
    %v8711 = vadd.f32 %v8557, %v8708
    %v8712 = vld [vmem:[#allocation19] sm:$0x1]
    %v8714 = vlaneseq
    %v8715 = vshrl.u32 %v8714, 7
    %v8716 = vsub.s32 0, %v8715
    %v8717 = vrot.slane %v8712, %v8716
    %v8719 = vadd.f32 %v8711, %v8717
    %vm8720 = vcmp.ge.f32.partialorder %v8719, 0.0
    %v8721 = vmul.f32 %v8719, 0.2
    %v8722 = vsel %vm8720, %v8719, %v8721
    %vm8723 = vcmask 523264
    %v8724 = vsel %vm8723, %v8722, 0.0
    %v8725 = vrot.slane %v8724, 4
    %v8726 = vadd.f32 %v8724, %v8725
    %v8727 = vrot.slane %v8726, 2
    %v8728 = vadd.f32 %v8726, %v8727
    %v8729 = vrot.slane %v8728, 1
    %v8730 = vadd.f32 %v8728, %v8729
    %v8731 = vrcp.pop 8.0
    %v8732 = vmul.f32 %v8730, %v8731
    %v8733 = vsub.f32 %v8722, %v8732
    %v8734 = vmul.f32 %v8733, %v8733
    %v8735 = vsel %vm8723, %v8734, 0.0
    %v8736 = vrot.slane %v8735, 4
    %v8737 = vadd.f32 %v8735, %v8736
    %v8738 = vrot.slane %v8737, 2
    %v8739 = vadd.f32 %v8737, %v8738
    %v8740 = vrot.slane %v8739, 1
    %v8741 = vadd.f32 %v8739, %v8740
    %v8742 = vmul.f32 %v8741, %v8731
    %v8743 = vadd.f32 %v8742, 1e-05
    %v8744 = vrsqrt.pop %v8743
    %v8745 = vmul.f32 %v8733, %v8744
    %v8746 = vld [vmem:[#allocation20] sm:$0x1]
    %v8748 = vlaneseq
    %v8749 = vshrl.u32 %v8748, 7
    %v8750 = vsub.s32 0, %v8749
    %v8751 = vrot.slane %v8746, %v8750
    %v8753 = vmul.f32 %v8745, %v8751
    %v8754 = vld [vmem:[#allocation22] sm:$0x1]
    %v8756 = vlaneseq
    %v8757 = vshrl.u32 %v8756, 7
    %v8758 = vsub.s32 0, %v8757
    %v8759 = vrot.slane %v8754, %v8758
    %v8761 = vadd.f32 %v8753, %v8759
    %v8762 = vld [vmem:[%s14] sm:$0x3]
    %vm8763 = vcmask 64512
    %v8765 = vsel %vm8763, %v8762, 0
    %8767 = vmatprep.subr.mxu0 0.0
    %8768 = vmatpush1.msra.mxu0 %v8761
    %8769 = vmatprep.subr.mxu0 0.0
    %8770 = vmatpush1.msra.mxu0 0.0
    %8771 = vmatprep.subr.mxu0 0.0
    %8772 = vmatpush1.msra.mxu0 0.0
    %8773 = vmatprep.subr.mxu0 0.0
    %8774 = vmatpush1.msra.mxu0 0.0
    %8775 = vmatprep.subr.mxu0 0.0
    %8776 = vmatpush1.msra.mxu0 0.0
    %8777 = vmatprep.subr.mxu0 0.0
    %8778 = vmatpush1.msra.mxu0 0.0
    %8779 = vmatprep.subr.mxu0 0.0
    %8780 = vmatpush1.msra.mxu0 0.0
    %8781 = vmatprep.subr.mxu0 0.0
    %8782 = vmatpush1.msra.mxu0 0.0
    %8783 = vmatprep.subr.mxu0 0.0
    %8784 = vmatpush1.msra.mxu0 0.0
    %8785 = vmatprep.subr.mxu0 0.0
    %8786 = vmatpush1.msra.mxu0 0.0
    %8787 = vmatprep.subr.mxu0 0.0
    %8788 = vmatpush1.msra.mxu0 0.0
    %8789 = vmatprep.subr.mxu0 0.0
    %8790 = vmatpush1.msra.mxu0 0.0
    %8791 = vmatprep.subr.mxu0 0.0
    %8792 = vmatpush1.msra.mxu0 0.0
    %8793 = vmatprep.subr.mxu0 0.0
    %8794 = vmatpush1.msra.mxu0 0.0
    %8795 = vmatprep.subr.mxu0 0.0
    %8796 = vmatpush1.msra.mxu0 0.0
    %8797 = vmatprep.subr.mxu0 0.0
    %8798 = vmatpush1.msra.mxu0 0.0
    %8799 = vmatprep.subr.mxu0 0.0
    %8800 = vmatpush1.msra.mxu0 0.0
    %8801 = vmatprep.subr.mxu0 0.0
    %8802 = vmatpush1.msra.mxu0 0.0
    %8803 = vmatprep.subr.mxu0 0.0
    %8804 = vmatpush1.msra.mxu0 0.0
    %8805 = vmatprep.subr.mxu0 0.0
    %8806 = vmatpush1.msra.mxu0 0.0
    %8807 = vmatprep.subr.mxu0 0.0
    %8808 = vmatpush1.msra.mxu0 0.0
    %8809 = vmatprep.subr.mxu0 0.0
    %8810 = vmatpush1.msra.mxu0 0.0
    %8811 = vmatprep.subr.mxu0 0.0
    %8812 = vmatpush1.msra.mxu0 0.0
    %8813 = vmatprep.subr.mxu0 0.0
    %8814 = vmatpush1.msra.mxu0 0.0
    %8815 = vmatprep.subr.mxu0 0.0
    %8816 = vmatpush1.msra.mxu0 0.0
    %8817 = vmatprep.subr.mxu0 0.0
    %8818 = vmatpush1.msra.mxu0 0.0
    %8819 = vmatprep.subr.mxu0 0.0
    %8820 = vmatpush1.msra.mxu0 0.0
    %8821 = vmatprep.subr.mxu0 0.0
    %8822 = vmatpush1.msra.mxu0 0.0
    %8823 = vmatprep.subr.mxu0 0.0
    %8824 = vmatpush1.msra.mxu0 0.0
    %8825 = vmatprep.subr.mxu0 0.0
    %8826 = vmatpush1.msra.mxu0 0.0
    %8827 = vmatprep.subr.mxu0 0.0
    %8828 = vmatpush1.msra.mxu0 0.0
    %8829 = vmatprep.subr.mxu0 0.0
    %8830 = vmatpush1.msra.mxu0 0.0
    %8831 = vmatprep.mubr.f32.mxu0 0.0
    %8832 = vmatmul.mubr.f32.gmra.mrb[0].mxu0 %v8765
    %v8833 = vpop.f32.mrb[0].mxu0
    %v8834 = vadd.f32 0.0, %v8833
    %v8835 = vpop.f32.mrb[0].mxu0
    %8836 = vdwg.mxu0
    %v8837 = vld [vmem:[#allocation23] sm:$0xff]
    %v8838 = vld [vmem:[#allocation23 + $0x8] sm:$0xff]
    %v8839 = vld [vmem:[#allocation23 + $0x10] sm:$0xff]
    %v8840 = vld [vmem:[#allocation23 + $0x18] sm:$0xff]
    %v8841 = vld [vmem:[#allocation23 + $0x20] sm:$0xff]
    %v8842 = vld [vmem:[#allocation23 + $0x28] sm:$0xff]
    %v8843 = vld [vmem:[#allocation23 + $0x30] sm:$0xff]
    %v8844 = vld [vmem:[#allocation23 + $0x38] sm:$0xff]
    %s8845 = scalar_lea.vmem %s14, 2
    %v8846 = vld [vmem:[%s8845] sm:$0x3]
    %v8848 = vsel %vm8763, %v8846, 0
    %8850 = vmatprep.subr.mxu0 0.0
    %8851 = vmatpush1.msra.mxu0 %v8761
    %8852 = vmatprep.subr.mxu0 0.0
    %8853 = vmatpush1.msra.mxu0 0.0
    %8854 = vmatprep.subr.mxu0 0.0
    %8855 = vmatpush1.msra.mxu0 0.0
    %8856 = vmatprep.subr.mxu0 0.0
    %8857 = vmatpush1.msra.mxu0 0.0
    %8858 = vmatprep.subr.mxu0 0.0
    %8859 = vmatpush1.msra.mxu0 0.0
    %8860 = vmatprep.subr.mxu0 0.0
    %8861 = vmatpush1.msra.mxu0 0.0
    %8862 = vmatprep.subr.mxu0 0.0
    %8863 = vmatpush1.msra.mxu0 0.0
    %8864 = vmatprep.subr.mxu0 0.0
    %8865 = vmatpush1.msra.mxu0 0.0
    %8866 = vmatprep.subr.mxu0 0.0
    %8867 = vmatpush1.msra.mxu0 0.0
    %8868 = vmatprep.subr.mxu0 0.0
    %8869 = vmatpush1.msra.mxu0 0.0
    %8870 = vmatprep.subr.mxu0 0.0
    %8871 = vmatpush1.msra.mxu0 0.0
    %8872 = vmatprep.subr.mxu0 0.0
    %8873 = vmatpush1.msra.mxu0 0.0
    %8874 = vmatprep.subr.mxu0 0.0
    %8875 = vmatpush1.msra.mxu0 0.0
    %8876 = vmatprep.subr.mxu0 0.0
    %8877 = vmatpush1.msra.mxu0 0.0
    %8878 = vmatprep.subr.mxu0 0.0
    %8879 = vmatpush1.msra.mxu0 0.0
    %8880 = vmatprep.subr.mxu0 0.0
    %8881 = vmatpush1.msra.mxu0 0.0
    %8882 = vmatprep.subr.mxu0 0.0
    %8883 = vmatpush1.msra.mxu0 0.0
    %8884 = vmatprep.subr.mxu0 0.0
    %8885 = vmatpush1.msra.mxu0 0.0
    %8886 = vmatprep.subr.mxu0 0.0
    %8887 = vmatpush1.msra.mxu0 0.0
    %8888 = vmatprep.subr.mxu0 0.0
    %8889 = vmatpush1.msra.mxu0 0.0
    %8890 = vmatprep.subr.mxu0 0.0
    %8891 = vmatpush1.msra.mxu0 0.0
    %8892 = vmatprep.subr.mxu0 0.0
    %8893 = vmatpush1.msra.mxu0 0.0
    %8894 = vmatprep.subr.mxu0 0.0
    %8895 = vmatpush1.msra.mxu0 0.0
    %8896 = vmatprep.subr.mxu0 0.0
    %8897 = vmatpush1.msra.mxu0 0.0
    %8898 = vmatprep.subr.mxu0 0.0
    %8899 = vmatpush1.msra.mxu0 0.0
    %8900 = vmatprep.subr.mxu0 0.0
    %8901 = vmatpush1.msra.mxu0 0.0
    %8902 = vmatprep.subr.mxu0 0.0
    %8903 = vmatpush1.msra.mxu0 0.0
    %8904 = vmatprep.subr.mxu0 0.0
    %8905 = vmatpush1.msra.mxu0 0.0
    %8906 = vmatprep.subr.mxu0 0.0
    %8907 = vmatpush1.msra.mxu0 0.0
    %8908 = vmatprep.subr.mxu0 0.0
    %8909 = vmatpush1.msra.mxu0 0.0
    %8910 = vmatprep.subr.mxu0 0.0
    %8911 = vmatpush1.msra.mxu0 0.0
    %8912 = vmatprep.subr.mxu0 0.0
    %8913 = vmatpush1.msra.mxu0 0.0
    %8914 = vmatprep.mubr.f32.mxu0 0.0
    %8915 = vmatmul.mubr.f32.gmra.mrb[0].mxu0 %v8848
    %v8916 = vpop.f32.mrb[0].mxu0
    %v8917 = vadd.f32 0.0, %v8916
    %v8918 = vpop.f32.mrb[0].mxu0
    %8919 = vdwg.mxu0
    %s8920 = scalar_lea.vmem [#allocation23], 64
    %v8921 = vld [vmem:[%s8920] sm:$0xff]
    %v8922 = vld [vmem:[%s8920 + $0x8] sm:$0xff]
    %v8923 = vld [vmem:[%s8920 + $0x10] sm:$0xff]
    %v8924 = vld [vmem:[%s8920 + $0x18] sm:$0xff]
    %v8925 = vld [vmem:[%s8920 + $0x20] sm:$0xff]
    %v8926 = vld [vmem:[%s8920 + $0x28] sm:$0xff]
    %v8927 = vld [vmem:[%s8920 + $0x30] sm:$0xff]
    %v8928 = vld [vmem:[%s8920 + $0x38] sm:$0xff]
    %v8930 = vsel %vm8723, %v8917, 0
    %8932 = vmatprep.subr.mxu0 0.0
    %8933 = vmatpush1.msra.mxu0 %v8921
    %8934 = vmatprep.subr.mxu0 0.0
    %8935 = vmatpush1.msra.mxu0 %v8922
    %8936 = vmatprep.subr.mxu0 0.0
    %8937 = vmatpush1.msra.mxu0 %v8923
    %8938 = vmatprep.subr.mxu0 0.0
    %8939 = vmatpush1.msra.mxu0 %v8924
    %8940 = vmatprep.subr.mxu0 0.0
    %8941 = vmatpush1.msra.mxu0 %v8925
    %8942 = vmatprep.subr.mxu0 0.0
    %8943 = vmatpush1.msra.mxu0 %v8926
    %8944 = vmatprep.subr.mxu0 0.0
    %8945 = vmatpush1.msra.mxu0 %v8927
    %8946 = vmatprep.subr.mxu0 0.0
    %8947 = vmatpush1.msra.mxu0 %v8928
    %8948 = vmatprep.subr.mxu0 0.0
    %8949 = vmatpush1.msra.mxu0 0.0
    %8950 = vmatprep.subr.mxu0 0.0
    %8951 = vmatpush1.msra.mxu0 0.0
    %8952 = vmatprep.subr.mxu0 0.0
    %8953 = vmatpush1.msra.mxu0 0.0
    %8954 = vmatprep.subr.mxu0 0.0
    %8955 = vmatpush1.msra.mxu0 0.0
    %8956 = vmatprep.subr.mxu0 0.0
    %8957 = vmatpush1.msra.mxu0 0.0
    %8958 = vmatprep.subr.mxu0 0.0
    %8959 = vmatpush1.msra.mxu0 0.0
    %8960 = vmatprep.subr.mxu0 0.0
    %8961 = vmatpush1.msra.mxu0 0.0
    %8962 = vmatprep.subr.mxu0 0.0
    %8963 = vmatpush1.msra.mxu0 0.0
    %8964 = vmatprep.subr.mxu0 0.0
    %8965 = vmatpush1.msra.mxu0 0.0
    %8966 = vmatprep.subr.mxu0 0.0
    %8967 = vmatpush1.msra.mxu0 0.0
    %8968 = vmatprep.subr.mxu0 0.0
    %8969 = vmatpush1.msra.mxu0 0.0
    %8970 = vmatprep.subr.mxu0 0.0
    %8971 = vmatpush1.msra.mxu0 0.0
    %8972 = vmatprep.subr.mxu0 0.0
    %8973 = vmatpush1.msra.mxu0 0.0
    %8974 = vmatprep.subr.mxu0 0.0
    %8975 = vmatpush1.msra.mxu0 0.0
    %8976 = vmatprep.subr.mxu0 0.0
    %8977 = vmatpush1.msra.mxu0 0.0
    %8978 = vmatprep.subr.mxu0 0.0
    %8979 = vmatpush1.msra.mxu0 0.0
    %8980 = vmatprep.subr.mxu0 0.0
    %8981 = vmatpush1.msra.mxu0 0.0
    %8982 = vmatprep.subr.mxu0 0.0
    %8983 = vmatpush1.msra.mxu0 0.0
    %8984 = vmatprep.subr.mxu0 0.0
    %8985 = vmatpush1.msra.mxu0 0.0
    %8986 = vmatprep.subr.mxu0 0.0
    %8987 = vmatpush1.msra.mxu0 0.0
    %8988 = vmatprep.subr.mxu0 0.0
    %8989 = vmatpush1.msra.mxu0 0.0
    %8990 = vmatprep.subr.mxu0 0.0
    %8991 = vmatpush1.msra.mxu0 0.0
    %8992 = vmatprep.subr.mxu0 0.0
    %8993 = vmatpush1.msra.mxu0 0.0
    %8994 = vmatprep.subr.mxu0 0.0
    %8995 = vmatpush1.msra.mxu0 0.0
    %8996 = vmatprep.mubr.f32.mxu0 0.0
    %8997 = vmatmul.mubr.f32.gmra.mrb[0].mxu0 %v8930
    %v8998 = vpop.f32.mrb[0].mxu0
    %v8999 = vadd.f32 0.0, %v8998
    %v9000 = vpop.f32.mrb[0].mxu0
    %9001 = vdwg.mxu0
    %v9003 = vsel %vm8723, %v8834, 0
    %9005 = vmatprep.subr.mxu0 0.0
    %9006 = vmatpush1.msra.mxu0 %v8837
    %9007 = vmatprep.subr.mxu0 0.0
    %9008 = vmatpush1.msra.mxu0 %v8838
    %9009 = vmatprep.subr.mxu0 0.0
    %9010 = vmatpush1.msra.mxu0 %v8839
    %9011 = vmatprep.subr.mxu0 0.0
    %9012 = vmatpush1.msra.mxu0 %v8840
    %9013 = vmatprep.subr.mxu0 0.0
    %9014 = vmatpush1.msra.mxu0 %v8841
    %9015 = vmatprep.subr.mxu0 0.0
    %9016 = vmatpush1.msra.mxu0 %v8842
    %9017 = vmatprep.subr.mxu0 0.0
    %9018 = vmatpush1.msra.mxu0 %v8843
    %9019 = vmatprep.subr.mxu0 0.0
    %9020 = vmatpush1.msra.mxu0 %v8844
    %9021 = vmatprep.subr.mxu0 0.0
    %9022 = vmatpush1.msra.mxu0 0.0
    %9023 = vmatprep.subr.mxu0 0.0
    %9024 = vmatpush1.msra.mxu0 0.0
    %9025 = vmatprep.subr.mxu0 0.0
    %9026 = vmatpush1.msra.mxu0 0.0
    %9027 = vmatprep.subr.mxu0 0.0
    %9028 = vmatpush1.msra.mxu0 0.0
    %9029 = vmatprep.subr.mxu0 0.0
    %9030 = vmatpush1.msra.mxu0 0.0
    %9031 = vmatprep.subr.mxu0 0.0
    %9032 = vmatpush1.msra.mxu0 0.0
    %9033 = vmatprep.subr.mxu0 0.0
    %9034 = vmatpush1.msra.mxu0 0.0
    %9035 = vmatprep.subr.mxu0 0.0
    %9036 = vmatpush1.msra.mxu0 0.0
    %9037 = vmatprep.subr.mxu0 0.0
    %9038 = vmatpush1.msra.mxu0 0.0
    %9039 = vmatprep.subr.mxu0 0.0
    %9040 = vmatpush1.msra.mxu0 0.0
    %9041 = vmatprep.subr.mxu0 0.0
    %9042 = vmatpush1.msra.mxu0 0.0
    %9043 = vmatprep.subr.mxu0 0.0
    %9044 = vmatpush1.msra.mxu0 0.0
    %9045 = vmatprep.subr.mxu0 0.0
    %9046 = vmatpush1.msra.mxu0 0.0
    %9047 = vmatprep.subr.mxu0 0.0
    %9048 = vmatpush1.msra.mxu0 0.0
    %9049 = vmatprep.subr.mxu0 0.0
    %9050 = vmatpush1.msra.mxu0 0.0
    %9051 = vmatprep.subr.mxu0 0.0
    %9052 = vmatpush1.msra.mxu0 0.0
    %9053 = vmatprep.subr.mxu0 0.0
    %9054 = vmatpush1.msra.mxu0 0.0
    %9055 = vmatprep.subr.mxu0 0.0
    %9056 = vmatpush1.msra.mxu0 0.0
    %9057 = vmatprep.subr.mxu0 0.0
    %9058 = vmatpush1.msra.mxu0 0.0
    %9059 = vmatprep.subr.mxu0 0.0
    %9060 = vmatpush1.msra.mxu0 0.0
    %9061 = vmatprep.subr.mxu0 0.0
    %9062 = vmatpush1.msra.mxu0 0.0
    %9063 = vmatprep.subr.mxu0 0.0
    %9064 = vmatpush1.msra.mxu0 0.0
    %9065 = vmatprep.subr.mxu0 0.0
    %9066 = vmatpush1.msra.mxu0 0.0
    %9067 = vmatprep.subr.mxu0 0.0
    %9068 = vmatpush1.msra.mxu0 0.0
    %9069 = vmatprep.mubr.f32.mxu0 0.0
    %9070 = vmatmul.mubr.f32.gmra.mrb[0].mxu0 %v9003
    %v9071 = vpop.f32.mrb[0].mxu0
    %v9072 = vadd.f32 %v8999, %v9071
    %v9073 = vpop.f32.mrb[0].mxu0
    %9074 = vdwg.mxu0
    %s9075 = scalar_lea.vmem %s14, 4
    %v9076 = vld [vmem:[%s9075] sm:$0x3]
    %v9078 = vsel %vm8763, %v9076, 0
    %9080 = vmatprep.subr.mxu0 0.0
    %9081 = vmatpush1.msra.mxu0 %v8761
    %9082 = vmatprep.subr.mxu0 0.0
    %9083 = vmatpush1.msra.mxu0 0.0
    %9084 = vmatprep.subr.mxu0 0.0
    %9085 = vmatpush1.msra.mxu0 0.0
    %9086 = vmatprep.subr.mxu0 0.0
    %9087 = vmatpush1.msra.mxu0 0.0
    %9088 = vmatprep.subr.mxu0 0.0
    %9089 = vmatpush1.msra.mxu0 0.0
    %9090 = vmatprep.subr.mxu0 0.0
    %9091 = vmatpush1.msra.mxu0 0.0
    %9092 = vmatprep.subr.mxu0 0.0
    %9093 = vmatpush1.msra.mxu0 0.0
    %9094 = vmatprep.subr.mxu0 0.0
    %9095 = vmatpush1.msra.mxu0 0.0
    %9096 = vmatprep.subr.mxu0 0.0
    %9097 = vmatpush1.msra.mxu0 0.0
    %9098 = vmatprep.subr.mxu0 0.0
    %9099 = vmatpush1.msra.mxu0 0.0
    %9100 = vmatprep.subr.mxu0 0.0
    %9101 = vmatpush1.msra.mxu0 0.0
    %9102 = vmatprep.subr.mxu0 0.0
    %9103 = vmatpush1.msra.mxu0 0.0
    %9104 = vmatprep.subr.mxu0 0.0
    %9105 = vmatpush1.msra.mxu0 0.0
    %9106 = vmatprep.subr.mxu0 0.0
    %9107 = vmatpush1.msra.mxu0 0.0
    %9108 = vmatprep.subr.mxu0 0.0
    %9109 = vmatpush1.msra.mxu0 0.0
    %9110 = vmatprep.subr.mxu0 0.0
    %9111 = vmatpush1.msra.mxu0 0.0
    %9112 = vmatprep.subr.mxu0 0.0
    %9113 = vmatpush1.msra.mxu0 0.0
    %9114 = vmatprep.subr.mxu0 0.0
    %9115 = vmatpush1.msra.mxu0 0.0
    %9116 = vmatprep.subr.mxu0 0.0
    %9117 = vmatpush1.msra.mxu0 0.0
    %9118 = vmatprep.subr.mxu0 0.0
    %9119 = vmatpush1.msra.mxu0 0.0
    %9120 = vmatprep.subr.mxu0 0.0
    %9121 = vmatpush1.msra.mxu0 0.0
    %9122 = vmatprep.subr.mxu0 0.0
    %9123 = vmatpush1.msra.mxu0 0.0
    %9124 = vmatprep.subr.mxu0 0.0
    %9125 = vmatpush1.msra.mxu0 0.0
    %9126 = vmatprep.subr.mxu0 0.0
    %9127 = vmatpush1.msra.mxu0 0.0
    %9128 = vmatprep.subr.mxu0 0.0
    %9129 = vmatpush1.msra.mxu0 0.0
    %9130 = vmatprep.subr.mxu0 0.0
    %9131 = vmatpush1.msra.mxu0 0.0
    %9132 = vmatprep.subr.mxu0 0.0
    %9133 = vmatpush1.msra.mxu0 0.0
    %9134 = vmatprep.subr.mxu0 0.0
    %9135 = vmatpush1.msra.mxu0 0.0
    %9136 = vmatprep.subr.mxu0 0.0
    %9137 = vmatpush1.msra.mxu0 0.0
    %9138 = vmatprep.subr.mxu0 0.0
    %9139 = vmatpush1.msra.mxu0 0.0
    %9140 = vmatprep.subr.mxu0 0.0
    %9141 = vmatpush1.msra.mxu0 0.0
    %9142 = vmatprep.subr.mxu0 0.0
    %9143 = vmatpush1.msra.mxu0 0.0
    %9144 = vmatprep.mubr.f32.mxu0 0.0
    %9145 = vmatmul.mubr.f32.gmra.mrb[0].mxu0 %v9078
    %v9146 = vpop.f32.mrb[0].mxu0
    %v9147 = vadd.f32 0.0, %v9146
    %v9148 = vpop.f32.mrb[0].mxu0
    %9149 = vdwg.mxu0
    %s9150 = scalar_lea.vmem [#allocation23], 128
    %v9151 = vld [vmem:[%s9150] sm:$0xff]
    %v9152 = vld [vmem:[%s9150 + $0x8] sm:$0xff]
    %v9153 = vld [vmem:[%s9150 + $0x10] sm:$0xff]
    %v9154 = vld [vmem:[%s9150 + $0x18] sm:$0xff]
    %v9155 = vld [vmem:[%s9150 + $0x20] sm:$0xff]
    %v9156 = vld [vmem:[%s9150 + $0x28] sm:$0xff]
    %v9157 = vld [vmem:[%s9150 + $0x30] sm:$0xff]
    %v9158 = vld [vmem:[%s9150 + $0x38] sm:$0xff]
    %v9160 = vsel %vm8723, %v9147, 0
    %9162 = vmatprep.subr.mxu0 0.0
    %9163 = vmatpush1.msra.mxu0 %v9151
    %9164 = vmatprep.subr.mxu0 0.0
    %9165 = vmatpush1.msra.mxu0 %v9152
    %9166 = vmatprep.subr.mxu0 0.0
    %9167 = vmatpush1.msra.mxu0 %v9153
    %9168 = vmatprep.subr.mxu0 0.0
    %9169 = vmatpush1.msra.mxu0 %v9154
    %9170 = vmatprep.subr.mxu0 0.0
    %9171 = vmatpush1.msra.mxu0 %v9155
    %9172 = vmatprep.subr.mxu0 0.0
    %9173 = vmatpush1.msra.mxu0 %v9156
    %9174 = vmatprep.subr.mxu0 0.0
    %9175 = vmatpush1.msra.mxu0 %v9157
    %9176 = vmatprep.subr.mxu0 0.0
    %9177 = vmatpush1.msra.mxu0 %v9158
    %9178 = vmatprep.subr.mxu0 0.0
    %9179 = vmatpush1.msra.mxu0 0.0
    %9180 = vmatprep.subr.mxu0 0.0
    %9181 = vmatpush1.msra.mxu0 0.0
    %9182 = vmatprep.subr.mxu0 0.0
    %9183 = vmatpush1.msra.mxu0 0.0
    %9184 = vmatprep.subr.mxu0 0.0
    %9185 = vmatpush1.msra.mxu0 0.0
    %9186 = vmatprep.subr.mxu0 0.0
    %9187 = vmatpush1.msra.mxu0 0.0
    %9188 = vmatprep.subr.mxu0 0.0
    %9189 = vmatpush1.msra.mxu0 0.0
    %9190 = vmatprep.subr.mxu0 0.0
    %9191 = vmatpush1.msra.mxu0 0.0
    %9192 = vmatprep.subr.mxu0 0.0
    %9193 = vmatpush1.msra.mxu0 0.0
    %9194 = vmatprep.subr.mxu0 0.0
    %9195 = vmatpush1.msra.mxu0 0.0
    %9196 = vmatprep.subr.mxu0 0.0
    %9197 = vmatpush1.msra.mxu0 0.0
    %9198 = vmatprep.subr.mxu0 0.0
    %9199 = vmatpush1.msra.mxu0 0.0
    %9200 = vmatprep.subr.mxu0 0.0
    %9201 = vmatpush1.msra.mxu0 0.0
    %9202 = vmatprep.subr.mxu0 0.0
    %9203 = vmatpush1.msra.mxu0 0.0
    %9204 = vmatprep.subr.mxu0 0.0
    %9205 = vmatpush1.msra.mxu0 0.0
    %9206 = vmatprep.subr.mxu0 0.0
    %9207 = vmatpush1.msra.mxu0 0.0
    %9208 = vmatprep.subr.mxu0 0.0
    %9209 = vmatpush1.msra.mxu0 0.0
    %9210 = vmatprep.subr.mxu0 0.0
    %9211 = vmatpush1.msra.mxu0 0.0
    %9212 = vmatprep.subr.mxu0 0.0
    %9213 = vmatpush1.msra.mxu0 0.0
    %9214 = vmatprep.subr.mxu0 0.0
    %9215 = vmatpush1.msra.mxu0 0.0
    %9216 = vmatprep.subr.mxu0 0.0
    %9217 = vmatpush1.msra.mxu0 0.0
    %9218 = vmatprep.subr.mxu0 0.0
    %9219 = vmatpush1.msra.mxu0 0.0
    %9220 = vmatprep.subr.mxu0 0.0
    %9221 = vmatpush1.msra.mxu0 0.0
    %9222 = vmatprep.subr.mxu0 0.0
    %9223 = vmatpush1.msra.mxu0 0.0
    %9224 = vmatprep.subr.mxu0 0.0
    %9225 = vmatpush1.msra.mxu0 0.0
    %9226 = vmatprep.mubr.f32.mxu0 0.0
    %9227 = vmatmul.mubr.f32.gmra.mrb[0].mxu0 %v9160
    %v9228 = vpop.f32.mrb[0].mxu0
    %v9229 = vadd.f32 0.0, %v9228
    %v9230 = vpop.f32.mrb[0].mxu0
    %9231 = vdwg.mxu0
    %v9232 = vadd.f32 %v9072, %v9229
    %s9233 = scalar_lea.vmem %s14, 6
    %v9234 = vld [vmem:[%s9233] sm:$0x3]
    %v9236 = vsel %vm8763, %v9234, 0
    %9238 = vmatprep.subr.mxu0 0.0
    %9239 = vmatpush1.msra.mxu0 %v8761
    %9240 = vmatprep.subr.mxu0 0.0
    %9241 = vmatpush1.msra.mxu0 0.0
    %9242 = vmatprep.subr.mxu0 0.0
    %9243 = vmatpush1.msra.mxu0 0.0
    %9244 = vmatprep.subr.mxu0 0.0
    %9245 = vmatpush1.msra.mxu0 0.0
    %9246 = vmatprep.subr.mxu0 0.0
    %9247 = vmatpush1.msra.mxu0 0.0
    %9248 = vmatprep.subr.mxu0 0.0
    %9249 = vmatpush1.msra.mxu0 0.0
    %9250 = vmatprep.subr.mxu0 0.0
    %9251 = vmatpush1.msra.mxu0 0.0
    %9252 = vmatprep.subr.mxu0 0.0
    %9253 = vmatpush1.msra.mxu0 0.0
    %9254 = vmatprep.subr.mxu0 0.0
    %9255 = vmatpush1.msra.mxu0 0.0
    %9256 = vmatprep.subr.mxu0 0.0
    %9257 = vmatpush1.msra.mxu0 0.0
    %9258 = vmatprep.subr.mxu0 0.0
    %9259 = vmatpush1.msra.mxu0 0.0
    %9260 = vmatprep.subr.mxu0 0.0
    %9261 = vmatpush1.msra.mxu0 0.0
    %9262 = vmatprep.subr.mxu0 0.0
    %9263 = vmatpush1.msra.mxu0 0.0
    %9264 = vmatprep.subr.mxu0 0.0
    %9265 = vmatpush1.msra.mxu0 0.0
    %9266 = vmatprep.subr.mxu0 0.0
    %9267 = vmatpush1.msra.mxu0 0.0
    %9268 = vmatprep.subr.mxu0 0.0
    %9269 = vmatpush1.msra.mxu0 0.0
    %9270 = vmatprep.subr.mxu0 0.0
    %9271 = vmatpush1.msra.mxu0 0.0
    %9272 = vmatprep.subr.mxu0 0.0
    %9273 = vmatpush1.msra.mxu0 0.0
    %9274 = vmatprep.subr.mxu0 0.0
    %9275 = vmatpush1.msra.mxu0 0.0
    %9276 = vmatprep.subr.mxu0 0.0
    %9277 = vmatpush1.msra.mxu0 0.0
    %9278 = vmatprep.subr.mxu0 0.0
    %9279 = vmatpush1.msra.mxu0 0.0
    %9280 = vmatprep.subr.mxu0 0.0
    %9281 = vmatpush1.msra.mxu0 0.0
    %9282 = vmatprep.subr.mxu0 0.0
    %9283 = vmatpush1.msra.mxu0 0.0
    %9284 = vmatprep.subr.mxu0 0.0
    %9285 = vmatpush1.msra.mxu0 0.0
    %9286 = vmatprep.subr.mxu0 0.0
    %9287 = vmatpush1.msra.mxu0 0.0
    %9288 = vmatprep.subr.mxu0 0.0
    %9289 = vmatpush1.msra.mxu0 0.0
    %9290 = vmatprep.subr.mxu0 0.0
    %9291 = vmatpush1.msra.mxu0 0.0
    %9292 = vmatprep.subr.mxu0 0.0
    %9293 = vmatpush1.msra.mxu0 0.0
    %9294 = vmatprep.subr.mxu0 0.0
    %9295 = vmatpush1.msra.mxu0 0.0
    %9296 = vmatprep.subr.mxu0 0.0
    %9297 = vmatpush1.msra.mxu0 0.0
    %9298 = vmatprep.subr.mxu0 0.0
    %9299 = vmatpush1.msra.mxu0 0.0
    %9300 = vmatprep.subr.mxu0 0.0
    %9301 = vmatpush1.msra.mxu0 0.0
    %9302 = vmatprep.mubr.f32.mxu0 0.0
    %9303 = vmatmul.mubr.f32.gmra.mrb[0].mxu0 %v9236
    %v9304 = vpop.f32.mrb[0].mxu0
    %v9305 = vadd.f32 0.0, %v9304
    %v9306 = vpop.f32.mrb[0].mxu0
    %9307 = vdwg.mxu0
    %s9308 = scalar_lea.vmem [#allocation23], 192
    %v9309 = vld [vmem:[%s9308] sm:$0xff]
    %v9310 = vld [vmem:[%s9308 + $0x8] sm:$0xff]
    %v9311 = vld [vmem:[%s9308 + $0x10] sm:$0xff]
    %v9312 = vld [vmem:[%s9308 + $0x18] sm:$0xff]
    %v9313 = vld [vmem:[%s9308 + $0x20] sm:$0xff]
    %v9314 = vld [vmem:[%s9308 + $0x28] sm:$0xff]
    %v9315 = vld [vmem:[%s9308 + $0x30] sm:$0xff]
    %v9316 = vld [vmem:[%s9308 + $0x38] sm:$0xff]
    %v9318 = vsel %vm8723, %v9305, 0
    %9320 = vmatprep.subr.mxu0 0.0
    %9321 = vmatpush1.msra.mxu0 %v9309
    %9322 = vmatprep.subr.mxu0 0.0
    %9323 = vmatpush1.msra.mxu0 %v9310
    %9324 = vmatprep.subr.mxu0 0.0
    %9325 = vmatpush1.msra.mxu0 %v9311
    %9326 = vmatprep.subr.mxu0 0.0
    %9327 = vmatpush1.msra.mxu0 %v9312
    %9328 = vmatprep.subr.mxu0 0.0
    %9329 = vmatpush1.msra.mxu0 %v9313
    %9330 = vmatprep.subr.mxu0 0.0
    %9331 = vmatpush1.msra.mxu0 %v9314
    %9332 = vmatprep.subr.mxu0 0.0
    %9333 = vmatpush1.msra.mxu0 %v9315
    %9334 = vmatprep.subr.mxu0 0.0
    %9335 = vmatpush1.msra.mxu0 %v9316
    %9336 = vmatprep.subr.mxu0 0.0
    %9337 = vmatpush1.msra.mxu0 0.0
    %9338 = vmatprep.subr.mxu0 0.0
    %9339 = vmatpush1.msra.mxu0 0.0
    %9340 = vmatprep.subr.mxu0 0.0
    %9341 = vmatpush1.msra.mxu0 0.0
    %9342 = vmatprep.subr.mxu0 0.0
    %9343 = vmatpush1.msra.mxu0 0.0
    %9344 = vmatprep.subr.mxu0 0.0
    %9345 = vmatpush1.msra.mxu0 0.0
    %9346 = vmatprep.subr.mxu0 0.0
    %9347 = vmatpush1.msra.mxu0 0.0
    %9348 = vmatprep.subr.mxu0 0.0
    %9349 = vmatpush1.msra.mxu0 0.0
    %9350 = vmatprep.subr.mxu0 0.0
    %9351 = vmatpush1.msra.mxu0 0.0
    %9352 = vmatprep.subr.mxu0 0.0
    %9353 = vmatpush1.msra.mxu0 0.0
    %9354 = vmatprep.subr.mxu0 0.0
    %9355 = vmatpush1.msra.mxu0 0.0
    %9356 = vmatprep.subr.mxu0 0.0
    %9357 = vmatpush1.msra.mxu0 0.0
    %9358 = vmatprep.subr.mxu0 0.0
    %9359 = vmatpush1.msra.mxu0 0.0
    %9360 = vmatprep.subr.mxu0 0.0
    %9361 = vmatpush1.msra.mxu0 0.0
    %9362 = vmatprep.subr.mxu0 0.0
    %9363 = vmatpush1.msra.mxu0 0.0
    %9364 = vmatprep.subr.mxu0 0.0
    %9365 = vmatpush1.msra.mxu0 0.0
    %9366 = vmatprep.subr.mxu0 0.0
    %9367 = vmatpush1.msra.mxu0 0.0
    %9368 = vmatprep.subr.mxu0 0.0
    %9369 = vmatpush1.msra.mxu0 0.0
    %9370 = vmatprep.subr.mxu0 0.0
    %9371 = vmatpush1.msra.mxu0 0.0
    %9372 = vmatprep.subr.mxu0 0.0
    %9373 = vmatpush1.msra.mxu0 0.0
    %9374 = vmatprep.subr.mxu0 0.0
    %9375 = vmatpush1.msra.mxu0 0.0
    %9376 = vmatprep.subr.mxu0 0.0
    %9377 = vmatpush1.msra.mxu0 0.0
    %9378 = vmatprep.subr.mxu0 0.0
    %9379 = vmatpush1.msra.mxu0 0.0
    %9380 = vmatprep.subr.mxu0 0.0
    %9381 = vmatpush1.msra.mxu0 0.0
    %9382 = vmatprep.subr.mxu0 0.0
    %9383 = vmatpush1.msra.mxu0 0.0
    %9384 = vmatprep.mubr.f32.mxu0 0.0
    %9385 = vmatmul.mubr.f32.gmra.mrb[0].mxu0 %v9318
    %v9386 = vpop.f32.mrb[0].mxu0
    %v9387 = vadd.f32 0.0, %v9386
    %v9388 = vpop.f32.mrb[0].mxu0
    %9389 = vdwg.mxu0
    %v9390 = vadd.f32 %v9232, %v9387
    %s9391 = scalar_lea.vmem %s14, 8
    %v9392 = vld [vmem:[%s9391] sm:$0x3]
    %v9394 = vsel %vm8763, %v9392, 0
    %9396 = vmatprep.subr.mxu0 0.0
    %9397 = vmatpush1.msra.mxu0 %v8761
    %9398 = vmatprep.subr.mxu0 0.0
    %9399 = vmatpush1.msra.mxu0 0.0
    %9400 = vmatprep.subr.mxu0 0.0
    %9401 = vmatpush1.msra.mxu0 0.0
    %9402 = vmatprep.subr.mxu0 0.0
    %9403 = vmatpush1.msra.mxu0 0.0
    %9404 = vmatprep.subr.mxu0 0.0
    %9405 = vmatpush1.msra.mxu0 0.0
    %9406 = vmatprep.subr.mxu0 0.0
    %9407 = vmatpush1.msra.mxu0 0.0
    %9408 = vmatprep.subr.mxu0 0.0
    %9409 = vmatpush1.msra.mxu0 0.0
    %9410 = vmatprep.subr.mxu0 0.0
    %9411 = vmatpush1.msra.mxu0 0.0
    %9412 = vmatprep.subr.mxu0 0.0
    %9413 = vmatpush1.msra.mxu0 0.0
    %9414 = vmatprep.subr.mxu0 0.0
    %9415 = vmatpush1.msra.mxu0 0.0
    %9416 = vmatprep.subr.mxu0 0.0
    %9417 = vmatpush1.msra.mxu0 0.0
    %9418 = vmatprep.subr.mxu0 0.0
    %9419 = vmatpush1.msra.mxu0 0.0
    %9420 = vmatprep.subr.mxu0 0.0
    %9421 = vmatpush1.msra.mxu0 0.0
    %9422 = vmatprep.subr.mxu0 0.0
    %9423 = vmatpush1.msra.mxu0 0.0
    %9424 = vmatprep.subr.mxu0 0.0
    %9425 = vmatpush1.msra.mxu0 0.0
    %9426 = vmatprep.subr.mxu0 0.0
    %9427 = vmatpush1.msra.mxu0 0.0
    %9428 = vmatprep.subr.mxu0 0.0
    %9429 = vmatpush1.msra.mxu0 0.0
    %9430 = vmatprep.subr.mxu0 0.0
    %9431 = vmatpush1.msra.mxu0 0.0
    %9432 = vmatprep.subr.mxu0 0.0
    %9433 = vmatpush1.msra.mxu0 0.0
    %9434 = vmatprep.subr.mxu0 0.0
    %9435 = vmatpush1.msra.mxu0 0.0
    %9436 = vmatprep.subr.mxu0 0.0
    %9437 = vmatpush1.msra.mxu0 0.0
    %9438 = vmatprep.subr.mxu0 0.0
    %9439 = vmatpush1.msra.mxu0 0.0
    %9440 = vmatprep.subr.mxu0 0.0
    %9441 = vmatpush1.msra.mxu0 0.0
    %9442 = vmatprep.subr.mxu0 0.0
    %9443 = vmatpush1.msra.mxu0 0.0
    %9444 = vmatprep.subr.mxu0 0.0
    %9445 = vmatpush1.msra.mxu0 0.0
    %9446 = vmatprep.subr.mxu0 0.0
    %9447 = vmatpush1.msra.mxu0 0.0
    %9448 = vmatprep.subr.mxu0 0.0
    %9449 = vmatpush1.msra.mxu0 0.0
    %9450 = vmatprep.subr.mxu0 0.0
    %9451 = vmatpush1.msra.mxu0 0.0
    %9452 = vmatprep.subr.mxu0 0.0
    %9453 = vmatpush1.msra.mxu0 0.0
    %9454 = vmatprep.subr.mxu0 0.0
    %9455 = vmatpush1.msra.mxu0 0.0
    %9456 = vmatprep.subr.mxu0 0.0
    %9457 = vmatpush1.msra.mxu0 0.0
    %9458 = vmatprep.subr.mxu0 0.0
    %9459 = vmatpush1.msra.mxu0 0.0
    %9460 = vmatprep.mubr.f32.mxu0 0.0
    %9461 = vmatmul.mubr.f32.gmra.mrb[0].mxu0 %v9394
    %v9462 = vpop.f32.mrb[0].mxu0
    %v9463 = vadd.f32 0.0, %v9462
    %v9464 = vpop.f32.mrb[0].mxu0
    %9465 = vdwg.mxu0
    %s9466 = scalar_lea.vmem [#allocation23], 256
    %v9467 = vld [vmem:[%s9466] sm:$0xff]
    %v9468 = vld [vmem:[%s9466 + $0x8] sm:$0xff]
    %v9469 = vld [vmem:[%s9466 + $0x10] sm:$0xff]
    %v9470 = vld [vmem:[%s9466 + $0x18] sm:$0xff]
    %v9471 = vld [vmem:[%s9466 + $0x20] sm:$0xff]
    %v9472 = vld [vmem:[%s9466 + $0x28] sm:$0xff]
    %v9473 = vld [vmem:[%s9466 + $0x30] sm:$0xff]
    %v9474 = vld [vmem:[%s9466 + $0x38] sm:$0xff]
    %v9476 = vsel %vm8723, %v9463, 0
    %9478 = vmatprep.subr.mxu0 0.0
    %9479 = vmatpush1.msra.mxu0 %v9467
    %9480 = vmatprep.subr.mxu0 0.0
    %9481 = vmatpush1.msra.mxu0 %v9468
    %9482 = vmatprep.subr.mxu0 0.0
    %9483 = vmatpush1.msra.mxu0 %v9469
    %9484 = vmatprep.subr.mxu0 0.0
    %9485 = vmatpush1.msra.mxu0 %v9470
    %9486 = vmatprep.subr.mxu0 0.0
    %9487 = vmatpush1.msra.mxu0 %v9471
    %9488 = vmatprep.subr.mxu0 0.0
    %9489 = vmatpush1.msra.mxu0 %v9472
    %9490 = vmatprep.subr.mxu0 0.0
    %9491 = vmatpush1.msra.mxu0 %v9473
    %9492 = vmatprep.subr.mxu0 0.0
    %9493 = vmatpush1.msra.mxu0 %v9474
    %9494 = vmatprep.subr.mxu0 0.0
    %9495 = vmatpush1.msra.mxu0 0.0
    %9496 = vmatprep.subr.mxu0 0.0
    %9497 = vmatpush1.msra.mxu0 0.0
    %9498 = vmatprep.subr.mxu0 0.0
    %9499 = vmatpush1.msra.mxu0 0.0
    %9500 = vmatprep.subr.mxu0 0.0
    %9501 = vmatpush1.msra.mxu0 0.0
    %9502 = vmatprep.subr.mxu0 0.0
    %9503 = vmatpush1.msra.mxu0 0.0
    %9504 = vmatprep.subr.mxu0 0.0
    %9505 = vmatpush1.msra.mxu0 0.0
    %9506 = vmatprep.subr.mxu0 0.0
    %9507 = vmatpush1.msra.mxu0 0.0
    %9508 = vmatprep.subr.mxu0 0.0
    %9509 = vmatpush1.msra.mxu0 0.0
    %9510 = vmatprep.subr.mxu0 0.0
    %9511 = vmatpush1.msra.mxu0 0.0
    %9512 = vmatprep.subr.mxu0 0.0
    %9513 = vmatpush1.msra.mxu0 0.0
    %9514 = vmatprep.subr.mxu0 0.0
    %9515 = vmatpush1.msra.mxu0 0.0
    %9516 = vmatprep.subr.mxu0 0.0
    %9517 = vmatpush1.msra.mxu0 0.0
    %9518 = vmatprep.subr.mxu0 0.0
    %9519 = vmatpush1.msra.mxu0 0.0
    %9520 = vmatprep.subr.mxu0 0.0
    %9521 = vmatpush1.msra.mxu0 0.0
    %9522 = vmatprep.subr.mxu0 0.0
    %9523 = vmatpush1.msra.mxu0 0.0
    %9524 = vmatprep.subr.mxu0 0.0
    %9525 = vmatpush1.msra.mxu0 0.0
    %9526 = vmatprep.subr.mxu0 0.0
    %9527 = vmatpush1.msra.mxu0 0.0
    %9528 = vmatprep.subr.mxu0 0.0
    %9529 = vmatpush1.msra.mxu0 0.0
    %9530 = vmatprep.subr.mxu0 0.0
    %9531 = vmatpush1.msra.mxu0 0.0
    %9532 = vmatprep.subr.mxu0 0.0
    %9533 = vmatpush1.msra.mxu0 0.0
    %9534 = vmatprep.subr.mxu0 0.0
    %9535 = vmatpush1.msra.mxu0 0.0
    %9536 = vmatprep.subr.mxu0 0.0
    %9537 = vmatpush1.msra.mxu0 0.0
    %9538 = vmatprep.subr.mxu0 0.0
    %9539 = vmatpush1.msra.mxu0 0.0
    %9540 = vmatprep.subr.mxu0 0.0
    %9541 = vmatpush1.msra.mxu0 0.0
    %9542 = vmatprep.mubr.f32.mxu0 0.0
    %9543 = vmatmul.mubr.f32.gmra.mrb[0].mxu0 %v9476
    %v9544 = vpop.f32.mrb[0].mxu0
    %v9545 = vadd.f32 0.0, %v9544
    %v9546 = vpop.f32.mrb[0].mxu0
    %9547 = vdwg.mxu0
    %v9548 = vadd.f32 %v9390, %v9545
    %s9549 = scalar_lea.vmem %s14, 10
    %v9550 = vld [vmem:[%s9549] sm:$0x3]
    %v9552 = vsel %vm8763, %v9550, 0
    %9554 = vmatprep.subr.mxu0 0.0
    %9555 = vmatpush1.msra.mxu0 %v8761
    %9556 = vmatprep.subr.mxu0 0.0
    %9557 = vmatpush1.msra.mxu0 0.0
    %9558 = vmatprep.subr.mxu0 0.0
    %9559 = vmatpush1.msra.mxu0 0.0
    %9560 = vmatprep.subr.mxu0 0.0
    %9561 = vmatpush1.msra.mxu0 0.0
    %9562 = vmatprep.subr.mxu0 0.0
    %9563 = vmatpush1.msra.mxu0 0.0
    %9564 = vmatprep.subr.mxu0 0.0
    %9565 = vmatpush1.msra.mxu0 0.0
    %9566 = vmatprep.subr.mxu0 0.0
    %9567 = vmatpush1.msra.mxu0 0.0
    %9568 = vmatprep.subr.mxu0 0.0
    %9569 = vmatpush1.msra.mxu0 0.0
    %9570 = vmatprep.subr.mxu0 0.0
    %9571 = vmatpush1.msra.mxu0 0.0
    %9572 = vmatprep.subr.mxu0 0.0
    %9573 = vmatpush1.msra.mxu0 0.0
    %9574 = vmatprep.subr.mxu0 0.0
    %9575 = vmatpush1.msra.mxu0 0.0
    %9576 = vmatprep.subr.mxu0 0.0
    %9577 = vmatpush1.msra.mxu0 0.0
    %9578 = vmatprep.subr.mxu0 0.0
    %9579 = vmatpush1.msra.mxu0 0.0
    %9580 = vmatprep.subr.mxu0 0.0
    %9581 = vmatpush1.msra.mxu0 0.0
    %9582 = vmatprep.subr.mxu0 0.0
    %9583 = vmatpush1.msra.mxu0 0.0
    %9584 = vmatprep.subr.mxu0 0.0
    %9585 = vmatpush1.msra.mxu0 0.0
    %9586 = vmatprep.subr.mxu0 0.0
    %9587 = vmatpush1.msra.mxu0 0.0
    %9588 = vmatprep.subr.mxu0 0.0
    %9589 = vmatpush1.msra.mxu0 0.0
    %9590 = vmatprep.subr.mxu0 0.0
    %9591 = vmatpush1.msra.mxu0 0.0
    %9592 = vmatprep.subr.mxu0 0.0
    %9593 = vmatpush1.msra.mxu0 0.0
    %9594 = vmatprep.subr.mxu0 0.0
    %9595 = vmatpush1.msra.mxu0 0.0
    %9596 = vmatprep.subr.mxu0 0.0
    %9597 = vmatpush1.msra.mxu0 0.0
    %9598 = vmatprep.subr.mxu0 0.0
    %9599 = vmatpush1.msra.mxu0 0.0
    %9600 = vmatprep.subr.mxu0 0.0
    %9601 = vmatpush1.msra.mxu0 0.0
    %9602 = vmatprep.subr.mxu0 0.0
    %9603 = vmatpush1.msra.mxu0 0.0
    %9604 = vmatprep.subr.mxu0 0.0
    %9605 = vmatpush1.msra.mxu0 0.0
    %9606 = vmatprep.subr.mxu0 0.0
    %9607 = vmatpush1.msra.mxu0 0.0
    %9608 = vmatprep.subr.mxu0 0.0
    %9609 = vmatpush1.msra.mxu0 0.0
    %9610 = vmatprep.subr.mxu0 0.0
    %9611 = vmatpush1.msra.mxu0 0.0
    %9612 = vmatprep.subr.mxu0 0.0
    %9613 = vmatpush1.msra.mxu0 0.0
    %9614 = vmatprep.subr.mxu0 0.0
    %9615 = vmatpush1.msra.mxu0 0.0
    %9616 = vmatprep.subr.mxu0 0.0
    %9617 = vmatpush1.msra.mxu0 0.0
    %9618 = vmatprep.mubr.f32.mxu0 0.0
    %9619 = vmatmul.mubr.f32.gmra.mrb[0].mxu0 %v9552
    %v9620 = vpop.f32.mrb[0].mxu0
    %v9621 = vadd.f32 0.0, %v9620
    %v9622 = vpop.f32.mrb[0].mxu0
    %9623 = vdwg.mxu0
    %s9624 = scalar_lea.vmem [#allocation23], 320
    %v9625 = vld [vmem:[%s9624] sm:$0xff]
    %v9626 = vld [vmem:[%s9624 + $0x8] sm:$0xff]
    %v9627 = vld [vmem:[%s9624 + $0x10] sm:$0xff]
    %v9628 = vld [vmem:[%s9624 + $0x18] sm:$0xff]
    %v9629 = vld [vmem:[%s9624 + $0x20] sm:$0xff]
    %v9630 = vld [vmem:[%s9624 + $0x28] sm:$0xff]
    %v9631 = vld [vmem:[%s9624 + $0x30] sm:$0xff]
    %v9632 = vld [vmem:[%s9624 + $0x38] sm:$0xff]
    %v9634 = vsel %vm8723, %v9621, 0
    %9636 = vmatprep.subr.mxu0 0.0
    %9637 = vmatpush1.msra.mxu0 %v9625
    %9638 = vmatprep.subr.mxu0 0.0
    %9639 = vmatpush1.msra.mxu0 %v9626
    %9640 = vmatprep.subr.mxu0 0.0
    %9641 = vmatpush1.msra.mxu0 %v9627
    %9642 = vmatprep.subr.mxu0 0.0
    %9643 = vmatpush1.msra.mxu0 %v9628
    %9644 = vmatprep.subr.mxu0 0.0
    %9645 = vmatpush1.msra.mxu0 %v9629
    %9646 = vmatprep.subr.mxu0 0.0
    %9647 = vmatpush1.msra.mxu0 %v9630
    %9648 = vmatprep.subr.mxu0 0.0
    %9649 = vmatpush1.msra.mxu0 %v9631
    %9650 = vmatprep.subr.mxu0 0.0
    %9651 = vmatpush1.msra.mxu0 %v9632
    %9652 = vmatprep.subr.mxu0 0.0
    %9653 = vmatpush1.msra.mxu0 0.0
    %9654 = vmatprep.subr.mxu0 0.0
    %9655 = vmatpush1.msra.mxu0 0.0
    %9656 = vmatprep.subr.mxu0 0.0
    %9657 = vmatpush1.msra.mxu0 0.0
    %9658 = vmatprep.subr.mxu0 0.0
    %9659 = vmatpush1.msra.mxu0 0.0
    %9660 = vmatprep.subr.mxu0 0.0
    %9661 = vmatpush1.msra.mxu0 0.0
    %9662 = vmatprep.subr.mxu0 0.0
    %9663 = vmatpush1.msra.mxu0 0.0
    %9664 = vmatprep.subr.mxu0 0.0
    %9665 = vmatpush1.msra.mxu0 0.0
    %9666 = vmatprep.subr.mxu0 0.0
    %9667 = vmatpush1.msra.mxu0 0.0
    %9668 = vmatprep.subr.mxu0 0.0
    %9669 = vmatpush1.msra.mxu0 0.0
    %9670 = vmatprep.subr.mxu0 0.0
    %9671 = vmatpush1.msra.mxu0 0.0
    %9672 = vmatprep.subr.mxu0 0.0
    %9673 = vmatpush1.msra.mxu0 0.0
    %9674 = vmatprep.subr.mxu0 0.0
    %9675 = vmatpush1.msra.mxu0 0.0
    %9676 = vmatprep.subr.mxu0 0.0
    %9677 = vmatpush1.msra.mxu0 0.0
    %9678 = vmatprep.subr.mxu0 0.0
    %9679 = vmatpush1.msra.mxu0 0.0
    %9680 = vmatprep.subr.mxu0 0.0
    %9681 = vmatpush1.msra.mxu0 0.0
    %9682 = vmatprep.subr.mxu0 0.0
    %9683 = vmatpush1.msra.mxu0 0.0
    %9684 = vmatprep.subr.mxu0 0.0
    %9685 = vmatpush1.msra.mxu0 0.0
    %9686 = vmatprep.subr.mxu0 0.0
    %9687 = vmatpush1.msra.mxu0 0.0
    %9688 = vmatprep.subr.mxu0 0.0
    %9689 = vmatpush1.msra.mxu0 0.0
    %9690 = vmatprep.subr.mxu0 0.0
    %9691 = vmatpush1.msra.mxu0 0.0
    %9692 = vmatprep.subr.mxu0 0.0
    %9693 = vmatpush1.msra.mxu0 0.0
    %9694 = vmatprep.subr.mxu0 0.0
    %9695 = vmatpush1.msra.mxu0 0.0
    %9696 = vmatprep.subr.mxu0 0.0
    %9697 = vmatpush1.msra.mxu0 0.0
    %9698 = vmatprep.subr.mxu0 0.0
    %9699 = vmatpush1.msra.mxu0 0.0
    %9700 = vmatprep.mubr.f32.mxu0 0.0
    %9701 = vmatmul.mubr.f32.gmra.mrb[0].mxu0 %v9634
    %v9702 = vpop.f32.mrb[0].mxu0
    %v9703 = vadd.f32 0.0, %v9702
    %v9704 = vpop.f32.mrb[0].mxu0
    %9705 = vdwg.mxu0
    %v9706 = vadd.f32 %v9548, %v9703
    %s9707 = scalar_lea.vmem %s14, 12
    %v9708 = vld [vmem:[%s9707] sm:$0x3]
    %v9710 = vsel %vm8763, %v9708, 0
    %9712 = vmatprep.subr.mxu0 0.0
    %9713 = vmatpush1.msra.mxu0 %v8761
    %9714 = vmatprep.subr.mxu0 0.0
    %9715 = vmatpush1.msra.mxu0 0.0
    %9716 = vmatprep.subr.mxu0 0.0
    %9717 = vmatpush1.msra.mxu0 0.0
    %9718 = vmatprep.subr.mxu0 0.0
    %9719 = vmatpush1.msra.mxu0 0.0
    %9720 = vmatprep.subr.mxu0 0.0
    %9721 = vmatpush1.msra.mxu0 0.0
    %9722 = vmatprep.subr.mxu0 0.0
    %9723 = vmatpush1.msra.mxu0 0.0
    %9724 = vmatprep.subr.mxu0 0.0
    %9725 = vmatpush1.msra.mxu0 0.0
    %9726 = vmatprep.subr.mxu0 0.0
    %9727 = vmatpush1.msra.mxu0 0.0
    %9728 = vmatprep.subr.mxu0 0.0
    %9729 = vmatpush1.msra.mxu0 0.0
    %9730 = vmatprep.subr.mxu0 0.0
    %9731 = vmatpush1.msra.mxu0 0.0
    %9732 = vmatprep.subr.mxu0 0.0
    %9733 = vmatpush1.msra.mxu0 0.0
    %9734 = vmatprep.subr.mxu0 0.0
    %9735 = vmatpush1.msra.mxu0 0.0
    %9736 = vmatprep.subr.mxu0 0.0
    %9737 = vmatpush1.msra.mxu0 0.0
    %9738 = vmatprep.subr.mxu0 0.0
    %9739 = vmatpush1.msra.mxu0 0.0
    %9740 = vmatprep.subr.mxu0 0.0
    %9741 = vmatpush1.msra.mxu0 0.0
    %9742 = vmatprep.subr.mxu0 0.0
    %9743 = vmatpush1.msra.mxu0 0.0
    %9744 = vmatprep.subr.mxu0 0.0
    %9745 = vmatpush1.msra.mxu0 0.0
    %9746 = vmatprep.subr.mxu0 0.0
    %9747 = vmatpush1.msra.mxu0 0.0
    %9748 = vmatprep.subr.mxu0 0.0
    %9749 = vmatpush1.msra.mxu0 0.0
    %9750 = vmatprep.subr.mxu0 0.0
    %9751 = vmatpush1.msra.mxu0 0.0
    %9752 = vmatprep.subr.mxu0 0.0
    %9753 = vmatpush1.msra.mxu0 0.0
    %9754 = vmatprep.subr.mxu0 0.0
    %9755 = vmatpush1.msra.mxu0 0.0
    %9756 = vmatprep.subr.mxu0 0.0
    %9757 = vmatpush1.msra.mxu0 0.0
    %9758 = vmatprep.subr.mxu0 0.0
    %9759 = vmatpush1.msra.mxu0 0.0
    %9760 = vmatprep.subr.mxu0 0.0
    %9761 = vmatpush1.msra.mxu0 0.0
    %9762 = vmatprep.subr.mxu0 0.0
    %9763 = vmatpush1.msra.mxu0 0.0
    %9764 = vmatprep.subr.mxu0 0.0
    %9765 = vmatpush1.msra.mxu0 0.0
    %9766 = vmatprep.subr.mxu0 0.0
    %9767 = vmatpush1.msra.mxu0 0.0
    %9768 = vmatprep.subr.mxu0 0.0
    %9769 = vmatpush1.msra.mxu0 0.0
    %9770 = vmatprep.subr.mxu0 0.0
    %9771 = vmatpush1.msra.mxu0 0.0
    %9772 = vmatprep.subr.mxu0 0.0
    %9773 = vmatpush1.msra.mxu0 0.0
    %9774 = vmatprep.subr.mxu0 0.0
    %9775 = vmatpush1.msra.mxu0 0.0
    %9776 = vmatprep.mubr.f32.mxu0 0.0
    %9777 = vmatmul.mubr.f32.gmra.mrb[0].mxu0 %v9710
    %v9778 = vpop.f32.mrb[0].mxu0
    %v9779 = vadd.f32 0.0, %v9778
    %v9780 = vpop.f32.mrb[0].mxu0
    %9781 = vdwg.mxu0
    %s9782 = scalar_lea.vmem [#allocation23], 384
    %v9783 = vld [vmem:[%s9782] sm:$0xff]
    %v9784 = vld [vmem:[%s9782 + $0x8] sm:$0xff]
    %v9785 = vld [vmem:[%s9782 + $0x10] sm:$0xff]
    %v9786 = vld [vmem:[%s9782 + $0x18] sm:$0xff]
    %v9787 = vld [vmem:[%s9782 + $0x20] sm:$0xff]
    %v9788 = vld [vmem:[%s9782 + $0x28] sm:$0xff]
    %v9789 = vld [vmem:[%s9782 + $0x30] sm:$0xff]
    %v9790 = vld [vmem:[%s9782 + $0x38] sm:$0xff]
    %v9792 = vsel %vm8723, %v9779, 0
    %9794 = vmatprep.subr.mxu0 0.0
    %9795 = vmatpush1.msra.mxu0 %v9783
    %9796 = vmatprep.subr.mxu0 0.0
    %9797 = vmatpush1.msra.mxu0 %v9784
    %9798 = vmatprep.subr.mxu0 0.0
    %9799 = vmatpush1.msra.mxu0 %v9785
    %9800 = vmatprep.subr.mxu0 0.0
    %9801 = vmatpush1.msra.mxu0 %v9786
    %9802 = vmatprep.subr.mxu0 0.0
    %9803 = vmatpush1.msra.mxu0 %v9787
    %9804 = vmatprep.subr.mxu0 0.0
    %9805 = vmatpush1.msra.mxu0 %v9788
    %9806 = vmatprep.subr.mxu0 0.0
    %9807 = vmatpush1.msra.mxu0 %v9789
    %9808 = vmatprep.subr.mxu0 0.0
    %9809 = vmatpush1.msra.mxu0 %v9790
    %9810 = vmatprep.subr.mxu0 0.0
    %9811 = vmatpush1.msra.mxu0 0.0
    %9812 = vmatprep.subr.mxu0 0.0
    %9813 = vmatpush1.msra.mxu0 0.0
    %9814 = vmatprep.subr.mxu0 0.0
    %9815 = vmatpush1.msra.mxu0 0.0
    %9816 = vmatprep.subr.mxu0 0.0
    %9817 = vmatpush1.msra.mxu0 0.0
    %9818 = vmatprep.subr.mxu0 0.0
    %9819 = vmatpush1.msra.mxu0 0.0
    %9820 = vmatprep.subr.mxu0 0.0
    %9821 = vmatpush1.msra.mxu0 0.0
    %9822 = vmatprep.subr.mxu0 0.0
    %9823 = vmatpush1.msra.mxu0 0.0
    %9824 = vmatprep.subr.mxu0 0.0
    %9825 = vmatpush1.msra.mxu0 0.0
    %9826 = vmatprep.subr.mxu0 0.0
    %9827 = vmatpush1.msra.mxu0 0.0
    %9828 = vmatprep.subr.mxu0 0.0
    %9829 = vmatpush1.msra.mxu0 0.0
    %9830 = vmatprep.subr.mxu0 0.0
    %9831 = vmatpush1.msra.mxu0 0.0
    %9832 = vmatprep.subr.mxu0 0.0
    %9833 = vmatpush1.msra.mxu0 0.0
    %9834 = vmatprep.subr.mxu0 0.0
    %9835 = vmatpush1.msra.mxu0 0.0
    %9836 = vmatprep.subr.mxu0 0.0
    %9837 = vmatpush1.msra.mxu0 0.0
    %9838 = vmatprep.subr.mxu0 0.0
    %9839 = vmatpush1.msra.mxu0 0.0
    %9840 = vmatprep.subr.mxu0 0.0
    %9841 = vmatpush1.msra.mxu0 0.0
    %9842 = vmatprep.subr.mxu0 0.0
    %9843 = vmatpush1.msra.mxu0 0.0
    %9844 = vmatprep.subr.mxu0 0.0
    %9845 = vmatpush1.msra.mxu0 0.0
    %9846 = vmatprep.subr.mxu0 0.0
    %9847 = vmatpush1.msra.mxu0 0.0
    %9848 = vmatprep.subr.mxu0 0.0
    %9849 = vmatpush1.msra.mxu0 0.0
    %9850 = vmatprep.subr.mxu0 0.0
    %9851 = vmatpush1.msra.mxu0 0.0
    %9852 = vmatprep.subr.mxu0 0.0
    %9853 = vmatpush1.msra.mxu0 0.0
    %9854 = vmatprep.subr.mxu0 0.0
    %9855 = vmatpush1.msra.mxu0 0.0
    %9856 = vmatprep.subr.mxu0 0.0
    %9857 = vmatpush1.msra.mxu0 0.0
    %9858 = vmatprep.mubr.f32.mxu0 0.0
    %9859 = vmatmul.mubr.f32.gmra.mrb[0].mxu0 %v9792
    %v9860 = vpop.f32.mrb[0].mxu0
    %v9861 = vadd.f32 0.0, %v9860
    %v9862 = vpop.f32.mrb[0].mxu0
    %9863 = vdwg.mxu0
    %v9864 = vadd.f32 %v9706, %v9861
    %s9865 = scalar_lea.vmem %s14, 14
    %v9866 = vld [vmem:[%s9865] sm:$0x3]
    %v9868 = vsel %vm8763, %v9866, 0
    %9870 = vmatprep.subr.mxu0 0.0
    %9871 = vmatpush1.msra.mxu0 %v8761
    %9872 = vmatprep.subr.mxu0 0.0
    %9873 = vmatpush1.msra.mxu0 0.0
    %9874 = vmatprep.subr.mxu0 0.0
    %9875 = vmatpush1.msra.mxu0 0.0
    %9876 = vmatprep.subr.mxu0 0.0
    %9877 = vmatpush1.msra.mxu0 0.0
    %9878 = vmatprep.subr.mxu0 0.0
    %9879 = vmatpush1.msra.mxu0 0.0
    %9880 = vmatprep.subr.mxu0 0.0
    %9881 = vmatpush1.msra.mxu0 0.0
    %9882 = vmatprep.subr.mxu0 0.0
    %9883 = vmatpush1.msra.mxu0 0.0
    %9884 = vmatprep.subr.mxu0 0.0
    %9885 = vmatpush1.msra.mxu0 0.0
    %9886 = vmatprep.subr.mxu0 0.0
    %9887 = vmatpush1.msra.mxu0 0.0
    %9888 = vmatprep.subr.mxu0 0.0
    %9889 = vmatpush1.msra.mxu0 0.0
    %9890 = vmatprep.subr.mxu0 0.0
    %9891 = vmatpush1.msra.mxu0 0.0
    %9892 = vmatprep.subr.mxu0 0.0
    %9893 = vmatpush1.msra.mxu0 0.0
    %9894 = vmatprep.subr.mxu0 0.0
    %9895 = vmatpush1.msra.mxu0 0.0
    %9896 = vmatprep.subr.mxu0 0.0
    %9897 = vmatpush1.msra.mxu0 0.0
    %9898 = vmatprep.subr.mxu0 0.0
    %9899 = vmatpush1.msra.mxu0 0.0
    %9900 = vmatprep.subr.mxu0 0.0
    %9901 = vmatpush1.msra.mxu0 0.0
    %9902 = vmatprep.subr.mxu0 0.0
    %9903 = vmatpush1.msra.mxu0 0.0
    %9904 = vmatprep.subr.mxu0 0.0
    %9905 = vmatpush1.msra.mxu0 0.0
    %9906 = vmatprep.subr.mxu0 0.0
    %9907 = vmatpush1.msra.mxu0 0.0
    %9908 = vmatprep.subr.mxu0 0.0
    %9909 = vmatpush1.msra.mxu0 0.0
    %9910 = vmatprep.subr.mxu0 0.0
    %9911 = vmatpush1.msra.mxu0 0.0
    %9912 = vmatprep.subr.mxu0 0.0
    %9913 = vmatpush1.msra.mxu0 0.0
    %9914 = vmatprep.subr.mxu0 0.0
    %9915 = vmatpush1.msra.mxu0 0.0
    %9916 = vmatprep.subr.mxu0 0.0
    %9917 = vmatpush1.msra.mxu0 0.0
    %9918 = vmatprep.subr.mxu0 0.0
    %9919 = vmatpush1.msra.mxu0 0.0
    %9920 = vmatprep.subr.mxu0 0.0
    %9921 = vmatpush1.msra.mxu0 0.0
    %9922 = vmatprep.subr.mxu0 0.0
    %9923 = vmatpush1.msra.mxu0 0.0
    %9924 = vmatprep.subr.mxu0 0.0
    %9925 = vmatpush1.msra.mxu0 0.0
    %9926 = vmatprep.subr.mxu0 0.0
    %9927 = vmatpush1.msra.mxu0 0.0
    %9928 = vmatprep.subr.mxu0 0.0
    %9929 = vmatpush1.msra.mxu0 0.0
    %9930 = vmatprep.subr.mxu0 0.0
    %9931 = vmatpush1.msra.mxu0 0.0
    %9932 = vmatprep.subr.mxu0 0.0
    %9933 = vmatpush1.msra.mxu0 0.0
    %9934 = vmatprep.mubr.f32.mxu0 0.0
    %9935 = vmatmul.mubr.f32.gmra.mrb[0].mxu0 %v9868
    %v9936 = vpop.f32.mrb[0].mxu0
    %v9937 = vadd.f32 0.0, %v9936
    %v9938 = vpop.f32.mrb[0].mxu0
    %9939 = vdwg.mxu0
    %s9940 = scalar_lea.vmem [#allocation23], 448
    %v9941 = vld [vmem:[%s9940] sm:$0xff]
    %v9942 = vld [vmem:[%s9940 + $0x8] sm:$0xff]
    %v9943 = vld [vmem:[%s9940 + $0x10] sm:$0xff]
    %v9944 = vld [vmem:[%s9940 + $0x18] sm:$0xff]
    %v9945 = vld [vmem:[%s9940 + $0x20] sm:$0xff]
    %v9946 = vld [vmem:[%s9940 + $0x28] sm:$0xff]
    %v9947 = vld [vmem:[%s9940 + $0x30] sm:$0xff]
    %v9948 = vld [vmem:[%s9940 + $0x38] sm:$0xff]
    %v9950 = vsel %vm8723, %v9937, 0
    %9952 = vmatprep.subr.mxu0 0.0
    %9953 = vmatpush1.msra.mxu0 %v9941
    %9954 = vmatprep.subr.mxu0 0.0
    %9955 = vmatpush1.msra.mxu0 %v9942
    %9956 = vmatprep.subr.mxu0 0.0
    %9957 = vmatpush1.msra.mxu0 %v9943
    %9958 = vmatprep.subr.mxu0 0.0
    %9959 = vmatpush1.msra.mxu0 %v9944
    %9960 = vmatprep.subr.mxu0 0.0
    %9961 = vmatpush1.msra.mxu0 %v9945
    %9962 = vmatprep.subr.mxu0 0.0
    %9963 = vmatpush1.msra.mxu0 %v9946
    %9964 = vmatprep.subr.mxu0 0.0
    %9965 = vmatpush1.msra.mxu0 %v9947
    %9966 = vmatprep.subr.mxu0 0.0
    %9967 = vmatpush1.msra.mxu0 %v9948
    %9968 = vmatprep.subr.mxu0 0.0
    %9969 = vmatpush1.msra.mxu0 0.0
    %9970 = vmatprep.subr.mxu0 0.0
    %9971 = vmatpush1.msra.mxu0 0.0
    %9972 = vmatprep.subr.mxu0 0.0
    %9973 = vmatpush1.msra.mxu0 0.0
    %9974 = vmatprep.subr.mxu0 0.0
    %9975 = vmatpush1.msra.mxu0 0.0
    %9976 = vmatprep.subr.mxu0 0.0
    %9977 = vmatpush1.msra.mxu0 0.0
    %9978 = vmatprep.subr.mxu0 0.0
    %9979 = vmatpush1.msra.mxu0 0.0
    %9980 = vmatprep.subr.mxu0 0.0
    %9981 = vmatpush1.msra.mxu0 0.0
    %9982 = vmatprep.subr.mxu0 0.0
    %9983 = vmatpush1.msra.mxu0 0.0
    %9984 = vmatprep.subr.mxu0 0.0
    %9985 = vmatpush1.msra.mxu0 0.0
    %9986 = vmatprep.subr.mxu0 0.0
    %9987 = vmatpush1.msra.mxu0 0.0
    %9988 = vmatprep.subr.mxu0 0.0
    %9989 = vmatpush1.msra.mxu0 0.0
    %9990 = vmatprep.subr.mxu0 0.0
    %9991 = vmatpush1.msra.mxu0 0.0
    %9992 = vmatprep.subr.mxu0 0.0
    %9993 = vmatpush1.msra.mxu0 0.0
    %9994 = vmatprep.subr.mxu0 0.0
    %9995 = vmatpush1.msra.mxu0 0.0
    %9996 = vmatprep.subr.mxu0 0.0
    %9997 = vmatpush1.msra.mxu0 0.0
    %9998 = vmatprep.subr.mxu0 0.0
    %9999 = vmatpush1.msra.mxu0 0.0
    %10000 = vmatprep.subr.mxu0 0.0
    %10001 = vmatpush1.msra.mxu0 0.0
    %10002 = vmatprep.subr.mxu0 0.0
    %10003 = vmatpush1.msra.mxu0 0.0
    %10004 = vmatprep.subr.mxu0 0.0
    %10005 = vmatpush1.msra.mxu0 0.0
    %10006 = vmatprep.subr.mxu0 0.0
    %10007 = vmatpush1.msra.mxu0 0.0
    %10008 = vmatprep.subr.mxu0 0.0
    %10009 = vmatpush1.msra.mxu0 0.0
    %10010 = vmatprep.subr.mxu0 0.0
    %10011 = vmatpush1.msra.mxu0 0.0
    %10012 = vmatprep.subr.mxu0 0.0
    %10013 = vmatpush1.msra.mxu0 0.0
    %10014 = vmatprep.subr.mxu0 0.0
    %10015 = vmatpush1.msra.mxu0 0.0
    %10016 = vmatprep.mubr.f32.mxu0 0.0
    %10017 = vmatmul.mubr.f32.gmra.mrb[0].mxu0 %v9950
    %v10018 = vpop.f32.mrb[0].mxu0
    %v10019 = vadd.f32 0.0, %v10018
    %v10020 = vpop.f32.mrb[0].mxu0
    %10021 = vdwg.mxu0
    %v10022 = vadd.f32 %v9864, %v10019
    %s10023 = scalar_lea.vmem %s14, 16
    %v10024 = vld [vmem:[%s10023] sm:$0x3]
    %v10026 = vsel %vm8763, %v10024, 0
    %10028 = vmatprep.subr.mxu0 0.0
    %10029 = vmatpush1.msra.mxu0 %v8761
    %10030 = vmatprep.subr.mxu0 0.0
    %10031 = vmatpush1.msra.mxu0 0.0
    %10032 = vmatprep.subr.mxu0 0.0
    %10033 = vmatpush1.msra.mxu0 0.0
    %10034 = vmatprep.subr.mxu0 0.0
    %10035 = vmatpush1.msra.mxu0 0.0
    %10036 = vmatprep.subr.mxu0 0.0
    %10037 = vmatpush1.msra.mxu0 0.0
    %10038 = vmatprep.subr.mxu0 0.0
    %10039 = vmatpush1.msra.mxu0 0.0
    %10040 = vmatprep.subr.mxu0 0.0
    %10041 = vmatpush1.msra.mxu0 0.0
    %10042 = vmatprep.subr.mxu0 0.0
    %10043 = vmatpush1.msra.mxu0 0.0
    %10044 = vmatprep.subr.mxu0 0.0
    %10045 = vmatpush1.msra.mxu0 0.0
    %10046 = vmatprep.subr.mxu0 0.0
    %10047 = vmatpush1.msra.mxu0 0.0
    %10048 = vmatprep.subr.mxu0 0.0
    %10049 = vmatpush1.msra.mxu0 0.0
    %10050 = vmatprep.subr.mxu0 0.0
    %10051 = vmatpush1.msra.mxu0 0.0
    %10052 = vmatprep.subr.mxu0 0.0
    %10053 = vmatpush1.msra.mxu0 0.0
    %10054 = vmatprep.subr.mxu0 0.0
    %10055 = vmatpush1.msra.mxu0 0.0
    %10056 = vmatprep.subr.mxu0 0.0
    %10057 = vmatpush1.msra.mxu0 0.0
    %10058 = vmatprep.subr.mxu0 0.0
    %10059 = vmatpush1.msra.mxu0 0.0
    %10060 = vmatprep.subr.mxu0 0.0
    %10061 = vmatpush1.msra.mxu0 0.0
    %10062 = vmatprep.subr.mxu0 0.0
    %10063 = vmatpush1.msra.mxu0 0.0
    %10064 = vmatprep.subr.mxu0 0.0
    %10065 = vmatpush1.msra.mxu0 0.0
    %10066 = vmatprep.subr.mxu0 0.0
    %10067 = vmatpush1.msra.mxu0 0.0
    %10068 = vmatprep.subr.mxu0 0.0
    %10069 = vmatpush1.msra.mxu0 0.0
    %10070 = vmatprep.subr.mxu0 0.0
    %10071 = vmatpush1.msra.mxu0 0.0
    %10072 = vmatprep.subr.mxu0 0.0
    %10073 = vmatpush1.msra.mxu0 0.0
    %10074 = vmatprep.subr.mxu0 0.0
    %10075 = vmatpush1.msra.mxu0 0.0
    %10076 = vmatprep.subr.mxu0 0.0
    %10077 = vmatpush1.msra.mxu0 0.0
    %10078 = vmatprep.subr.mxu0 0.0
    %10079 = vmatpush1.msra.mxu0 0.0
    %10080 = vmatprep.subr.mxu0 0.0
    %10081 = vmatpush1.msra.mxu0 0.0
    %10082 = vmatprep.subr.mxu0 0.0
    %10083 = vmatpush1.msra.mxu0 0.0
    %10084 = vmatprep.subr.mxu0 0.0
    %10085 = vmatpush1.msra.mxu0 0.0
    %10086 = vmatprep.subr.mxu0 0.0
    %10087 = vmatpush1.msra.mxu0 0.0
    %10088 = vmatprep.subr.mxu0 0.0
    %10089 = vmatpush1.msra.mxu0 0.0
    %10090 = vmatprep.subr.mxu0 0.0
    %10091 = vmatpush1.msra.mxu0 0.0
    %10092 = vmatprep.mubr.f32.mxu0 0.0
    %10093 = vmatmul.mubr.f32.gmra.mrb[0].mxu0 %v10026
    %v10094 = vpop.f32.mrb[0].mxu0
    %v10095 = vadd.f32 0.0, %v10094
    %v10096 = vpop.f32.mrb[0].mxu0
    %10097 = vdwg.mxu0
    %s10098 = scalar_lea.vmem [#allocation23], 512
    %v10099 = vld [vmem:[%s10098] sm:$0xff]
    %v10100 = vld [vmem:[%s10098 + $0x8] sm:$0xff]
    %v10101 = vld [vmem:[%s10098 + $0x10] sm:$0xff]
    %v10102 = vld [vmem:[%s10098 + $0x18] sm:$0xff]
    %v10103 = vld [vmem:[%s10098 + $0x20] sm:$0xff]
    %v10104 = vld [vmem:[%s10098 + $0x28] sm:$0xff]
    %v10105 = vld [vmem:[%s10098 + $0x30] sm:$0xff]
    %v10106 = vld [vmem:[%s10098 + $0x38] sm:$0xff]
    %v10108 = vsel %vm8723, %v10095, 0
    %10110 = vmatprep.subr.mxu0 0.0
    %10111 = vmatpush1.msra.mxu0 %v10099
    %10112 = vmatprep.subr.mxu0 0.0
    %10113 = vmatpush1.msra.mxu0 %v10100
    %10114 = vmatprep.subr.mxu0 0.0
    %10115 = vmatpush1.msra.mxu0 %v10101
    %10116 = vmatprep.subr.mxu0 0.0
    %10117 = vmatpush1.msra.mxu0 %v10102
    %10118 = vmatprep.subr.mxu0 0.0
    %10119 = vmatpush1.msra.mxu0 %v10103
    %10120 = vmatprep.subr.mxu0 0.0
    %10121 = vmatpush1.msra.mxu0 %v10104
    %10122 = vmatprep.subr.mxu0 0.0
    %10123 = vmatpush1.msra.mxu0 %v10105
    %10124 = vmatprep.subr.mxu0 0.0
    %10125 = vmatpush1.msra.mxu0 %v10106
    %10126 = vmatprep.subr.mxu0 0.0
    %10127 = vmatpush1.msra.mxu0 0.0
    %10128 = vmatprep.subr.mxu0 0.0
    %10129 = vmatpush1.msra.mxu0 0.0
    %10130 = vmatprep.subr.mxu0 0.0
    %10131 = vmatpush1.msra.mxu0 0.0
    %10132 = vmatprep.subr.mxu0 0.0
    %10133 = vmatpush1.msra.mxu0 0.0
    %10134 = vmatprep.subr.mxu0 0.0
    %10135 = vmatpush1.msra.mxu0 0.0
    %10136 = vmatprep.subr.mxu0 0.0
    %10137 = vmatpush1.msra.mxu0 0.0
    %10138 = vmatprep.subr.mxu0 0.0
    %10139 = vmatpush1.msra.mxu0 0.0
    %10140 = vmatprep.subr.mxu0 0.0
    %10141 = vmatpush1.msra.mxu0 0.0
    %10142 = vmatprep.subr.mxu0 0.0
    %10143 = vmatpush1.msra.mxu0 0.0
    %10144 = vmatprep.subr.mxu0 0.0
    %10145 = vmatpush1.msra.mxu0 0.0
    %10146 = vmatprep.subr.mxu0 0.0
    %10147 = vmatpush1.msra.mxu0 0.0
    %10148 = vmatprep.subr.mxu0 0.0
    %10149 = vmatpush1.msra.mxu0 0.0
    %10150 = vmatprep.subr.mxu0 0.0
    %10151 = vmatpush1.msra.mxu0 0.0
    %10152 = vmatprep.subr.mxu0 0.0
    %10153 = vmatpush1.msra.mxu0 0.0
    %10154 = vmatprep.subr.mxu0 0.0
    %10155 = vmatpush1.msra.mxu0 0.0
    %10156 = vmatprep.subr.mxu0 0.0
    %10157 = vmatpush1.msra.mxu0 0.0
    %10158 = vmatprep.subr.mxu0 0.0
    %10159 = vmatpush1.msra.mxu0 0.0
    %10160 = vmatprep.subr.mxu0 0.0
    %10161 = vmatpush1.msra.mxu0 0.0
    %10162 = vmatprep.subr.mxu0 0.0
    %10163 = vmatpush1.msra.mxu0 0.0
    %10164 = vmatprep.subr.mxu0 0.0
    %10165 = vmatpush1.msra.mxu0 0.0
    %10166 = vmatprep.subr.mxu0 0.0
    %10167 = vmatpush1.msra.mxu0 0.0
    %10168 = vmatprep.subr.mxu0 0.0
    %10169 = vmatpush1.msra.mxu0 0.0
    %10170 = vmatprep.subr.mxu0 0.0
    %10171 = vmatpush1.msra.mxu0 0.0
    %10172 = vmatprep.subr.mxu0 0.0
    %10173 = vmatpush1.msra.mxu0 0.0
    %10174 = vmatprep.mubr.f32.mxu0 0.0
    %10175 = vmatmul.mubr.f32.gmra.mrb[0].mxu0 %v10108
    %v10176 = vpop.f32.mrb[0].mxu0
    %v10177 = vadd.f32 0.0, %v10176
    %v10178 = vpop.f32.mrb[0].mxu0
    %10179 = vdwg.mxu0
    %v10180 = vadd.f32 %v10022, %v10177
    %v10181 = vld [vmem:[#allocation25] sm:$0x1]
    %v10183 = vlaneseq
    %v10184 = vshrl.u32 %v10183, 7
    %v10185 = vsub.s32 0, %v10184
    %v10186 = vrot.slane %v10181, %v10185
    %v10188 = vadd.f32 %v10180, %v10186
    %vm10189 = vcmp.ge.f32.partialorder %v10188, 0.0
    %v10190 = vmul.f32 %v10188, 0.2
    %v10191 = vsel %vm10189, %v10188, %v10190
    %vm10192 = vcmask 1041408
    %v10193 = vsel %vm10192, %v10191, 0.0
    %v10194 = vrot.slane %v10193, 4
    %v10195 = vadd.f32 %v10193, %v10194
    %v10196 = vrot.slane %v10195, 2
    %v10197 = vadd.f32 %v10195, %v10196
    %v10198 = vrot.slane %v10197, 1
    %v10199 = vadd.f32 %v10197, %v10198
    %v10200 = vrcp.pop 2.0
    %v10201 = vmul.f32 %v10199, %v10200
    %v10202 = vsub.f32 %v10191, %v10201
    %v10203 = vmul.f32 %v10202, %v10202
    %v10204 = vsel %vm10192, %v10203, 0.0
    %v10205 = vrot.slane %v10204, 4
    %v10206 = vadd.f32 %v10204, %v10205
    %v10207 = vrot.slane %v10206, 2
    %v10208 = vadd.f32 %v10206, %v10207
    %v10209 = vrot.slane %v10208, 1
    %v10210 = vadd.f32 %v10208, %v10209
    %v10211 = vmul.f32 %v10210, %v10200
    %v10212 = vadd.f32 %v10211, 1e-05
    %v10213 = vrsqrt.pop %v10212
    %v10214 = vmul.f32 %v10202, %v10213
    %v10215 = vld [vmem:[#allocation26] sm:$0x1]
    %v10217 = vlaneseq
    %v10218 = vshrl.u32 %v10217, 7
    %v10219 = vsub.s32 0, %v10218
    %v10220 = vrot.slane %v10215, %v10219
    %v10222 = vmul.f32 %v10214, %v10220
    %v10223 = vld [vmem:[#allocation28] sm:$0x1]
    %v10225 = vlaneseq
    %v10226 = vshrl.u32 %v10225, 7
    %v10227 = vsub.s32 0, %v10226
    %v10228 = vrot.slane %v10223, %v10227
    %v10230 = vadd.f32 %v10222, %v10228
    %v10231 = vld [vmem:[%s19] sm:$0xff]
    %v10232 = vld [vmem:[%s19 + $0x8] sm:$0xff]
    %v10233 = vld [vmem:[%s19 + $0x10] sm:$0xff]
    %v10234 = vld [vmem:[%s19 + $0x18] sm:$0xff]
    %v10235 = vld [vmem:[%s19 + $0x20] sm:$0xff]
    %v10236 = vld [vmem:[%s19 + $0x28] sm:$0xff]
    %v10237 = vld [vmem:[%s19 + $0x30] sm:$0xff]
    %v10238 = vld [vmem:[%s19 + $0x38] sm:$0xff]
    %v10239 = vld [vmem:[%s19 + $0x40] sm:$0xff]
    %v10240 = vld [vmem:[%s19 + $0x48] sm:$0xff]
    %v10241 = vld [vmem:[%s19 + $0x50] sm:$0xff]
    %v10242 = vld [vmem:[%s19 + $0x58] sm:$0xff]
    %v10243 = vld [vmem:[%s19 + $0x60] sm:$0xff]
    %v10244 = vld [vmem:[%s19 + $0x68] sm:$0xff]
    %v10245 = vld [vmem:[%s19 + $0x70] sm:$0xff]
    %v10246 = vld [vmem:[%s19 + $0x78] sm:$0xff]
    %v10247 = vld [vmem:[#allocation2] sm:$0x1]
    %v10249 = vlaneseq
    %v10250 = vshrl.u32 %v10249, 7
    %v10251 = vsub.s32 0, %v10250
    %v10252 = vrot.slane %v10247, %v10251
    %10254 = vmatprep.subr.mxu0 0.0
    %10255 = vmatpush1.msra.mxu0 %v10231
    %10256 = vmatprep.subr.mxu0 0.0
    %10257 = vmatpush1.msra.mxu0 %v10232
    %10258 = vmatprep.subr.mxu0 0.0
    %10259 = vmatpush1.msra.mxu0 %v10233
    %10260 = vmatprep.subr.mxu0 0.0
    %10261 = vmatpush1.msra.mxu0 %v10234
    %10262 = vmatprep.subr.mxu0 0.0
    %10263 = vmatpush1.msra.mxu0 %v10235
    %10264 = vmatprep.subr.mxu0 0.0
    %10265 = vmatpush1.msra.mxu0 %v10236
    %10266 = vmatprep.subr.mxu0 0.0
    %10267 = vmatpush1.msra.mxu0 %v10237
    %10268 = vmatprep.subr.mxu0 0.0
    %10269 = vmatpush1.msra.mxu0 %v10238
    %10270 = vmatprep.subr.mxu0 0.0
    %10271 = vmatpush1.msra.mxu0 %v10239
    %10272 = vmatprep.subr.mxu0 0.0
    %10273 = vmatpush1.msra.mxu0 %v10240
    %10274 = vmatprep.subr.mxu0 0.0
    %10275 = vmatpush1.msra.mxu0 %v10241
    %10276 = vmatprep.subr.mxu0 0.0
    %10277 = vmatpush1.msra.mxu0 %v10242
    %10278 = vmatprep.subr.mxu0 0.0
    %10279 = vmatpush1.msra.mxu0 %v10243
    %10280 = vmatprep.subr.mxu0 0.0
    %10281 = vmatpush1.msra.mxu0 %v10244
    %10282 = vmatprep.subr.mxu0 0.0
    %10283 = vmatpush1.msra.mxu0 %v10245
    %10284 = vmatprep.subr.mxu0 0.0
    %10285 = vmatpush1.msra.mxu0 %v10246
    %10286 = vmatprep.subr.mxu0 0.0
    %10287 = vmatpush1.msra.mxu0 0.0
    %10288 = vmatprep.subr.mxu0 0.0
    %10289 = vmatpush1.msra.mxu0 0.0
    %10290 = vmatprep.subr.mxu0 0.0
    %10291 = vmatpush1.msra.mxu0 0.0
    %10292 = vmatprep.subr.mxu0 0.0
    %10293 = vmatpush1.msra.mxu0 0.0
    %10294 = vmatprep.subr.mxu0 0.0
    %10295 = vmatpush1.msra.mxu0 0.0
    %10296 = vmatprep.subr.mxu0 0.0
    %10297 = vmatpush1.msra.mxu0 0.0
    %10298 = vmatprep.subr.mxu0 0.0
    %10299 = vmatpush1.msra.mxu0 0.0
    %10300 = vmatprep.subr.mxu0 0.0
    %10301 = vmatpush1.msra.mxu0 0.0
    %10302 = vmatprep.subr.mxu0 0.0
    %10303 = vmatpush1.msra.mxu0 0.0
    %10304 = vmatprep.subr.mxu0 0.0
    %10305 = vmatpush1.msra.mxu0 0.0
    %10306 = vmatprep.subr.mxu0 0.0
    %10307 = vmatpush1.msra.mxu0 0.0
    %10308 = vmatprep.subr.mxu0 0.0
    %10309 = vmatpush1.msra.mxu0 0.0
    %10310 = vmatprep.subr.mxu0 0.0
    %10311 = vmatpush1.msra.mxu0 0.0
    %10312 = vmatprep.subr.mxu0 0.0
    %10313 = vmatpush1.msra.mxu0 0.0
    %10314 = vmatprep.subr.mxu0 0.0
    %10315 = vmatpush1.msra.mxu0 0.0
    %10316 = vmatprep.subr.mxu0 0.0
    %10317 = vmatpush1.msra.mxu0 0.0
    %10318 = vmatprep.mubr.f32.mxu0 0.0
    %10319 = vmatmul.mubr.f32.gmra.mrb[0].mxu0 %v10230
    %v10320 = vpop.f32.mrb[0].mxu0
    %v10321 = vadd.f32 %v10252, %v10320
    %v10322 = vpop.f32.mrb[0].mxu0
    %10323 = vdwg.mxu0
    %vm10324 = vcmask 1024
    %10325 = vst.msk [vmem:[%s21] sm:$0x3] %vm10324, %v10321
    // Predicated region
    $region154: #{discriminator_forward.1} parent=1 // pred_check
      _
    $region155: #{discriminator_forward.1} parent=1 // pred_check_branch
      %10327 = sbr.rel (0) target = $region157
    $region156: #{discriminator_forward.1} parent=1 // pred_region
      _
    $region157: #{discriminator_forward.1} parent=1 // pred_fallthru
      _
    // Predicated region
    $region158: #{discriminator_forward.1} parent=1 // pred_check
      _
    $region159: #{discriminator_forward.1} parent=1 // pred_check_branch
      %10329 = sbr.rel (0) target = $region161
    $region160: #{discriminator_forward.1} parent=1 // pred_region
      _
    $region161: #{discriminator_forward.1} parent=1 // pred_fallthru
      _
    %10330 = vsyncpa [#allocation4], 1
    %10331 = vsyncpa [#allocation6], 1
    %10332 = vsyncpa [#allocation9], 1
    %10333 = vsyncpa [#allocation12], 1
    %10334 = vsyncpa [#allocation15], 1
    %10335 = vsyncpa [#allocation18], 1
    %10336 = vsyncpa [#allocation21], 1
    %10337 = vsyncpa [#allocation24], 1
    %10338 = vsyncpa [#allocation27], 1

</llo_original>
